<compile_context>
chip_gen: v7x
topology: tpu7x:2x2x1
jax: 0.10.0
libtpu: 0.0.40
codegen_flags: <defaults>
</compile_context>

<pallas_src>
import functools

import jax
import jax.numpy as jnp
from jax.experimental import pallas as pl
from jax.experimental.pallas import tpu as pltpu

EPS = 1e-5


def _round_up(x, m):
    return (x + m - 1) // m * m


# --------------------------------------------------------------------------- #
# Kernel 1: conv-as-matmul (bf16 MXU, f32 accumulation) + fused BN partial stats
# --------------------------------------------------------------------------- #
def _conv_stats_kernel(a_ref, w_ref, o_ref, stats_ref, acc_ref, *, m_total, tm):
    k = pl.program_id(1)
    nk = pl.num_programs(1)

    @pl.when(k == 0)
    def _():
        acc_ref[...] = jnp.zeros_like(acc_ref)

    acc_ref[...] += jnp.dot(a_ref[...], w_ref[...],
                            preferred_element_type=jnp.float32)

    @pl.when(k == nk - 1)
    def _():
        acc = acc_ref[...]
        o_ref[...] = acc.astype(o_ref.dtype)
        if m_total % tm != 0:
            # Ragged last M tile: mask invalid rows out of the BN statistics.
            valid = m_total - pl.program_id(0) * tm
            row = jax.lax.broadcasted_iota(jnp.int32, acc.shape, 0)
            acc = jnp.where(row < valid, acc, 0.0)
        stats_ref[0, 0:1, :] = jnp.sum(acc, axis=0, keepdims=True)
        stats_ref[0, 1:2, :] = jnp.sum(acc * acc, axis=0, keepdims=True)


def conv_bn_stats(patches, w_mat, *, out_dtype=jnp.bfloat16, tm=512):
    """out = patches @ w_mat with f32 accumulation, plus batch mean/var of out.

    patches: (M, K) bf16, w_mat: (K, Cp) bf16 with Cp % 128 == 0 (lane dense).
    Returns (out (M, Cp) out_dtype, mean (Cp,) f32, var (Cp,) f32).
    """
    M, K = patches.shape
    Kw, Cp = w_mat.shape
    assert K == Kw and Cp % 128 == 0

    tm = min(tm, M)
    if tm != M:
        tm = max(8, (tm // 8) * 8)
    nm = pl.cdiv(M, tm)

    # K tiling only for very large reduction dims (deep ResNet layers).
    tk = K
    if K > 2048:
        for f in range(2, 65):
            if K % f == 0 and K // f <= 2048 and (K // f) % 128 == 0:
                tk = K // f
                break
    nk = K // tk

    kernel = functools.partial(_conv_stats_kernel, m_total=M, tm=tm)
    out, stats = pl.pallas_call(
        kernel,
        out_shape=(jax.ShapeDtypeStruct((M, Cp), out_dtype),
                   jax.ShapeDtypeStruct((nm, 2, Cp), jnp.float32)),
        grid=(nm, nk),
        in_specs=[
            pl.BlockSpec((tm, tk), lambda i, k: (i, k)),
            pl.BlockSpec((tk, Cp), lambda i, k: (k, 0)),
        ],
        out_specs=(
            pl.BlockSpec((tm, Cp), lambda i, k: (i, 0)),
            pl.BlockSpec((1, 2, Cp), lambda i, k: (i, 0, 0)),
        ),
        scratch_shapes=[pltpu.VMEM((tm, Cp), jnp.float32)],
        compiler_params=pltpu.CompilerParams(
            dimension_semantics=("parallel", "arbitrary")),
    )(patches, w_mat)

    ssum = jnp.sum(stats[:, 0, :], axis=0)
    ssq = jnp.sum(stats[:, 1, :], axis=0)
    mean = ssum / M
    var = jnp.maximum(ssq / M - mean * mean, 0.0)   # biased (training-mode) var
    return out, mean, var


# --------------------------------------------------------------------------- #
# Kernel 2: tiled affine (+ residual-affine) (+ ReLU)  — BN phase 2 / epilogue
# --------------------------------------------------------------------------- #
def _affine_kernel(*refs, relu, has_res):
    if has_res:
        x_ref, s_ref, t_ref, r_ref, rs_ref, rt_ref, o_ref = refs
    else:
        x_ref, s_ref, t_ref, o_ref = refs
    y = x_ref[...].astype(jnp.float32) * s_ref[...] + t_ref[...]
    if has_res:
        y = y + r_ref[...].astype(jnp.float32) * rs_ref[...] + rt_ref[...]
    if relu:
        y = jnp.maximum(y, 0.0)
    o_ref[...] = y.astype(o_ref.dtype)


def affine_pallas(x, scale, shift, *, relu, residual=None, rscale=None,
                  rshift=None, out_dtype=jnp.float32, tm=1024):
    """Tiled y = x*scale + shift [+ residual*rscale + rshift] [ReLU]."""
    M, Cp = x.shape
    tm = min(tm, M)
    if tm != M:
        tm = max(8, (tm // 8) * 8)
    nm = pl.cdiv(M, tm)

    vec = lambda v: v.reshape(1, Cp).astype(jnp.float32)
    inputs = [x, vec(scale), vec(shift)]
    in_specs = [pl.BlockSpec((tm, Cp), lambda i: (i, 0)),
                pl.BlockSpec((1, Cp), lambda i: (0, 0)),
                pl.BlockSpec((1, Cp), lambda i: (0, 0))]
    has_res = residual is not None
    if has_res:
        assert residual.shape == (M, Cp)
        inputs += [residual, vec(rscale), vec(rshift)]
        in_specs += [pl.BlockSpec((tm, Cp), lambda i: (i, 0)),
                     pl.BlockSpec((1, Cp), lambda i: (0, 0)),
                     pl.BlockSpec((1, Cp), lambda i: (0, 0))]

    kernel = functools.partial(_affine_kernel, relu=relu, has_res=has_res)
    return pl.pallas_call(
        kernel,
        out_shape=jax.ShapeDtypeStruct((M, Cp), out_dtype),
        grid=(nm,),
        in_specs=in_specs,
        out_specs=pl.BlockSpec((tm, Cp), lambda i: (i, 0)),
        compiler_params=pltpu.CompilerParams(dimension_semantics=("parallel",)),
    )(*inputs)


# --------------------------------------------------------------------------- #
# Plain-JAX glue: im2col patch extraction (bf16), weight packing, BN coeffs
# --------------------------------------------------------------------------- #
def im2col(x_nhwc, kh, kw, stride, pad, dtype=jnp.bfloat16):
    """(N,H,W,C) -> patches (N*Ho*Wo, kh*kw*C), K ordered (kh, kw, c)."""
    N, H, W, C = x_nhwc.shape
    xp = jnp.pad(x_nhwc, ((0, 0), (pad, pad), (pad, pad), (0, 0))) if pad else x_nhwc
    Ho = (H + 2 * pad - kh) // stride + 1
    Wo = (W + 2 * pad - kw) // stride + 1
    cols = []
    for i in range(kh):
        for j in range(kw):
            cols.append(xp[:, i:i + (Ho - 1) * stride + 1:stride,
                            j:j + (Wo - 1) * stride + 1:stride, :])
    patches = jnp.stack(cols, axis=3)               # (N, Ho, Wo, kh*kw, C)
    return patches.reshape(N * Ho * Wo, kh * kw * C).astype(dtype), (N, Ho, Wo)


def w_to_mat_padded(w_oihw, cin_p, cout_p, dtype=jnp.bfloat16):
    """(Cout,Cin,kh,kw) -> (kh*kw*cin_p, cout_p) bf16, zero-padded channels."""
    co, ci, kh, kw = w_oihw.shape
    w = jnp.transpose(w_oihw, (2, 3, 1, 0))         # (kh, kw, ci, co)
    w = jnp.pad(w, ((0, 0), (0, 0), (0, cin_p - ci), (0, cout_p - co)))
    return w.reshape(kh * kw * cin_p, cout_p).astype(dtype)


def _pad_channels(v, cp, fill):
    c = v.shape[0]
    if c == cp:
        return v.astype(jnp.float32)
    return jnp.concatenate(
        [v.astype(jnp.float32), jnp.full((cp - c,), fill, jnp.float32)])


def bn_scale_shift(mean, var, gamma, beta, eps=EPS):
    scale = gamma * jax.lax.rsqrt(var + eps)
    return scale, beta - mean * scale


# --------------------------------------------------------------------------- #
# ResidualBlock forward
# --------------------------------------------------------------------------- #
def residual_block_forward_nhwc(x, params, cin, cout, stride):
    """x: (N,H,W,cin) f32 -> (N,Ho,Wo,cout) f32 (training-mode BN semantics)."""
    Cp = _round_up(cout, 128)                        # lane-dense output channels

    # conv1 (3x3, stride) : MXU matmul + fused BN1 partial statistics
    p1, (N, Ho, Wo) = im2col(x, 3, 3, stride, 1)
    M = N * Ho * Wo
    y1, mean1, var1 = conv_bn_stats(p1, w_to_mat_padded(params["w1"], cin, Cp))
    s1, t1 = bn_scale_shift(mean1, var1,
                            _pad_channels(params["g1"], Cp, 1.0),
                            _pad_channels(params["b1"], Cp, 0.0))
    # BN1 normalize + ReLU (tiled); bf16 output feeds conv2 directly
    y1n = affine_pallas(y1, s1, t1, relu=True, out_dtype=jnp.bfloat16)

    # conv2 (3x3, stride 1) : MXU matmul + fused BN2 partial statistics
    p2, _ = im2col(y1n.reshape(N, Ho, Wo, Cp), 3, 3, 1, 1)
    y2, mean2, var2 = conv_bn_stats(p2, w_to_mat_padded(params["w2"], Cp, Cp))
    s2, t2 = bn_scale_shift(mean2, var2,
                            _pad_channels(params["g2"], Cp, 1.0),
                            _pad_channels(params["b2"], Cp, 0.0))

    # shortcut
    if stride != 1 or cin != cout:
        ps, _ = im2col(x, 1, 1, stride, 0)           # 1x1 conv: strided subsample
        res, means, vars_ = conv_bn_stats(ps, w_to_mat_padded(params["ws"], cin, Cp))
        rs, rt = bn_scale_shift(means, vars_,
                                _pad_channels(params["gs"], Cp, 1.0),
                                _pad_channels(params["bs"], Cp, 0.0))
    else:
        res = x.reshape(M, cin)                      # identity shortcut (f32, exact)
        if cin < Cp:
            res = jnp.pad(res, ((0, 0), (0, Cp - cin)))
        rs = jnp.ones((Cp,), jnp.float32)
        rt = jnp.zeros((Cp,), jnp.float32)

    # BN2 + shortcut-BN + residual add + final ReLU — one fused tiled pass
    out = affine_pallas(y2, s2, t2, relu=True, residual=res, rscale=rs, rshift=rt)
    return out[:, :cout].reshape(N, Ho, Wo, cout)


@functools.partial(jax.jit, static_argnames=("cin", "cout", "stride"))
def residual_block_forward(x_nchw, params, *, cin, cout, stride):
    # NCHW <-> NHWC conversion happens once at the module boundary; a full
    # network should stay NHWC and call residual_block_forward_nhwc directly.
    x = jnp.transpose(x_nchw, (0, 2, 3, 1)).astype(jnp.float32)
    out = residual_block_forward_nhwc(x, params, cin, cout, stride)
    return jnp.transpose(out, (0, 3, 1, 2))


# --------------------------------------------------------------------------- #
# Pure-JAX f32 reference (PyTorch training-mode semantics) for verification
# --------------------------------------------------------------------------- #
def reference_forward(x, params, cin, cout, stride):
    def conv(x, w, s, p):
        return jax.lax.conv_general_dilated(
            x, w, (s, s), [(p, p), (p, p)],
            dimension_numbers=("NCHW", "OIHW", "NCHW"))

    def bn(x, g, b, eps=EPS):
        mean = jnp.mean(x, axis=(0, 2, 3), keepdims=True)
        var = jnp.mean((x - mean) ** 2, axis=(0, 2, 3), keepdims=True)
        xhat = (x - mean) * jax.lax.rsqrt(var + eps)
        return xhat * g.reshape(1, -1, 1, 1) + b.reshape(1, -1, 1, 1)

    out = jnp.maximum(bn(conv(x, params["w1"], stride, 1), params["g1"], params["b1"]), 0.0)
    out = bn(conv(out, params["w2"], 1, 1), params["g2"], params["b2"])
    if stride != 1 or cin != cout:
        sc = bn(conv(x, params["ws"], stride, 0), params["gs"], params["bs"])
    else:
        sc = x
    return jnp.maximum(out + sc, 0.0)


def init_params(key, cin, cout, stride):
    ks = jax.random.split(key, 8)
    p = {
        "w1": 0.1 * jax.random.normal(ks[0], (cout, cin, 3, 3), jnp.float32),
        "g1": 1.0 + 0.1 * jax.random.normal(ks[1], (cout,), jnp.float32),
        "b1": 0.1 * jax.random.normal(ks[2], (cout,), jnp.float32),
        "w2": 0.1 * jax.random.normal(ks[3], (cout, cout, 3, 3), jnp.float32),
        "g2": 1.0 + 0.1 * jax.random.normal(ks[4], (cout,), jnp.float32),
        "b2": 0.1 * jax.random.normal(ks[5], (cout,), jnp.float32),
    }
    if stride != 1 or cin != cout:
        p["ws"] = 0.1 * jax.random.normal(ks[6], (cout, cin, 1, 1), jnp.float32)
        p["gs"] = 1.0 + 0.05 * jax.random.normal(ks[7], (cout,), jnp.float32)
        p["bs"] = jnp.full((cout,), 0.05, jnp.float32)
    return p


if __name__ == "__main__":
    key = jax.random.PRNGKey(0)
    kx, kp1, kp2 = jax.random.split(key, 3)
    x = jax.random.normal(kx, (2, 4, 16, 16), jnp.float32)     # NCHW, like PyTorch

    # bf16 MXU operands (f32 accumulation) -> relaxed tolerance vs f32 reference.
    ATOL = RTOL = 5e-2

    # Case 1: identity shortcut (stride=1, inchannel == outchannel)
    cin, cout, stride = 4, 4, 1
    params1 = init_params(kp1, cin, cout, stride)
    out1 = jax.block_until_ready(
        residual_block_forward(x, params1, cin=cin, cout=cout, stride=stride))
    ref1 = reference_forward(x, params1, cin, cout, stride)
    assert out1.shape == (2, 4, 16, 16)
    err1 = float(jnp.max(jnp.abs(out1 - ref1)))
    assert jnp.allclose(out1, ref1, atol=ATOL, rtol=RTOL), err1

    # Case 2: projection shortcut (stride=2, inchannel != outchannel)
    cin, cout, stride = 4, 8, 2
    params2 = init_params(kp2, cin, cout, stride)
    out2 = jax.block_until_ready(
        residual_block_forward(x, params2, cin=cin, cout=cout, stride=stride))
    ref2 = reference_forward(x, params2, cin, cout, stride)
    assert out2.shape == (2, 8, 8, 8)
    err2 = float(jnp.max(jnp.abs(out2 - ref2)))
    assert jnp.allclose(out2, ref2, atol=ATOL, rtol=RTOL), err2

    print("KERNEL_OK")
</pallas_src>

<mosaic_0001>
module attributes {stable_mosaic.version = 11 : i64} {
  func.func @_conv_stats_kernel(%arg0: i32, %arg1: i32, %arg2: memref<512x36xbf16, #tpu.memory_space<vmem>>, %arg3: memref<36x128xbf16, #tpu.memory_space<vmem>>, %arg4: memref<512x128xbf16, #tpu.memory_space<vmem>>, %arg5: memref<1x2x128xf32, #tpu.memory_space<vmem>>, %arg6: memref<512x128xf32, #tpu.memory_space<vmem>>) attributes {dimension_semantics = [#tpu.dimension_semantics<parallel>, #tpu.dimension_semantics<arbitrary>], iteration_bounds = array<i64: 1, 1>, scalar_prefetch = 0 : i64, scratch_operands = 1 : i64, tpu.core_type = #tpu.core_type<tc>, window_params = [{transform_indices = @transform_0, window_bounds = array<i64: 512, 36>}, {transform_indices = @transform_1, window_bounds = array<i64: 36, 128>}, {transform_indices = @transform_2, window_bounds = array<i64: 512, 128>}, {transform_indices = @transform_3, window_bounds = array<i64: 1, 2, 128>}]} {
    %c0_i32 = arith.constant 0 : i32
    %0 = arith.cmpi eq, %arg1, %c0_i32 : i32
    %1 = arith.extui %0 : i1 to i32
    %c0_i32_0 = arith.constant 0 : i32
    %2 = arith.cmpi ne, %1, %c0_i32_0 : i32
    scf.if %2 {
      %cst_10 = arith.constant 0.000000e+00 : f32
      %12 = vector.broadcast %cst_10 : f32 to vector<512x128xf32>
      %c0_11 = arith.constant 0 : index
      %c0_12 = arith.constant 0 : index
      %13 = vector.load %arg6[%c0_11, %c0_12] : memref<512x128xf32, #tpu.memory_space<vmem>>, vector<512x128xf32>
      tpu.vector_store %arg6[%c0_11, %c0_12], %12 {strides = array<i32>} : memref<512x128xf32, #tpu.memory_space<vmem>>, vector<512x128xf32>,
    } else {
    }
    %c0 = arith.constant 0 : index
    %c0_1 = arith.constant 0 : index
    %3 = vector.load %arg6[%c0, %c0_1] : memref<512x128xf32, #tpu.memory_space<vmem>>, vector<512x128xf32>
    %c0_2 = arith.constant 0 : index
    %c0_3 = arith.constant 0 : index
    %4 = vector.load %arg2[%c0_2, %c0_3] : memref<512x36xbf16, #tpu.memory_space<vmem>>, vector<512x36xbf16>
    %c0_4 = arith.constant 0 : index
    %c0_5 = arith.constant 0 : index
    %5 = vector.load %arg3[%c0_4, %c0_5] : memref<36x128xbf16, #tpu.memory_space<vmem>>, vector<36x128xbf16>
    %cst = arith.constant dense<0.000000e+00> : vector<512x128xf32>
    %6 = tpu.matmul %4, %5, %cst {dimension_numbers = #tpu.dot_dimension_numbers<[1], [0], [0], [1], [0, 0, 1, 1], [], []>} : vector<512x36xbf16>, vector<36x128xbf16>, vector<512x128xf32> -> vector<512x128xf32>
    %7 = arith.addf %3, %6 : vector<512x128xf32>
    %c0_6 = arith.constant 0 : index
    %c0_7 = arith.constant 0 : index
    %8 = vector.load %arg6[%c0_6, %c0_7] : memref<512x128xf32, #tpu.memory_space<vmem>>, vector<512x128xf32>
    tpu.vector_store %arg6[%c0_6, %c0_7], %7 {strides = array<i32>} : memref<512x128xf32, #tpu.memory_space<vmem>>, vector<512x128xf32>,
    %c0_i32_8 = arith.constant 0 : i32
    %9 = arith.cmpi eq, %arg1, %c0_i32_8 : i32
    %10 = arith.extui %9 : i1 to i32
    %c0_i32_9 = arith.constant 0 : i32
    %11 = arith.cmpi ne, %10, %c0_i32_9 : i32
    scf.if %11 {
      %c0_10 = arith.constant 0 : index
      %c0_11 = arith.constant 0 : index
      %12 = vector.load %arg6[%c0_10, %c0_11] : memref<512x128xf32, #tpu.memory_space<vmem>>, vector<512x128xf32>
      %13 = arith.truncf %12 : vector<512x128xf32> to vector<512x128xbf16>
      %c0_12 = arith.constant 0 : index
      %c0_13 = arith.constant 0 : index
      %14 = vector.load %arg4[%c0_12, %c0_13] : memref<512x128xbf16, #tpu.memory_space<vmem>>, vector<512x128xbf16>
      tpu.vector_store %arg4[%c0_12, %c0_13], %13 {strides = array<i32>} : memref<512x128xbf16, #tpu.memory_space<vmem>>, vector<512x128xbf16>,
      %cst_14 = arith.constant dense<0.000000e+00> : vector<128xf32>
      %15 = vector.multi_reduction <add>, %12, %cst_14 [0] : vector<512x128xf32> to vector<128xf32>
      %16 = vector.shape_cast %15 : vector<128xf32> to vector<1x128xf32>
      %c0_15 = arith.constant 0 : index
      %c0_16 = arith.constant 0 : index
      %c0_17 = arith.constant 0 : index
      %17 = vector.load %arg5[%c0_15, %c0_16, %c0_17] : memref<1x2x128xf32, #tpu.memory_space<vmem>>, vector<1x1x128xf32>
      %18 = vector.shape_cast %17 : vector<1x1x128xf32> to vector<1x128xf32>
      %19 = vector.shape_cast %16 : vector<1x128xf32> to vector<1x1x128xf32>
      tpu.vector_store %arg5[%c0_15, %c0_16, %c0_17], %19 {strides = array<i32>} : memref<1x2x128xf32, #tpu.memory_space<vmem>>, vector<1x1x128xf32>,
      %20 = arith.mulf %12, %12 : vector<512x128xf32>
      %cst_18 = arith.constant dense<0.000000e+00> : vector<128xf32>
      %21 = vector.multi_reduction <add>, %20, %cst_18 [0] : vector<512x128xf32> to vector<128xf32>
      %22 = vector.shape_cast %21 : vector<128xf32> to vector<1x128xf32>
      %c0_19 = arith.constant 0 : index
      %c1 = arith.constant 1 : index
      %c0_20 = arith.constant 0 : index
      %23 = vector.load %arg5[%c0_19, %c1, %c0_20] : memref<1x2x128xf32, #tpu.memory_space<vmem>>, vector<1x1x128xf32>
      %24 = vector.shape_cast %23 : vector<1x1x128xf32> to vector<1x128xf32>
      %25 = vector.shape_cast %22 : vector<1x128xf32> to vector<1x1x128xf32>
      tpu.vector_store %arg5[%c0_19, %c1, %c0_20], %25 {strides = array<i32>} : memref<1x2x128xf32, #tpu.memory_space<vmem>>, vector<1x1x128xf32>,
    } else {
    }
    return
  }
  func.func @transform_0(%arg0: i32, %arg1: i32) -> (i32, i32) {
    %c0_i32 = arith.constant 0 : i32
    return %arg0, %arg1 : i32, i32
  }
  func.func @transform_1(%arg0: i32, %arg1: i32) -> (i32, i32) {
    %c0_i32 = arith.constant 0 : i32
    %c0_i32_0 = arith.constant 0 : i32
    return %arg1, %c0_i32 : i32, i32
  }
  func.func @transform_2(%arg0: i32, %arg1: i32) -> (i32, i32) {
    %c0_i32 = arith.constant 0 : i32
    %c0_i32_0 = arith.constant 0 : i32
    return %arg0, %c0_i32 : i32, i32
  }
  func.func @transform_3(%arg0: i32, %arg1: i32) -> (i32, i32, i32) {
    %c0_i32 = arith.constant 0 : i32
    %c0_i32_0 = arith.constant 0 : i32
    %c0_i32_1 = arith.constant 0 : i32
    return %arg0, %c0_i32, %c0_i32_0 : i32, i32, i32
  }
}

module attributes {stable_mosaic.version = 11 : i64} {
  func.func @_affine_kernel(%arg0: i32, %arg1: memref<512x128xbf16, #tpu.memory_space<vmem>>, %arg2: memref<1x128xf32, #tpu.memory_space<vmem>>, %arg3: memref<1x128xf32, #tpu.memory_space<vmem>>, %arg4: memref<512x128xbf16, #tpu.memory_space<vmem>>) attributes {dimension_semantics = [#tpu.dimension_semantics<parallel>], iteration_bounds = array<i64: 1>, scalar_prefetch = 0 : i64, scratch_operands = 0 : i64, tpu.core_type = #tpu.core_type<tc>, window_params = [{transform_indices = @transform_0, window_bounds = array<i64: 512, 128>}, {pipeline_mode = #tpu.pipeline_mode<synchronous>, transform_indices = @transform_1, window_bounds = array<i64: 1, 128>}, {pipeline_mode = #tpu.pipeline_mode<synchronous>, transform_indices = @transform_2, window_bounds = array<i64: 1, 128>}, {transform_indices = @transform_3, window_bounds = array<i64: 512, 128>}]} {
    %c0 = arith.constant 0 : index
    %c0_0 = arith.constant 0 : index
    %0 = vector.load %arg1[%c0, %c0_0] : memref<512x128xbf16, #tpu.memory_space<vmem>>, vector<512x128xbf16>
    %1 = arith.extf %0 : vector<512x128xbf16> to vector<512x128xf32>
    %c0_1 = arith.constant 0 : index
    %c0_2 = arith.constant 0 : index
    %2 = vector.load %arg2[%c0_1, %c0_2] : memref<1x128xf32, #tpu.memory_space<vmem>>, vector<1x128xf32>
    %3 = vector.broadcast %2 : vector<1x128xf32> to vector<512x128xf32>
    %4 = arith.mulf %1, %3 : vector<512x128xf32>
    %c0_3 = arith.constant 0 : index
    %c0_4 = arith.constant 0 : index
    %5 = vector.load %arg3[%c0_3, %c0_4] : memref<1x128xf32, #tpu.memory_space<vmem>>, vector<1x128xf32>
    %6 = vector.broadcast %5 : vector<1x128xf32> to vector<512x128xf32>
    %7 = arith.addf %4, %6 : vector<512x128xf32>
    %cst = arith.constant 0.000000e+00 : f32
    %8 = vector.broadcast %cst : f32 to vector<512x128xf32>
    %9 = arith.maximumf %7, %8 : vector<512x128xf32>
    %10 = arith.truncf %9 : vector<512x128xf32> to vector<512x128xbf16>
    %c0_5 = arith.constant 0 : index
    %c0_6 = arith.constant 0 : index
    %11 = vector.load %arg4[%c0_5, %c0_6] : memref<512x128xbf16, #tpu.memory_space<vmem>>, vector<512x128xbf16>
    tpu.vector_store %arg4[%c0_5, %c0_6], %10 {strides = array<i32>} : memref<512x128xbf16, #tpu.memory_space<vmem>>, vector<512x128xbf16>,
    return
  }
  func.func @transform_0(%arg0: i32) -> (i32, i32) {
    %c0_i32 = arith.constant 0 : i32
    %c0_i32_0 = arith.constant 0 : i32
    return %arg0, %c0_i32 : i32, i32
  }
  func.func @transform_1(%arg0: i32) -> (i32, i32) {
    %c0_i32 = arith.constant 0 : i32
    %c0_i32_0 = arith.constant 0 : i32
    %c0_i32_1 = arith.constant 0 : i32
    return %c0_i32, %c0_i32_0 : i32, i32
  }
  func.func @transform_2(%arg0: i32) -> (i32, i32) {
    %c0_i32 = arith.constant 0 : i32
    %c0_i32_0 = arith.constant 0 : i32
    %c0_i32_1 = arith.constant 0 : i32
    return %c0_i32, %c0_i32_0 : i32, i32
  }
  func.func @transform_3(%arg0: i32) -> (i32, i32) {
    %c0_i32 = arith.constant 0 : i32
    %c0_i32_0 = arith.constant 0 : i32
    return %arg0, %c0_i32 : i32, i32
  }
}

module attributes {stable_mosaic.version = 11 : i64} {
  func.func @_conv_stats_kernel(%arg0: i32, %arg1: i32, %arg2: memref<512x1152xbf16, #tpu.memory_space<vmem>>, %arg3: memref<1152x128xbf16, #tpu.memory_space<vmem>>, %arg4: memref<512x128xbf16, #tpu.memory_space<vmem>>, %arg5: memref<1x2x128xf32, #tpu.memory_space<vmem>>, %arg6: memref<512x128xf32, #tpu.memory_space<vmem>>) attributes {dimension_semantics = [#tpu.dimension_semantics<parallel>, #tpu.dimension_semantics<arbitrary>], iteration_bounds = array<i64: 1, 1>, scalar_prefetch = 0 : i64, scratch_operands = 1 : i64, tpu.core_type = #tpu.core_type<tc>, window_params = [{transform_indices = @transform_0, window_bounds = array<i64: 512, 1152>}, {transform_indices = @transform_1, window_bounds = array<i64: 1152, 128>}, {transform_indices = @transform_2, window_bounds = array<i64: 512, 128>}, {transform_indices = @transform_3, window_bounds = array<i64: 1, 2, 128>}]} {
    %c0_i32 = arith.constant 0 : i32
    %0 = arith.cmpi eq, %arg1, %c0_i32 : i32
    %1 = arith.extui %0 : i1 to i32
    %c0_i32_0 = arith.constant 0 : i32
    %2 = arith.cmpi ne, %1, %c0_i32_0 : i32
    scf.if %2 {
      %cst_10 = arith.constant 0.000000e+00 : f32
      %12 = vector.broadcast %cst_10 : f32 to vector<512x128xf32>
      %c0_11 = arith.constant 0 : index
      %c0_12 = arith.constant 0 : index
      %13 = vector.load %arg6[%c0_11, %c0_12] : memref<512x128xf32, #tpu.memory_space<vmem>>, vector<512x128xf32>
      tpu.vector_store %arg6[%c0_11, %c0_12], %12 {strides = array<i32>} : memref<512x128xf32, #tpu.memory_space<vmem>>, vector<512x128xf32>,
    } else {
    }
    %c0 = arith.constant 0 : index
    %c0_1 = arith.constant 0 : index
    %3 = vector.load %arg6[%c0, %c0_1] : memref<512x128xf32, #tpu.memory_space<vmem>>, vector<512x128xf32>
    %c0_2 = arith.constant 0 : index
    %c0_3 = arith.constant 0 : index
    %4 = vector.load %arg2[%c0_2, %c0_3] : memref<512x1152xbf16, #tpu.memory_space<vmem>>, vector<512x1152xbf16>
    %c0_4 = arith.constant 0 : index
    %c0_5 = arith.constant 0 : index
    %5 = vector.load %arg3[%c0_4, %c0_5] : memref<1152x128xbf16, #tpu.memory_space<vmem>>, vector<1152x128xbf16>
    %cst = arith.constant dense<0.000000e+00> : vector<512x128xf32>
    %6 = tpu.matmul %4, %5, %cst {dimension_numbers = #tpu.dot_dimension_numbers<[1], [0], [0], [1], [0, 0, 1, 1], [], []>} : vector<512x1152xbf16>, vector<1152x128xbf16>, vector<512x128xf32> -> vector<512x128xf32>
    %7 = arith.addf %3, %6 : vector<512x128xf32>
    %c0_6 = arith.constant 0 : index
    %c0_7 = arith.constant 0 : index
    %8 = vector.load %arg6[%c0_6, %c0_7] : memref<512x128xf32, #tpu.memory_space<vmem>>, vector<512x128xf32>
    tpu.vector_store %arg6[%c0_6, %c0_7], %7 {strides = array<i32>} : memref<512x128xf32, #tpu.memory_space<vmem>>, vector<512x128xf32>,
    %c0_i32_8 = arith.constant 0 : i32
    %9 = arith.cmpi eq, %arg1, %c0_i32_8 : i32
    %10 = arith.extui %9 : i1 to i32
    %c0_i32_9 = arith.constant 0 : i32
    %11 = arith.cmpi ne, %10, %c0_i32_9 : i32
    scf.if %11 {
      %c0_10 = arith.constant 0 : index
      %c0_11 = arith.constant 0 : index
      %12 = vector.load %arg6[%c0_10, %c0_11] : memref<512x128xf32, #tpu.memory_space<vmem>>, vector<512x128xf32>
      %13 = arith.truncf %12 : vector<512x128xf32> to vector<512x128xbf16>
      %c0_12 = arith.constant 0 : index
      %c0_13 = arith.constant 0 : index
      %14 = vector.load %arg4[%c0_12, %c0_13] : memref<512x128xbf16, #tpu.memory_space<vmem>>, vector<512x128xbf16>
      tpu.vector_store %arg4[%c0_12, %c0_13], %13 {strides = array<i32>} : memref<512x128xbf16, #tpu.memory_space<vmem>>, vector<512x128xbf16>,
      %cst_14 = arith.constant dense<0.000000e+00> : vector<128xf32>
      %15 = vector.multi_reduction <add>, %12, %cst_14 [0] : vector<512x128xf32> to vector<128xf32>
      %16 = vector.shape_cast %15 : vector<128xf32> to vector<1x128xf32>
      %c0_15 = arith.constant 0 : index
      %c0_16 = arith.constant 0 : index
      %c0_17 = arith.constant 0 : index
      %17 = vector.load %arg5[%c0_15, %c0_16, %c0_17] : memref<1x2x128xf32, #tpu.memory_space<vmem>>, vector<1x1x128xf32>
      %18 = vector.shape_cast %17 : vector<1x1x128xf32> to vector<1x128xf32>
      %19 = vector.shape_cast %16 : vector<1x128xf32> to vector<1x1x128xf32>
      tpu.vector_store %arg5[%c0_15, %c0_16, %c0_17], %19 {strides = array<i32>} : memref<1x2x128xf32, #tpu.memory_space<vmem>>, vector<1x1x128xf32>,
      %20 = arith.mulf %12, %12 : vector<512x128xf32>
      %cst_18 = arith.constant dense<0.000000e+00> : vector<128xf32>
      %21 = vector.multi_reduction <add>, %20, %cst_18 [0] : vector<512x128xf32> to vector<128xf32>
      %22 = vector.shape_cast %21 : vector<128xf32> to vector<1x128xf32>
      %c0_19 = arith.constant 0 : index
      %c1 = arith.constant 1 : index
      %c0_20 = arith.constant 0 : index
      %23 = vector.load %arg5[%c0_19, %c1, %c0_20] : memref<1x2x128xf32, #tpu.memory_space<vmem>>, vector<1x1x128xf32>
      %24 = vector.shape_cast %23 : vector<1x1x128xf32> to vector<1x128xf32>
      %25 = vector.shape_cast %22 : vector<1x128xf32> to vector<1x1x128xf32>
      tpu.vector_store %arg5[%c0_19, %c1, %c0_20], %25 {strides = array<i32>} : memref<1x2x128xf32, #tpu.memory_space<vmem>>, vector<1x1x128xf32>,
    } else {
    }
    return
  }
  func.func @transform_0(%arg0: i32, %arg1: i32) -> (i32, i32) {
    %c0_i32 = arith.constant 0 : i32
    return %arg0, %arg1 : i32, i32
  }
  func.func @transform_1(%arg0: i32, %arg1: i32) -> (i32, i32) {
    %c0_i32 = arith.constant 0 : i32
    %c0_i32_0 = arith.constant 0 : i32
    return %arg1, %c0_i32 : i32, i32
  }
  func.func @transform_2(%arg0: i32, %arg1: i32) -> (i32, i32) {
    %c0_i32 = arith.constant 0 : i32
    %c0_i32_0 = arith.constant 0 : i32
    return %arg0, %c0_i32 : i32, i32
  }
  func.func @transform_3(%arg0: i32, %arg1: i32) -> (i32, i32, i32) {
    %c0_i32 = arith.constant 0 : i32
    %c0_i32_0 = arith.constant 0 : i32
    %c0_i32_1 = arith.constant 0 : i32
    return %arg0, %c0_i32, %c0_i32_0 : i32, i32, i32
  }
}

module attributes {stable_mosaic.version = 11 : i64} {
  func.func @_affine_kernel(%arg0: i32, %arg1: memref<512x128xbf16, #tpu.memory_space<vmem>>, %arg2: memref<1x128xf32, #tpu.memory_space<vmem>>, %arg3: memref<1x128xf32, #tpu.memory_space<vmem>>, %arg4: memref<512x128xf32, #tpu.memory_space<vmem>>, %arg5: memref<1x128xf32, #tpu.memory_space<vmem>>, %arg6: memref<1x128xf32, #tpu.memory_space<vmem>>, %arg7: memref<512x128xf32, #tpu.memory_space<vmem>>) attributes {dimension_semantics = [#tpu.dimension_semantics<parallel>], iteration_bounds = array<i64: 1>, scalar_prefetch = 0 : i64, scratch_operands = 0 : i64, tpu.core_type = #tpu.core_type<tc>, window_params = [{transform_indices = @transform_0, window_bounds = array<i64: 512, 128>}, {pipeline_mode = #tpu.pipeline_mode<synchronous>, transform_indices = @transform_1, window_bounds = array<i64: 1, 128>}, {pipeline_mode = #tpu.pipeline_mode<synchronous>, transform_indices = @transform_2, window_bounds = array<i64: 1, 128>}, {transform_indices = @transform_3, window_bounds = array<i64: 512, 128>}, {pipeline_mode = #tpu.pipeline_mode<synchronous>, transform_indices = @transform_4, window_bounds = array<i64: 1, 128>}, {pipeline_mode = #tpu.pipeline_mode<synchronous>, transform_indices = @transform_5, window_bounds = array<i64: 1, 128>}, {transform_indices = @transform_6, window_bounds = array<i64: 512, 128>}]} {
    %c0 = arith.constant 0 : index
    %c0_0 = arith.constant 0 : index
    %0 = vector.load %arg1[%c0, %c0_0] : memref<512x128xbf16, #tpu.memory_space<vmem>>, vector<512x128xbf16>
    %1 = arith.extf %0 : vector<512x128xbf16> to vector<512x128xf32>
    %c0_1 = arith.constant 0 : index
    %c0_2 = arith.constant 0 : index
    %2 = vector.load %arg2[%c0_1, %c0_2] : memref<1x128xf32, #tpu.memory_space<vmem>>, vector<1x128xf32>
    %3 = vector.broadcast %2 : vector<1x128xf32> to vector<512x128xf32>
    %4 = arith.mulf %1, %3 : vector<512x128xf32>
    %c0_3 = arith.constant 0 : index
    %c0_4 = arith.constant 0 : index
    %5 = vector.load %arg3[%c0_3, %c0_4] : memref<1x128xf32, #tpu.memory_space<vmem>>, vector<1x128xf32>
    %6 = vector.broadcast %5 : vector<1x128xf32> to vector<512x128xf32>
    %7 = arith.addf %4, %6 : vector<512x128xf32>
    %c0_5 = arith.constant 0 : index
    %c0_6 = arith.constant 0 : index
    %8 = vector.load %arg4[%c0_5, %c0_6] : memref<512x128xf32, #tpu.memory_space<vmem>>, vector<512x128xf32>
    %c0_7 = arith.constant 0 : index
    %c0_8 = arith.constant 0 : index
    %9 = vector.load %arg5[%c0_7, %c0_8] : memref<1x128xf32, #tpu.memory_space<vmem>>, vector<1x128xf32>
    %10 = vector.broadcast %9 : vector<1x128xf32> to vector<512x128xf32>
    %11 = arith.mulf %8, %10 : vector<512x128xf32>
    %12 = arith.addf %7, %11 : vector<512x128xf32>
    %c0_9 = arith.constant 0 : index
    %c0_10 = arith.constant 0 : index
    %13 = vector.load %arg6[%c0_9, %c0_10] : memref<1x128xf32, #tpu.memory_space<vmem>>, vector<1x128xf32>
    %14 = vector.broadcast %13 : vector<1x128xf32> to vector<512x128xf32>
    %15 = arith.addf %12, %14 : vector<512x128xf32>
    %cst = arith.constant 0.000000e+00 : f32
    %16 = vector.broadcast %cst : f32 to vector<512x128xf32>
    %17 = arith.maximumf %15, %16 : vector<512x128xf32>
    %c0_11 = arith.constant 0 : index
    %c0_12 = arith.constant 0 : index
    %18 = vector.load %arg7[%c0_11, %c0_12] : memref<512x128xf32, #tpu.memory_space<vmem>>, vector<512x128xf32>
    tpu.vector_store %arg7[%c0_11, %c0_12], %17 {strides = array<i32>} : memref<512x128xf32, #tpu.memory_space<vmem>>, vector<512x128xf32>,
    return
  }
  func.func @transform_0(%arg0: i32) -> (i32, i32) {
    %c0_i32 = arith.constant 0 : i32
    %c0_i32_0 = arith.constant 0 : i32
    return %arg0, %c0_i32 : i32, i32
  }
  func.func @transform_1(%arg0: i32) -> (i32, i32) {
    %c0_i32 = arith.constant 0 : i32
    %c0_i32_0 = arith.constant 0 : i32
    %c0_i32_1 = arith.constant 0 : i32
    return %c0_i32, %c0_i32_0 : i32, i32
  }
  func.func @transform_2(%arg0: i32) -> (i32, i32) {
    %c0_i32 = arith.constant 0 : i32
    %c0_i32_0 = arith.constant 0 : i32
    %c0_i32_1 = arith.constant 0 : i32
    return %c0_i32, %c0_i32_0 : i32, i32
  }
  func.func @transform_3(%arg0: i32) -> (i32, i32) {
    %c0_i32 = arith.constant 0 : i32
    %c0_i32_0 = arith.constant 0 : i32
    return %arg0, %c0_i32 : i32, i32
  }
  func.func @transform_4(%arg0: i32) -> (i32, i32) {
    %c0_i32 = arith.constant 0 : i32
    %c0_i32_0 = arith.constant 0 : i32
    %c0_i32_1 = arith.constant 0 : i32
    return %c0_i32, %c0_i32_0 : i32, i32
  }
  func.func @transform_5(%arg0: i32) -> (i32, i32) {
    %c0_i32 = arith.constant 0 : i32
    %c0_i32_0 = arith.constant 0 : i32
    %c0_i32_1 = arith.constant 0 : i32
    return %c0_i32, %c0_i32_0 : i32, i32
  }
  func.func @transform_6(%arg0: i32) -> (i32, i32) {
    %c0_i32 = arith.constant 0 : i32
    %c0_i32_0 = arith.constant 0 : i32
    return %arg0, %c0_i32 : i32, i32
  }
}

</mosaic_0001>

<llo_original>
// kernel: residual_block_forward.5
$region0: #{residual_block_forward.5}
  #allocation0 [shape = 'u32[]', space=smem, size = 0x4, offset = 0x4, fixed_abs, tag = 'smem constant byte address 0x4 - core index']
  #allocation1 [shape = 'u32[144,128]{1,0:T(1,128)}', space=vmem, size = 0x12000, scoped, tag = 'internal scratch']
  %s0 = inlined_call_operand.vmem [shape: bf16[512,128], index: 0, kind: input, shape index: {}]
  %s1 = inlined_call_operand.vmem [shape: f32[1,128], index: 1, kind: input, shape index: {}]
  %s2 = inlined_call_operand.vmem [shape: f32[1,128], index: 2, kind: input, shape index: {}]
  %s3 = inlined_call_operand.vmem [shape: bf16[512,128], index: 3, kind: output, shape index: {}]
  %s4 = sld [smem:[#allocation0]]
  $region22: #{residual_block_forward.5} parent=0
    _
  %s6 = ssub.s32 1, %s4
  %s7 = scalar_select 0, %s6, %s4
  // Predicated region
  $region2: #{residual_block_forward.5} parent=0 // pred_check
    _
  $region3: #{residual_block_forward.5} parent=0 // pred_check_branch
    %9 = sbr.rel (0) target = $region5
  $region4: #{residual_block_forward.5} parent=0 // pred_region
    _
  $region5: #{residual_block_forward.5} parent=0 // pred_fallthru
    _
  // Predicated region
  $region6: #{residual_block_forward.5} parent=0 // pred_check
    _
  $region7: #{residual_block_forward.5} parent=0 // pred_check_branch
    %11 = sbr.rel (0) target = $region9
  $region8: #{residual_block_forward.5} parent=0 // pred_region
    _
  $region9: #{residual_block_forward.5} parent=0 // pred_fallthru
    _
  // Predicated region
  $region10: #{residual_block_forward.5} parent=0 // pred_check
    _
  $region11: #{residual_block_forward.5} parent=0 // pred_check_branch
    %13 = sbr.rel (0) target = $region13
  $region12: #{residual_block_forward.5} parent=0 // pred_region
    _
  $region13: #{residual_block_forward.5} parent=0 // pred_fallthru
    _
  %v14 = vld [vmem:[%s0] sm:$0xf]
  %v15 = vld [vmem:[%s0 + $0x4] sm:$0xf]
  %v16 = vld [vmem:[%s0 + $0x8] sm:$0xf]
  %v17 = vld [vmem:[%s0 + $0xc] sm:$0xf]
  %v18 = vld [vmem:[%s0 + $0x10] sm:$0xf]
  %v19 = vld [vmem:[%s0 + $0x14] sm:$0xf]
  %v20 = vld [vmem:[%s0 + $0x18] sm:$0xf]
  %v21 = vld [vmem:[%s0 + $0x1c] sm:$0xf]
  %v22 = vld [vmem:[%s0 + $0x20] sm:$0xf]
  %v23 = vld [vmem:[%s0 + $0x24] sm:$0xf]
  %v24 = vld [vmem:[%s0 + $0x28] sm:$0xf]
  %v25 = vld [vmem:[%s0 + $0x2c] sm:$0xf]
  %v26 = vld [vmem:[%s0 + $0x30] sm:$0xf]
  %v27 = vld [vmem:[%s0 + $0x34] sm:$0xf]
  %v28 = vld [vmem:[%s0 + $0x38] sm:$0xf]
  %v29 = vld [vmem:[%s0 + $0x3c] sm:$0xf]
  %v30 = vld [vmem:[%s0 + $0x40] sm:$0xf]
  %v31 = vld [vmem:[%s0 + $0x44] sm:$0xf]
  %v32 = vld [vmem:[%s0 + $0x48] sm:$0xf]
  %v33 = vld [vmem:[%s0 + $0x4c] sm:$0xf]
  %v34 = vld [vmem:[%s0 + $0x50] sm:$0xf]
  %v35 = vld [vmem:[%s0 + $0x54] sm:$0xf]
  %v36 = vld [vmem:[%s0 + $0x58] sm:$0xf]
  %v37 = vld [vmem:[%s0 + $0x5c] sm:$0xf]
  %v38 = vld [vmem:[%s0 + $0x60] sm:$0xf]
  %v39 = vld [vmem:[%s0 + $0x64] sm:$0xf]
  %v40 = vld [vmem:[%s0 + $0x68] sm:$0xf]
  %v41 = vld [vmem:[%s0 + $0x6c] sm:$0xf]
  %v42 = vld [vmem:[%s0 + $0x70] sm:$0xf]
  %v43 = vld [vmem:[%s0 + $0x74] sm:$0xf]
  %v44 = vld [vmem:[%s0 + $0x78] sm:$0xf]
  %v45 = vld [vmem:[%s0 + $0x7c] sm:$0xf]
  %v46 = vld [vmem:[%s0 + $0x80] sm:$0xf]
  %v47 = vld [vmem:[%s0 + $0x84] sm:$0xf]
  %v48 = vld [vmem:[%s0 + $0x88] sm:$0xf]
  %v49 = vld [vmem:[%s0 + $0x8c] sm:$0xf]
  %v50 = vld [vmem:[%s0 + $0x90] sm:$0xf]
  %v51 = vld [vmem:[%s0 + $0x94] sm:$0xf]
  %v52 = vld [vmem:[%s0 + $0x98] sm:$0xf]
  %v53 = vld [vmem:[%s0 + $0x9c] sm:$0xf]
  %v54 = vld [vmem:[%s0 + $0xa0] sm:$0xf]
  %v55 = vld [vmem:[%s0 + $0xa4] sm:$0xf]
  %v56 = vld [vmem:[%s0 + $0xa8] sm:$0xf]
  %v57 = vld [vmem:[%s0 + $0xac] sm:$0xf]
  %v58 = vld [vmem:[%s0 + $0xb0] sm:$0xf]
  %v59 = vld [vmem:[%s0 + $0xb4] sm:$0xf]
  %v60 = vld [vmem:[%s0 + $0xb8] sm:$0xf]
  %v61 = vld [vmem:[%s0 + $0xbc] sm:$0xf]
  %v62 = vld [vmem:[%s0 + $0xc0] sm:$0xf]
  %v63 = vld [vmem:[%s0 + $0xc4] sm:$0xf]
  %v64 = vld [vmem:[%s0 + $0xc8] sm:$0xf]
  %v65 = vld [vmem:[%s0 + $0xcc] sm:$0xf]
  %v66 = vld [vmem:[%s0 + $0xd0] sm:$0xf]
  %v67 = vld [vmem:[%s0 + $0xd4] sm:$0xf]
  %v68 = vld [vmem:[%s0 + $0xd8] sm:$0xf]
  %v69 = vld [vmem:[%s0 + $0xdc] sm:$0xf]
  %v70 = vld [vmem:[%s0 + $0xe0] sm:$0xf]
  %v71 = vld [vmem:[%s0 + $0xe4] sm:$0xf]
  %v72 = vld [vmem:[%s0 + $0xe8] sm:$0xf]
  %v73 = vld [vmem:[%s0 + $0xec] sm:$0xf]
  %v74 = vld [vmem:[%s0 + $0xf0] sm:$0xf]
  %v75 = vld [vmem:[%s0 + $0xf4] sm:$0xf]
  %v76 = vld [vmem:[%s0 + $0xf8] sm:$0xf]
  %v77 = vld [vmem:[%s0 + $0xfc] sm:$0xf]
  %v78 = vunpack.c.l.bf16 %v14
  %v79 = vunpack.c.l.bf16 %v15
  %v80 = vunpack.c.l.bf16 %v16
  %v81 = vunpack.c.l.bf16 %v17
  %v82 = vunpack.c.l.bf16 %v18
  %v83 = vunpack.c.l.bf16 %v19
  %v84 = vunpack.c.l.bf16 %v20
  %v85 = vunpack.c.l.bf16 %v21
  %v86 = vunpack.c.l.bf16 %v22
  %v87 = vunpack.c.l.bf16 %v23
  %v88 = vunpack.c.l.bf16 %v24
  %v89 = vunpack.c.l.bf16 %v25
  %v90 = vunpack.c.l.bf16 %v26
  %v91 = vunpack.c.l.bf16 %v27
  %v92 = vunpack.c.l.bf16 %v28
  %v93 = vunpack.c.l.bf16 %v29
  %v94 = vunpack.c.l.bf16 %v30
  %v95 = vunpack.c.l.bf16 %v31
  %v96 = vunpack.c.l.bf16 %v32
  %v97 = vunpack.c.l.bf16 %v33
  %v98 = vunpack.c.l.bf16 %v34
  %v99 = vunpack.c.l.bf16 %v35
  %v100 = vunpack.c.l.bf16 %v36
  %v101 = vunpack.c.l.bf16 %v37
  %v102 = vunpack.c.l.bf16 %v38
  %v103 = vunpack.c.l.bf16 %v39
  %v104 = vunpack.c.l.bf16 %v40
  %v105 = vunpack.c.l.bf16 %v41
  %v106 = vunpack.c.l.bf16 %v42
  %v107 = vunpack.c.l.bf16 %v43
  %v108 = vunpack.c.l.bf16 %v44
  %v109 = vunpack.c.l.bf16 %v45
  %v110 = vunpack.c.l.bf16 %v46
  %v111 = vunpack.c.l.bf16 %v47
  %v112 = vunpack.c.l.bf16 %v48
  %v113 = vunpack.c.l.bf16 %v49
  %v114 = vunpack.c.l.bf16 %v50
  %v115 = vunpack.c.l.bf16 %v51
  %v116 = vunpack.c.l.bf16 %v52
  %v117 = vunpack.c.l.bf16 %v53
  %v118 = vunpack.c.l.bf16 %v54
  %v119 = vunpack.c.l.bf16 %v55
  %v120 = vunpack.c.l.bf16 %v56
  %v121 = vunpack.c.l.bf16 %v57
  %v122 = vunpack.c.l.bf16 %v58
  %v123 = vunpack.c.l.bf16 %v59
  %v124 = vunpack.c.l.bf16 %v60
  %v125 = vunpack.c.l.bf16 %v61
  %v126 = vunpack.c.l.bf16 %v62
  %v127 = vunpack.c.l.bf16 %v63
  %v128 = vunpack.c.l.bf16 %v64
  %v129 = vunpack.c.l.bf16 %v65
  %v130 = vunpack.c.l.bf16 %v66
  %v131 = vunpack.c.l.bf16 %v67
  %v132 = vunpack.c.l.bf16 %v68
  %v133 = vunpack.c.l.bf16 %v69
  %v134 = vunpack.c.l.bf16 %v70
  %v135 = vunpack.c.l.bf16 %v71
  %v136 = vunpack.c.l.bf16 %v72
  %v137 = vunpack.c.l.bf16 %v73
  %v138 = vunpack.c.l.bf16 %v74
  %v139 = vunpack.c.l.bf16 %v75
  %v140 = vunpack.c.l.bf16 %v76
  %v141 = vunpack.c.l.bf16 %v77
  %v142 = vld [vmem:[%s1] sm:$0x1]
  %v144 = vlaneseq
  %v145 = vshrl.u32 %v144, 7
  %v146 = vsub.s32 0, %v145
  %v147 = vrot.slane %v142, %v146
  %v149 = vmul.f32 %v78, %v147
  %v150 = vmul.f32 %v79, %v147
  %v151 = vmul.f32 %v80, %v147
  %v152 = vmul.f32 %v81, %v147
  %v153 = vmul.f32 %v82, %v147
  %v154 = vmul.f32 %v83, %v147
  %v155 = vmul.f32 %v84, %v147
  %v156 = vmul.f32 %v85, %v147
  %v157 = vmul.f32 %v86, %v147
  %v158 = vmul.f32 %v87, %v147
  %v159 = vmul.f32 %v88, %v147
  %v160 = vmul.f32 %v89, %v147
  %v161 = vmul.f32 %v90, %v147
  %v162 = vmul.f32 %v91, %v147
  %v163 = vmul.f32 %v92, %v147
  %v164 = vmul.f32 %v93, %v147
  %v165 = vmul.f32 %v94, %v147
  %v166 = vmul.f32 %v95, %v147
  %v167 = vmul.f32 %v96, %v147
  %v168 = vmul.f32 %v97, %v147
  %v169 = vmul.f32 %v98, %v147
  %v170 = vmul.f32 %v99, %v147
  %v171 = vmul.f32 %v100, %v147
  %v172 = vmul.f32 %v101, %v147
  %v173 = vmul.f32 %v102, %v147
  %v174 = vmul.f32 %v103, %v147
  %v175 = vmul.f32 %v104, %v147
  %v176 = vmul.f32 %v105, %v147
  %v177 = vmul.f32 %v106, %v147
  %v178 = vmul.f32 %v107, %v147
  %v179 = vmul.f32 %v108, %v147
  %v180 = vmul.f32 %v109, %v147
  %v181 = vmul.f32 %v110, %v147
  %v182 = vmul.f32 %v111, %v147
  %v183 = vmul.f32 %v112, %v147
  %v184 = vmul.f32 %v113, %v147
  %v185 = vmul.f32 %v114, %v147
  %v186 = vmul.f32 %v115, %v147
  %v187 = vmul.f32 %v116, %v147
  %v188 = vmul.f32 %v117, %v147
  %v189 = vmul.f32 %v118, %v147
  %v190 = vmul.f32 %v119, %v147
  %v191 = vmul.f32 %v120, %v147
  %v192 = vmul.f32 %v121, %v147
  %v193 = vmul.f32 %v122, %v147
  %v194 = vmul.f32 %v123, %v147
  %v195 = vmul.f32 %v124, %v147
  %v196 = vmul.f32 %v125, %v147
  %v197 = vmul.f32 %v126, %v147
  %v198 = vmul.f32 %v127, %v147
  %v199 = vmul.f32 %v128, %v147
  %v200 = vmul.f32 %v129, %v147
  %v201 = vmul.f32 %v130, %v147
  %v202 = vmul.f32 %v131, %v147
  %v203 = vmul.f32 %v132, %v147
  %v204 = vmul.f32 %v133, %v147
  %v205 = vmul.f32 %v134, %v147
  %v206 = vmul.f32 %v135, %v147
  %v207 = vmul.f32 %v136, %v147
  %v208 = vmul.f32 %v137, %v147
  %v209 = vmul.f32 %v138, %v147
  %v210 = vmul.f32 %v139, %v147
  %v211 = vmul.f32 %v140, %v147
  %v212 = vmul.f32 %v141, %v147
  %v213 = vld [vmem:[%s2] sm:$0x1]
  %v215 = vlaneseq
  %v216 = vshrl.u32 %v215, 7
  %v217 = vsub.s32 0, %v216
  %v218 = vrot.slane %v213, %v217
  %v220 = vadd.f32 %v149, %v218
  %v221 = vadd.f32 %v150, %v218
  %v222 = vadd.f32 %v151, %v218
  %v223 = vadd.f32 %v152, %v218
  %v224 = vadd.f32 %v153, %v218
  %v225 = vadd.f32 %v154, %v218
  %v226 = vadd.f32 %v155, %v218
  %v227 = vadd.f32 %v156, %v218
  %v228 = vadd.f32 %v157, %v218
  %v229 = vadd.f32 %v158, %v218
  %v230 = vadd.f32 %v159, %v218
  %v231 = vadd.f32 %v160, %v218
  %v232 = vadd.f32 %v161, %v218
  %v233 = vadd.f32 %v162, %v218
  %v234 = vadd.f32 %v163, %v218
  %v235 = vadd.f32 %v164, %v218
  %v236 = vadd.f32 %v165, %v218
  %v237 = vadd.f32 %v166, %v218
  %v238 = vadd.f32 %v167, %v218
  %v239 = vadd.f32 %v168, %v218
  %v240 = vadd.f32 %v169, %v218
  %v241 = vadd.f32 %v170, %v218
  %v242 = vadd.f32 %v171, %v218
  %v243 = vadd.f32 %v172, %v218
  %v244 = vadd.f32 %v173, %v218
  %v245 = vadd.f32 %v174, %v218
  %v246 = vadd.f32 %v175, %v218
  %v247 = vadd.f32 %v176, %v218
  %v248 = vadd.f32 %v177, %v218
  %v249 = vadd.f32 %v178, %v218
  %v250 = vadd.f32 %v179, %v218
  %v251 = vadd.f32 %v180, %v218
  %v252 = vadd.f32 %v181, %v218
  %v253 = vadd.f32 %v182, %v218
  %v254 = vadd.f32 %v183, %v218
  %v255 = vadd.f32 %v184, %v218
  %v256 = vadd.f32 %v185, %v218
  %v257 = vadd.f32 %v186, %v218
  %v258 = vadd.f32 %v187, %v218
  %v259 = vadd.f32 %v188, %v218
  %v260 = vadd.f32 %v189, %v218
  %v261 = vadd.f32 %v190, %v218
  %v262 = vadd.f32 %v191, %v218
  %v263 = vadd.f32 %v192, %v218
  %v264 = vadd.f32 %v193, %v218
  %v265 = vadd.f32 %v194, %v218
  %v266 = vadd.f32 %v195, %v218
  %v267 = vadd.f32 %v196, %v218
  %v268 = vadd.f32 %v197, %v218
  %v269 = vadd.f32 %v198, %v218
  %v270 = vadd.f32 %v199, %v218
  %v271 = vadd.f32 %v200, %v218
  %v272 = vadd.f32 %v201, %v218
  %v273 = vadd.f32 %v202, %v218
  %v274 = vadd.f32 %v203, %v218
  %v275 = vadd.f32 %v204, %v218
  %v276 = vadd.f32 %v205, %v218
  %v277 = vadd.f32 %v206, %v218
  %v278 = vadd.f32 %v207, %v218
  %v279 = vadd.f32 %v208, %v218
  %v280 = vadd.f32 %v209, %v218
  %v281 = vadd.f32 %v210, %v218
  %v282 = vadd.f32 %v211, %v218
  %v283 = vadd.f32 %v212, %v218
  %v284 = vmax.f32 %v220, 0.0
  %v285 = vmax.f32 %v221, 0.0
  %v286 = vmax.f32 %v222, 0.0
  %v287 = vmax.f32 %v223, 0.0
  %v288 = vmax.f32 %v224, 0.0
  %v289 = vmax.f32 %v225, 0.0
  %v290 = vmax.f32 %v226, 0.0
  %v291 = vmax.f32 %v227, 0.0
  %v292 = vmax.f32 %v228, 0.0
  %v293 = vmax.f32 %v229, 0.0
  %v294 = vmax.f32 %v230, 0.0
  %v295 = vmax.f32 %v231, 0.0
  %v296 = vmax.f32 %v232, 0.0
  %v297 = vmax.f32 %v233, 0.0
  %v298 = vmax.f32 %v234, 0.0
  %v299 = vmax.f32 %v235, 0.0
  %v300 = vmax.f32 %v236, 0.0
  %v301 = vmax.f32 %v237, 0.0
  %v302 = vmax.f32 %v238, 0.0
  %v303 = vmax.f32 %v239, 0.0
  %v304 = vmax.f32 %v240, 0.0
  %v305 = vmax.f32 %v241, 0.0
  %v306 = vmax.f32 %v242, 0.0
  %v307 = vmax.f32 %v243, 0.0
  %v308 = vmax.f32 %v244, 0.0
  %v309 = vmax.f32 %v245, 0.0
  %v310 = vmax.f32 %v246, 0.0
  %v311 = vmax.f32 %v247, 0.0
  %v312 = vmax.f32 %v248, 0.0
  %v313 = vmax.f32 %v249, 0.0
  %v314 = vmax.f32 %v250, 0.0
  %v315 = vmax.f32 %v251, 0.0
  %v316 = vmax.f32 %v252, 0.0
  %v317 = vmax.f32 %v253, 0.0
  %v318 = vmax.f32 %v254, 0.0
  %v319 = vmax.f32 %v255, 0.0
  %v320 = vmax.f32 %v256, 0.0
  %v321 = vmax.f32 %v257, 0.0
  %v322 = vmax.f32 %v258, 0.0
  %v323 = vmax.f32 %v259, 0.0
  %v324 = vmax.f32 %v260, 0.0
  %v325 = vmax.f32 %v261, 0.0
  %v326 = vmax.f32 %v262, 0.0
  %v327 = vmax.f32 %v263, 0.0
  %v328 = vmax.f32 %v264, 0.0
  %v329 = vmax.f32 %v265, 0.0
  %v330 = vmax.f32 %v266, 0.0
  %v331 = vmax.f32 %v267, 0.0
  %v332 = vmax.f32 %v268, 0.0
  %v333 = vmax.f32 %v269, 0.0
  %v334 = vmax.f32 %v270, 0.0
  %v335 = vmax.f32 %v271, 0.0
  %v336 = vmax.f32 %v272, 0.0
  %v337 = vmax.f32 %v273, 0.0
  %v338 = vmax.f32 %v274, 0.0
  %v339 = vmax.f32 %v275, 0.0
  %v340 = vmax.f32 %v276, 0.0
  %v341 = vmax.f32 %v277, 0.0
  %v342 = vmax.f32 %v278, 0.0
  %v343 = vmax.f32 %v279, 0.0
  %v344 = vmax.f32 %v280, 0.0
  %v345 = vmax.f32 %v281, 0.0
  %v346 = vmax.f32 %v282, 0.0
  %v347 = vmax.f32 %v283, 0.0
  %v348 = vpack.c.bf16 %v285, %v284
  %v349 = vpack.c.bf16 %v287, %v286
  %v350 = vpack.c.bf16 %v289, %v288
  %v351 = vpack.c.bf16 %v291, %v290
  %v352 = vpack.c.bf16 %v293, %v292
  %v353 = vpack.c.bf16 %v295, %v294
  %v354 = vpack.c.bf16 %v297, %v296
  %v355 = vpack.c.bf16 %v299, %v298
  %v356 = vpack.c.bf16 %v301, %v300
  %v357 = vpack.c.bf16 %v303, %v302
  %v358 = vpack.c.bf16 %v305, %v304
  %v359 = vpack.c.bf16 %v307, %v306
  %v360 = vpack.c.bf16 %v309, %v308
  %v361 = vpack.c.bf16 %v311, %v310
  %v362 = vpack.c.bf16 %v313, %v312
  %v363 = vpack.c.bf16 %v315, %v314
  %v364 = vpack.c.bf16 %v317, %v316
  %v365 = vpack.c.bf16 %v319, %v318
  %v366 = vpack.c.bf16 %v321, %v320
  %v367 = vpack.c.bf16 %v323, %v322
  %v368 = vpack.c.bf16 %v325, %v324
  %v369 = vpack.c.bf16 %v327, %v326
  %v370 = vpack.c.bf16 %v329, %v328
  %v371 = vpack.c.bf16 %v331, %v330
  %v372 = vpack.c.bf16 %v333, %v332
  %v373 = vpack.c.bf16 %v335, %v334
  %v374 = vpack.c.bf16 %v337, %v336
  %v375 = vpack.c.bf16 %v339, %v338
  %v376 = vpack.c.bf16 %v341, %v340
  %v377 = vpack.c.bf16 %v343, %v342
  %v378 = vpack.c.bf16 %v345, %v344
  %v379 = vpack.c.bf16 %v347, %v346
  %v412 = vunpack.c.l.b16 %v348
  %v413 = vunpack.c.h.b16 %v348
  %v414 = vunpack.c.l.b16 %v349
  %v415 = vunpack.c.h.b16 %v349
  %v416 = vunpack.c.l.b16 %v350
  %v417 = vunpack.c.h.b16 %v350
  %v418 = vunpack.c.l.b16 %v351
  %v419 = vunpack.c.h.b16 %v351
  %v420 = vunpack.c.l.b16 %v352
  %v421 = vunpack.c.h.b16 %v352
  %v422 = vunpack.c.l.b16 %v353
  %v423 = vunpack.c.h.b16 %v353
  %v424 = vunpack.c.l.b16 %v354
  %v425 = vunpack.c.h.b16 %v354
  %v426 = vunpack.c.l.b16 %v355
  %v427 = vunpack.c.h.b16 %v355
  %v428 = vunpack.c.l.b16 %v356
  %v429 = vunpack.c.h.b16 %v356
  %v430 = vunpack.c.l.b16 %v357
  %v431 = vunpack.c.h.b16 %v357
  %v432 = vunpack.c.l.b16 %v358
  %v433 = vunpack.c.h.b16 %v358
  %v434 = vunpack.c.l.b16 %v359
  %v435 = vunpack.c.h.b16 %v359
  %v436 = vunpack.c.l.b16 %v360
  %v437 = vunpack.c.h.b16 %v360
  %v438 = vunpack.c.l.b16 %v361
  %v439 = vunpack.c.h.b16 %v361
  %v440 = vunpack.c.l.b16 %v362
  %v441 = vunpack.c.h.b16 %v362
  %v442 = vunpack.c.l.b16 %v363
  %v443 = vunpack.c.h.b16 %v363
  %v444 = vunpack.c.l.b16 %v364
  %v445 = vunpack.c.h.b16 %v364
  %v446 = vunpack.c.l.b16 %v365
  %v447 = vunpack.c.h.b16 %v365
  %v448 = vunpack.c.l.b16 %v366
  %v449 = vunpack.c.h.b16 %v366
  %v450 = vunpack.c.l.b16 %v367
  %v451 = vunpack.c.h.b16 %v367
  %v452 = vunpack.c.l.b16 %v368
  %v453 = vunpack.c.h.b16 %v368
  %v454 = vunpack.c.l.b16 %v369
  %v455 = vunpack.c.h.b16 %v369
  %v456 = vunpack.c.l.b16 %v370
  %v457 = vunpack.c.h.b16 %v370
  %v458 = vunpack.c.l.b16 %v371
  %v459 = vunpack.c.h.b16 %v371
  %v460 = vunpack.c.l.b16 %v372
  %v461 = vunpack.c.h.b16 %v372
  %v462 = vunpack.c.l.b16 %v373
  %v463 = vunpack.c.h.b16 %v373
  %v464 = vunpack.c.l.b16 %v374
  %v465 = vunpack.c.h.b16 %v374
  %v466 = vunpack.c.l.b16 %v375
  %v467 = vunpack.c.h.b16 %v375
  %v468 = vunpack.c.l.b16 %v376
  %v469 = vunpack.c.h.b16 %v376
  %v470 = vunpack.c.l.b16 %v377
  %v471 = vunpack.c.h.b16 %v377
  %v472 = vunpack.c.l.b16 %v378
  %v473 = vunpack.c.h.b16 %v378
  %v474 = vunpack.c.l.b16 %v379
  %v475 = vunpack.c.h.b16 %v379
  %v476 = vpack.c.b16 %v412, %v412
  %v477 = vpack.c.b16 %v413, %v413
  %v478 = vpack.c.b16 %v414, %v414
  %v479 = vpack.c.b16 %v415, %v415
  %v480 = vpack.c.b16 %v416, %v416
  %v481 = vpack.c.b16 %v417, %v417
  %v482 = vpack.c.b16 %v418, %v418
  %v483 = vpack.c.b16 %v419, %v419
  %v484 = vpack.c.b16 %v420, %v420
  %v485 = vpack.c.b16 %v421, %v421
  %v486 = vpack.c.b16 %v422, %v422
  %v487 = vpack.c.b16 %v423, %v423
  %v488 = vpack.c.b16 %v424, %v424
  %v489 = vpack.c.b16 %v425, %v425
  %v490 = vpack.c.b16 %v426, %v426
  %v491 = vpack.c.b16 %v427, %v427
  %v492 = vpack.c.b16 %v428, %v428
  %v493 = vpack.c.b16 %v429, %v429
  %v494 = vpack.c.b16 %v430, %v430
  %v495 = vpack.c.b16 %v431, %v431
  %v496 = vpack.c.b16 %v432, %v432
  %v497 = vpack.c.b16 %v433, %v433
  %v498 = vpack.c.b16 %v434, %v434
  %v499 = vpack.c.b16 %v435, %v435
  %v500 = vpack.c.b16 %v436, %v436
  %v501 = vpack.c.b16 %v437, %v437
  %v502 = vpack.c.b16 %v438, %v438
  %v503 = vpack.c.b16 %v439, %v439
  %v504 = vpack.c.b16 %v440, %v440
  %v505 = vpack.c.b16 %v441, %v441
  %v506 = vpack.c.b16 %v442, %v442
  %v507 = vpack.c.b16 %v443, %v443
  %v508 = vpack.c.b16 %v444, %v444
  %v509 = vpack.c.b16 %v445, %v445
  %v510 = vpack.c.b16 %v446, %v446
  %v511 = vpack.c.b16 %v447, %v447
  %v512 = vpack.c.b16 %v448, %v448
  %v513 = vpack.c.b16 %v449, %v449
  %v514 = vpack.c.b16 %v450, %v450
  %v515 = vpack.c.b16 %v451, %v451
  %v516 = vpack.c.b16 %v452, %v452
  %v517 = vpack.c.b16 %v453, %v453
  %v518 = vpack.c.b16 %v454, %v454
  %v519 = vpack.c.b16 %v455, %v455
  %v520 = vpack.c.b16 %v456, %v456
  %v521 = vpack.c.b16 %v457, %v457
  %v522 = vpack.c.b16 %v458, %v458
  %v523 = vpack.c.b16 %v459, %v459
  %v524 = vpack.c.b16 %v460, %v460
  %v525 = vpack.c.b16 %v461, %v461
  %v526 = vpack.c.b16 %v462, %v462
  %v527 = vpack.c.b16 %v463, %v463
  %v528 = vpack.c.b16 %v464, %v464
  %v529 = vpack.c.b16 %v465, %v465
  %v530 = vpack.c.b16 %v466, %v466
  %v531 = vpack.c.b16 %v467, %v467
  %v532 = vpack.c.b16 %v468, %v468
  %v533 = vpack.c.b16 %v469, %v469
  %v534 = vpack.c.b16 %v470, %v470
  %v535 = vpack.c.b16 %v471, %v471
  %v536 = vpack.c.b16 %v472, %v472
  %v537 = vpack.c.b16 %v473, %v473
  %v538 = vpack.c.b16 %v474, %v474
  %v539 = vpack.c.b16 %v475, %v475
  %604 = vst [vmem:[%s3] sm:$0xf] %v476
  %605 = vst [vmem:[%s3 + $0x4] sm:$0xf] %v477
  %606 = vst [vmem:[%s3 + $0x8] sm:$0xf] %v478
  %607 = vst [vmem:[%s3 + $0xc] sm:$0xf] %v479
  %608 = vst [vmem:[%s3 + $0x10] sm:$0xf] %v480
  %609 = vst [vmem:[%s3 + $0x14] sm:$0xf] %v481
  %610 = vst [vmem:[%s3 + $0x18] sm:$0xf] %v482
  %611 = vst [vmem:[%s3 + $0x1c] sm:$0xf] %v483
  %612 = vst [vmem:[%s3 + $0x20] sm:$0xf] %v484
  %613 = vst [vmem:[%s3 + $0x24] sm:$0xf] %v485
  %614 = vst [vmem:[%s3 + $0x28] sm:$0xf] %v486
  %615 = vst [vmem:[%s3 + $0x2c] sm:$0xf] %v487
  %616 = vst [vmem:[%s3 + $0x30] sm:$0xf] %v488
  %617 = vst [vmem:[%s3 + $0x34] sm:$0xf] %v489
  %618 = vst [vmem:[%s3 + $0x38] sm:$0xf] %v490
  %619 = vst [vmem:[%s3 + $0x3c] sm:$0xf] %v491
  %620 = vst [vmem:[%s3 + $0x40] sm:$0xf] %v492
  %621 = vst [vmem:[%s3 + $0x44] sm:$0xf] %v493
  %622 = vst [vmem:[%s3 + $0x48] sm:$0xf] %v494
  %623 = vst [vmem:[%s3 + $0x4c] sm:$0xf] %v495
  %624 = vst [vmem:[%s3 + $0x50] sm:$0xf] %v496
  %625 = vst [vmem:[%s3 + $0x54] sm:$0xf] %v497
  %626 = vst [vmem:[%s3 + $0x58] sm:$0xf] %v498
  %627 = vst [vmem:[%s3 + $0x5c] sm:$0xf] %v499
  %628 = vst [vmem:[%s3 + $0x60] sm:$0xf] %v500
  %629 = vst [vmem:[%s3 + $0x64] sm:$0xf] %v501
  %630 = vst [vmem:[%s3 + $0x68] sm:$0xf] %v502
  %631 = vst [vmem:[%s3 + $0x6c] sm:$0xf] %v503
  %632 = vst [vmem:[%s3 + $0x70] sm:$0xf] %v504
  %633 = vst [vmem:[%s3 + $0x74] sm:$0xf] %v505
  %634 = vst [vmem:[%s3 + $0x78] sm:$0xf] %v506
  %635 = vst [vmem:[%s3 + $0x7c] sm:$0xf] %v507
  %636 = vst [vmem:[%s3 + $0x80] sm:$0xf] %v508
  %637 = vst [vmem:[%s3 + $0x84] sm:$0xf] %v509
  %638 = vst [vmem:[%s3 + $0x88] sm:$0xf] %v510
  %639 = vst [vmem:[%s3 + $0x8c] sm:$0xf] %v511
  %640 = vst [vmem:[%s3 + $0x90] sm:$0xf] %v512
  %641 = vst [vmem:[%s3 + $0x94] sm:$0xf] %v513
  %642 = vst [vmem:[%s3 + $0x98] sm:$0xf] %v514
  %643 = vst [vmem:[%s3 + $0x9c] sm:$0xf] %v515
  %644 = vst [vmem:[%s3 + $0xa0] sm:$0xf] %v516
  %645 = vst [vmem:[%s3 + $0xa4] sm:$0xf] %v517
  %646 = vst [vmem:[%s3 + $0xa8] sm:$0xf] %v518
  %647 = vst [vmem:[%s3 + $0xac] sm:$0xf] %v519
  %648 = vst [vmem:[%s3 + $0xb0] sm:$0xf] %v520
  %649 = vst [vmem:[%s3 + $0xb4] sm:$0xf] %v521
  %650 = vst [vmem:[%s3 + $0xb8] sm:$0xf] %v522
  %651 = vst [vmem:[%s3 + $0xbc] sm:$0xf] %v523
  %652 = vst [vmem:[%s3 + $0xc0] sm:$0xf] %v524
  %653 = vst [vmem:[%s3 + $0xc4] sm:$0xf] %v525
  %654 = vst [vmem:[%s3 + $0xc8] sm:$0xf] %v526
  %655 = vst [vmem:[%s3 + $0xcc] sm:$0xf] %v527
  %656 = vst [vmem:[%s3 + $0xd0] sm:$0xf] %v528
  %657 = vst [vmem:[%s3 + $0xd4] sm:$0xf] %v529
  %658 = vst [vmem:[%s3 + $0xd8] sm:$0xf] %v530
  %659 = vst [vmem:[%s3 + $0xdc] sm:$0xf] %v531
  %660 = vst [vmem:[%s3 + $0xe0] sm:$0xf] %v532
  %661 = vst [vmem:[%s3 + $0xe4] sm:$0xf] %v533
  %662 = vst [vmem:[%s3 + $0xe8] sm:$0xf] %v534
  %663 = vst [vmem:[%s3 + $0xec] sm:$0xf] %v535
  %664 = vst [vmem:[%s3 + $0xf0] sm:$0xf] %v536
  %665 = vst [vmem:[%s3 + $0xf4] sm:$0xf] %v537
  %666 = vst [vmem:[%s3 + $0xf8] sm:$0xf] %v538
  %667 = vst [vmem:[%s3 + $0xfc] sm:$0xf] %v539
  // Predicated region
  $region14: #{residual_block_forward.5} parent=0 // pred_check
    _
  $region15: #{residual_block_forward.5} parent=0 // pred_check_branch
    %669 = sbr.rel (0) target = $region17
  $region16: #{residual_block_forward.5} parent=0 // pred_region
    _
  $region17: #{residual_block_forward.5} parent=0 // pred_fallthru
    _
  // Predicated region
  $region18: #{residual_block_forward.5} parent=0 // pred_check
    _
  $region19: #{residual_block_forward.5} parent=0 // pred_check_branch
    %671 = sbr.rel (0) target = $region21
  $region20: #{residual_block_forward.5} parent=0 // pred_region
    _
  $region21: #{residual_block_forward.5} parent=0 // pred_fallthru
    _

// kernel: residual_block_forward.4
$region0: #{residual_block_forward.4}
  #allocation0 [shape = 'u32[]', space=smem, size = 0x4, offset = 0x4, fixed_abs, tag = 'smem constant byte address 0x4 - core index']
  #allocation1 [shape = 'u32[144,128]{1,0:T(1,128)}', space=vmem, size = 0x12000, scoped, tag = 'internal scratch']
  #allocation2 [shape = 'f32[512,128]{1,0:T(8,128)}', space=vmem, size = 0x40000, scoped, tag = 'scratch operand']
  %s0 = inlined_call_operand.vmem [shape: bf16[512,36], index: 0, kind: input, shape index: {}]
  %s1 = inlined_call_operand.vmem [shape: bf16[36,128], index: 1, kind: input, shape index: {}]
  %s2 = inlined_call_operand.vmem [shape: bf16[512,128], index: 2, kind: output, shape index: {0}]
  %s3 = inlined_call_operand.vmem [shape: f32[1,2,128], index: 3, kind: output, shape index: {1}]
  %4 = xla_tuple %s2, %s3
  %s5 = sld [smem:[#allocation0]]
  $region34: #{residual_block_forward.4} parent=0
    _
  %s7 = ssub.s32 1, %s5
  %s8 = scalar_select 0, %s7, %s5
  // Predicated region
  $region2: #{residual_block_forward.4} parent=0 // pred_check
    _
  $region3: #{residual_block_forward.4} parent=0 // pred_check_branch
    %10 = sbr.rel (0) target = $region5
  $region4: #{residual_block_forward.4} parent=0 // pred_region
    _
  $region5: #{residual_block_forward.4} parent=0 // pred_fallthru
    _
  // Predicated region
  $region6: #{residual_block_forward.4} parent=0 // pred_check
    _
  $region7: #{residual_block_forward.4} parent=0 // pred_check_branch
    %12 = sbr.rel (0) target = $region9
  $region8: #{residual_block_forward.4} parent=0 // pred_region
    _
  $region9: #{residual_block_forward.4} parent=0 // pred_fallthru
    _
  %p14 = scmp.eq.s32.totalorder 0, 0
  // Predicated region
  $region10: #{residual_block_forward.4} parent=0 // pred_check
    %p15 = pneg %p14
  $region11: #{residual_block_forward.4} parent=0 // pred_check_branch
    %17 = sbr.rel (%p15) target = $region13
  $region12: #{residual_block_forward.4} parent=0 // pred_region
    %18 = vst [vmem:[#allocation2] sm:$0xff] 0.0
    %19 = vst [vmem:[#allocation2 + $0x8] sm:$0xff] 0.0
    %20 = vst [vmem:[#allocation2 + $0x10] sm:$0xff] 0.0
    %21 = vst [vmem:[#allocation2 + $0x18] sm:$0xff] 0.0
    %22 = vst [vmem:[#allocation2 + $0x20] sm:$0xff] 0.0
    %23 = vst [vmem:[#allocation2 + $0x28] sm:$0xff] 0.0
    %24 = vst [vmem:[#allocation2 + $0x30] sm:$0xff] 0.0
    %25 = vst [vmem:[#allocation2 + $0x38] sm:$0xff] 0.0
    %26 = vst [vmem:[#allocation2 + $0x40] sm:$0xff] 0.0
    %27 = vst [vmem:[#allocation2 + $0x48] sm:$0xff] 0.0
    %28 = vst [vmem:[#allocation2 + $0x50] sm:$0xff] 0.0
    %29 = vst [vmem:[#allocation2 + $0x58] sm:$0xff] 0.0
    %30 = vst [vmem:[#allocation2 + $0x60] sm:$0xff] 0.0
    %31 = vst [vmem:[#allocation2 + $0x68] sm:$0xff] 0.0
    %32 = vst [vmem:[#allocation2 + $0x70] sm:$0xff] 0.0
    %33 = vst [vmem:[#allocation2 + $0x78] sm:$0xff] 0.0
    %34 = vst [vmem:[#allocation2 + $0x80] sm:$0xff] 0.0
    %35 = vst [vmem:[#allocation2 + $0x88] sm:$0xff] 0.0
    %36 = vst [vmem:[#allocation2 + $0x90] sm:$0xff] 0.0
    %37 = vst [vmem:[#allocation2 + $0x98] sm:$0xff] 0.0
    %38 = vst [vmem:[#allocation2 + $0xa0] sm:$0xff] 0.0
    %39 = vst [vmem:[#allocation2 + $0xa8] sm:$0xff] 0.0
    %40 = vst [vmem:[#allocation2 + $0xb0] sm:$0xff] 0.0
    %41 = vst [vmem:[#allocation2 + $0xb8] sm:$0xff] 0.0
    %42 = vst [vmem:[#allocation2 + $0xc0] sm:$0xff] 0.0
    %43 = vst [vmem:[#allocation2 + $0xc8] sm:$0xff] 0.0
    %44 = vst [vmem:[#allocation2 + $0xd0] sm:$0xff] 0.0
    %45 = vst [vmem:[#allocation2 + $0xd8] sm:$0xff] 0.0
    %46 = vst [vmem:[#allocation2 + $0xe0] sm:$0xff] 0.0
    %47 = vst [vmem:[#allocation2 + $0xe8] sm:$0xff] 0.0
    %48 = vst [vmem:[#allocation2 + $0xf0] sm:$0xff] 0.0
    %49 = vst [vmem:[#allocation2 + $0xf8] sm:$0xff] 0.0
    %50 = vst [vmem:[#allocation2 + $0x100] sm:$0xff] 0.0
    %51 = vst [vmem:[#allocation2 + $0x108] sm:$0xff] 0.0
    %52 = vst [vmem:[#allocation2 + $0x110] sm:$0xff] 0.0
    %53 = vst [vmem:[#allocation2 + $0x118] sm:$0xff] 0.0
    %54 = vst [vmem:[#allocation2 + $0x120] sm:$0xff] 0.0
    %55 = vst [vmem:[#allocation2 + $0x128] sm:$0xff] 0.0
    %56 = vst [vmem:[#allocation2 + $0x130] sm:$0xff] 0.0
    %57 = vst [vmem:[#allocation2 + $0x138] sm:$0xff] 0.0
    %58 = vst [vmem:[#allocation2 + $0x140] sm:$0xff] 0.0
    %59 = vst [vmem:[#allocation2 + $0x148] sm:$0xff] 0.0
    %60 = vst [vmem:[#allocation2 + $0x150] sm:$0xff] 0.0
    %61 = vst [vmem:[#allocation2 + $0x158] sm:$0xff] 0.0
    %62 = vst [vmem:[#allocation2 + $0x160] sm:$0xff] 0.0
    %63 = vst [vmem:[#allocation2 + $0x168] sm:$0xff] 0.0
    %64 = vst [vmem:[#allocation2 + $0x170] sm:$0xff] 0.0
    %65 = vst [vmem:[#allocation2 + $0x178] sm:$0xff] 0.0
    %66 = vst [vmem:[#allocation2 + $0x180] sm:$0xff] 0.0
    %67 = vst [vmem:[#allocation2 + $0x188] sm:$0xff] 0.0
    %68 = vst [vmem:[#allocation2 + $0x190] sm:$0xff] 0.0
    %69 = vst [vmem:[#allocation2 + $0x198] sm:$0xff] 0.0
    %70 = vst [vmem:[#allocation2 + $0x1a0] sm:$0xff] 0.0
    %71 = vst [vmem:[#allocation2 + $0x1a8] sm:$0xff] 0.0
    %72 = vst [vmem:[#allocation2 + $0x1b0] sm:$0xff] 0.0
    %73 = vst [vmem:[#allocation2 + $0x1b8] sm:$0xff] 0.0
    %74 = vst [vmem:[#allocation2 + $0x1c0] sm:$0xff] 0.0
    %75 = vst [vmem:[#allocation2 + $0x1c8] sm:$0xff] 0.0
    %76 = vst [vmem:[#allocation2 + $0x1d0] sm:$0xff] 0.0
    %77 = vst [vmem:[#allocation2 + $0x1d8] sm:$0xff] 0.0
    %78 = vst [vmem:[#allocation2 + $0x1e0] sm:$0xff] 0.0
    %79 = vst [vmem:[#allocation2 + $0x1e8] sm:$0xff] 0.0
    %80 = vst [vmem:[#allocation2 + $0x1f0] sm:$0xff] 0.0
    %81 = vst [vmem:[#allocation2 + $0x1f8] sm:$0xff] 0.0
  $region13: #{residual_block_forward.4} parent=0 // pred_fallthru
    _
  %v82 = vld [vmem:[#allocation2] sm:$0xff]
  %v83 = vld [vmem:[#allocation2 + $0x8] sm:$0xff]
  %v84 = vld [vmem:[#allocation2 + $0x10] sm:$0xff]
  %v85 = vld [vmem:[#allocation2 + $0x18] sm:$0xff]
  %v86 = vld [vmem:[#allocation2 + $0x20] sm:$0xff]
  %v87 = vld [vmem:[#allocation2 + $0x28] sm:$0xff]
  %v88 = vld [vmem:[#allocation2 + $0x30] sm:$0xff]
  %v89 = vld [vmem:[#allocation2 + $0x38] sm:$0xff]
  %v90 = vld [vmem:[#allocation2 + $0x40] sm:$0xff]
  %v91 = vld [vmem:[#allocation2 + $0x48] sm:$0xff]
  %v92 = vld [vmem:[#allocation2 + $0x50] sm:$0xff]
  %v93 = vld [vmem:[#allocation2 + $0x58] sm:$0xff]
  %v94 = vld [vmem:[#allocation2 + $0x60] sm:$0xff]
  %v95 = vld [vmem:[#allocation2 + $0x68] sm:$0xff]
  %v96 = vld [vmem:[#allocation2 + $0x70] sm:$0xff]
  %v97 = vld [vmem:[#allocation2 + $0x78] sm:$0xff]
  %v98 = vld [vmem:[#allocation2 + $0x80] sm:$0xff]
  %v99 = vld [vmem:[#allocation2 + $0x88] sm:$0xff]
  %v100 = vld [vmem:[#allocation2 + $0x90] sm:$0xff]
  %v101 = vld [vmem:[#allocation2 + $0x98] sm:$0xff]
  %v102 = vld [vmem:[#allocation2 + $0xa0] sm:$0xff]
  %v103 = vld [vmem:[#allocation2 + $0xa8] sm:$0xff]
  %v104 = vld [vmem:[#allocation2 + $0xb0] sm:$0xff]
  %v105 = vld [vmem:[#allocation2 + $0xb8] sm:$0xff]
  %v106 = vld [vmem:[#allocation2 + $0xc0] sm:$0xff]
  %v107 = vld [vmem:[#allocation2 + $0xc8] sm:$0xff]
  %v108 = vld [vmem:[#allocation2 + $0xd0] sm:$0xff]
  %v109 = vld [vmem:[#allocation2 + $0xd8] sm:$0xff]
  %v110 = vld [vmem:[#allocation2 + $0xe0] sm:$0xff]
  %v111 = vld [vmem:[#allocation2 + $0xe8] sm:$0xff]
  %v112 = vld [vmem:[#allocation2 + $0xf0] sm:$0xff]
  %v113 = vld [vmem:[#allocation2 + $0xf8] sm:$0xff]
  %v114 = vld [vmem:[#allocation2 + $0x100] sm:$0xff]
  %v115 = vld [vmem:[#allocation2 + $0x108] sm:$0xff]
  %v116 = vld [vmem:[#allocation2 + $0x110] sm:$0xff]
  %v117 = vld [vmem:[#allocation2 + $0x118] sm:$0xff]
  %v118 = vld [vmem:[#allocation2 + $0x120] sm:$0xff]
  %v119 = vld [vmem:[#allocation2 + $0x128] sm:$0xff]
  %v120 = vld [vmem:[#allocation2 + $0x130] sm:$0xff]
  %v121 = vld [vmem:[#allocation2 + $0x138] sm:$0xff]
  %v122 = vld [vmem:[#allocation2 + $0x140] sm:$0xff]
  %v123 = vld [vmem:[#allocation2 + $0x148] sm:$0xff]
  %v124 = vld [vmem:[#allocation2 + $0x150] sm:$0xff]
  %v125 = vld [vmem:[#allocation2 + $0x158] sm:$0xff]
  %v126 = vld [vmem:[#allocation2 + $0x160] sm:$0xff]
  %v127 = vld [vmem:[#allocation2 + $0x168] sm:$0xff]
  %v128 = vld [vmem:[#allocation2 + $0x170] sm:$0xff]
  %v129 = vld [vmem:[#allocation2 + $0x178] sm:$0xff]
  %v130 = vld [vmem:[#allocation2 + $0x180] sm:$0xff]
  %v131 = vld [vmem:[#allocation2 + $0x188] sm:$0xff]
  %v132 = vld [vmem:[#allocation2 + $0x190] sm:$0xff]
  %v133 = vld [vmem:[#allocation2 + $0x198] sm:$0xff]
  %v134 = vld [vmem:[#allocation2 + $0x1a0] sm:$0xff]
  %v135 = vld [vmem:[#allocation2 + $0x1a8] sm:$0xff]
  %v136 = vld [vmem:[#allocation2 + $0x1b0] sm:$0xff]
  %v137 = vld [vmem:[#allocation2 + $0x1b8] sm:$0xff]
  %v138 = vld [vmem:[#allocation2 + $0x1c0] sm:$0xff]
  %v139 = vld [vmem:[#allocation2 + $0x1c8] sm:$0xff]
  %v140 = vld [vmem:[#allocation2 + $0x1d0] sm:$0xff]
  %v141 = vld [vmem:[#allocation2 + $0x1d8] sm:$0xff]
  %v142 = vld [vmem:[#allocation2 + $0x1e0] sm:$0xff]
  %v143 = vld [vmem:[#allocation2 + $0x1e8] sm:$0xff]
  %v144 = vld [vmem:[#allocation2 + $0x1f0] sm:$0xff]
  %v145 = vld [vmem:[#allocation2 + $0x1f8] sm:$0xff]
  %v146 = vld [vmem:[%s0] sm:$0xf]
  %v147 = vld [vmem:[%s0 + $0x4] sm:$0xf]
  %v148 = vld [vmem:[%s0 + $0x8] sm:$0xf]
  %v149 = vld [vmem:[%s0 + $0xc] sm:$0xf]
  %v150 = vld [vmem:[%s0 + $0x10] sm:$0xf]
  %v151 = vld [vmem:[%s0 + $0x14] sm:$0xf]
  %v152 = vld [vmem:[%s0 + $0x18] sm:$0xf]
  %v153 = vld [vmem:[%s0 + $0x1c] sm:$0xf]
  %v154 = vld [vmem:[%s0 + $0x20] sm:$0xf]
  %v155 = vld [vmem:[%s0 + $0x24] sm:$0xf]
  %v156 = vld [vmem:[%s0 + $0x28] sm:$0xf]
  %v157 = vld [vmem:[%s0 + $0x2c] sm:$0xf]
  %v158 = vld [vmem:[%s0 + $0x30] sm:$0xf]
  %v159 = vld [vmem:[%s0 + $0x34] sm:$0xf]
  %v160 = vld [vmem:[%s0 + $0x38] sm:$0xf]
  %v161 = vld [vmem:[%s0 + $0x3c] sm:$0xf]
  %v162 = vld [vmem:[%s0 + $0x40] sm:$0xf]
  %v163 = vld [vmem:[%s0 + $0x44] sm:$0xf]
  %v164 = vld [vmem:[%s0 + $0x48] sm:$0xf]
  %v165 = vld [vmem:[%s0 + $0x4c] sm:$0xf]
  %v166 = vld [vmem:[%s0 + $0x50] sm:$0xf]
  %v167 = vld [vmem:[%s0 + $0x54] sm:$0xf]
  %v168 = vld [vmem:[%s0 + $0x58] sm:$0xf]
  %v169 = vld [vmem:[%s0 + $0x5c] sm:$0xf]
  %v170 = vld [vmem:[%s0 + $0x60] sm:$0xf]
  %v171 = vld [vmem:[%s0 + $0x64] sm:$0xf]
  %v172 = vld [vmem:[%s0 + $0x68] sm:$0xf]
  %v173 = vld [vmem:[%s0 + $0x6c] sm:$0xf]
  %v174 = vld [vmem:[%s0 + $0x70] sm:$0xf]
  %v175 = vld [vmem:[%s0 + $0x74] sm:$0xf]
  %v176 = vld [vmem:[%s0 + $0x78] sm:$0xf]
  %v177 = vld [vmem:[%s0 + $0x7c] sm:$0xf]
  %v178 = vld [vmem:[%s0 + $0x80] sm:$0xf]
  %v179 = vld [vmem:[%s0 + $0x84] sm:$0xf]
  %v180 = vld [vmem:[%s0 + $0x88] sm:$0xf]
  %v181 = vld [vmem:[%s0 + $0x8c] sm:$0xf]
  %v182 = vld [vmem:[%s0 + $0x90] sm:$0xf]
  %v183 = vld [vmem:[%s0 + $0x94] sm:$0xf]
  %v184 = vld [vmem:[%s0 + $0x98] sm:$0xf]
  %v185 = vld [vmem:[%s0 + $0x9c] sm:$0xf]
  %v186 = vld [vmem:[%s0 + $0xa0] sm:$0xf]
  %v187 = vld [vmem:[%s0 + $0xa4] sm:$0xf]
  %v188 = vld [vmem:[%s0 + $0xa8] sm:$0xf]
  %v189 = vld [vmem:[%s0 + $0xac] sm:$0xf]
  %v190 = vld [vmem:[%s0 + $0xb0] sm:$0xf]
  %v191 = vld [vmem:[%s0 + $0xb4] sm:$0xf]
  %v192 = vld [vmem:[%s0 + $0xb8] sm:$0xf]
  %v193 = vld [vmem:[%s0 + $0xbc] sm:$0xf]
  %v194 = vld [vmem:[%s0 + $0xc0] sm:$0xf]
  %v195 = vld [vmem:[%s0 + $0xc4] sm:$0xf]
  %v196 = vld [vmem:[%s0 + $0xc8] sm:$0xf]
  %v197 = vld [vmem:[%s0 + $0xcc] sm:$0xf]
  %v198 = vld [vmem:[%s0 + $0xd0] sm:$0xf]
  %v199 = vld [vmem:[%s0 + $0xd4] sm:$0xf]
  %v200 = vld [vmem:[%s0 + $0xd8] sm:$0xf]
  %v201 = vld [vmem:[%s0 + $0xdc] sm:$0xf]
  %v202 = vld [vmem:[%s0 + $0xe0] sm:$0xf]
  %v203 = vld [vmem:[%s0 + $0xe4] sm:$0xf]
  %v204 = vld [vmem:[%s0 + $0xe8] sm:$0xf]
  %v205 = vld [vmem:[%s0 + $0xec] sm:$0xf]
  %v206 = vld [vmem:[%s0 + $0xf0] sm:$0xf]
  %v207 = vld [vmem:[%s0 + $0xf4] sm:$0xf]
  %v208 = vld [vmem:[%s0 + $0xf8] sm:$0xf]
  %v209 = vld [vmem:[%s0 + $0xfc] sm:$0xf]
  %v210 = vld [vmem:[%s1] sm:$0xf]
  %v211 = vld [vmem:[%s1 + $0x4] sm:$0xf]
  %v212 = vld [vmem:[%s1 + $0x8] sm:$0xf]
  %v213 = vld [vmem:[%s1 + $0xc] sm:$0xf]
  %v214 = vld [vmem:[%s1 + $0x10] sm:$0x3]
  %v279 = vunpack.c.l.b16 %v146
  %v280 = vunpack.c.l.b16 %v147
  %v281 = vunpack.c.l.b16 %v148
  %v282 = vunpack.c.l.b16 %v149
  %v283 = vunpack.c.l.b16 %v150
  %v284 = vunpack.c.l.b16 %v151
  %v285 = vunpack.c.l.b16 %v152
  %v286 = vunpack.c.l.b16 %v153
  %v287 = vunpack.c.l.b16 %v154
  %v288 = vunpack.c.l.b16 %v155
  %v289 = vunpack.c.l.b16 %v156
  %v290 = vunpack.c.l.b16 %v157
  %v291 = vunpack.c.l.b16 %v158
  %v292 = vunpack.c.l.b16 %v159
  %v293 = vunpack.c.l.b16 %v160
  %v294 = vunpack.c.l.b16 %v161
  %v295 = vunpack.c.l.b16 %v162
  %v296 = vunpack.c.l.b16 %v163
  %v297 = vunpack.c.l.b16 %v164
  %v298 = vunpack.c.l.b16 %v165
  %v299 = vunpack.c.l.b16 %v166
  %v300 = vunpack.c.l.b16 %v167
  %v301 = vunpack.c.l.b16 %v168
  %v302 = vunpack.c.l.b16 %v169
  %v303 = vunpack.c.l.b16 %v170
  %v304 = vunpack.c.l.b16 %v171
  %v305 = vunpack.c.l.b16 %v172
  %v306 = vunpack.c.l.b16 %v173
  %v307 = vunpack.c.l.b16 %v174
  %v308 = vunpack.c.l.b16 %v175
  %v309 = vunpack.c.l.b16 %v176
  %v310 = vunpack.c.l.b16 %v177
  %v311 = vunpack.c.l.b16 %v178
  %v312 = vunpack.c.l.b16 %v179
  %v313 = vunpack.c.l.b16 %v180
  %v314 = vunpack.c.l.b16 %v181
  %v315 = vunpack.c.l.b16 %v182
  %v316 = vunpack.c.l.b16 %v183
  %v317 = vunpack.c.l.b16 %v184
  %v318 = vunpack.c.l.b16 %v185
  %v319 = vunpack.c.l.b16 %v186
  %v320 = vunpack.c.l.b16 %v187
  %v321 = vunpack.c.l.b16 %v188
  %v322 = vunpack.c.l.b16 %v189
  %v323 = vunpack.c.l.b16 %v190
  %v324 = vunpack.c.l.b16 %v191
  %v325 = vunpack.c.l.b16 %v192
  %v326 = vunpack.c.l.b16 %v193
  %v327 = vunpack.c.l.b16 %v194
  %v328 = vunpack.c.l.b16 %v195
  %v329 = vunpack.c.l.b16 %v196
  %v330 = vunpack.c.l.b16 %v197
  %v331 = vunpack.c.l.b16 %v198
  %v332 = vunpack.c.l.b16 %v199
  %v333 = vunpack.c.l.b16 %v200
  %v334 = vunpack.c.l.b16 %v201
  %v335 = vunpack.c.l.b16 %v202
  %v336 = vunpack.c.l.b16 %v203
  %v337 = vunpack.c.l.b16 %v204
  %v338 = vunpack.c.l.b16 %v205
  %v339 = vunpack.c.l.b16 %v206
  %v340 = vunpack.c.l.b16 %v207
  %v341 = vunpack.c.l.b16 %v208
  %v342 = vunpack.c.l.b16 %v209
  %v343 = vpack.c.b16 %v280, %v279
  %v344 = vpack.c.b16 %v282, %v281
  %v345 = vpack.c.b16 %v284, %v283
  %v346 = vpack.c.b16 %v286, %v285
  %v347 = vpack.c.b16 %v288, %v287
  %v348 = vpack.c.b16 %v290, %v289
  %v349 = vpack.c.b16 %v292, %v291
  %v350 = vpack.c.b16 %v294, %v293
  %v351 = vpack.c.b16 %v296, %v295
  %v352 = vpack.c.b16 %v298, %v297
  %v353 = vpack.c.b16 %v300, %v299
  %v354 = vpack.c.b16 %v302, %v301
  %v355 = vpack.c.b16 %v304, %v303
  %v356 = vpack.c.b16 %v306, %v305
  %v357 = vpack.c.b16 %v308, %v307
  %v358 = vpack.c.b16 %v310, %v309
  %v359 = vpack.c.b16 %v312, %v311
  %v360 = vpack.c.b16 %v314, %v313
  %v361 = vpack.c.b16 %v316, %v315
  %v362 = vpack.c.b16 %v318, %v317
  %v363 = vpack.c.b16 %v320, %v319
  %v364 = vpack.c.b16 %v322, %v321
  %v365 = vpack.c.b16 %v324, %v323
  %v366 = vpack.c.b16 %v326, %v325
  %v367 = vpack.c.b16 %v328, %v327
  %v368 = vpack.c.b16 %v330, %v329
  %v369 = vpack.c.b16 %v332, %v331
  %v370 = vpack.c.b16 %v334, %v333
  %v371 = vpack.c.b16 %v336, %v335
  %v372 = vpack.c.b16 %v338, %v337
  %v373 = vpack.c.b16 %v340, %v339
  %v374 = vpack.c.b16 %v342, %v341
  %v380 = vunpack.c.l.b16 %v210
  %v381 = vunpack.c.l.b16 %v211
  %v382 = vunpack.c.l.b16 %v212
  %v383 = vunpack.c.l.b16 %v213
  %v384 = vunpack.c.l.b16 %v214
  %v385 = vpack.c.b16 %v381, %v380
  %v386 = vpack.c.b16 %v383, %v382
  %v387 = vpack.c.b16 %v384, %v384
  %vm390 = vcmask 293888
  %v392 = vsel %vm390, %v343, 0
  %v395 = vsel %vm390, %v344, 0
  %v398 = vsel %vm390, %v345, 0
  %v401 = vsel %vm390, %v346, 0
  %v404 = vsel %vm390, %v347, 0
  %v407 = vsel %vm390, %v348, 0
  %v410 = vsel %vm390, %v349, 0
  %v413 = vsel %vm390, %v350, 0
  %v416 = vsel %vm390, %v351, 0
  %v419 = vsel %vm390, %v352, 0
  %v422 = vsel %vm390, %v353, 0
  %v425 = vsel %vm390, %v354, 0
  %v428 = vsel %vm390, %v355, 0
  %v431 = vsel %vm390, %v356, 0
  %v434 = vsel %vm390, %v357, 0
  %v437 = vsel %vm390, %v358, 0
  %v440 = vsel %vm390, %v359, 0
  %v443 = vsel %vm390, %v360, 0
  %v446 = vsel %vm390, %v361, 0
  %v449 = vsel %vm390, %v362, 0
  %v452 = vsel %vm390, %v363, 0
  %v455 = vsel %vm390, %v364, 0
  %v458 = vsel %vm390, %v365, 0
  %v461 = vsel %vm390, %v366, 0
  %v464 = vsel %vm390, %v367, 0
  %v467 = vsel %vm390, %v368, 0
  %v470 = vsel %vm390, %v369, 0
  %v473 = vsel %vm390, %v370, 0
  %v476 = vsel %vm390, %v371, 0
  %v479 = vsel %vm390, %v372, 0
  %v482 = vsel %vm390, %v373, 0
  %v485 = vsel %vm390, %v374, 0
  %vm487 = vcmask 1041408
  %v489 = vsel %vm487, %v387, 0
  %491 = vmatprep.subr.bf16.mxu0 0
  %492 = vmatpush1.bf16.msra.mxu0 %v385
  %493 = vmatprep.subr.bf16.mxu0 0
  %494 = vmatpush1.bf16.msra.mxu0 %v386
  %495 = vmatprep.subr.bf16.mxu0 0
  %496 = vmatpush1.bf16.msra.mxu0 %v489
  %497 = vmatprep.subr.bf16.mxu0 0
  %498 = vmatpush1.bf16.msra.mxu0 0
  %499 = vmatprep.subr.bf16.mxu0 0
  %500 = vmatpush1.bf16.msra.mxu0 0
  %501 = vmatprep.subr.bf16.mxu0 0
  %502 = vmatpush1.bf16.msra.mxu0 0
  %503 = vmatprep.subr.bf16.mxu0 0
  %504 = vmatpush1.bf16.msra.mxu0 0
  %505 = vmatprep.subr.bf16.mxu0 0
  %506 = vmatpush1.bf16.msra.mxu0 0
  %507 = vmatprep.subr.bf16.mxu0 0
  %508 = vmatpush1.bf16.msra.mxu0 0
  %509 = vmatprep.subr.bf16.mxu0 0
  %510 = vmatpush1.bf16.msra.mxu0 0
  %511 = vmatprep.subr.bf16.mxu0 0
  %512 = vmatpush1.bf16.msra.mxu0 0
  %513 = vmatprep.subr.bf16.mxu0 0
  %514 = vmatpush1.bf16.msra.mxu0 0
  %515 = vmatprep.subr.bf16.mxu0 0
  %516 = vmatpush1.bf16.msra.mxu0 0
  %517 = vmatprep.subr.bf16.mxu0 0
  %518 = vmatpush1.bf16.msra.mxu0 0
  %519 = vmatprep.subr.bf16.mxu0 0
  %520 = vmatpush1.bf16.msra.mxu0 0
  %521 = vmatprep.subr.bf16.mxu0 0
  %522 = vmatpush1.bf16.msra.mxu0 0
  %523 = vmatprep.mubr.bf16.mxu0 0
  %524 = vmatmul.mubr.bf16.gmra.mrb[0].mxu0 %v392
  %v525 = vpop.f32.mrb[0].mxu0
  %v526 = vadd.f32 0.0, %v525
  %v527 = vpop.f32.mrb[0].mxu0
  %v528 = vpop.f32.mrb[0].mxu0
  %v529 = vadd.f32 0.0, %v528
  %v530 = vpop.f32.mrb[0].mxu0
  %531 = vmatprep.mubr.bf16.mxu0 0
  %532 = vmatmul.mubr.bf16.gmra.mrb[0].mxu0 %v395
  %v533 = vpop.f32.mrb[0].mxu0
  %v534 = vadd.f32 0.0, %v533
  %v535 = vpop.f32.mrb[0].mxu0
  %v536 = vpop.f32.mrb[0].mxu0
  %v537 = vadd.f32 0.0, %v536
  %v538 = vpop.f32.mrb[0].mxu0
  %539 = vmatprep.mubr.bf16.mxu0 0
  %540 = vmatmul.mubr.bf16.gmra.mrb[0].mxu0 %v398
  %v541 = vpop.f32.mrb[0].mxu0
  %v542 = vadd.f32 0.0, %v541
  %v543 = vpop.f32.mrb[0].mxu0
  %v544 = vpop.f32.mrb[0].mxu0
  %v545 = vadd.f32 0.0, %v544
  %v546 = vpop.f32.mrb[0].mxu0
  %547 = vmatprep.mubr.bf16.mxu0 0
  %548 = vmatmul.mubr.bf16.gmra.mrb[0].mxu0 %v401
  %v549 = vpop.f32.mrb[0].mxu0
  %v550 = vadd.f32 0.0, %v549
  %v551 = vpop.f32.mrb[0].mxu0
  %v552 = vpop.f32.mrb[0].mxu0
  %v553 = vadd.f32 0.0, %v552
  %v554 = vpop.f32.mrb[0].mxu0
  %555 = vmatprep.mubr.bf16.mxu0 0
  %556 = vmatmul.mubr.bf16.gmra.mrb[0].mxu0 %v404
  %v557 = vpop.f32.mrb[0].mxu0
  %v558 = vadd.f32 0.0, %v557
  %v559 = vpop.f32.mrb[0].mxu0
  %v560 = vpop.f32.mrb[0].mxu0
  %v561 = vadd.f32 0.0, %v560
  %v562 = vpop.f32.mrb[0].mxu0
  %563 = vmatprep.mubr.bf16.mxu0 0
  %564 = vmatmul.mubr.bf16.gmra.mrb[0].mxu0 %v407
  %v565 = vpop.f32.mrb[0].mxu0
  %v566 = vadd.f32 0.0, %v565
  %v567 = vpop.f32.mrb[0].mxu0
  %v568 = vpop.f32.mrb[0].mxu0
  %v569 = vadd.f32 0.0, %v568
  %v570 = vpop.f32.mrb[0].mxu0
  %571 = vmatprep.mubr.bf16.mxu0 0
  %572 = vmatmul.mubr.bf16.gmra.mrb[0].mxu0 %v410
  %v573 = vpop.f32.mrb[0].mxu0
  %v574 = vadd.f32 0.0, %v573
  %v575 = vpop.f32.mrb[0].mxu0
  %v576 = vpop.f32.mrb[0].mxu0
  %v577 = vadd.f32 0.0, %v576
  %v578 = vpop.f32.mrb[0].mxu0
  %579 = vmatprep.mubr.bf16.mxu0 0
  %580 = vmatmul.mubr.bf16.gmra.mrb[0].mxu0 %v413
  %v581 = vpop.f32.mrb[0].mxu0
  %v582 = vadd.f32 0.0, %v581
  %v583 = vpop.f32.mrb[0].mxu0
  %v584 = vpop.f32.mrb[0].mxu0
  %v585 = vadd.f32 0.0, %v584
  %v586 = vpop.f32.mrb[0].mxu0
  %587 = vmatprep.mubr.bf16.mxu0 0
  %588 = vmatmul.mubr.bf16.gmra.mrb[0].mxu0 %v416
  %v589 = vpop.f32.mrb[0].mxu0
  %v590 = vadd.f32 0.0, %v589
  %v591 = vpop.f32.mrb[0].mxu0
  %v592 = vpop.f32.mrb[0].mxu0
  %v593 = vadd.f32 0.0, %v592
  %v594 = vpop.f32.mrb[0].mxu0
  %595 = vmatprep.mubr.bf16.mxu0 0
  %596 = vmatmul.mubr.bf16.gmra.mrb[0].mxu0 %v419
  %v597 = vpop.f32.mrb[0].mxu0
  %v598 = vadd.f32 0.0, %v597
  %v599 = vpop.f32.mrb[0].mxu0
  %v600 = vpop.f32.mrb[0].mxu0
  %v601 = vadd.f32 0.0, %v600
  %v602 = vpop.f32.mrb[0].mxu0
  %603 = vmatprep.mubr.bf16.mxu0 0
  %604 = vmatmul.mubr.bf16.gmra.mrb[0].mxu0 %v422
  %v605 = vpop.f32.mrb[0].mxu0
  %v606 = vadd.f32 0.0, %v605
  %v607 = vpop.f32.mrb[0].mxu0
  %v608 = vpop.f32.mrb[0].mxu0
  %v609 = vadd.f32 0.0, %v608
  %v610 = vpop.f32.mrb[0].mxu0
  %611 = vmatprep.mubr.bf16.mxu0 0
  %612 = vmatmul.mubr.bf16.gmra.mrb[0].mxu0 %v425
  %v613 = vpop.f32.mrb[0].mxu0
  %v614 = vadd.f32 0.0, %v613
  %v615 = vpop.f32.mrb[0].mxu0
  %v616 = vpop.f32.mrb[0].mxu0
  %v617 = vadd.f32 0.0, %v616
  %v618 = vpop.f32.mrb[0].mxu0
  %619 = vmatprep.mubr.bf16.mxu0 0
  %620 = vmatmul.mubr.bf16.gmra.mrb[0].mxu0 %v428
  %v621 = vpop.f32.mrb[0].mxu0
  %v622 = vadd.f32 0.0, %v621
  %v623 = vpop.f32.mrb[0].mxu0
  %v624 = vpop.f32.mrb[0].mxu0
  %v625 = vadd.f32 0.0, %v624
  %v626 = vpop.f32.mrb[0].mxu0
  %627 = vmatprep.mubr.bf16.mxu0 0
  %628 = vmatmul.mubr.bf16.gmra.mrb[0].mxu0 %v431
  %v629 = vpop.f32.mrb[0].mxu0
  %v630 = vadd.f32 0.0, %v629
  %v631 = vpop.f32.mrb[0].mxu0
  %v632 = vpop.f32.mrb[0].mxu0
  %v633 = vadd.f32 0.0, %v632
  %v634 = vpop.f32.mrb[0].mxu0
  %635 = vmatprep.mubr.bf16.mxu0 0
  %636 = vmatmul.mubr.bf16.gmra.mrb[0].mxu0 %v434
  %v637 = vpop.f32.mrb[0].mxu0
  %v638 = vadd.f32 0.0, %v637
  %v639 = vpop.f32.mrb[0].mxu0
  %v640 = vpop.f32.mrb[0].mxu0
  %v641 = vadd.f32 0.0, %v640
  %v642 = vpop.f32.mrb[0].mxu0
  %643 = vmatprep.mubr.bf16.mxu0 0
  %644 = vmatmul.mubr.bf16.gmra.mrb[0].mxu0 %v437
  %v645 = vpop.f32.mrb[0].mxu0
  %v646 = vadd.f32 0.0, %v645
  %v647 = vpop.f32.mrb[0].mxu0
  %v648 = vpop.f32.mrb[0].mxu0
  %v649 = vadd.f32 0.0, %v648
  %v650 = vpop.f32.mrb[0].mxu0
  %651 = vmatprep.mubr.bf16.mxu0 0
  %652 = vmatmul.mubr.bf16.gmra.mrb[0].mxu0 %v440
  %v653 = vpop.f32.mrb[0].mxu0
  %v654 = vadd.f32 0.0, %v653
  %v655 = vpop.f32.mrb[0].mxu0
  %v656 = vpop.f32.mrb[0].mxu0
  %v657 = vadd.f32 0.0, %v656
  %v658 = vpop.f32.mrb[0].mxu0
  %659 = vmatprep.mubr.bf16.mxu0 0
  %660 = vmatmul.mubr.bf16.gmra.mrb[0].mxu0 %v443
  %v661 = vpop.f32.mrb[0].mxu0
  %v662 = vadd.f32 0.0, %v661
  %v663 = vpop.f32.mrb[0].mxu0
  %v664 = vpop.f32.mrb[0].mxu0
  %v665 = vadd.f32 0.0, %v664
  %v666 = vpop.f32.mrb[0].mxu0
  %667 = vmatprep.mubr.bf16.mxu0 0
  %668 = vmatmul.mubr.bf16.gmra.mrb[0].mxu0 %v446
  %v669 = vpop.f32.mrb[0].mxu0
  %v670 = vadd.f32 0.0, %v669
  %v671 = vpop.f32.mrb[0].mxu0
  %v672 = vpop.f32.mrb[0].mxu0
  %v673 = vadd.f32 0.0, %v672
  %v674 = vpop.f32.mrb[0].mxu0
  %675 = vmatprep.mubr.bf16.mxu0 0
  %676 = vmatmul.mubr.bf16.gmra.mrb[0].mxu0 %v449
  %v677 = vpop.f32.mrb[0].mxu0
  %v678 = vadd.f32 0.0, %v677
  %v679 = vpop.f32.mrb[0].mxu0
  %v680 = vpop.f32.mrb[0].mxu0
  %v681 = vadd.f32 0.0, %v680
  %v682 = vpop.f32.mrb[0].mxu0
  %683 = vmatprep.mubr.bf16.mxu0 0
  %684 = vmatmul.mubr.bf16.gmra.mrb[0].mxu0 %v452
  %v685 = vpop.f32.mrb[0].mxu0
  %v686 = vadd.f32 0.0, %v685
  %v687 = vpop.f32.mrb[0].mxu0
  %v688 = vpop.f32.mrb[0].mxu0
  %v689 = vadd.f32 0.0, %v688
  %v690 = vpop.f32.mrb[0].mxu0
  %691 = vmatprep.mubr.bf16.mxu0 0
  %692 = vmatmul.mubr.bf16.gmra.mrb[0].mxu0 %v455
  %v693 = vpop.f32.mrb[0].mxu0
  %v694 = vadd.f32 0.0, %v693
  %v695 = vpop.f32.mrb[0].mxu0
  %v696 = vpop.f32.mrb[0].mxu0
  %v697 = vadd.f32 0.0, %v696
  %v698 = vpop.f32.mrb[0].mxu0
  %699 = vmatprep.mubr.bf16.mxu0 0
  %700 = vmatmul.mubr.bf16.gmra.mrb[0].mxu0 %v458
  %v701 = vpop.f32.mrb[0].mxu0
  %v702 = vadd.f32 0.0, %v701
  %v703 = vpop.f32.mrb[0].mxu0
  %v704 = vpop.f32.mrb[0].mxu0
  %v705 = vadd.f32 0.0, %v704
  %v706 = vpop.f32.mrb[0].mxu0
  %707 = vmatprep.mubr.bf16.mxu0 0
  %708 = vmatmul.mubr.bf16.gmra.mrb[0].mxu0 %v461
  %v709 = vpop.f32.mrb[0].mxu0
  %v710 = vadd.f32 0.0, %v709
  %v711 = vpop.f32.mrb[0].mxu0
  %v712 = vpop.f32.mrb[0].mxu0
  %v713 = vadd.f32 0.0, %v712
  %v714 = vpop.f32.mrb[0].mxu0
  %715 = vmatprep.mubr.bf16.mxu0 0
  %716 = vmatmul.mubr.bf16.gmra.mrb[0].mxu0 %v464
  %v717 = vpop.f32.mrb[0].mxu0
  %v718 = vadd.f32 0.0, %v717
  %v719 = vpop.f32.mrb[0].mxu0
  %v720 = vpop.f32.mrb[0].mxu0
  %v721 = vadd.f32 0.0, %v720
  %v722 = vpop.f32.mrb[0].mxu0
  %723 = vmatprep.mubr.bf16.mxu0 0
  %724 = vmatmul.mubr.bf16.gmra.mrb[0].mxu0 %v467
  %v725 = vpop.f32.mrb[0].mxu0
  %v726 = vadd.f32 0.0, %v725
  %v727 = vpop.f32.mrb[0].mxu0
  %v728 = vpop.f32.mrb[0].mxu0
  %v729 = vadd.f32 0.0, %v728
  %v730 = vpop.f32.mrb[0].mxu0
  %731 = vmatprep.mubr.bf16.mxu0 0
  %732 = vmatmul.mubr.bf16.gmra.mrb[0].mxu0 %v470
  %v733 = vpop.f32.mrb[0].mxu0
  %v734 = vadd.f32 0.0, %v733
  %v735 = vpop.f32.mrb[0].mxu0
  %v736 = vpop.f32.mrb[0].mxu0
  %v737 = vadd.f32 0.0, %v736
  %v738 = vpop.f32.mrb[0].mxu0
  %739 = vmatprep.mubr.bf16.mxu0 0
  %740 = vmatmul.mubr.bf16.gmra.mrb[0].mxu0 %v473
  %v741 = vpop.f32.mrb[0].mxu0
  %v742 = vadd.f32 0.0, %v741
  %v743 = vpop.f32.mrb[0].mxu0
  %v744 = vpop.f32.mrb[0].mxu0
  %v745 = vadd.f32 0.0, %v744
  %v746 = vpop.f32.mrb[0].mxu0
  %747 = vmatprep.mubr.bf16.mxu0 0
  %748 = vmatmul.mubr.bf16.gmra.mrb[0].mxu0 %v476
  %v749 = vpop.f32.mrb[0].mxu0
  %v750 = vadd.f32 0.0, %v749
  %v751 = vpop.f32.mrb[0].mxu0
  %v752 = vpop.f32.mrb[0].mxu0
  %v753 = vadd.f32 0.0, %v752
  %v754 = vpop.f32.mrb[0].mxu0
  %755 = vmatprep.mubr.bf16.mxu0 0
  %756 = vmatmul.mubr.bf16.gmra.mrb[0].mxu0 %v479
  %v757 = vpop.f32.mrb[0].mxu0
  %v758 = vadd.f32 0.0, %v757
  %v759 = vpop.f32.mrb[0].mxu0
  %v760 = vpop.f32.mrb[0].mxu0
  %v761 = vadd.f32 0.0, %v760
  %v762 = vpop.f32.mrb[0].mxu0
  %763 = vmatprep.mubr.bf16.mxu0 0
  %764 = vmatmul.mubr.bf16.gmra.mrb[0].mxu0 %v482
  %v765 = vpop.f32.mrb[0].mxu0
  %v766 = vadd.f32 0.0, %v765
  %v767 = vpop.f32.mrb[0].mxu0
  %v768 = vpop.f32.mrb[0].mxu0
  %v769 = vadd.f32 0.0, %v768
  %v770 = vpop.f32.mrb[0].mxu0
  %771 = vmatprep.mubr.bf16.mxu0 0
  %772 = vmatmul.mubr.bf16.gmra.mrb[0].mxu0 %v485
  %v773 = vpop.f32.mrb[0].mxu0
  %v774 = vadd.f32 0.0, %v773
  %v775 = vpop.f32.mrb[0].mxu0
  %v776 = vpop.f32.mrb[0].mxu0
  %v777 = vadd.f32 0.0, %v776
  %v778 = vpop.f32.mrb[0].mxu0
  %779 = vdwg.mxu0
  %v780 = vadd.f32 %v82, %v526
  %v781 = vadd.f32 %v83, %v529
  %v782 = vadd.f32 %v84, %v534
  %v783 = vadd.f32 %v85, %v537
  %v784 = vadd.f32 %v86, %v542
  %v785 = vadd.f32 %v87, %v545
  %v786 = vadd.f32 %v88, %v550
  %v787 = vadd.f32 %v89, %v553
  %v788 = vadd.f32 %v90, %v558
  %v789 = vadd.f32 %v91, %v561
  %v790 = vadd.f32 %v92, %v566
  %v791 = vadd.f32 %v93, %v569
  %v792 = vadd.f32 %v94, %v574
  %v793 = vadd.f32 %v95, %v577
  %v794 = vadd.f32 %v96, %v582
  %v795 = vadd.f32 %v97, %v585
  %v796 = vadd.f32 %v98, %v590
  %v797 = vadd.f32 %v99, %v593
  %v798 = vadd.f32 %v100, %v598
  %v799 = vadd.f32 %v101, %v601
  %v800 = vadd.f32 %v102, %v606
  %v801 = vadd.f32 %v103, %v609
  %v802 = vadd.f32 %v104, %v614
  %v803 = vadd.f32 %v105, %v617
  %v804 = vadd.f32 %v106, %v622
  %v805 = vadd.f32 %v107, %v625
  %v806 = vadd.f32 %v108, %v630
  %v807 = vadd.f32 %v109, %v633
  %v808 = vadd.f32 %v110, %v638
  %v809 = vadd.f32 %v111, %v641
  %v810 = vadd.f32 %v112, %v646
  %v811 = vadd.f32 %v113, %v649
  %v812 = vadd.f32 %v114, %v654
  %v813 = vadd.f32 %v115, %v657
  %v814 = vadd.f32 %v116, %v662
  %v815 = vadd.f32 %v117, %v665
  %v816 = vadd.f32 %v118, %v670
  %v817 = vadd.f32 %v119, %v673
  %v818 = vadd.f32 %v120, %v678
  %v819 = vadd.f32 %v121, %v681
  %v820 = vadd.f32 %v122, %v686
  %v821 = vadd.f32 %v123, %v689
  %v822 = vadd.f32 %v124, %v694
  %v823 = vadd.f32 %v125, %v697
  %v824 = vadd.f32 %v126, %v702
  %v825 = vadd.f32 %v127, %v705
  %v826 = vadd.f32 %v128, %v710
  %v827 = vadd.f32 %v129, %v713
  %v828 = vadd.f32 %v130, %v718
  %v829 = vadd.f32 %v131, %v721
  %v830 = vadd.f32 %v132, %v726
  %v831 = vadd.f32 %v133, %v729
  %v832 = vadd.f32 %v134, %v734
  %v833 = vadd.f32 %v135, %v737
  %v834 = vadd.f32 %v136, %v742
  %v835 = vadd.f32 %v137, %v745
  %v836 = vadd.f32 %v138, %v750
  %v837 = vadd.f32 %v139, %v753
  %v838 = vadd.f32 %v140, %v758
  %v839 = vadd.f32 %v141, %v761
  %v840 = vadd.f32 %v142, %v766
  %v841 = vadd.f32 %v143, %v769
  %v842 = vadd.f32 %v144, %v774
  %v843 = vadd.f32 %v145, %v777
  %844 = vst [vmem:[#allocation2] sm:$0xff] %v780
  %845 = vst [vmem:[#allocation2 + $0x8] sm:$0xff] %v781
  %846 = vst [vmem:[#allocation2 + $0x10] sm:$0xff] %v782
  %847 = vst [vmem:[#allocation2 + $0x18] sm:$0xff] %v783
  %848 = vst [vmem:[#allocation2 + $0x20] sm:$0xff] %v784
  %849 = vst [vmem:[#allocation2 + $0x28] sm:$0xff] %v785
  %850 = vst [vmem:[#allocation2 + $0x30] sm:$0xff] %v786
  %851 = vst [vmem:[#allocation2 + $0x38] sm:$0xff] %v787
  %852 = vst [vmem:[#allocation2 + $0x40] sm:$0xff] %v788
  %853 = vst [vmem:[#allocation2 + $0x48] sm:$0xff] %v789
  %854 = vst [vmem:[#allocation2 + $0x50] sm:$0xff] %v790
  %855 = vst [vmem:[#allocation2 + $0x58] sm:$0xff] %v791
  %856 = vst [vmem:[#allocation2 + $0x60] sm:$0xff] %v792
  %857 = vst [vmem:[#allocation2 + $0x68] sm:$0xff] %v793
  %858 = vst [vmem:[#allocation2 + $0x70] sm:$0xff] %v794
  %859 = vst [vmem:[#allocation2 + $0x78] sm:$0xff] %v795
  %860 = vst [vmem:[#allocation2 + $0x80] sm:$0xff] %v796
  %861 = vst [vmem:[#allocation2 + $0x88] sm:$0xff] %v797
  %862 = vst [vmem:[#allocation2 + $0x90] sm:$0xff] %v798
  %863 = vst [vmem:[#allocation2 + $0x98] sm:$0xff] %v799
  %864 = vst [vmem:[#allocation2 + $0xa0] sm:$0xff] %v800
  %865 = vst [vmem:[#allocation2 + $0xa8] sm:$0xff] %v801
  %866 = vst [vmem:[#allocation2 + $0xb0] sm:$0xff] %v802
  %867 = vst [vmem:[#allocation2 + $0xb8] sm:$0xff] %v803
  %868 = vst [vmem:[#allocation2 + $0xc0] sm:$0xff] %v804
  %869 = vst [vmem:[#allocation2 + $0xc8] sm:$0xff] %v805
  %870 = vst [vmem:[#allocation2 + $0xd0] sm:$0xff] %v806
  %871 = vst [vmem:[#allocation2 + $0xd8] sm:$0xff] %v807
  %872 = vst [vmem:[#allocation2 + $0xe0] sm:$0xff] %v808
  %873 = vst [vmem:[#allocation2 + $0xe8] sm:$0xff] %v809
  %874 = vst [vmem:[#allocation2 + $0xf0] sm:$0xff] %v810
  %875 = vst [vmem:[#allocation2 + $0xf8] sm:$0xff] %v811
  %876 = vst [vmem:[#allocation2 + $0x100] sm:$0xff] %v812
  %877 = vst [vmem:[#allocation2 + $0x108] sm:$0xff] %v813
  %878 = vst [vmem:[#allocation2 + $0x110] sm:$0xff] %v814
  %879 = vst [vmem:[#allocation2 + $0x118] sm:$0xff] %v815
  %880 = vst [vmem:[#allocation2 + $0x120] sm:$0xff] %v816
  %881 = vst [vmem:[#allocation2 + $0x128] sm:$0xff] %v817
  %882 = vst [vmem:[#allocation2 + $0x130] sm:$0xff] %v818
  %883 = vst [vmem:[#allocation2 + $0x138] sm:$0xff] %v819
  %884 = vst [vmem:[#allocation2 + $0x140] sm:$0xff] %v820
  %885 = vst [vmem:[#allocation2 + $0x148] sm:$0xff] %v821
  %886 = vst [vmem:[#allocation2 + $0x150] sm:$0xff] %v822
  %887 = vst [vmem:[#allocation2 + $0x158] sm:$0xff] %v823
  %888 = vst [vmem:[#allocation2 + $0x160] sm:$0xff] %v824
  %889 = vst [vmem:[#allocation2 + $0x168] sm:$0xff] %v825
  %890 = vst [vmem:[#allocation2 + $0x170] sm:$0xff] %v826
  %891 = vst [vmem:[#allocation2 + $0x178] sm:$0xff] %v827
  %892 = vst [vmem:[#allocation2 + $0x180] sm:$0xff] %v828
  %893 = vst [vmem:[#allocation2 + $0x188] sm:$0xff] %v829
  %894 = vst [vmem:[#allocation2 + $0x190] sm:$0xff] %v830
  %895 = vst [vmem:[#allocation2 + $0x198] sm:$0xff] %v831
  %896 = vst [vmem:[#allocation2 + $0x1a0] sm:$0xff] %v832
  %897 = vst [vmem:[#allocation2 + $0x1a8] sm:$0xff] %v833
  %898 = vst [vmem:[#allocation2 + $0x1b0] sm:$0xff] %v834
  %899 = vst [vmem:[#allocation2 + $0x1b8] sm:$0xff] %v835
  %900 = vst [vmem:[#allocation2 + $0x1c0] sm:$0xff] %v836
  %901 = vst [vmem:[#allocation2 + $0x1c8] sm:$0xff] %v837
  %902 = vst [vmem:[#allocation2 + $0x1d0] sm:$0xff] %v838
  %903 = vst [vmem:[#allocation2 + $0x1d8] sm:$0xff] %v839
  %904 = vst [vmem:[#allocation2 + $0x1e0] sm:$0xff] %v840
  %905 = vst [vmem:[#allocation2 + $0x1e8] sm:$0xff] %v841
  %906 = vst [vmem:[#allocation2 + $0x1f0] sm:$0xff] %v842
  %907 = vst [vmem:[#allocation2 + $0x1f8] sm:$0xff] %v843
  // Predicated region
  $region14: #{residual_block_forward.4} parent=0 // pred_check
    %p908 = pneg %p14
  $region15: #{residual_block_forward.4} parent=0 // pred_check_branch
    %910 = sbr.rel (%p908) target = $region17
  $region16: #{residual_block_forward.4} parent=0 // pred_region
    %v911 = vld [vmem:[#allocation2] sm:$0xff]
    %v912 = vld [vmem:[#allocation2 + $0x8] sm:$0xff]
    %v913 = vld [vmem:[#allocation2 + $0x10] sm:$0xff]
    %v914 = vld [vmem:[#allocation2 + $0x18] sm:$0xff]
    %v915 = vld [vmem:[#allocation2 + $0x20] sm:$0xff]
    %v916 = vld [vmem:[#allocation2 + $0x28] sm:$0xff]
    %v917 = vld [vmem:[#allocation2 + $0x30] sm:$0xff]
    %v918 = vld [vmem:[#allocation2 + $0x38] sm:$0xff]
    %v919 = vld [vmem:[#allocation2 + $0x40] sm:$0xff]
    %v920 = vld [vmem:[#allocation2 + $0x48] sm:$0xff]
    %v921 = vld [vmem:[#allocation2 + $0x50] sm:$0xff]
    %v922 = vld [vmem:[#allocation2 + $0x58] sm:$0xff]
    %v923 = vld [vmem:[#allocation2 + $0x60] sm:$0xff]
    %v924 = vld [vmem:[#allocation2 + $0x68] sm:$0xff]
    %v925 = vld [vmem:[#allocation2 + $0x70] sm:$0xff]
    %v926 = vld [vmem:[#allocation2 + $0x78] sm:$0xff]
    %v927 = vld [vmem:[#allocation2 + $0x80] sm:$0xff]
    %v928 = vld [vmem:[#allocation2 + $0x88] sm:$0xff]
    %v929 = vld [vmem:[#allocation2 + $0x90] sm:$0xff]
    %v930 = vld [vmem:[#allocation2 + $0x98] sm:$0xff]
    %v931 = vld [vmem:[#allocation2 + $0xa0] sm:$0xff]
    %v932 = vld [vmem:[#allocation2 + $0xa8] sm:$0xff]
    %v933 = vld [vmem:[#allocation2 + $0xb0] sm:$0xff]
    %v934 = vld [vmem:[#allocation2 + $0xb8] sm:$0xff]
    %v935 = vld [vmem:[#allocation2 + $0xc0] sm:$0xff]
    %v936 = vld [vmem:[#allocation2 + $0xc8] sm:$0xff]
    %v937 = vld [vmem:[#allocation2 + $0xd0] sm:$0xff]
    %v938 = vld [vmem:[#allocation2 + $0xd8] sm:$0xff]
    %v939 = vld [vmem:[#allocation2 + $0xe0] sm:$0xff]
    %v940 = vld [vmem:[#allocation2 + $0xe8] sm:$0xff]
    %v941 = vld [vmem:[#allocation2 + $0xf0] sm:$0xff]
    %v942 = vld [vmem:[#allocation2 + $0xf8] sm:$0xff]
    %v943 = vld [vmem:[#allocation2 + $0x100] sm:$0xff]
    %v944 = vld [vmem:[#allocation2 + $0x108] sm:$0xff]
    %v945 = vld [vmem:[#allocation2 + $0x110] sm:$0xff]
    %v946 = vld [vmem:[#allocation2 + $0x118] sm:$0xff]
    %v947 = vld [vmem:[#allocation2 + $0x120] sm:$0xff]
    %v948 = vld [vmem:[#allocation2 + $0x128] sm:$0xff]
    %v949 = vld [vmem:[#allocation2 + $0x130] sm:$0xff]
    %v950 = vld [vmem:[#allocation2 + $0x138] sm:$0xff]
    %v951 = vld [vmem:[#allocation2 + $0x140] sm:$0xff]
    %v952 = vld [vmem:[#allocation2 + $0x148] sm:$0xff]
    %v953 = vld [vmem:[#allocation2 + $0x150] sm:$0xff]
    %v954 = vld [vmem:[#allocation2 + $0x158] sm:$0xff]
    %v955 = vld [vmem:[#allocation2 + $0x160] sm:$0xff]
    %v956 = vld [vmem:[#allocation2 + $0x168] sm:$0xff]
    %v957 = vld [vmem:[#allocation2 + $0x170] sm:$0xff]
    %v958 = vld [vmem:[#allocation2 + $0x178] sm:$0xff]
    %v959 = vld [vmem:[#allocation2 + $0x180] sm:$0xff]
    %v960 = vld [vmem:[#allocation2 + $0x188] sm:$0xff]
    %v961 = vld [vmem:[#allocation2 + $0x190] sm:$0xff]
    %v962 = vld [vmem:[#allocation2 + $0x198] sm:$0xff]
    %v963 = vld [vmem:[#allocation2 + $0x1a0] sm:$0xff]
    %v964 = vld [vmem:[#allocation2 + $0x1a8] sm:$0xff]
    %v965 = vld [vmem:[#allocation2 + $0x1b0] sm:$0xff]
    %v966 = vld [vmem:[#allocation2 + $0x1b8] sm:$0xff]
    %v967 = vld [vmem:[#allocation2 + $0x1c0] sm:$0xff]
    %v968 = vld [vmem:[#allocation2 + $0x1c8] sm:$0xff]
    %v969 = vld [vmem:[#allocation2 + $0x1d0] sm:$0xff]
    %v970 = vld [vmem:[#allocation2 + $0x1d8] sm:$0xff]
    %v971 = vld [vmem:[#allocation2 + $0x1e0] sm:$0xff]
    %v972 = vld [vmem:[#allocation2 + $0x1e8] sm:$0xff]
    %v973 = vld [vmem:[#allocation2 + $0x1f0] sm:$0xff]
    %v974 = vld [vmem:[#allocation2 + $0x1f8] sm:$0xff]
    %v975 = vpack.c.bf16 %v912, %v911
    %v976 = vpack.c.bf16 %v914, %v913
    %v977 = vpack.c.bf16 %v916, %v915
    %v978 = vpack.c.bf16 %v918, %v917
    %v979 = vpack.c.bf16 %v920, %v919
    %v980 = vpack.c.bf16 %v922, %v921
    %v981 = vpack.c.bf16 %v924, %v923
    %v982 = vpack.c.bf16 %v926, %v925
    %v983 = vpack.c.bf16 %v928, %v927
    %v984 = vpack.c.bf16 %v930, %v929
    %v985 = vpack.c.bf16 %v932, %v931
    %v986 = vpack.c.bf16 %v934, %v933
    %v987 = vpack.c.bf16 %v936, %v935
    %v988 = vpack.c.bf16 %v938, %v937
    %v989 = vpack.c.bf16 %v940, %v939
    %v990 = vpack.c.bf16 %v942, %v941
    %v991 = vpack.c.bf16 %v944, %v943
    %v992 = vpack.c.bf16 %v946, %v945
    %v993 = vpack.c.bf16 %v948, %v947
    %v994 = vpack.c.bf16 %v950, %v949
    %v995 = vpack.c.bf16 %v952, %v951
    %v996 = vpack.c.bf16 %v954, %v953
    %v997 = vpack.c.bf16 %v956, %v955
    %v998 = vpack.c.bf16 %v958, %v957
    %v999 = vpack.c.bf16 %v960, %v959
    %v1000 = vpack.c.bf16 %v962, %v961
    %v1001 = vpack.c.bf16 %v964, %v963
    %v1002 = vpack.c.bf16 %v966, %v965
    %v1003 = vpack.c.bf16 %v968, %v967
    %v1004 = vpack.c.bf16 %v970, %v969
    %v1005 = vpack.c.bf16 %v972, %v971
    %v1006 = vpack.c.bf16 %v974, %v973
    %v1039 = vunpack.c.l.b16 %v975
    %v1040 = vunpack.c.h.b16 %v975
    %v1041 = vunpack.c.l.b16 %v976
    %v1042 = vunpack.c.h.b16 %v976
    %v1043 = vunpack.c.l.b16 %v977
    %v1044 = vunpack.c.h.b16 %v977
    %v1045 = vunpack.c.l.b16 %v978
    %v1046 = vunpack.c.h.b16 %v978
    %v1047 = vunpack.c.l.b16 %v979
    %v1048 = vunpack.c.h.b16 %v979
    %v1049 = vunpack.c.l.b16 %v980
    %v1050 = vunpack.c.h.b16 %v980
    %v1051 = vunpack.c.l.b16 %v981
    %v1052 = vunpack.c.h.b16 %v981
    %v1053 = vunpack.c.l.b16 %v982
    %v1054 = vunpack.c.h.b16 %v982
    %v1055 = vunpack.c.l.b16 %v983
    %v1056 = vunpack.c.h.b16 %v983
    %v1057 = vunpack.c.l.b16 %v984
    %v1058 = vunpack.c.h.b16 %v984
    %v1059 = vunpack.c.l.b16 %v985
    %v1060 = vunpack.c.h.b16 %v985
    %v1061 = vunpack.c.l.b16 %v986
    %v1062 = vunpack.c.h.b16 %v986
    %v1063 = vunpack.c.l.b16 %v987
    %v1064 = vunpack.c.h.b16 %v987
    %v1065 = vunpack.c.l.b16 %v988
    %v1066 = vunpack.c.h.b16 %v988
    %v1067 = vunpack.c.l.b16 %v989
    %v1068 = vunpack.c.h.b16 %v989
    %v1069 = vunpack.c.l.b16 %v990
    %v1070 = vunpack.c.h.b16 %v990
    %v1071 = vunpack.c.l.b16 %v991
    %v1072 = vunpack.c.h.b16 %v991
    %v1073 = vunpack.c.l.b16 %v992
    %v1074 = vunpack.c.h.b16 %v992
    %v1075 = vunpack.c.l.b16 %v993
    %v1076 = vunpack.c.h.b16 %v993
    %v1077 = vunpack.c.l.b16 %v994
    %v1078 = vunpack.c.h.b16 %v994
    %v1079 = vunpack.c.l.b16 %v995
    %v1080 = vunpack.c.h.b16 %v995
    %v1081 = vunpack.c.l.b16 %v996
    %v1082 = vunpack.c.h.b16 %v996
    %v1083 = vunpack.c.l.b16 %v997
    %v1084 = vunpack.c.h.b16 %v997
    %v1085 = vunpack.c.l.b16 %v998
    %v1086 = vunpack.c.h.b16 %v998
    %v1087 = vunpack.c.l.b16 %v999
    %v1088 = vunpack.c.h.b16 %v999
    %v1089 = vunpack.c.l.b16 %v1000
    %v1090 = vunpack.c.h.b16 %v1000
    %v1091 = vunpack.c.l.b16 %v1001
    %v1092 = vunpack.c.h.b16 %v1001
    %v1093 = vunpack.c.l.b16 %v1002
    %v1094 = vunpack.c.h.b16 %v1002
    %v1095 = vunpack.c.l.b16 %v1003
    %v1096 = vunpack.c.h.b16 %v1003
    %v1097 = vunpack.c.l.b16 %v1004
    %v1098 = vunpack.c.h.b16 %v1004
    %v1099 = vunpack.c.l.b16 %v1005
    %v1100 = vunpack.c.h.b16 %v1005
    %v1101 = vunpack.c.l.b16 %v1006
    %v1102 = vunpack.c.h.b16 %v1006
    %v1103 = vpack.c.b16 %v1039, %v1039
    %v1104 = vpack.c.b16 %v1040, %v1040
    %v1105 = vpack.c.b16 %v1041, %v1041
    %v1106 = vpack.c.b16 %v1042, %v1042
    %v1107 = vpack.c.b16 %v1043, %v1043
    %v1108 = vpack.c.b16 %v1044, %v1044
    %v1109 = vpack.c.b16 %v1045, %v1045
    %v1110 = vpack.c.b16 %v1046, %v1046
    %v1111 = vpack.c.b16 %v1047, %v1047
    %v1112 = vpack.c.b16 %v1048, %v1048
    %v1113 = vpack.c.b16 %v1049, %v1049
    %v1114 = vpack.c.b16 %v1050, %v1050
    %v1115 = vpack.c.b16 %v1051, %v1051
    %v1116 = vpack.c.b16 %v1052, %v1052
    %v1117 = vpack.c.b16 %v1053, %v1053
    %v1118 = vpack.c.b16 %v1054, %v1054
    %v1119 = vpack.c.b16 %v1055, %v1055
    %v1120 = vpack.c.b16 %v1056, %v1056
    %v1121 = vpack.c.b16 %v1057, %v1057
    %v1122 = vpack.c.b16 %v1058, %v1058
    %v1123 = vpack.c.b16 %v1059, %v1059
    %v1124 = vpack.c.b16 %v1060, %v1060
    %v1125 = vpack.c.b16 %v1061, %v1061
    %v1126 = vpack.c.b16 %v1062, %v1062
    %v1127 = vpack.c.b16 %v1063, %v1063
    %v1128 = vpack.c.b16 %v1064, %v1064
    %v1129 = vpack.c.b16 %v1065, %v1065
    %v1130 = vpack.c.b16 %v1066, %v1066
    %v1131 = vpack.c.b16 %v1067, %v1067
    %v1132 = vpack.c.b16 %v1068, %v1068
    %v1133 = vpack.c.b16 %v1069, %v1069
    %v1134 = vpack.c.b16 %v1070, %v1070
    %v1135 = vpack.c.b16 %v1071, %v1071
    %v1136 = vpack.c.b16 %v1072, %v1072
    %v1137 = vpack.c.b16 %v1073, %v1073
    %v1138 = vpack.c.b16 %v1074, %v1074
    %v1139 = vpack.c.b16 %v1075, %v1075
    %v1140 = vpack.c.b16 %v1076, %v1076
    %v1141 = vpack.c.b16 %v1077, %v1077
    %v1142 = vpack.c.b16 %v1078, %v1078
    %v1143 = vpack.c.b16 %v1079, %v1079
    %v1144 = vpack.c.b16 %v1080, %v1080
    %v1145 = vpack.c.b16 %v1081, %v1081
    %v1146 = vpack.c.b16 %v1082, %v1082
    %v1147 = vpack.c.b16 %v1083, %v1083
    %v1148 = vpack.c.b16 %v1084, %v1084
    %v1149 = vpack.c.b16 %v1085, %v1085
    %v1150 = vpack.c.b16 %v1086, %v1086
    %v1151 = vpack.c.b16 %v1087, %v1087
    %v1152 = vpack.c.b16 %v1088, %v1088
    %v1153 = vpack.c.b16 %v1089, %v1089
    %v1154 = vpack.c.b16 %v1090, %v1090
    %v1155 = vpack.c.b16 %v1091, %v1091
    %v1156 = vpack.c.b16 %v1092, %v1092
    %v1157 = vpack.c.b16 %v1093, %v1093
    %v1158 = vpack.c.b16 %v1094, %v1094
    %v1159 = vpack.c.b16 %v1095, %v1095
    %v1160 = vpack.c.b16 %v1096, %v1096
    %v1161 = vpack.c.b16 %v1097, %v1097
    %v1162 = vpack.c.b16 %v1098, %v1098
    %v1163 = vpack.c.b16 %v1099, %v1099
    %v1164 = vpack.c.b16 %v1100, %v1100
    %v1165 = vpack.c.b16 %v1101, %v1101
    %v1166 = vpack.c.b16 %v1102, %v1102
    %1231 = vst [vmem:[%s2] sm:$0xf] %v1103
    %1232 = vst [vmem:[%s2 + $0x4] sm:$0xf] %v1104
    %1233 = vst [vmem:[%s2 + $0x8] sm:$0xf] %v1105
    %1234 = vst [vmem:[%s2 + $0xc] sm:$0xf] %v1106
    %1235 = vst [vmem:[%s2 + $0x10] sm:$0xf] %v1107
    %1236 = vst [vmem:[%s2 + $0x14] sm:$0xf] %v1108
    %1237 = vst [vmem:[%s2 + $0x18] sm:$0xf] %v1109
    %1238 = vst [vmem:[%s2 + $0x1c] sm:$0xf] %v1110
    %1239 = vst [vmem:[%s2 + $0x20] sm:$0xf] %v1111
    %1240 = vst [vmem:[%s2 + $0x24] sm:$0xf] %v1112
    %1241 = vst [vmem:[%s2 + $0x28] sm:$0xf] %v1113
    %1242 = vst [vmem:[%s2 + $0x2c] sm:$0xf] %v1114
    %1243 = vst [vmem:[%s2 + $0x30] sm:$0xf] %v1115
    %1244 = vst [vmem:[%s2 + $0x34] sm:$0xf] %v1116
    %1245 = vst [vmem:[%s2 + $0x38] sm:$0xf] %v1117
    %1246 = vst [vmem:[%s2 + $0x3c] sm:$0xf] %v1118
    %1247 = vst [vmem:[%s2 + $0x40] sm:$0xf] %v1119
    %1248 = vst [vmem:[%s2 + $0x44] sm:$0xf] %v1120
    %1249 = vst [vmem:[%s2 + $0x48] sm:$0xf] %v1121
    %1250 = vst [vmem:[%s2 + $0x4c] sm:$0xf] %v1122
    %1251 = vst [vmem:[%s2 + $0x50] sm:$0xf] %v1123
    %1252 = vst [vmem:[%s2 + $0x54] sm:$0xf] %v1124
    %1253 = vst [vmem:[%s2 + $0x58] sm:$0xf] %v1125
    %1254 = vst [vmem:[%s2 + $0x5c] sm:$0xf] %v1126
    %1255 = vst [vmem:[%s2 + $0x60] sm:$0xf] %v1127
    %1256 = vst [vmem:[%s2 + $0x64] sm:$0xf] %v1128
    %1257 = vst [vmem:[%s2 + $0x68] sm:$0xf] %v1129
    %1258 = vst [vmem:[%s2 + $0x6c] sm:$0xf] %v1130
    %1259 = vst [vmem:[%s2 + $0x70] sm:$0xf] %v1131
    %1260 = vst [vmem:[%s2 + $0x74] sm:$0xf] %v1132
    %1261 = vst [vmem:[%s2 + $0x78] sm:$0xf] %v1133
    %1262 = vst [vmem:[%s2 + $0x7c] sm:$0xf] %v1134
    %1263 = vst [vmem:[%s2 + $0x80] sm:$0xf] %v1135
    %1264 = vst [vmem:[%s2 + $0x84] sm:$0xf] %v1136
    %1265 = vst [vmem:[%s2 + $0x88] sm:$0xf] %v1137
    %1266 = vst [vmem:[%s2 + $0x8c] sm:$0xf] %v1138
    %1267 = vst [vmem:[%s2 + $0x90] sm:$0xf] %v1139
    %1268 = vst [vmem:[%s2 + $0x94] sm:$0xf] %v1140
    %1269 = vst [vmem:[%s2 + $0x98] sm:$0xf] %v1141
    %1270 = vst [vmem:[%s2 + $0x9c] sm:$0xf] %v1142
    %1271 = vst [vmem:[%s2 + $0xa0] sm:$0xf] %v1143
    %1272 = vst [vmem:[%s2 + $0xa4] sm:$0xf] %v1144
    %1273 = vst [vmem:[%s2 + $0xa8] sm:$0xf] %v1145
    %1274 = vst [vmem:[%s2 + $0xac] sm:$0xf] %v1146
    %1275 = vst [vmem:[%s2 + $0xb0] sm:$0xf] %v1147
    %1276 = vst [vmem:[%s2 + $0xb4] sm:$0xf] %v1148
    %1277 = vst [vmem:[%s2 + $0xb8] sm:$0xf] %v1149
    %1278 = vst [vmem:[%s2 + $0xbc] sm:$0xf] %v1150
    %1279 = vst [vmem:[%s2 + $0xc0] sm:$0xf] %v1151
    %1280 = vst [vmem:[%s2 + $0xc4] sm:$0xf] %v1152
    %1281 = vst [vmem:[%s2 + $0xc8] sm:$0xf] %v1153
    %1282 = vst [vmem:[%s2 + $0xcc] sm:$0xf] %v1154
    %1283 = vst [vmem:[%s2 + $0xd0] sm:$0xf] %v1155
    %1284 = vst [vmem:[%s2 + $0xd4] sm:$0xf] %v1156
    %1285 = vst [vmem:[%s2 + $0xd8] sm:$0xf] %v1157
    %1286 = vst [vmem:[%s2 + $0xdc] sm:$0xf] %v1158
    %1287 = vst [vmem:[%s2 + $0xe0] sm:$0xf] %v1159
    %1288 = vst [vmem:[%s2 + $0xe4] sm:$0xf] %v1160
    %1289 = vst [vmem:[%s2 + $0xe8] sm:$0xf] %v1161
    %1290 = vst [vmem:[%s2 + $0xec] sm:$0xf] %v1162
    %1291 = vst [vmem:[%s2 + $0xf0] sm:$0xf] %v1163
    %1292 = vst [vmem:[%s2 + $0xf4] sm:$0xf] %v1164
    %1293 = vst [vmem:[%s2 + $0xf8] sm:$0xf] %v1165
    %1294 = vst [vmem:[%s2 + $0xfc] sm:$0xf] %v1166
    %v1295 = vadd.f32 %v911, %v912
    %v1296 = vadd.f32 %v1295, %v913
    %v1297 = vadd.f32 %v1296, %v914
    %v1298 = vadd.f32 %v1297, %v915
    %v1299 = vadd.f32 %v1298, %v916
    %v1300 = vadd.f32 %v1299, %v917
    %v1301 = vadd.f32 %v1300, %v918
    %v1302 = vadd.f32 %v1301, %v919
    %v1303 = vadd.f32 %v1302, %v920
    %v1304 = vadd.f32 %v1303, %v921
    %v1305 = vadd.f32 %v1304, %v922
    %v1306 = vadd.f32 %v1305, %v923
    %v1307 = vadd.f32 %v1306, %v924
    %v1308 = vadd.f32 %v1307, %v925
    %v1309 = vadd.f32 %v1308, %v926
    %v1310 = vadd.f32 %v1309, %v927
    %v1311 = vadd.f32 %v1310, %v928
    %v1312 = vadd.f32 %v1311, %v929
    %v1313 = vadd.f32 %v1312, %v930
    %v1314 = vadd.f32 %v1313, %v931
    %v1315 = vadd.f32 %v1314, %v932
    %v1316 = vadd.f32 %v1315, %v933
    %v1317 = vadd.f32 %v1316, %v934
    %v1318 = vadd.f32 %v1317, %v935
    %v1319 = vadd.f32 %v1318, %v936
    %v1320 = vadd.f32 %v1319, %v937
    %v1321 = vadd.f32 %v1320, %v938
    %v1322 = vadd.f32 %v1321, %v939
    %v1323 = vadd.f32 %v1322, %v940
    %v1324 = vadd.f32 %v1323, %v941
    %v1325 = vadd.f32 %v1324, %v942
    %v1326 = vadd.f32 %v1325, %v943
    %v1327 = vadd.f32 %v1326, %v944
    %v1328 = vadd.f32 %v1327, %v945
    %v1329 = vadd.f32 %v1328, %v946
    %v1330 = vadd.f32 %v1329, %v947
    %v1331 = vadd.f32 %v1330, %v948
    %v1332 = vadd.f32 %v1331, %v949
    %v1333 = vadd.f32 %v1332, %v950
    %v1334 = vadd.f32 %v1333, %v951
    %v1335 = vadd.f32 %v1334, %v952
    %v1336 = vadd.f32 %v1335, %v953
    %v1337 = vadd.f32 %v1336, %v954
    %v1338 = vadd.f32 %v1337, %v955
    %v1339 = vadd.f32 %v1338, %v956
    %v1340 = vadd.f32 %v1339, %v957
    %v1341 = vadd.f32 %v1340, %v958
    %v1342 = vadd.f32 %v1341, %v959
    %v1343 = vadd.f32 %v1342, %v960
    %v1344 = vadd.f32 %v1343, %v961
    %v1345 = vadd.f32 %v1344, %v962
    %v1346 = vadd.f32 %v1345, %v963
    %v1347 = vadd.f32 %v1346, %v964
    %v1348 = vadd.f32 %v1347, %v965
    %v1349 = vadd.f32 %v1348, %v966
    %v1350 = vadd.f32 %v1349, %v967
    %v1351 = vadd.f32 %v1350, %v968
    %v1352 = vadd.f32 %v1351, %v969
    %v1353 = vadd.f32 %v1352, %v970
    %v1354 = vadd.f32 %v1353, %v971
    %v1355 = vadd.f32 %v1354, %v972
    %v1356 = vadd.f32 %v1355, %v973
    %v1357 = vadd.f32 %v1356, %v974
    %v1358 = vrot.slane %v1357, 4
    %v1359 = vadd.f32 %v1357, %v1358
    %v1360 = vrot.slane %v1359, 2
    %v1361 = vadd.f32 %v1359, %v1360
    %v1362 = vrot.slane %v1361, 1
    %v1363 = vadd.f32 %v1361, %v1362
    %1364 = vst [vmem:[%s3] sm:$0x1] %v1363
    %v1365 = vmul.f32 %v911, %v911
    %v1366 = vmul.f32 %v912, %v912
    %v1367 = vmul.f32 %v913, %v913
    %v1368 = vmul.f32 %v914, %v914
    %v1369 = vmul.f32 %v915, %v915
    %v1370 = vmul.f32 %v916, %v916
    %v1371 = vmul.f32 %v917, %v917
    %v1372 = vmul.f32 %v918, %v918
    %v1373 = vmul.f32 %v919, %v919
    %v1374 = vmul.f32 %v920, %v920
    %v1375 = vmul.f32 %v921, %v921
    %v1376 = vmul.f32 %v922, %v922
    %v1377 = vmul.f32 %v923, %v923
    %v1378 = vmul.f32 %v924, %v924
    %v1379 = vmul.f32 %v925, %v925
    %v1380 = vmul.f32 %v926, %v926
    %v1381 = vmul.f32 %v927, %v927
    %v1382 = vmul.f32 %v928, %v928
    %v1383 = vmul.f32 %v929, %v929
    %v1384 = vmul.f32 %v930, %v930
    %v1385 = vmul.f32 %v931, %v931
    %v1386 = vmul.f32 %v932, %v932
    %v1387 = vmul.f32 %v933, %v933
    %v1388 = vmul.f32 %v934, %v934
    %v1389 = vmul.f32 %v935, %v935
    %v1390 = vmul.f32 %v936, %v936
    %v1391 = vmul.f32 %v937, %v937
    %v1392 = vmul.f32 %v938, %v938
    %v1393 = vmul.f32 %v939, %v939
    %v1394 = vmul.f32 %v940, %v940
    %v1395 = vmul.f32 %v941, %v941
    %v1396 = vmul.f32 %v942, %v942
    %v1397 = vmul.f32 %v943, %v943
    %v1398 = vmul.f32 %v944, %v944
    %v1399 = vmul.f32 %v945, %v945
    %v1400 = vmul.f32 %v946, %v946
    %v1401 = vmul.f32 %v947, %v947
    %v1402 = vmul.f32 %v948, %v948
    %v1403 = vmul.f32 %v949, %v949
    %v1404 = vmul.f32 %v950, %v950
    %v1405 = vmul.f32 %v951, %v951
    %v1406 = vmul.f32 %v952, %v952
    %v1407 = vmul.f32 %v953, %v953
    %v1408 = vmul.f32 %v954, %v954
    %v1409 = vmul.f32 %v955, %v955
    %v1410 = vmul.f32 %v956, %v956
    %v1411 = vmul.f32 %v957, %v957
    %v1412 = vmul.f32 %v958, %v958
    %v1413 = vmul.f32 %v959, %v959
    %v1414 = vmul.f32 %v960, %v960
    %v1415 = vmul.f32 %v961, %v961
    %v1416 = vmul.f32 %v962, %v962
    %v1417 = vmul.f32 %v963, %v963
    %v1418 = vmul.f32 %v964, %v964
    %v1419 = vmul.f32 %v965, %v965
    %v1420 = vmul.f32 %v966, %v966
    %v1421 = vmul.f32 %v967, %v967
    %v1422 = vmul.f32 %v968, %v968
    %v1423 = vmul.f32 %v969, %v969
    %v1424 = vmul.f32 %v970, %v970
    %v1425 = vmul.f32 %v971, %v971
    %v1426 = vmul.f32 %v972, %v972
    %v1427 = vmul.f32 %v973, %v973
    %v1428 = vmul.f32 %v974, %v974
    %v1429 = vadd.f32 %v1365, %v1366
    %v1430 = vadd.f32 %v1429, %v1367
    %v1431 = vadd.f32 %v1430, %v1368
    %v1432 = vadd.f32 %v1431, %v1369
    %v1433 = vadd.f32 %v1432, %v1370
    %v1434 = vadd.f32 %v1433, %v1371
    %v1435 = vadd.f32 %v1434, %v1372
    %v1436 = vadd.f32 %v1435, %v1373
    %v1437 = vadd.f32 %v1436, %v1374
    %v1438 = vadd.f32 %v1437, %v1375
    %v1439 = vadd.f32 %v1438, %v1376
    %v1440 = vadd.f32 %v1439, %v1377
    %v1441 = vadd.f32 %v1440, %v1378
    %v1442 = vadd.f32 %v1441, %v1379
    %v1443 = vadd.f32 %v1442, %v1380
    %v1444 = vadd.f32 %v1443, %v1381
    %v1445 = vadd.f32 %v1444, %v1382
    %v1446 = vadd.f32 %v1445, %v1383
    %v1447 = vadd.f32 %v1446, %v1384
    %v1448 = vadd.f32 %v1447, %v1385
    %v1449 = vadd.f32 %v1448, %v1386
    %v1450 = vadd.f32 %v1449, %v1387
    %v1451 = vadd.f32 %v1450, %v1388
    %v1452 = vadd.f32 %v1451, %v1389
    %v1453 = vadd.f32 %v1452, %v1390
    %v1454 = vadd.f32 %v1453, %v1391
    %v1455 = vadd.f32 %v1454, %v1392
    %v1456 = vadd.f32 %v1455, %v1393
    %v1457 = vadd.f32 %v1456, %v1394
    %v1458 = vadd.f32 %v1457, %v1395
    %v1459 = vadd.f32 %v1458, %v1396
    %v1460 = vadd.f32 %v1459, %v1397
    %v1461 = vadd.f32 %v1460, %v1398
    %v1462 = vadd.f32 %v1461, %v1399
    %v1463 = vadd.f32 %v1462, %v1400
    %v1464 = vadd.f32 %v1463, %v1401
    %v1465 = vadd.f32 %v1464, %v1402
    %v1466 = vadd.f32 %v1465, %v1403
    %v1467 = vadd.f32 %v1466, %v1404
    %v1468 = vadd.f32 %v1467, %v1405
    %v1469 = vadd.f32 %v1468, %v1406
    %v1470 = vadd.f32 %v1469, %v1407
    %v1471 = vadd.f32 %v1470, %v1408
    %v1472 = vadd.f32 %v1471, %v1409
    %v1473 = vadd.f32 %v1472, %v1410
    %v1474 = vadd.f32 %v1473, %v1411
    %v1475 = vadd.f32 %v1474, %v1412
    %v1476 = vadd.f32 %v1475, %v1413
    %v1477 = vadd.f32 %v1476, %v1414
    %v1478 = vadd.f32 %v1477, %v1415
    %v1479 = vadd.f32 %v1478, %v1416
    %v1480 = vadd.f32 %v1479, %v1417
    %v1481 = vadd.f32 %v1480, %v1418
    %v1482 = vadd.f32 %v1481, %v1419
    %v1483 = vadd.f32 %v1482, %v1420
    %v1484 = vadd.f32 %v1483, %v1421
    %v1485 = vadd.f32 %v1484, %v1422
    %v1486 = vadd.f32 %v1485, %v1423
    %v1487 = vadd.f32 %v1486, %v1424
    %v1488 = vadd.f32 %v1487, %v1425
    %v1489 = vadd.f32 %v1488, %v1426
    %v1490 = vadd.f32 %v1489, %v1427
    %v1491 = vadd.f32 %v1490, %v1428
    %v1492 = vrot.slane %v1491, 4
    %v1493 = vadd.f32 %v1491, %v1492
    %v1494 = vrot.slane %v1493, 2
    %v1495 = vadd.f32 %v1493, %v1494
    %v1496 = vrot.slane %v1495, 1
    %v1497 = vadd.f32 %v1495, %v1496
    %1498 = vst [vmem:[%s3 + $0x1] sm:$0x1] %v1497
  $region17: #{residual_block_forward.4} parent=0 // pred_fallthru
    _
  // Predicated region
  $region18: #{residual_block_forward.4} parent=0 // pred_check
    _
  $region19: #{residual_block_forward.4} parent=0 // pred_check_branch
    %1500 = sbr.rel (0) target = $region21
  $region20: #{residual_block_forward.4} parent=0 // pred_region
    _
  $region21: #{residual_block_forward.4} parent=0 // pred_fallthru
    _
  // Predicated region
  $region22: #{residual_block_forward.4} parent=0 // pred_check
    _
  $region23: #{residual_block_forward.4} parent=0 // pred_check_branch
    %1502 = sbr.rel (0) target = $region25
  $region24: #{residual_block_forward.4} parent=0 // pred_region
    _
  $region25: #{residual_block_forward.4} parent=0 // pred_fallthru
    _
  // Predicated region
  $region26: #{residual_block_forward.4} parent=0 // pred_check
    _
  $region27: #{residual_block_forward.4} parent=0 // pred_check_branch
    %1504 = sbr.rel (0) target = $region29
  $region28: #{residual_block_forward.4} parent=0 // pred_region
    _
  $region29: #{residual_block_forward.4} parent=0 // pred_fallthru
    _
  // Predicated region
  $region30: #{residual_block_forward.4} parent=0 // pred_check
    _
  $region31: #{residual_block_forward.4} parent=0 // pred_check_branch
    %1506 = sbr.rel (0) target = $region33
  $region32: #{residual_block_forward.4} parent=0 // pred_region
    _
  $region33: #{residual_block_forward.4} parent=0 // pred_fallthru
    _

// kernel: residual_block_forward.7
$region0: #{residual_block_forward.7}
  #allocation0 [shape = 'u32[]', space=smem, size = 0x4, offset = 0x4, fixed_abs, tag = 'smem constant byte address 0x4 - core index']
  #allocation1 [shape = 'u32[144,128]{1,0:T(1,128)}', space=vmem, size = 0x12000, scoped, tag = 'internal scratch']
  %s0 = inlined_call_operand.vmem [shape: bf16[512,128], index: 0, kind: input, shape index: {}]
  %s1 = inlined_call_operand.vmem [shape: f32[1,128], index: 1, kind: input, shape index: {}]
  %s2 = inlined_call_operand.vmem [shape: f32[1,128], index: 2, kind: input, shape index: {}]
  %s3 = inlined_call_operand.vmem [shape: f32[512,128], index: 3, kind: input, shape index: {}]
  %s4 = inlined_call_operand.vmem [shape: f32[1,128], index: 4, kind: input, shape index: {}]
  %s5 = inlined_call_operand.vmem [shape: f32[1,128], index: 5, kind: input, shape index: {}]
  %s6 = inlined_call_operand.vmem [shape: f32[512,128], index: 6, kind: output, shape index: {}]
  %s7 = sld [smem:[#allocation0]]
  $region34: #{residual_block_forward.7} parent=0
    _
  %s9 = ssub.s32 1, %s7
  %s10 = scalar_select 0, %s9, %s7
  // Predicated region
  $region2: #{residual_block_forward.7} parent=0 // pred_check
    _
  $region3: #{residual_block_forward.7} parent=0 // pred_check_branch
    %12 = sbr.rel (0) target = $region5
  $region4: #{residual_block_forward.7} parent=0 // pred_region
    _
  $region5: #{residual_block_forward.7} parent=0 // pred_fallthru
    _
  // Predicated region
  $region6: #{residual_block_forward.7} parent=0 // pred_check
    _
  $region7: #{residual_block_forward.7} parent=0 // pred_check_branch
    %14 = sbr.rel (0) target = $region9
  $region8: #{residual_block_forward.7} parent=0 // pred_region
    _
  $region9: #{residual_block_forward.7} parent=0 // pred_fallthru
    _
  // Predicated region
  $region10: #{residual_block_forward.7} parent=0 // pred_check
    _
  $region11: #{residual_block_forward.7} parent=0 // pred_check_branch
    %16 = sbr.rel (0) target = $region13
  $region12: #{residual_block_forward.7} parent=0 // pred_region
    _
  $region13: #{residual_block_forward.7} parent=0 // pred_fallthru
    _
  // Predicated region
  $region14: #{residual_block_forward.7} parent=0 // pred_check
    _
  $region15: #{residual_block_forward.7} parent=0 // pred_check_branch
    %18 = sbr.rel (0) target = $region17
  $region16: #{residual_block_forward.7} parent=0 // pred_region
    _
  $region17: #{residual_block_forward.7} parent=0 // pred_fallthru
    _
  // Predicated region
  $region18: #{residual_block_forward.7} parent=0 // pred_check
    _
  $region19: #{residual_block_forward.7} parent=0 // pred_check_branch
    %20 = sbr.rel (0) target = $region21
  $region20: #{residual_block_forward.7} parent=0 // pred_region
    _
  $region21: #{residual_block_forward.7} parent=0 // pred_fallthru
    _
  // Predicated region
  $region22: #{residual_block_forward.7} parent=0 // pred_check
    _
  $region23: #{residual_block_forward.7} parent=0 // pred_check_branch
    %22 = sbr.rel (0) target = $region25
  $region24: #{residual_block_forward.7} parent=0 // pred_region
    _
  $region25: #{residual_block_forward.7} parent=0 // pred_fallthru
    _
  %v23 = vld [vmem:[%s0] sm:$0xf]
  %v24 = vld [vmem:[%s0 + $0x4] sm:$0xf]
  %v25 = vld [vmem:[%s0 + $0x8] sm:$0xf]
  %v26 = vld [vmem:[%s0 + $0xc] sm:$0xf]
  %v27 = vld [vmem:[%s0 + $0x10] sm:$0xf]
  %v28 = vld [vmem:[%s0 + $0x14] sm:$0xf]
  %v29 = vld [vmem:[%s0 + $0x18] sm:$0xf]
  %v30 = vld [vmem:[%s0 + $0x1c] sm:$0xf]
  %v31 = vld [vmem:[%s0 + $0x20] sm:$0xf]
  %v32 = vld [vmem:[%s0 + $0x24] sm:$0xf]
  %v33 = vld [vmem:[%s0 + $0x28] sm:$0xf]
  %v34 = vld [vmem:[%s0 + $0x2c] sm:$0xf]
  %v35 = vld [vmem:[%s0 + $0x30] sm:$0xf]
  %v36 = vld [vmem:[%s0 + $0x34] sm:$0xf]
  %v37 = vld [vmem:[%s0 + $0x38] sm:$0xf]
  %v38 = vld [vmem:[%s0 + $0x3c] sm:$0xf]
  %v39 = vld [vmem:[%s0 + $0x40] sm:$0xf]
  %v40 = vld [vmem:[%s0 + $0x44] sm:$0xf]
  %v41 = vld [vmem:[%s0 + $0x48] sm:$0xf]
  %v42 = vld [vmem:[%s0 + $0x4c] sm:$0xf]
  %v43 = vld [vmem:[%s0 + $0x50] sm:$0xf]
  %v44 = vld [vmem:[%s0 + $0x54] sm:$0xf]
  %v45 = vld [vmem:[%s0 + $0x58] sm:$0xf]
  %v46 = vld [vmem:[%s0 + $0x5c] sm:$0xf]
  %v47 = vld [vmem:[%s0 + $0x60] sm:$0xf]
  %v48 = vld [vmem:[%s0 + $0x64] sm:$0xf]
  %v49 = vld [vmem:[%s0 + $0x68] sm:$0xf]
  %v50 = vld [vmem:[%s0 + $0x6c] sm:$0xf]
  %v51 = vld [vmem:[%s0 + $0x70] sm:$0xf]
  %v52 = vld [vmem:[%s0 + $0x74] sm:$0xf]
  %v53 = vld [vmem:[%s0 + $0x78] sm:$0xf]
  %v54 = vld [vmem:[%s0 + $0x7c] sm:$0xf]
  %v55 = vld [vmem:[%s0 + $0x80] sm:$0xf]
  %v56 = vld [vmem:[%s0 + $0x84] sm:$0xf]
  %v57 = vld [vmem:[%s0 + $0x88] sm:$0xf]
  %v58 = vld [vmem:[%s0 + $0x8c] sm:$0xf]
  %v59 = vld [vmem:[%s0 + $0x90] sm:$0xf]
  %v60 = vld [vmem:[%s0 + $0x94] sm:$0xf]
  %v61 = vld [vmem:[%s0 + $0x98] sm:$0xf]
  %v62 = vld [vmem:[%s0 + $0x9c] sm:$0xf]
  %v63 = vld [vmem:[%s0 + $0xa0] sm:$0xf]
  %v64 = vld [vmem:[%s0 + $0xa4] sm:$0xf]
  %v65 = vld [vmem:[%s0 + $0xa8] sm:$0xf]
  %v66 = vld [vmem:[%s0 + $0xac] sm:$0xf]
  %v67 = vld [vmem:[%s0 + $0xb0] sm:$0xf]
  %v68 = vld [vmem:[%s0 + $0xb4] sm:$0xf]
  %v69 = vld [vmem:[%s0 + $0xb8] sm:$0xf]
  %v70 = vld [vmem:[%s0 + $0xbc] sm:$0xf]
  %v71 = vld [vmem:[%s0 + $0xc0] sm:$0xf]
  %v72 = vld [vmem:[%s0 + $0xc4] sm:$0xf]
  %v73 = vld [vmem:[%s0 + $0xc8] sm:$0xf]
  %v74 = vld [vmem:[%s0 + $0xcc] sm:$0xf]
  %v75 = vld [vmem:[%s0 + $0xd0] sm:$0xf]
  %v76 = vld [vmem:[%s0 + $0xd4] sm:$0xf]
  %v77 = vld [vmem:[%s0 + $0xd8] sm:$0xf]
  %v78 = vld [vmem:[%s0 + $0xdc] sm:$0xf]
  %v79 = vld [vmem:[%s0 + $0xe0] sm:$0xf]
  %v80 = vld [vmem:[%s0 + $0xe4] sm:$0xf]
  %v81 = vld [vmem:[%s0 + $0xe8] sm:$0xf]
  %v82 = vld [vmem:[%s0 + $0xec] sm:$0xf]
  %v83 = vld [vmem:[%s0 + $0xf0] sm:$0xf]
  %v84 = vld [vmem:[%s0 + $0xf4] sm:$0xf]
  %v85 = vld [vmem:[%s0 + $0xf8] sm:$0xf]
  %v86 = vld [vmem:[%s0 + $0xfc] sm:$0xf]
  %v87 = vunpack.c.l.bf16 %v23
  %v88 = vunpack.c.l.bf16 %v24
  %v89 = vunpack.c.l.bf16 %v25
  %v90 = vunpack.c.l.bf16 %v26
  %v91 = vunpack.c.l.bf16 %v27
  %v92 = vunpack.c.l.bf16 %v28
  %v93 = vunpack.c.l.bf16 %v29
  %v94 = vunpack.c.l.bf16 %v30
  %v95 = vunpack.c.l.bf16 %v31
  %v96 = vunpack.c.l.bf16 %v32
  %v97 = vunpack.c.l.bf16 %v33
  %v98 = vunpack.c.l.bf16 %v34
  %v99 = vunpack.c.l.bf16 %v35
  %v100 = vunpack.c.l.bf16 %v36
  %v101 = vunpack.c.l.bf16 %v37
  %v102 = vunpack.c.l.bf16 %v38
  %v103 = vunpack.c.l.bf16 %v39
  %v104 = vunpack.c.l.bf16 %v40
  %v105 = vunpack.c.l.bf16 %v41
  %v106 = vunpack.c.l.bf16 %v42
  %v107 = vunpack.c.l.bf16 %v43
  %v108 = vunpack.c.l.bf16 %v44
  %v109 = vunpack.c.l.bf16 %v45
  %v110 = vunpack.c.l.bf16 %v46
  %v111 = vunpack.c.l.bf16 %v47
  %v112 = vunpack.c.l.bf16 %v48
  %v113 = vunpack.c.l.bf16 %v49
  %v114 = vunpack.c.l.bf16 %v50
  %v115 = vunpack.c.l.bf16 %v51
  %v116 = vunpack.c.l.bf16 %v52
  %v117 = vunpack.c.l.bf16 %v53
  %v118 = vunpack.c.l.bf16 %v54
  %v119 = vunpack.c.l.bf16 %v55
  %v120 = vunpack.c.l.bf16 %v56
  %v121 = vunpack.c.l.bf16 %v57
  %v122 = vunpack.c.l.bf16 %v58
  %v123 = vunpack.c.l.bf16 %v59
  %v124 = vunpack.c.l.bf16 %v60
  %v125 = vunpack.c.l.bf16 %v61
  %v126 = vunpack.c.l.bf16 %v62
  %v127 = vunpack.c.l.bf16 %v63
  %v128 = vunpack.c.l.bf16 %v64
  %v129 = vunpack.c.l.bf16 %v65
  %v130 = vunpack.c.l.bf16 %v66
  %v131 = vunpack.c.l.bf16 %v67
  %v132 = vunpack.c.l.bf16 %v68
  %v133 = vunpack.c.l.bf16 %v69
  %v134 = vunpack.c.l.bf16 %v70
  %v135 = vunpack.c.l.bf16 %v71
  %v136 = vunpack.c.l.bf16 %v72
  %v137 = vunpack.c.l.bf16 %v73
  %v138 = vunpack.c.l.bf16 %v74
  %v139 = vunpack.c.l.bf16 %v75
  %v140 = vunpack.c.l.bf16 %v76
  %v141 = vunpack.c.l.bf16 %v77
  %v142 = vunpack.c.l.bf16 %v78
  %v143 = vunpack.c.l.bf16 %v79
  %v144 = vunpack.c.l.bf16 %v80
  %v145 = vunpack.c.l.bf16 %v81
  %v146 = vunpack.c.l.bf16 %v82
  %v147 = vunpack.c.l.bf16 %v83
  %v148 = vunpack.c.l.bf16 %v84
  %v149 = vunpack.c.l.bf16 %v85
  %v150 = vunpack.c.l.bf16 %v86
  %v151 = vld [vmem:[%s1] sm:$0x1]
  %v153 = vlaneseq
  %v154 = vshrl.u32 %v153, 7
  %v155 = vsub.s32 0, %v154
  %v156 = vrot.slane %v151, %v155
  %v158 = vmul.f32 %v87, %v156
  %v159 = vmul.f32 %v88, %v156
  %v160 = vmul.f32 %v89, %v156
  %v161 = vmul.f32 %v90, %v156
  %v162 = vmul.f32 %v91, %v156
  %v163 = vmul.f32 %v92, %v156
  %v164 = vmul.f32 %v93, %v156
  %v165 = vmul.f32 %v94, %v156
  %v166 = vmul.f32 %v95, %v156
  %v167 = vmul.f32 %v96, %v156
  %v168 = vmul.f32 %v97, %v156
  %v169 = vmul.f32 %v98, %v156
  %v170 = vmul.f32 %v99, %v156
  %v171 = vmul.f32 %v100, %v156
  %v172 = vmul.f32 %v101, %v156
  %v173 = vmul.f32 %v102, %v156
  %v174 = vmul.f32 %v103, %v156
  %v175 = vmul.f32 %v104, %v156
  %v176 = vmul.f32 %v105, %v156
  %v177 = vmul.f32 %v106, %v156
  %v178 = vmul.f32 %v107, %v156
  %v179 = vmul.f32 %v108, %v156
  %v180 = vmul.f32 %v109, %v156
  %v181 = vmul.f32 %v110, %v156
  %v182 = vmul.f32 %v111, %v156
  %v183 = vmul.f32 %v112, %v156
  %v184 = vmul.f32 %v113, %v156
  %v185 = vmul.f32 %v114, %v156
  %v186 = vmul.f32 %v115, %v156
  %v187 = vmul.f32 %v116, %v156
  %v188 = vmul.f32 %v117, %v156
  %v189 = vmul.f32 %v118, %v156
  %v190 = vmul.f32 %v119, %v156
  %v191 = vmul.f32 %v120, %v156
  %v192 = vmul.f32 %v121, %v156
  %v193 = vmul.f32 %v122, %v156
  %v194 = vmul.f32 %v123, %v156
  %v195 = vmul.f32 %v124, %v156
  %v196 = vmul.f32 %v125, %v156
  %v197 = vmul.f32 %v126, %v156
  %v198 = vmul.f32 %v127, %v156
  %v199 = vmul.f32 %v128, %v156
  %v200 = vmul.f32 %v129, %v156
  %v201 = vmul.f32 %v130, %v156
  %v202 = vmul.f32 %v131, %v156
  %v203 = vmul.f32 %v132, %v156
  %v204 = vmul.f32 %v133, %v156
  %v205 = vmul.f32 %v134, %v156
  %v206 = vmul.f32 %v135, %v156
  %v207 = vmul.f32 %v136, %v156
  %v208 = vmul.f32 %v137, %v156
  %v209 = vmul.f32 %v138, %v156
  %v210 = vmul.f32 %v139, %v156
  %v211 = vmul.f32 %v140, %v156
  %v212 = vmul.f32 %v141, %v156
  %v213 = vmul.f32 %v142, %v156
  %v214 = vmul.f32 %v143, %v156
  %v215 = vmul.f32 %v144, %v156
  %v216 = vmul.f32 %v145, %v156
  %v217 = vmul.f32 %v146, %v156
  %v218 = vmul.f32 %v147, %v156
  %v219 = vmul.f32 %v148, %v156
  %v220 = vmul.f32 %v149, %v156
  %v221 = vmul.f32 %v150, %v156
  %v222 = vld [vmem:[%s2] sm:$0x1]
  %v224 = vlaneseq
  %v225 = vshrl.u32 %v224, 7
  %v226 = vsub.s32 0, %v225
  %v227 = vrot.slane %v222, %v226
  %v229 = vadd.f32 %v158, %v227
  %v230 = vadd.f32 %v159, %v227
  %v231 = vadd.f32 %v160, %v227
  %v232 = vadd.f32 %v161, %v227
  %v233 = vadd.f32 %v162, %v227
  %v234 = vadd.f32 %v163, %v227
  %v235 = vadd.f32 %v164, %v227
  %v236 = vadd.f32 %v165, %v227
  %v237 = vadd.f32 %v166, %v227
  %v238 = vadd.f32 %v167, %v227
  %v239 = vadd.f32 %v168, %v227
  %v240 = vadd.f32 %v169, %v227
  %v241 = vadd.f32 %v170, %v227
  %v242 = vadd.f32 %v171, %v227
  %v243 = vadd.f32 %v172, %v227
  %v244 = vadd.f32 %v173, %v227
  %v245 = vadd.f32 %v174, %v227
  %v246 = vadd.f32 %v175, %v227
  %v247 = vadd.f32 %v176, %v227
  %v248 = vadd.f32 %v177, %v227
  %v249 = vadd.f32 %v178, %v227
  %v250 = vadd.f32 %v179, %v227
  %v251 = vadd.f32 %v180, %v227
  %v252 = vadd.f32 %v181, %v227
  %v253 = vadd.f32 %v182, %v227
  %v254 = vadd.f32 %v183, %v227
  %v255 = vadd.f32 %v184, %v227
  %v256 = vadd.f32 %v185, %v227
  %v257 = vadd.f32 %v186, %v227
  %v258 = vadd.f32 %v187, %v227
  %v259 = vadd.f32 %v188, %v227
  %v260 = vadd.f32 %v189, %v227
  %v261 = vadd.f32 %v190, %v227
  %v262 = vadd.f32 %v191, %v227
  %v263 = vadd.f32 %v192, %v227
  %v264 = vadd.f32 %v193, %v227
  %v265 = vadd.f32 %v194, %v227
  %v266 = vadd.f32 %v195, %v227
  %v267 = vadd.f32 %v196, %v227
  %v268 = vadd.f32 %v197, %v227
  %v269 = vadd.f32 %v198, %v227
  %v270 = vadd.f32 %v199, %v227
  %v271 = vadd.f32 %v200, %v227
  %v272 = vadd.f32 %v201, %v227
  %v273 = vadd.f32 %v202, %v227
  %v274 = vadd.f32 %v203, %v227
  %v275 = vadd.f32 %v204, %v227
  %v276 = vadd.f32 %v205, %v227
  %v277 = vadd.f32 %v206, %v227
  %v278 = vadd.f32 %v207, %v227
  %v279 = vadd.f32 %v208, %v227
  %v280 = vadd.f32 %v209, %v227
  %v281 = vadd.f32 %v210, %v227
  %v282 = vadd.f32 %v211, %v227
  %v283 = vadd.f32 %v212, %v227
  %v284 = vadd.f32 %v213, %v227
  %v285 = vadd.f32 %v214, %v227
  %v286 = vadd.f32 %v215, %v227
  %v287 = vadd.f32 %v216, %v227
  %v288 = vadd.f32 %v217, %v227
  %v289 = vadd.f32 %v218, %v227
  %v290 = vadd.f32 %v219, %v227
  %v291 = vadd.f32 %v220, %v227
  %v292 = vadd.f32 %v221, %v227
  %v293 = vld [vmem:[%s3] sm:$0xff]
  %v294 = vld [vmem:[%s3 + $0x8] sm:$0xff]
  %v295 = vld [vmem:[%s3 + $0x10] sm:$0xff]
  %v296 = vld [vmem:[%s3 + $0x18] sm:$0xff]
  %v297 = vld [vmem:[%s3 + $0x20] sm:$0xff]
  %v298 = vld [vmem:[%s3 + $0x28] sm:$0xff]
  %v299 = vld [vmem:[%s3 + $0x30] sm:$0xff]
  %v300 = vld [vmem:[%s3 + $0x38] sm:$0xff]
  %v301 = vld [vmem:[%s3 + $0x40] sm:$0xff]
  %v302 = vld [vmem:[%s3 + $0x48] sm:$0xff]
  %v303 = vld [vmem:[%s3 + $0x50] sm:$0xff]
  %v304 = vld [vmem:[%s3 + $0x58] sm:$0xff]
  %v305 = vld [vmem:[%s3 + $0x60] sm:$0xff]
  %v306 = vld [vmem:[%s3 + $0x68] sm:$0xff]
  %v307 = vld [vmem:[%s3 + $0x70] sm:$0xff]
  %v308 = vld [vmem:[%s3 + $0x78] sm:$0xff]
  %v309 = vld [vmem:[%s3 + $0x80] sm:$0xff]
  %v310 = vld [vmem:[%s3 + $0x88] sm:$0xff]
  %v311 = vld [vmem:[%s3 + $0x90] sm:$0xff]
  %v312 = vld [vmem:[%s3 + $0x98] sm:$0xff]
  %v313 = vld [vmem:[%s3 + $0xa0] sm:$0xff]
  %v314 = vld [vmem:[%s3 + $0xa8] sm:$0xff]
  %v315 = vld [vmem:[%s3 + $0xb0] sm:$0xff]
  %v316 = vld [vmem:[%s3 + $0xb8] sm:$0xff]
  %v317 = vld [vmem:[%s3 + $0xc0] sm:$0xff]
  %v318 = vld [vmem:[%s3 + $0xc8] sm:$0xff]
  %v319 = vld [vmem:[%s3 + $0xd0] sm:$0xff]
  %v320 = vld [vmem:[%s3 + $0xd8] sm:$0xff]
  %v321 = vld [vmem:[%s3 + $0xe0] sm:$0xff]
  %v322 = vld [vmem:[%s3 + $0xe8] sm:$0xff]
  %v323 = vld [vmem:[%s3 + $0xf0] sm:$0xff]
  %v324 = vld [vmem:[%s3 + $0xf8] sm:$0xff]
  %v325 = vld [vmem:[%s3 + $0x100] sm:$0xff]
  %v326 = vld [vmem:[%s3 + $0x108] sm:$0xff]
  %v327 = vld [vmem:[%s3 + $0x110] sm:$0xff]
  %v328 = vld [vmem:[%s3 + $0x118] sm:$0xff]
  %v329 = vld [vmem:[%s3 + $0x120] sm:$0xff]
  %v330 = vld [vmem:[%s3 + $0x128] sm:$0xff]
  %v331 = vld [vmem:[%s3 + $0x130] sm:$0xff]
  %v332 = vld [vmem:[%s3 + $0x138] sm:$0xff]
  %v333 = vld [vmem:[%s3 + $0x140] sm:$0xff]
  %v334 = vld [vmem:[%s3 + $0x148] sm:$0xff]
  %v335 = vld [vmem:[%s3 + $0x150] sm:$0xff]
  %v336 = vld [vmem:[%s3 + $0x158] sm:$0xff]
  %v337 = vld [vmem:[%s3 + $0x160] sm:$0xff]
  %v338 = vld [vmem:[%s3 + $0x168] sm:$0xff]
  %v339 = vld [vmem:[%s3 + $0x170] sm:$0xff]
  %v340 = vld [vmem:[%s3 + $0x178] sm:$0xff]
  %v341 = vld [vmem:[%s3 + $0x180] sm:$0xff]
  %v342 = vld [vmem:[%s3 + $0x188] sm:$0xff]
  %v343 = vld [vmem:[%s3 + $0x190] sm:$0xff]
  %v344 = vld [vmem:[%s3 + $0x198] sm:$0xff]
  %v345 = vld [vmem:[%s3 + $0x1a0] sm:$0xff]
  %v346 = vld [vmem:[%s3 + $0x1a8] sm:$0xff]
  %v347 = vld [vmem:[%s3 + $0x1b0] sm:$0xff]
  %v348 = vld [vmem:[%s3 + $0x1b8] sm:$0xff]
  %v349 = vld [vmem:[%s3 + $0x1c0] sm:$0xff]
  %v350 = vld [vmem:[%s3 + $0x1c8] sm:$0xff]
  %v351 = vld [vmem:[%s3 + $0x1d0] sm:$0xff]
  %v352 = vld [vmem:[%s3 + $0x1d8] sm:$0xff]
  %v353 = vld [vmem:[%s3 + $0x1e0] sm:$0xff]
  %v354 = vld [vmem:[%s3 + $0x1e8] sm:$0xff]
  %v355 = vld [vmem:[%s3 + $0x1f0] sm:$0xff]
  %v356 = vld [vmem:[%s3 + $0x1f8] sm:$0xff]
  %v357 = vld [vmem:[%s4] sm:$0x1]
  %v359 = vlaneseq
  %v360 = vshrl.u32 %v359, 7
  %v361 = vsub.s32 0, %v360
  %v362 = vrot.slane %v357, %v361
  %v364 = vmul.f32 %v293, %v362
  %v365 = vmul.f32 %v294, %v362
  %v366 = vmul.f32 %v295, %v362
  %v367 = vmul.f32 %v296, %v362
  %v368 = vmul.f32 %v297, %v362
  %v369 = vmul.f32 %v298, %v362
  %v370 = vmul.f32 %v299, %v362
  %v371 = vmul.f32 %v300, %v362
  %v372 = vmul.f32 %v301, %v362
  %v373 = vmul.f32 %v302, %v362
  %v374 = vmul.f32 %v303, %v362
  %v375 = vmul.f32 %v304, %v362
  %v376 = vmul.f32 %v305, %v362
  %v377 = vmul.f32 %v306, %v362
  %v378 = vmul.f32 %v307, %v362
  %v379 = vmul.f32 %v308, %v362
  %v380 = vmul.f32 %v309, %v362
  %v381 = vmul.f32 %v310, %v362
  %v382 = vmul.f32 %v311, %v362
  %v383 = vmul.f32 %v312, %v362
  %v384 = vmul.f32 %v313, %v362
  %v385 = vmul.f32 %v314, %v362
  %v386 = vmul.f32 %v315, %v362
  %v387 = vmul.f32 %v316, %v362
  %v388 = vmul.f32 %v317, %v362
  %v389 = vmul.f32 %v318, %v362
  %v390 = vmul.f32 %v319, %v362
  %v391 = vmul.f32 %v320, %v362
  %v392 = vmul.f32 %v321, %v362
  %v393 = vmul.f32 %v322, %v362
  %v394 = vmul.f32 %v323, %v362
  %v395 = vmul.f32 %v324, %v362
  %v396 = vmul.f32 %v325, %v362
  %v397 = vmul.f32 %v326, %v362
  %v398 = vmul.f32 %v327, %v362
  %v399 = vmul.f32 %v328, %v362
  %v400 = vmul.f32 %v329, %v362
  %v401 = vmul.f32 %v330, %v362
  %v402 = vmul.f32 %v331, %v362
  %v403 = vmul.f32 %v332, %v362
  %v404 = vmul.f32 %v333, %v362
  %v405 = vmul.f32 %v334, %v362
  %v406 = vmul.f32 %v335, %v362
  %v407 = vmul.f32 %v336, %v362
  %v408 = vmul.f32 %v337, %v362
  %v409 = vmul.f32 %v338, %v362
  %v410 = vmul.f32 %v339, %v362
  %v411 = vmul.f32 %v340, %v362
  %v412 = vmul.f32 %v341, %v362
  %v413 = vmul.f32 %v342, %v362
  %v414 = vmul.f32 %v343, %v362
  %v415 = vmul.f32 %v344, %v362
  %v416 = vmul.f32 %v345, %v362
  %v417 = vmul.f32 %v346, %v362
  %v418 = vmul.f32 %v347, %v362
  %v419 = vmul.f32 %v348, %v362
  %v420 = vmul.f32 %v349, %v362
  %v421 = vmul.f32 %v350, %v362
  %v422 = vmul.f32 %v351, %v362
  %v423 = vmul.f32 %v352, %v362
  %v424 = vmul.f32 %v353, %v362
  %v425 = vmul.f32 %v354, %v362
  %v426 = vmul.f32 %v355, %v362
  %v427 = vmul.f32 %v356, %v362
  %v428 = vadd.f32 %v229, %v364
  %v429 = vadd.f32 %v230, %v365
  %v430 = vadd.f32 %v231, %v366
  %v431 = vadd.f32 %v232, %v367
  %v432 = vadd.f32 %v233, %v368
  %v433 = vadd.f32 %v234, %v369
  %v434 = vadd.f32 %v235, %v370
  %v435 = vadd.f32 %v236, %v371
  %v436 = vadd.f32 %v237, %v372
  %v437 = vadd.f32 %v238, %v373
  %v438 = vadd.f32 %v239, %v374
  %v439 = vadd.f32 %v240, %v375
  %v440 = vadd.f32 %v241, %v376
  %v441 = vadd.f32 %v242, %v377
  %v442 = vadd.f32 %v243, %v378
  %v443 = vadd.f32 %v244, %v379
  %v444 = vadd.f32 %v245, %v380
  %v445 = vadd.f32 %v246, %v381
  %v446 = vadd.f32 %v247, %v382
  %v447 = vadd.f32 %v248, %v383
  %v448 = vadd.f32 %v249, %v384
  %v449 = vadd.f32 %v250, %v385
  %v450 = vadd.f32 %v251, %v386
  %v451 = vadd.f32 %v252, %v387
  %v452 = vadd.f32 %v253, %v388
  %v453 = vadd.f32 %v254, %v389
  %v454 = vadd.f32 %v255, %v390
  %v455 = vadd.f32 %v256, %v391
  %v456 = vadd.f32 %v257, %v392
  %v457 = vadd.f32 %v258, %v393
  %v458 = vadd.f32 %v259, %v394
  %v459 = vadd.f32 %v260, %v395
  %v460 = vadd.f32 %v261, %v396
  %v461 = vadd.f32 %v262, %v397
  %v462 = vadd.f32 %v263, %v398
  %v463 = vadd.f32 %v264, %v399
  %v464 = vadd.f32 %v265, %v400
  %v465 = vadd.f32 %v266, %v401
  %v466 = vadd.f32 %v267, %v402
  %v467 = vadd.f32 %v268, %v403
  %v468 = vadd.f32 %v269, %v404
  %v469 = vadd.f32 %v270, %v405
  %v470 = vadd.f32 %v271, %v406
  %v471 = vadd.f32 %v272, %v407
  %v472 = vadd.f32 %v273, %v408
  %v473 = vadd.f32 %v274, %v409
  %v474 = vadd.f32 %v275, %v410
  %v475 = vadd.f32 %v276, %v411
  %v476 = vadd.f32 %v277, %v412
  %v477 = vadd.f32 %v278, %v413
  %v478 = vadd.f32 %v279, %v414
  %v479 = vadd.f32 %v280, %v415
  %v480 = vadd.f32 %v281, %v416
  %v481 = vadd.f32 %v282, %v417
  %v482 = vadd.f32 %v283, %v418
  %v483 = vadd.f32 %v284, %v419
  %v484 = vadd.f32 %v285, %v420
  %v485 = vadd.f32 %v286, %v421
  %v486 = vadd.f32 %v287, %v422
  %v487 = vadd.f32 %v288, %v423
  %v488 = vadd.f32 %v289, %v424
  %v489 = vadd.f32 %v290, %v425
  %v490 = vadd.f32 %v291, %v426
  %v491 = vadd.f32 %v292, %v427
  %v492 = vld [vmem:[%s5] sm:$0x1]
  %v494 = vlaneseq
  %v495 = vshrl.u32 %v494, 7
  %v496 = vsub.s32 0, %v495
  %v497 = vrot.slane %v492, %v496
  %v499 = vadd.f32 %v428, %v497
  %v500 = vadd.f32 %v429, %v497
  %v501 = vadd.f32 %v430, %v497
  %v502 = vadd.f32 %v431, %v497
  %v503 = vadd.f32 %v432, %v497
  %v504 = vadd.f32 %v433, %v497
  %v505 = vadd.f32 %v434, %v497
  %v506 = vadd.f32 %v435, %v497
  %v507 = vadd.f32 %v436, %v497
  %v508 = vadd.f32 %v437, %v497
  %v509 = vadd.f32 %v438, %v497
  %v510 = vadd.f32 %v439, %v497
  %v511 = vadd.f32 %v440, %v497
  %v512 = vadd.f32 %v441, %v497
  %v513 = vadd.f32 %v442, %v497
  %v514 = vadd.f32 %v443, %v497
  %v515 = vadd.f32 %v444, %v497
  %v516 = vadd.f32 %v445, %v497
  %v517 = vadd.f32 %v446, %v497
  %v518 = vadd.f32 %v447, %v497
  %v519 = vadd.f32 %v448, %v497
  %v520 = vadd.f32 %v449, %v497
  %v521 = vadd.f32 %v450, %v497
  %v522 = vadd.f32 %v451, %v497
  %v523 = vadd.f32 %v452, %v497
  %v524 = vadd.f32 %v453, %v497
  %v525 = vadd.f32 %v454, %v497
  %v526 = vadd.f32 %v455, %v497
  %v527 = vadd.f32 %v456, %v497
  %v528 = vadd.f32 %v457, %v497
  %v529 = vadd.f32 %v458, %v497
  %v530 = vadd.f32 %v459, %v497
  %v531 = vadd.f32 %v460, %v497
  %v532 = vadd.f32 %v461, %v497
  %v533 = vadd.f32 %v462, %v497
  %v534 = vadd.f32 %v463, %v497
  %v535 = vadd.f32 %v464, %v497
  %v536 = vadd.f32 %v465, %v497
  %v537 = vadd.f32 %v466, %v497
  %v538 = vadd.f32 %v467, %v497
  %v539 = vadd.f32 %v468, %v497
  %v540 = vadd.f32 %v469, %v497
  %v541 = vadd.f32 %v470, %v497
  %v542 = vadd.f32 %v471, %v497
  %v543 = vadd.f32 %v472, %v497
  %v544 = vadd.f32 %v473, %v497
  %v545 = vadd.f32 %v474, %v497
  %v546 = vadd.f32 %v475, %v497
  %v547 = vadd.f32 %v476, %v497
  %v548 = vadd.f32 %v477, %v497
  %v549 = vadd.f32 %v478, %v497
  %v550 = vadd.f32 %v479, %v497
  %v551 = vadd.f32 %v480, %v497
  %v552 = vadd.f32 %v481, %v497
  %v553 = vadd.f32 %v482, %v497
  %v554 = vadd.f32 %v483, %v497
  %v555 = vadd.f32 %v484, %v497
  %v556 = vadd.f32 %v485, %v497
  %v557 = vadd.f32 %v486, %v497
  %v558 = vadd.f32 %v487, %v497
  %v559 = vadd.f32 %v488, %v497
  %v560 = vadd.f32 %v489, %v497
  %v561 = vadd.f32 %v490, %v497
  %v562 = vadd.f32 %v491, %v497
  %v563 = vmax.f32 %v499, 0.0
  %v564 = vmax.f32 %v500, 0.0
  %v565 = vmax.f32 %v501, 0.0
  %v566 = vmax.f32 %v502, 0.0
  %v567 = vmax.f32 %v503, 0.0
  %v568 = vmax.f32 %v504, 0.0
  %v569 = vmax.f32 %v505, 0.0
  %v570 = vmax.f32 %v506, 0.0
  %v571 = vmax.f32 %v507, 0.0
  %v572 = vmax.f32 %v508, 0.0
  %v573 = vmax.f32 %v509, 0.0
  %v574 = vmax.f32 %v510, 0.0
  %v575 = vmax.f32 %v511, 0.0
  %v576 = vmax.f32 %v512, 0.0
  %v577 = vmax.f32 %v513, 0.0
  %v578 = vmax.f32 %v514, 0.0
  %v579 = vmax.f32 %v515, 0.0
  %v580 = vmax.f32 %v516, 0.0
  %v581 = vmax.f32 %v517, 0.0
  %v582 = vmax.f32 %v518, 0.0
  %v583 = vmax.f32 %v519, 0.0
  %v584 = vmax.f32 %v520, 0.0
  %v585 = vmax.f32 %v521, 0.0
  %v586 = vmax.f32 %v522, 0.0
  %v587 = vmax.f32 %v523, 0.0
  %v588 = vmax.f32 %v524, 0.0
  %v589 = vmax.f32 %v525, 0.0
  %v590 = vmax.f32 %v526, 0.0
  %v591 = vmax.f32 %v527, 0.0
  %v592 = vmax.f32 %v528, 0.0
  %v593 = vmax.f32 %v529, 0.0
  %v594 = vmax.f32 %v530, 0.0
  %v595 = vmax.f32 %v531, 0.0
  %v596 = vmax.f32 %v532, 0.0
  %v597 = vmax.f32 %v533, 0.0
  %v598 = vmax.f32 %v534, 0.0
  %v599 = vmax.f32 %v535, 0.0
  %v600 = vmax.f32 %v536, 0.0
  %v601 = vmax.f32 %v537, 0.0
  %v602 = vmax.f32 %v538, 0.0
  %v603 = vmax.f32 %v539, 0.0
  %v604 = vmax.f32 %v540, 0.0
  %v605 = vmax.f32 %v541, 0.0
  %v606 = vmax.f32 %v542, 0.0
  %v607 = vmax.f32 %v543, 0.0
  %v608 = vmax.f32 %v544, 0.0
  %v609 = vmax.f32 %v545, 0.0
  %v610 = vmax.f32 %v546, 0.0
  %v611 = vmax.f32 %v547, 0.0
  %v612 = vmax.f32 %v548, 0.0
  %v613 = vmax.f32 %v549, 0.0
  %v614 = vmax.f32 %v550, 0.0
  %v615 = vmax.f32 %v551, 0.0
  %v616 = vmax.f32 %v552, 0.0
  %v617 = vmax.f32 %v553, 0.0
  %v618 = vmax.f32 %v554, 0.0
  %v619 = vmax.f32 %v555, 0.0
  %v620 = vmax.f32 %v556, 0.0
  %v621 = vmax.f32 %v557, 0.0
  %v622 = vmax.f32 %v558, 0.0
  %v623 = vmax.f32 %v559, 0.0
  %v624 = vmax.f32 %v560, 0.0
  %v625 = vmax.f32 %v561, 0.0
  %v626 = vmax.f32 %v562, 0.0
  %627 = vst [vmem:[%s6] sm:$0xff] %v563
  %628 = vst [vmem:[%s6 + $0x8] sm:$0xff] %v564
  %629 = vst [vmem:[%s6 + $0x10] sm:$0xff] %v565
  %630 = vst [vmem:[%s6 + $0x18] sm:$0xff] %v566
  %631 = vst [vmem:[%s6 + $0x20] sm:$0xff] %v567
  %632 = vst [vmem:[%s6 + $0x28] sm:$0xff] %v568
  %633 = vst [vmem:[%s6 + $0x30] sm:$0xff] %v569
  %634 = vst [vmem:[%s6 + $0x38] sm:$0xff] %v570
  %635 = vst [vmem:[%s6 + $0x40] sm:$0xff] %v571
  %636 = vst [vmem:[%s6 + $0x48] sm:$0xff] %v572
  %637 = vst [vmem:[%s6 + $0x50] sm:$0xff] %v573
  %638 = vst [vmem:[%s6 + $0x58] sm:$0xff] %v574
  %639 = vst [vmem:[%s6 + $0x60] sm:$0xff] %v575
  %640 = vst [vmem:[%s6 + $0x68] sm:$0xff] %v576
  %641 = vst [vmem:[%s6 + $0x70] sm:$0xff] %v577
  %642 = vst [vmem:[%s6 + $0x78] sm:$0xff] %v578
  %643 = vst [vmem:[%s6 + $0x80] sm:$0xff] %v579
  %644 = vst [vmem:[%s6 + $0x88] sm:$0xff] %v580
  %645 = vst [vmem:[%s6 + $0x90] sm:$0xff] %v581
  %646 = vst [vmem:[%s6 + $0x98] sm:$0xff] %v582
  %647 = vst [vmem:[%s6 + $0xa0] sm:$0xff] %v583
  %648 = vst [vmem:[%s6 + $0xa8] sm:$0xff] %v584
  %649 = vst [vmem:[%s6 + $0xb0] sm:$0xff] %v585
  %650 = vst [vmem:[%s6 + $0xb8] sm:$0xff] %v586
  %651 = vst [vmem:[%s6 + $0xc0] sm:$0xff] %v587
  %652 = vst [vmem:[%s6 + $0xc8] sm:$0xff] %v588
  %653 = vst [vmem:[%s6 + $0xd0] sm:$0xff] %v589
  %654 = vst [vmem:[%s6 + $0xd8] sm:$0xff] %v590
  %655 = vst [vmem:[%s6 + $0xe0] sm:$0xff] %v591
  %656 = vst [vmem:[%s6 + $0xe8] sm:$0xff] %v592
  %657 = vst [vmem:[%s6 + $0xf0] sm:$0xff] %v593
  %658 = vst [vmem:[%s6 + $0xf8] sm:$0xff] %v594
  %659 = vst [vmem:[%s6 + $0x100] sm:$0xff] %v595
  %660 = vst [vmem:[%s6 + $0x108] sm:$0xff] %v596
  %661 = vst [vmem:[%s6 + $0x110] sm:$0xff] %v597
  %662 = vst [vmem:[%s6 + $0x118] sm:$0xff] %v598
  %663 = vst [vmem:[%s6 + $0x120] sm:$0xff] %v599
  %664 = vst [vmem:[%s6 + $0x128] sm:$0xff] %v600
  %665 = vst [vmem:[%s6 + $0x130] sm:$0xff] %v601
  %666 = vst [vmem:[%s6 + $0x138] sm:$0xff] %v602
  %667 = vst [vmem:[%s6 + $0x140] sm:$0xff] %v603
  %668 = vst [vmem:[%s6 + $0x148] sm:$0xff] %v604
  %669 = vst [vmem:[%s6 + $0x150] sm:$0xff] %v605
  %670 = vst [vmem:[%s6 + $0x158] sm:$0xff] %v606
  %671 = vst [vmem:[%s6 + $0x160] sm:$0xff] %v607
  %672 = vst [vmem:[%s6 + $0x168] sm:$0xff] %v608
  %673 = vst [vmem:[%s6 + $0x170] sm:$0xff] %v609
  %674 = vst [vmem:[%s6 + $0x178] sm:$0xff] %v610
  %675 = vst [vmem:[%s6 + $0x180] sm:$0xff] %v611
  %676 = vst [vmem:[%s6 + $0x188] sm:$0xff] %v612
  %677 = vst [vmem:[%s6 + $0x190] sm:$0xff] %v613
  %678 = vst [vmem:[%s6 + $0x198] sm:$0xff] %v614
  %679 = vst [vmem:[%s6 + $0x1a0] sm:$0xff] %v615
  %680 = vst [vmem:[%s6 + $0x1a8] sm:$0xff] %v616
  %681 = vst [vmem:[%s6 + $0x1b0] sm:$0xff] %v617
  %682 = vst [vmem:[%s6 + $0x1b8] sm:$0xff] %v618
  %683 = vst [vmem:[%s6 + $0x1c0] sm:$0xff] %v619
  %684 = vst [vmem:[%s6 + $0x1c8] sm:$0xff] %v620
  %685 = vst [vmem:[%s6 + $0x1d0] sm:$0xff] %v621
  %686 = vst [vmem:[%s6 + $0x1d8] sm:$0xff] %v622
  %687 = vst [vmem:[%s6 + $0x1e0] sm:$0xff] %v623
  %688 = vst [vmem:[%s6 + $0x1e8] sm:$0xff] %v624
  %689 = vst [vmem:[%s6 + $0x1f0] sm:$0xff] %v625
  %690 = vst [vmem:[%s6 + $0x1f8] sm:$0xff] %v626
  // Predicated region
  $region26: #{residual_block_forward.7} parent=0 // pred_check
    _
  $region27: #{residual_block_forward.7} parent=0 // pred_check_branch
    %692 = sbr.rel (0) target = $region29
  $region28: #{residual_block_forward.7} parent=0 // pred_region
    _
  $region29: #{residual_block_forward.7} parent=0 // pred_fallthru
    _
  // Predicated region
  $region30: #{residual_block_forward.7} parent=0 // pred_check
    _
  $region31: #{residual_block_forward.7} parent=0 // pred_check_branch
    %694 = sbr.rel (0) target = $region33
  $region32: #{residual_block_forward.7} parent=0 // pred_region
    _
  $region33: #{residual_block_forward.7} parent=0 // pred_fallthru
    _

// kernel: residual_block_forward.6
$region0: #{residual_block_forward.6}
  #allocation0 [shape = 'u32[]', space=smem, size = 0x4, offset = 0x4, fixed_abs, tag = 'smem constant byte address 0x4 - core index']
  #allocation1 [shape = 'u32[144,128]{1,0:T(1,128)}', space=vmem, size = 0x12000, scoped, tag = 'internal scratch']
  #allocation2 [shape = 'f32[512,128]{1,0:T(8,128)}', space=vmem, size = 0x40000, scoped, tag = 'scratch operand']
  %s0 = inlined_call_operand.vmem [shape: bf16[512,1152], index: 0, kind: input, shape index: {}]
  %s1 = inlined_call_operand.vmem [shape: bf16[1152,128], index: 1, kind: input, shape index: {}]
  %s2 = inlined_call_operand.vmem [shape: bf16[512,128], index: 2, kind: output, shape index: {0}]
  %s3 = inlined_call_operand.vmem [shape: f32[1,2,128], index: 3, kind: output, shape index: {1}]
  %4 = xla_tuple %s2, %s3
  %s5 = sld [smem:[#allocation0]]
  $region34: #{residual_block_forward.6} parent=0
    _
  %s7 = ssub.s32 1, %s5
  %s8 = scalar_select 0, %s7, %s5
  // Predicated region
  $region2: #{residual_block_forward.6} parent=0 // pred_check
    _
  $region3: #{residual_block_forward.6} parent=0 // pred_check_branch
    %10 = sbr.rel (0) target = $region5
  $region4: #{residual_block_forward.6} parent=0 // pred_region
    _
  $region5: #{residual_block_forward.6} parent=0 // pred_fallthru
    _
  // Predicated region
  $region6: #{residual_block_forward.6} parent=0 // pred_check
    _
  $region7: #{residual_block_forward.6} parent=0 // pred_check_branch
    %12 = sbr.rel (0) target = $region9
  $region8: #{residual_block_forward.6} parent=0 // pred_region
    _
  $region9: #{residual_block_forward.6} parent=0 // pred_fallthru
    _
  %p14 = scmp.eq.s32.totalorder 0, 0
  // Predicated region
  $region10: #{residual_block_forward.6} parent=0 // pred_check
    %p15 = pneg %p14
  $region11: #{residual_block_forward.6} parent=0 // pred_check_branch
    %17 = sbr.rel (%p15) target = $region13
  $region12: #{residual_block_forward.6} parent=0 // pred_region
    %18 = vst [vmem:[#allocation2] sm:$0xff] 0.0
    %19 = vst [vmem:[#allocation2 + $0x8] sm:$0xff] 0.0
    %20 = vst [vmem:[#allocation2 + $0x10] sm:$0xff] 0.0
    %21 = vst [vmem:[#allocation2 + $0x18] sm:$0xff] 0.0
    %22 = vst [vmem:[#allocation2 + $0x20] sm:$0xff] 0.0
    %23 = vst [vmem:[#allocation2 + $0x28] sm:$0xff] 0.0
    %24 = vst [vmem:[#allocation2 + $0x30] sm:$0xff] 0.0
    %25 = vst [vmem:[#allocation2 + $0x38] sm:$0xff] 0.0
    %26 = vst [vmem:[#allocation2 + $0x40] sm:$0xff] 0.0
    %27 = vst [vmem:[#allocation2 + $0x48] sm:$0xff] 0.0
    %28 = vst [vmem:[#allocation2 + $0x50] sm:$0xff] 0.0
    %29 = vst [vmem:[#allocation2 + $0x58] sm:$0xff] 0.0
    %30 = vst [vmem:[#allocation2 + $0x60] sm:$0xff] 0.0
    %31 = vst [vmem:[#allocation2 + $0x68] sm:$0xff] 0.0
    %32 = vst [vmem:[#allocation2 + $0x70] sm:$0xff] 0.0
    %33 = vst [vmem:[#allocation2 + $0x78] sm:$0xff] 0.0
    %34 = vst [vmem:[#allocation2 + $0x80] sm:$0xff] 0.0
    %35 = vst [vmem:[#allocation2 + $0x88] sm:$0xff] 0.0
    %36 = vst [vmem:[#allocation2 + $0x90] sm:$0xff] 0.0
    %37 = vst [vmem:[#allocation2 + $0x98] sm:$0xff] 0.0
    %38 = vst [vmem:[#allocation2 + $0xa0] sm:$0xff] 0.0
    %39 = vst [vmem:[#allocation2 + $0xa8] sm:$0xff] 0.0
    %40 = vst [vmem:[#allocation2 + $0xb0] sm:$0xff] 0.0
    %41 = vst [vmem:[#allocation2 + $0xb8] sm:$0xff] 0.0
    %42 = vst [vmem:[#allocation2 + $0xc0] sm:$0xff] 0.0
    %43 = vst [vmem:[#allocation2 + $0xc8] sm:$0xff] 0.0
    %44 = vst [vmem:[#allocation2 + $0xd0] sm:$0xff] 0.0
    %45 = vst [vmem:[#allocation2 + $0xd8] sm:$0xff] 0.0
    %46 = vst [vmem:[#allocation2 + $0xe0] sm:$0xff] 0.0
    %47 = vst [vmem:[#allocation2 + $0xe8] sm:$0xff] 0.0
    %48 = vst [vmem:[#allocation2 + $0xf0] sm:$0xff] 0.0
    %49 = vst [vmem:[#allocation2 + $0xf8] sm:$0xff] 0.0
    %50 = vst [vmem:[#allocation2 + $0x100] sm:$0xff] 0.0
    %51 = vst [vmem:[#allocation2 + $0x108] sm:$0xff] 0.0
    %52 = vst [vmem:[#allocation2 + $0x110] sm:$0xff] 0.0
    %53 = vst [vmem:[#allocation2 + $0x118] sm:$0xff] 0.0
    %54 = vst [vmem:[#allocation2 + $0x120] sm:$0xff] 0.0
    %55 = vst [vmem:[#allocation2 + $0x128] sm:$0xff] 0.0
    %56 = vst [vmem:[#allocation2 + $0x130] sm:$0xff] 0.0
    %57 = vst [vmem:[#allocation2 + $0x138] sm:$0xff] 0.0
    %58 = vst [vmem:[#allocation2 + $0x140] sm:$0xff] 0.0
    %59 = vst [vmem:[#allocation2 + $0x148] sm:$0xff] 0.0
    %60 = vst [vmem:[#allocation2 + $0x150] sm:$0xff] 0.0
    %61 = vst [vmem:[#allocation2 + $0x158] sm:$0xff] 0.0
    %62 = vst [vmem:[#allocation2 + $0x160] sm:$0xff] 0.0
    %63 = vst [vmem:[#allocation2 + $0x168] sm:$0xff] 0.0
    %64 = vst [vmem:[#allocation2 + $0x170] sm:$0xff] 0.0
    %65 = vst [vmem:[#allocation2 + $0x178] sm:$0xff] 0.0
    %66 = vst [vmem:[#allocation2 + $0x180] sm:$0xff] 0.0
    %67 = vst [vmem:[#allocation2 + $0x188] sm:$0xff] 0.0
    %68 = vst [vmem:[#allocation2 + $0x190] sm:$0xff] 0.0
    %69 = vst [vmem:[#allocation2 + $0x198] sm:$0xff] 0.0
    %70 = vst [vmem:[#allocation2 + $0x1a0] sm:$0xff] 0.0
    %71 = vst [vmem:[#allocation2 + $0x1a8] sm:$0xff] 0.0
    %72 = vst [vmem:[#allocation2 + $0x1b0] sm:$0xff] 0.0
    %73 = vst [vmem:[#allocation2 + $0x1b8] sm:$0xff] 0.0
    %74 = vst [vmem:[#allocation2 + $0x1c0] sm:$0xff] 0.0
    %75 = vst [vmem:[#allocation2 + $0x1c8] sm:$0xff] 0.0
    %76 = vst [vmem:[#allocation2 + $0x1d0] sm:$0xff] 0.0
    %77 = vst [vmem:[#allocation2 + $0x1d8] sm:$0xff] 0.0
    %78 = vst [vmem:[#allocation2 + $0x1e0] sm:$0xff] 0.0
    %79 = vst [vmem:[#allocation2 + $0x1e8] sm:$0xff] 0.0
    %80 = vst [vmem:[#allocation2 + $0x1f0] sm:$0xff] 0.0
    %81 = vst [vmem:[#allocation2 + $0x1f8] sm:$0xff] 0.0
  $region13: #{residual_block_forward.6} parent=0 // pred_fallthru
    _
  %v82 = vld [vmem:[#allocation2] sm:$0xff]
  %v83 = vld [vmem:[#allocation2 + $0x8] sm:$0xff]
  %v84 = vld [vmem:[#allocation2 + $0x10] sm:$0xff]
  %v85 = vld [vmem:[#allocation2 + $0x18] sm:$0xff]
  %v86 = vld [vmem:[#allocation2 + $0x20] sm:$0xff]
  %v87 = vld [vmem:[#allocation2 + $0x28] sm:$0xff]
  %v88 = vld [vmem:[#allocation2 + $0x30] sm:$0xff]
  %v89 = vld [vmem:[#allocation2 + $0x38] sm:$0xff]
  %v90 = vld [vmem:[#allocation2 + $0x40] sm:$0xff]
  %v91 = vld [vmem:[#allocation2 + $0x48] sm:$0xff]
  %v92 = vld [vmem:[#allocation2 + $0x50] sm:$0xff]
  %v93 = vld [vmem:[#allocation2 + $0x58] sm:$0xff]
  %v94 = vld [vmem:[#allocation2 + $0x60] sm:$0xff]
  %v95 = vld [vmem:[#allocation2 + $0x68] sm:$0xff]
  %v96 = vld [vmem:[#allocation2 + $0x70] sm:$0xff]
  %v97 = vld [vmem:[#allocation2 + $0x78] sm:$0xff]
  %v98 = vld [vmem:[#allocation2 + $0x80] sm:$0xff]
  %v99 = vld [vmem:[#allocation2 + $0x88] sm:$0xff]
  %v100 = vld [vmem:[#allocation2 + $0x90] sm:$0xff]
  %v101 = vld [vmem:[#allocation2 + $0x98] sm:$0xff]
  %v102 = vld [vmem:[#allocation2 + $0xa0] sm:$0xff]
  %v103 = vld [vmem:[#allocation2 + $0xa8] sm:$0xff]
  %v104 = vld [vmem:[#allocation2 + $0xb0] sm:$0xff]
  %v105 = vld [vmem:[#allocation2 + $0xb8] sm:$0xff]
  %v106 = vld [vmem:[#allocation2 + $0xc0] sm:$0xff]
  %v107 = vld [vmem:[#allocation2 + $0xc8] sm:$0xff]
  %v108 = vld [vmem:[#allocation2 + $0xd0] sm:$0xff]
  %v109 = vld [vmem:[#allocation2 + $0xd8] sm:$0xff]
  %v110 = vld [vmem:[#allocation2 + $0xe0] sm:$0xff]
  %v111 = vld [vmem:[#allocation2 + $0xe8] sm:$0xff]
  %v112 = vld [vmem:[#allocation2 + $0xf0] sm:$0xff]
  %v113 = vld [vmem:[#allocation2 + $0xf8] sm:$0xff]
  %v114 = vld [vmem:[#allocation2 + $0x100] sm:$0xff]
  %v115 = vld [vmem:[#allocation2 + $0x108] sm:$0xff]
  %v116 = vld [vmem:[#allocation2 + $0x110] sm:$0xff]
  %v117 = vld [vmem:[#allocation2 + $0x118] sm:$0xff]
  %v118 = vld [vmem:[#allocation2 + $0x120] sm:$0xff]
  %v119 = vld [vmem:[#allocation2 + $0x128] sm:$0xff]
  %v120 = vld [vmem:[#allocation2 + $0x130] sm:$0xff]
  %v121 = vld [vmem:[#allocation2 + $0x138] sm:$0xff]
  %v122 = vld [vmem:[#allocation2 + $0x140] sm:$0xff]
  %v123 = vld [vmem:[#allocation2 + $0x148] sm:$0xff]
  %v124 = vld [vmem:[#allocation2 + $0x150] sm:$0xff]
  %v125 = vld [vmem:[#allocation2 + $0x158] sm:$0xff]
  %v126 = vld [vmem:[#allocation2 + $0x160] sm:$0xff]
  %v127 = vld [vmem:[#allocation2 + $0x168] sm:$0xff]
  %v128 = vld [vmem:[#allocation2 + $0x170] sm:$0xff]
  %v129 = vld [vmem:[#allocation2 + $0x178] sm:$0xff]
  %v130 = vld [vmem:[#allocation2 + $0x180] sm:$0xff]
  %v131 = vld [vmem:[#allocation2 + $0x188] sm:$0xff]
  %v132 = vld [vmem:[#allocation2 + $0x190] sm:$0xff]
  %v133 = vld [vmem:[#allocation2 + $0x198] sm:$0xff]
  %v134 = vld [vmem:[#allocation2 + $0x1a0] sm:$0xff]
  %v135 = vld [vmem:[#allocation2 + $0x1a8] sm:$0xff]
  %v136 = vld [vmem:[#allocation2 + $0x1b0] sm:$0xff]
  %v137 = vld [vmem:[#allocation2 + $0x1b8] sm:$0xff]
  %v138 = vld [vmem:[#allocation2 + $0x1c0] sm:$0xff]
  %v139 = vld [vmem:[#allocation2 + $0x1c8] sm:$0xff]
  %v140 = vld [vmem:[#allocation2 + $0x1d0] sm:$0xff]
  %v141 = vld [vmem:[#allocation2 + $0x1d8] sm:$0xff]
  %v142 = vld [vmem:[#allocation2 + $0x1e0] sm:$0xff]
  %v143 = vld [vmem:[#allocation2 + $0x1e8] sm:$0xff]
  %v144 = vld [vmem:[#allocation2 + $0x1f0] sm:$0xff]
  %v145 = vld [vmem:[#allocation2 + $0x1f8] sm:$0xff]
  %v146 = vld [vmem:[%s0] sm:$0xff]
  %v147 = vld [vmem:[%s0 + $0x8] sm:$0xff]
  %v148 = vld [vmem:[%s0 + $0x10] sm:$0xff]
  %v149 = vld [vmem:[%s0 + $0x18] sm:$0xff]
  %v150 = vld [vmem:[%s0 + $0x20] sm:$0xf]
  %v151 = vld [vmem:[%s0 + $0x24] sm:$0xff]
  %v152 = vld [vmem:[%s0 + $0x2c] sm:$0xff]
  %v153 = vld [vmem:[%s0 + $0x34] sm:$0xff]
  %v154 = vld [vmem:[%s0 + $0x3c] sm:$0xff]
  %v155 = vld [vmem:[%s0 + $0x44] sm:$0xf]
  %v156 = vld [vmem:[%s0 + $0x48] sm:$0xff]
  %v157 = vld [vmem:[%s0 + $0x50] sm:$0xff]
  %v158 = vld [vmem:[%s0 + $0x58] sm:$0xff]
  %v159 = vld [vmem:[%s0 + $0x60] sm:$0xff]
  %v160 = vld [vmem:[%s0 + $0x68] sm:$0xf]
  %v161 = vld [vmem:[%s0 + $0x6c] sm:$0xff]
  %v162 = vld [vmem:[%s0 + $0x74] sm:$0xff]
  %v163 = vld [vmem:[%s0 + $0x7c] sm:$0xff]
  %v164 = vld [vmem:[%s0 + $0x84] sm:$0xff]
  %v165 = vld [vmem:[%s0 + $0x8c] sm:$0xf]
  %v166 = vld [vmem:[%s0 + $0x90] sm:$0xff]
  %v167 = vld [vmem:[%s0 + $0x98] sm:$0xff]
  %v168 = vld [vmem:[%s0 + $0xa0] sm:$0xff]
  %v169 = vld [vmem:[%s0 + $0xa8] sm:$0xff]
  %v170 = vld [vmem:[%s0 + $0xb0] sm:$0xf]
  %v171 = vld [vmem:[%s0 + $0xb4] sm:$0xff]
  %v172 = vld [vmem:[%s0 + $0xbc] sm:$0xff]
  %v173 = vld [vmem:[%s0 + $0xc4] sm:$0xff]
  %v174 = vld [vmem:[%s0 + $0xcc] sm:$0xff]
  %v175 = vld [vmem:[%s0 + $0xd4] sm:$0xf]
  %v176 = vld [vmem:[%s0 + $0xd8] sm:$0xff]
  %v177 = vld [vmem:[%s0 + $0xe0] sm:$0xff]
  %v178 = vld [vmem:[%s0 + $0xe8] sm:$0xff]
  %v179 = vld [vmem:[%s0 + $0xf0] sm:$0xff]
  %v180 = vld [vmem:[%s0 + $0xf8] sm:$0xf]
  %v181 = vld [vmem:[%s0 + $0xfc] sm:$0xff]
  %v182 = vld [vmem:[%s0 + $0x104] sm:$0xff]
  %v183 = vld [vmem:[%s0 + $0x10c] sm:$0xff]
  %v184 = vld [vmem:[%s0 + $0x114] sm:$0xff]
  %v185 = vld [vmem:[%s0 + $0x11c] sm:$0xf]
  %v186 = vld [vmem:[%s0 + $0x120] sm:$0xff]
  %v187 = vld [vmem:[%s0 + $0x128] sm:$0xff]
  %v188 = vld [vmem:[%s0 + $0x130] sm:$0xff]
  %v189 = vld [vmem:[%s0 + $0x138] sm:$0xff]
  %v190 = vld [vmem:[%s0 + $0x140] sm:$0xf]
  %v191 = vld [vmem:[%s0 + $0x144] sm:$0xff]
  %v192 = vld [vmem:[%s0 + $0x14c] sm:$0xff]
  %v193 = vld [vmem:[%s0 + $0x154] sm:$0xff]
  %v194 = vld [vmem:[%s0 + $0x15c] sm:$0xff]
  %v195 = vld [vmem:[%s0 + $0x164] sm:$0xf]
  %v196 = vld [vmem:[%s0 + $0x168] sm:$0xff]
  %v197 = vld [vmem:[%s0 + $0x170] sm:$0xff]
  %v198 = vld [vmem:[%s0 + $0x178] sm:$0xff]
  %v199 = vld [vmem:[%s0 + $0x180] sm:$0xff]
  %v200 = vld [vmem:[%s0 + $0x188] sm:$0xf]
  %v201 = vld [vmem:[%s0 + $0x18c] sm:$0xff]
  %v202 = vld [vmem:[%s0 + $0x194] sm:$0xff]
  %v203 = vld [vmem:[%s0 + $0x19c] sm:$0xff]
  %v204 = vld [vmem:[%s0 + $0x1a4] sm:$0xff]
  %v205 = vld [vmem:[%s0 + $0x1ac] sm:$0xf]
  %v206 = vld [vmem:[%s0 + $0x1b0] sm:$0xff]
  %v207 = vld [vmem:[%s0 + $0x1b8] sm:$0xff]
  %v208 = vld [vmem:[%s0 + $0x1c0] sm:$0xff]
  %v209 = vld [vmem:[%s0 + $0x1c8] sm:$0xff]
  %v210 = vld [vmem:[%s0 + $0x1d0] sm:$0xf]
  %v211 = vld [vmem:[%s0 + $0x1d4] sm:$0xff]
  %v212 = vld [vmem:[%s0 + $0x1dc] sm:$0xff]
  %v213 = vld [vmem:[%s0 + $0x1e4] sm:$0xff]
  %v214 = vld [vmem:[%s0 + $0x1ec] sm:$0xff]
  %v215 = vld [vmem:[%s0 + $0x1f4] sm:$0xf]
  %v216 = vld [vmem:[%s0 + $0x1f8] sm:$0xff]
  %v217 = vld [vmem:[%s0 + $0x200] sm:$0xff]
  %v218 = vld [vmem:[%s0 + $0x208] sm:$0xff]
  %v219 = vld [vmem:[%s0 + $0x210] sm:$0xff]
  %v220 = vld [vmem:[%s0 + $0x218] sm:$0xf]
  %v221 = vld [vmem:[%s0 + $0x21c] sm:$0xff]
  %v222 = vld [vmem:[%s0 + $0x224] sm:$0xff]
  %v223 = vld [vmem:[%s0 + $0x22c] sm:$0xff]
  %v224 = vld [vmem:[%s0 + $0x234] sm:$0xff]
  %v225 = vld [vmem:[%s0 + $0x23c] sm:$0xf]
  %v226 = vld [vmem:[%s0 + $0x240] sm:$0xff]
  %v227 = vld [vmem:[%s0 + $0x248] sm:$0xff]
  %v228 = vld [vmem:[%s0 + $0x250] sm:$0xff]
  %v229 = vld [vmem:[%s0 + $0x258] sm:$0xff]
  %v230 = vld [vmem:[%s0 + $0x260] sm:$0xf]
  %v231 = vld [vmem:[%s0 + $0x264] sm:$0xff]
  %v232 = vld [vmem:[%s0 + $0x26c] sm:$0xff]
  %v233 = vld [vmem:[%s0 + $0x274] sm:$0xff]
  %v234 = vld [vmem:[%s0 + $0x27c] sm:$0xff]
  %v235 = vld [vmem:[%s0 + $0x284] sm:$0xf]
  %v236 = vld [vmem:[%s0 + $0x288] sm:$0xff]
  %v237 = vld [vmem:[%s0 + $0x290] sm:$0xff]
  %v238 = vld [vmem:[%s0 + $0x298] sm:$0xff]
  %v239 = vld [vmem:[%s0 + $0x2a0] sm:$0xff]
  %v240 = vld [vmem:[%s0 + $0x2a8] sm:$0xf]
  %v241 = vld [vmem:[%s0 + $0x2ac] sm:$0xff]
  %v242 = vld [vmem:[%s0 + $0x2b4] sm:$0xff]
  %v243 = vld [vmem:[%s0 + $0x2bc] sm:$0xff]
  %v244 = vld [vmem:[%s0 + $0x2c4] sm:$0xff]
  %v245 = vld [vmem:[%s0 + $0x2cc] sm:$0xf]
  %v246 = vld [vmem:[%s0 + $0x2d0] sm:$0xff]
  %v247 = vld [vmem:[%s0 + $0x2d8] sm:$0xff]
  %v248 = vld [vmem:[%s0 + $0x2e0] sm:$0xff]
  %v249 = vld [vmem:[%s0 + $0x2e8] sm:$0xff]
  %v250 = vld [vmem:[%s0 + $0x2f0] sm:$0xf]
  %v251 = vld [vmem:[%s0 + $0x2f4] sm:$0xff]
  %v252 = vld [vmem:[%s0 + $0x2fc] sm:$0xff]
  %v253 = vld [vmem:[%s0 + $0x304] sm:$0xff]
  %v254 = vld [vmem:[%s0 + $0x30c] sm:$0xff]
  %v255 = vld [vmem:[%s0 + $0x314] sm:$0xf]
  %v256 = vld [vmem:[%s0 + $0x318] sm:$0xff]
  %v257 = vld [vmem:[%s0 + $0x320] sm:$0xff]
  %v258 = vld [vmem:[%s0 + $0x328] sm:$0xff]
  %v259 = vld [vmem:[%s0 + $0x330] sm:$0xff]
  %v260 = vld [vmem:[%s0 + $0x338] sm:$0xf]
  %v261 = vld [vmem:[%s0 + $0x33c] sm:$0xff]
  %v262 = vld [vmem:[%s0 + $0x344] sm:$0xff]
  %v263 = vld [vmem:[%s0 + $0x34c] sm:$0xff]
  %v264 = vld [vmem:[%s0 + $0x354] sm:$0xff]
  %v265 = vld [vmem:[%s0 + $0x35c] sm:$0xf]
  %v266 = vld [vmem:[%s0 + $0x360] sm:$0xff]
  %v267 = vld [vmem:[%s0 + $0x368] sm:$0xff]
  %v268 = vld [vmem:[%s0 + $0x370] sm:$0xff]
  %v269 = vld [vmem:[%s0 + $0x378] sm:$0xff]
  %v270 = vld [vmem:[%s0 + $0x380] sm:$0xf]
  %v271 = vld [vmem:[%s0 + $0x384] sm:$0xff]
  %v272 = vld [vmem:[%s0 + $0x38c] sm:$0xff]
  %v273 = vld [vmem:[%s0 + $0x394] sm:$0xff]
  %v274 = vld [vmem:[%s0 + $0x39c] sm:$0xff]
  %v275 = vld [vmem:[%s0 + $0x3a4] sm:$0xf]
  %v276 = vld [vmem:[%s0 + $0x3a8] sm:$0xff]
  %v277 = vld [vmem:[%s0 + $0x3b0] sm:$0xff]
  %v278 = vld [vmem:[%s0 + $0x3b8] sm:$0xff]
  %v279 = vld [vmem:[%s0 + $0x3c0] sm:$0xff]
  %v280 = vld [vmem:[%s0 + $0x3c8] sm:$0xf]
  %v281 = vld [vmem:[%s0 + $0x3cc] sm:$0xff]
  %v282 = vld [vmem:[%s0 + $0x3d4] sm:$0xff]
  %v283 = vld [vmem:[%s0 + $0x3dc] sm:$0xff]
  %v284 = vld [vmem:[%s0 + $0x3e4] sm:$0xff]
  %v285 = vld [vmem:[%s0 + $0x3ec] sm:$0xf]
  %v286 = vld [vmem:[%s0 + $0x3f0] sm:$0xff]
  %v287 = vld [vmem:[%s0 + $0x3f8] sm:$0xff]
  %v288 = vld [vmem:[%s0 + $0x400] sm:$0xff]
  %v289 = vld [vmem:[%s0 + $0x408] sm:$0xff]
  %v290 = vld [vmem:[%s0 + $0x410] sm:$0xf]
  %v291 = vld [vmem:[%s0 + $0x414] sm:$0xff]
  %v292 = vld [vmem:[%s0 + $0x41c] sm:$0xff]
  %v293 = vld [vmem:[%s0 + $0x424] sm:$0xff]
  %v294 = vld [vmem:[%s0 + $0x42c] sm:$0xff]
  %v295 = vld [vmem:[%s0 + $0x434] sm:$0xf]
  %v296 = vld [vmem:[%s0 + $0x438] sm:$0xff]
  %v297 = vld [vmem:[%s0 + $0x440] sm:$0xff]
  %v298 = vld [vmem:[%s0 + $0x448] sm:$0xff]
  %v299 = vld [vmem:[%s0 + $0x450] sm:$0xff]
  %v300 = vld [vmem:[%s0 + $0x458] sm:$0xf]
  %v301 = vld [vmem:[%s0 + $0x45c] sm:$0xff]
  %v302 = vld [vmem:[%s0 + $0x464] sm:$0xff]
  %v303 = vld [vmem:[%s0 + $0x46c] sm:$0xff]
  %v304 = vld [vmem:[%s0 + $0x474] sm:$0xff]
  %v305 = vld [vmem:[%s0 + $0x47c] sm:$0xf]
  %v306 = vld [vmem:[%s0 + $0x480] sm:$0xff]
  %v307 = vld [vmem:[%s0 + $0x488] sm:$0xff]
  %v308 = vld [vmem:[%s0 + $0x490] sm:$0xff]
  %v309 = vld [vmem:[%s0 + $0x498] sm:$0xff]
  %v310 = vld [vmem:[%s0 + $0x4a0] sm:$0xf]
  %v311 = vld [vmem:[%s0 + $0x4a4] sm:$0xff]
  %v312 = vld [vmem:[%s0 + $0x4ac] sm:$0xff]
  %v313 = vld [vmem:[%s0 + $0x4b4] sm:$0xff]
  %v314 = vld [vmem:[%s0 + $0x4bc] sm:$0xff]
  %v315 = vld [vmem:[%s0 + $0x4c4] sm:$0xf]
  %v316 = vld [vmem:[%s0 + $0x4c8] sm:$0xff]
  %v317 = vld [vmem:[%s0 + $0x4d0] sm:$0xff]
  %v318 = vld [vmem:[%s0 + $0x4d8] sm:$0xff]
  %v319 = vld [vmem:[%s0 + $0x4e0] sm:$0xff]
  %v320 = vld [vmem:[%s0 + $0x4e8] sm:$0xf]
  %v321 = vld [vmem:[%s0 + $0x4ec] sm:$0xff]
  %v322 = vld [vmem:[%s0 + $0x4f4] sm:$0xff]
  %v323 = vld [vmem:[%s0 + $0x4fc] sm:$0xff]
  %v324 = vld [vmem:[%s0 + $0x504] sm:$0xff]
  %v325 = vld [vmem:[%s0 + $0x50c] sm:$0xf]
  %v326 = vld [vmem:[%s0 + $0x510] sm:$0xff]
  %v327 = vld [vmem:[%s0 + $0x518] sm:$0xff]
  %v328 = vld [vmem:[%s0 + $0x520] sm:$0xff]
  %v329 = vld [vmem:[%s0 + $0x528] sm:$0xff]
  %v330 = vld [vmem:[%s0 + $0x530] sm:$0xf]
  %v331 = vld [vmem:[%s0 + $0x534] sm:$0xff]
  %v332 = vld [vmem:[%s0 + $0x53c] sm:$0xff]
  %v333 = vld [vmem:[%s0 + $0x544] sm:$0xff]
  %v334 = vld [vmem:[%s0 + $0x54c] sm:$0xff]
  %v335 = vld [vmem:[%s0 + $0x554] sm:$0xf]
  %v336 = vld [vmem:[%s0 + $0x558] sm:$0xff]
  %v337 = vld [vmem:[%s0 + $0x560] sm:$0xff]
  %v338 = vld [vmem:[%s0 + $0x568] sm:$0xff]
  %v339 = vld [vmem:[%s0 + $0x570] sm:$0xff]
  %v340 = vld [vmem:[%s0 + $0x578] sm:$0xf]
  %v341 = vld [vmem:[%s0 + $0x57c] sm:$0xff]
  %v342 = vld [vmem:[%s0 + $0x584] sm:$0xff]
  %v343 = vld [vmem:[%s0 + $0x58c] sm:$0xff]
  %v344 = vld [vmem:[%s0 + $0x594] sm:$0xff]
  %v345 = vld [vmem:[%s0 + $0x59c] sm:$0xf]
  %v346 = vld [vmem:[%s0 + $0x5a0] sm:$0xff]
  %v347 = vld [vmem:[%s0 + $0x5a8] sm:$0xff]
  %v348 = vld [vmem:[%s0 + $0x5b0] sm:$0xff]
  %v349 = vld [vmem:[%s0 + $0x5b8] sm:$0xff]
  %v350 = vld [vmem:[%s0 + $0x5c0] sm:$0xf]
  %v351 = vld [vmem:[%s0 + $0x5c4] sm:$0xff]
  %v352 = vld [vmem:[%s0 + $0x5cc] sm:$0xff]
  %v353 = vld [vmem:[%s0 + $0x5d4] sm:$0xff]
  %v354 = vld [vmem:[%s0 + $0x5dc] sm:$0xff]
  %v355 = vld [vmem:[%s0 + $0x5e4] sm:$0xf]
  %v356 = vld [vmem:[%s0 + $0x5e8] sm:$0xff]
  %v357 = vld [vmem:[%s0 + $0x5f0] sm:$0xff]
  %v358 = vld [vmem:[%s0 + $0x5f8] sm:$0xff]
  %v359 = vld [vmem:[%s0 + $0x600] sm:$0xff]
  %v360 = vld [vmem:[%s0 + $0x608] sm:$0xf]
  %v361 = vld [vmem:[%s0 + $0x60c] sm:$0xff]
  %v362 = vld [vmem:[%s0 + $0x614] sm:$0xff]
  %v363 = vld [vmem:[%s0 + $0x61c] sm:$0xff]
  %v364 = vld [vmem:[%s0 + $0x624] sm:$0xff]
  %v365 = vld [vmem:[%s0 + $0x62c] sm:$0xf]
  %v366 = vld [vmem:[%s0 + $0x630] sm:$0xff]
  %v367 = vld [vmem:[%s0 + $0x638] sm:$0xff]
  %v368 = vld [vmem:[%s0 + $0x640] sm:$0xff]
  %v369 = vld [vmem:[%s0 + $0x648] sm:$0xff]
  %v370 = vld [vmem:[%s0 + $0x650] sm:$0xf]
  %v371 = vld [vmem:[%s0 + $0x654] sm:$0xff]
  %v372 = vld [vmem:[%s0 + $0x65c] sm:$0xff]
  %v373 = vld [vmem:[%s0 + $0x664] sm:$0xff]
  %v374 = vld [vmem:[%s0 + $0x66c] sm:$0xff]
  %v375 = vld [vmem:[%s0 + $0x674] sm:$0xf]
  %v376 = vld [vmem:[%s0 + $0x678] sm:$0xff]
  %v377 = vld [vmem:[%s0 + $0x680] sm:$0xff]
  %v378 = vld [vmem:[%s0 + $0x688] sm:$0xff]
  %v379 = vld [vmem:[%s0 + $0x690] sm:$0xff]
  %v380 = vld [vmem:[%s0 + $0x698] sm:$0xf]
  %v381 = vld [vmem:[%s0 + $0x69c] sm:$0xff]
  %v382 = vld [vmem:[%s0 + $0x6a4] sm:$0xff]
  %v383 = vld [vmem:[%s0 + $0x6ac] sm:$0xff]
  %v384 = vld [vmem:[%s0 + $0x6b4] sm:$0xff]
  %v385 = vld [vmem:[%s0 + $0x6bc] sm:$0xf]
  %v386 = vld [vmem:[%s0 + $0x6c0] sm:$0xff]
  %v387 = vld [vmem:[%s0 + $0x6c8] sm:$0xff]
  %v388 = vld [vmem:[%s0 + $0x6d0] sm:$0xff]
  %v389 = vld [vmem:[%s0 + $0x6d8] sm:$0xff]
  %v390 = vld [vmem:[%s0 + $0x6e0] sm:$0xf]
  %v391 = vld [vmem:[%s0 + $0x6e4] sm:$0xff]
  %v392 = vld [vmem:[%s0 + $0x6ec] sm:$0xff]
  %v393 = vld [vmem:[%s0 + $0x6f4] sm:$0xff]
  %v394 = vld [vmem:[%s0 + $0x6fc] sm:$0xff]
  %v395 = vld [vmem:[%s0 + $0x704] sm:$0xf]
  %v396 = vld [vmem:[%s0 + $0x708] sm:$0xff]
  %v397 = vld [vmem:[%s0 + $0x710] sm:$0xff]
  %v398 = vld [vmem:[%s0 + $0x718] sm:$0xff]
  %v399 = vld [vmem:[%s0 + $0x720] sm:$0xff]
  %v400 = vld [vmem:[%s0 + $0x728] sm:$0xf]
  %v401 = vld [vmem:[%s0 + $0x72c] sm:$0xff]
  %v402 = vld [vmem:[%s0 + $0x734] sm:$0xff]
  %v403 = vld [vmem:[%s0 + $0x73c] sm:$0xff]
  %v404 = vld [vmem:[%s0 + $0x744] sm:$0xff]
  %v405 = vld [vmem:[%s0 + $0x74c] sm:$0xf]
  %v406 = vld [vmem:[%s0 + $0x750] sm:$0xff]
  %v407 = vld [vmem:[%s0 + $0x758] sm:$0xff]
  %v408 = vld [vmem:[%s0 + $0x760] sm:$0xff]
  %v409 = vld [vmem:[%s0 + $0x768] sm:$0xff]
  %v410 = vld [vmem:[%s0 + $0x770] sm:$0xf]
  %v411 = vld [vmem:[%s0 + $0x774] sm:$0xff]
  %v412 = vld [vmem:[%s0 + $0x77c] sm:$0xff]
  %v413 = vld [vmem:[%s0 + $0x784] sm:$0xff]
  %v414 = vld [vmem:[%s0 + $0x78c] sm:$0xff]
  %v415 = vld [vmem:[%s0 + $0x794] sm:$0xf]
  %v416 = vld [vmem:[%s0 + $0x798] sm:$0xff]
  %v417 = vld [vmem:[%s0 + $0x7a0] sm:$0xff]
  %v418 = vld [vmem:[%s0 + $0x7a8] sm:$0xff]
  %v419 = vld [vmem:[%s0 + $0x7b0] sm:$0xff]
  %v420 = vld [vmem:[%s0 + $0x7b8] sm:$0xf]
  %v421 = vld [vmem:[%s0 + $0x7bc] sm:$0xff]
  %v422 = vld [vmem:[%s0 + $0x7c4] sm:$0xff]
  %v423 = vld [vmem:[%s0 + $0x7cc] sm:$0xff]
  %v424 = vld [vmem:[%s0 + $0x7d4] sm:$0xff]
  %v425 = vld [vmem:[%s0 + $0x7dc] sm:$0xf]
  %v426 = vld [vmem:[%s0 + $0x7e0] sm:$0xff]
  %v427 = vld [vmem:[%s0 + $0x7e8] sm:$0xff]
  %v428 = vld [vmem:[%s0 + $0x7f0] sm:$0xff]
  %v429 = vld [vmem:[%s0 + $0x7f8] sm:$0xff]
  %v430 = vld [vmem:[%s0 + $0x800] sm:$0xf]
  %v431 = vld [vmem:[%s0 + $0x804] sm:$0xff]
  %v432 = vld [vmem:[%s0 + $0x80c] sm:$0xff]
  %v433 = vld [vmem:[%s0 + $0x814] sm:$0xff]
  %v434 = vld [vmem:[%s0 + $0x81c] sm:$0xff]
  %v435 = vld [vmem:[%s0 + $0x824] sm:$0xf]
  %v436 = vld [vmem:[%s0 + $0x828] sm:$0xff]
  %v437 = vld [vmem:[%s0 + $0x830] sm:$0xff]
  %v438 = vld [vmem:[%s0 + $0x838] sm:$0xff]
  %v439 = vld [vmem:[%s0 + $0x840] sm:$0xff]
  %v440 = vld [vmem:[%s0 + $0x848] sm:$0xf]
  %v441 = vld [vmem:[%s0 + $0x84c] sm:$0xff]
  %v442 = vld [vmem:[%s0 + $0x854] sm:$0xff]
  %v443 = vld [vmem:[%s0 + $0x85c] sm:$0xff]
  %v444 = vld [vmem:[%s0 + $0x864] sm:$0xff]
  %v445 = vld [vmem:[%s0 + $0x86c] sm:$0xf]
  %v446 = vld [vmem:[%s0 + $0x870] sm:$0xff]
  %v447 = vld [vmem:[%s0 + $0x878] sm:$0xff]
  %v448 = vld [vmem:[%s0 + $0x880] sm:$0xff]
  %v449 = vld [vmem:[%s0 + $0x888] sm:$0xff]
  %v450 = vld [vmem:[%s0 + $0x890] sm:$0xf]
  %v451 = vld [vmem:[%s0 + $0x894] sm:$0xff]
  %v452 = vld [vmem:[%s0 + $0x89c] sm:$0xff]
  %v453 = vld [vmem:[%s0 + $0x8a4] sm:$0xff]
  %v454 = vld [vmem:[%s0 + $0x8ac] sm:$0xff]
  %v455 = vld [vmem:[%s0 + $0x8b4] sm:$0xf]
  %v456 = vld [vmem:[%s0 + $0x8b8] sm:$0xff]
  %v457 = vld [vmem:[%s0 + $0x8c0] sm:$0xff]
  %v458 = vld [vmem:[%s0 + $0x8c8] sm:$0xff]
  %v459 = vld [vmem:[%s0 + $0x8d0] sm:$0xff]
  %v460 = vld [vmem:[%s0 + $0x8d8] sm:$0xf]
  %v461 = vld [vmem:[%s0 + $0x8dc] sm:$0xff]
  %v462 = vld [vmem:[%s0 + $0x8e4] sm:$0xff]
  %v463 = vld [vmem:[%s0 + $0x8ec] sm:$0xff]
  %v464 = vld [vmem:[%s0 + $0x8f4] sm:$0xff]
  %v465 = vld [vmem:[%s0 + $0x8fc] sm:$0xf]
  %v466 = vld [vmem:[%s1] sm:$0xf]
  %v467 = vld [vmem:[%s1 + $0x4] sm:$0xf]
  %v468 = vld [vmem:[%s1 + $0x8] sm:$0xf]
  %v469 = vld [vmem:[%s1 + $0xc] sm:$0xf]
  %v470 = vld [vmem:[%s1 + $0x10] sm:$0xf]
  %v471 = vld [vmem:[%s1 + $0x14] sm:$0xf]
  %v472 = vld [vmem:[%s1 + $0x18] sm:$0xf]
  %v473 = vld [vmem:[%s1 + $0x1c] sm:$0xf]
  %v474 = vld [vmem:[%s1 + $0x20] sm:$0xf]
  %v475 = vld [vmem:[%s1 + $0x24] sm:$0xf]
  %v476 = vld [vmem:[%s1 + $0x28] sm:$0xf]
  %v477 = vld [vmem:[%s1 + $0x2c] sm:$0xf]
  %v478 = vld [vmem:[%s1 + $0x30] sm:$0xf]
  %v479 = vld [vmem:[%s1 + $0x34] sm:$0xf]
  %v480 = vld [vmem:[%s1 + $0x38] sm:$0xf]
  %v481 = vld [vmem:[%s1 + $0x3c] sm:$0xf]
  %v482 = vld [vmem:[%s1 + $0x40] sm:$0xf]
  %v483 = vld [vmem:[%s1 + $0x44] sm:$0xf]
  %v484 = vld [vmem:[%s1 + $0x48] sm:$0xf]
  %v485 = vld [vmem:[%s1 + $0x4c] sm:$0xf]
  %v486 = vld [vmem:[%s1 + $0x50] sm:$0xf]
  %v487 = vld [vmem:[%s1 + $0x54] sm:$0xf]
  %v488 = vld [vmem:[%s1 + $0x58] sm:$0xf]
  %v489 = vld [vmem:[%s1 + $0x5c] sm:$0xf]
  %v490 = vld [vmem:[%s1 + $0x60] sm:$0xf]
  %v491 = vld [vmem:[%s1 + $0x64] sm:$0xf]
  %v492 = vld [vmem:[%s1 + $0x68] sm:$0xf]
  %v493 = vld [vmem:[%s1 + $0x6c] sm:$0xf]
  %v494 = vld [vmem:[%s1 + $0x70] sm:$0xf]
  %v495 = vld [vmem:[%s1 + $0x74] sm:$0xf]
  %v496 = vld [vmem:[%s1 + $0x78] sm:$0xf]
  %v497 = vld [vmem:[%s1 + $0x7c] sm:$0xf]
  %v498 = vld [vmem:[%s1 + $0x80] sm:$0xf]
  %v499 = vld [vmem:[%s1 + $0x84] sm:$0xf]
  %v500 = vld [vmem:[%s1 + $0x88] sm:$0xf]
  %v501 = vld [vmem:[%s1 + $0x8c] sm:$0xf]
  %v502 = vld [vmem:[%s1 + $0x90] sm:$0xf]
  %v503 = vld [vmem:[%s1 + $0x94] sm:$0xf]
  %v504 = vld [vmem:[%s1 + $0x98] sm:$0xf]
  %v505 = vld [vmem:[%s1 + $0x9c] sm:$0xf]
  %v506 = vld [vmem:[%s1 + $0xa0] sm:$0xf]
  %v507 = vld [vmem:[%s1 + $0xa4] sm:$0xf]
  %v508 = vld [vmem:[%s1 + $0xa8] sm:$0xf]
  %v509 = vld [vmem:[%s1 + $0xac] sm:$0xf]
  %v510 = vld [vmem:[%s1 + $0xb0] sm:$0xf]
  %v511 = vld [vmem:[%s1 + $0xb4] sm:$0xf]
  %v512 = vld [vmem:[%s1 + $0xb8] sm:$0xf]
  %v513 = vld [vmem:[%s1 + $0xbc] sm:$0xf]
  %v514 = vld [vmem:[%s1 + $0xc0] sm:$0xf]
  %v515 = vld [vmem:[%s1 + $0xc4] sm:$0xf]
  %v516 = vld [vmem:[%s1 + $0xc8] sm:$0xf]
  %v517 = vld [vmem:[%s1 + $0xcc] sm:$0xf]
  %v518 = vld [vmem:[%s1 + $0xd0] sm:$0xf]
  %v519 = vld [vmem:[%s1 + $0xd4] sm:$0xf]
  %v520 = vld [vmem:[%s1 + $0xd8] sm:$0xf]
  %v521 = vld [vmem:[%s1 + $0xdc] sm:$0xf]
  %v522 = vld [vmem:[%s1 + $0xe0] sm:$0xf]
  %v523 = vld [vmem:[%s1 + $0xe4] sm:$0xf]
  %v524 = vld [vmem:[%s1 + $0xe8] sm:$0xf]
  %v525 = vld [vmem:[%s1 + $0xec] sm:$0xf]
  %v526 = vld [vmem:[%s1 + $0xf0] sm:$0xf]
  %v527 = vld [vmem:[%s1 + $0xf4] sm:$0xf]
  %v528 = vld [vmem:[%s1 + $0xf8] sm:$0xf]
  %v529 = vld [vmem:[%s1 + $0xfc] sm:$0xf]
  %v530 = vld [vmem:[%s1 + $0x100] sm:$0xf]
  %v531 = vld [vmem:[%s1 + $0x104] sm:$0xf]
  %v532 = vld [vmem:[%s1 + $0x108] sm:$0xf]
  %v533 = vld [vmem:[%s1 + $0x10c] sm:$0xf]
  %v534 = vld [vmem:[%s1 + $0x110] sm:$0xf]
  %v535 = vld [vmem:[%s1 + $0x114] sm:$0xf]
  %v536 = vld [vmem:[%s1 + $0x118] sm:$0xf]
  %v537 = vld [vmem:[%s1 + $0x11c] sm:$0xf]
  %v538 = vld [vmem:[%s1 + $0x120] sm:$0xf]
  %v539 = vld [vmem:[%s1 + $0x124] sm:$0xf]
  %v540 = vld [vmem:[%s1 + $0x128] sm:$0xf]
  %v541 = vld [vmem:[%s1 + $0x12c] sm:$0xf]
  %v542 = vld [vmem:[%s1 + $0x130] sm:$0xf]
  %v543 = vld [vmem:[%s1 + $0x134] sm:$0xf]
  %v544 = vld [vmem:[%s1 + $0x138] sm:$0xf]
  %v545 = vld [vmem:[%s1 + $0x13c] sm:$0xf]
  %v546 = vld [vmem:[%s1 + $0x140] sm:$0xf]
  %v547 = vld [vmem:[%s1 + $0x144] sm:$0xf]
  %v548 = vld [vmem:[%s1 + $0x148] sm:$0xf]
  %v549 = vld [vmem:[%s1 + $0x14c] sm:$0xf]
  %v550 = vld [vmem:[%s1 + $0x150] sm:$0xf]
  %v551 = vld [vmem:[%s1 + $0x154] sm:$0xf]
  %v552 = vld [vmem:[%s1 + $0x158] sm:$0xf]
  %v553 = vld [vmem:[%s1 + $0x15c] sm:$0xf]
  %v554 = vld [vmem:[%s1 + $0x160] sm:$0xf]
  %v555 = vld [vmem:[%s1 + $0x164] sm:$0xf]
  %v556 = vld [vmem:[%s1 + $0x168] sm:$0xf]
  %v557 = vld [vmem:[%s1 + $0x16c] sm:$0xf]
  %v558 = vld [vmem:[%s1 + $0x170] sm:$0xf]
  %v559 = vld [vmem:[%s1 + $0x174] sm:$0xf]
  %v560 = vld [vmem:[%s1 + $0x178] sm:$0xf]
  %v561 = vld [vmem:[%s1 + $0x17c] sm:$0xf]
  %v562 = vld [vmem:[%s1 + $0x180] sm:$0xf]
  %v563 = vld [vmem:[%s1 + $0x184] sm:$0xf]
  %v564 = vld [vmem:[%s1 + $0x188] sm:$0xf]
  %v565 = vld [vmem:[%s1 + $0x18c] sm:$0xf]
  %v566 = vld [vmem:[%s1 + $0x190] sm:$0xf]
  %v567 = vld [vmem:[%s1 + $0x194] sm:$0xf]
  %v568 = vld [vmem:[%s1 + $0x198] sm:$0xf]
  %v569 = vld [vmem:[%s1 + $0x19c] sm:$0xf]
  %v570 = vld [vmem:[%s1 + $0x1a0] sm:$0xf]
  %v571 = vld [vmem:[%s1 + $0x1a4] sm:$0xf]
  %v572 = vld [vmem:[%s1 + $0x1a8] sm:$0xf]
  %v573 = vld [vmem:[%s1 + $0x1ac] sm:$0xf]
  %v574 = vld [vmem:[%s1 + $0x1b0] sm:$0xf]
  %v575 = vld [vmem:[%s1 + $0x1b4] sm:$0xf]
  %v576 = vld [vmem:[%s1 + $0x1b8] sm:$0xf]
  %v577 = vld [vmem:[%s1 + $0x1bc] sm:$0xf]
  %v578 = vld [vmem:[%s1 + $0x1c0] sm:$0xf]
  %v579 = vld [vmem:[%s1 + $0x1c4] sm:$0xf]
  %v580 = vld [vmem:[%s1 + $0x1c8] sm:$0xf]
  %v581 = vld [vmem:[%s1 + $0x1cc] sm:$0xf]
  %v582 = vld [vmem:[%s1 + $0x1d0] sm:$0xf]
  %v583 = vld [vmem:[%s1 + $0x1d4] sm:$0xf]
  %v584 = vld [vmem:[%s1 + $0x1d8] sm:$0xf]
  %v585 = vld [vmem:[%s1 + $0x1dc] sm:$0xf]
  %v586 = vld [vmem:[%s1 + $0x1e0] sm:$0xf]
  %v587 = vld [vmem:[%s1 + $0x1e4] sm:$0xf]
  %v588 = vld [vmem:[%s1 + $0x1e8] sm:$0xf]
  %v589 = vld [vmem:[%s1 + $0x1ec] sm:$0xf]
  %v590 = vld [vmem:[%s1 + $0x1f0] sm:$0xf]
  %v591 = vld [vmem:[%s1 + $0x1f4] sm:$0xf]
  %v592 = vld [vmem:[%s1 + $0x1f8] sm:$0xf]
  %v593 = vld [vmem:[%s1 + $0x1fc] sm:$0xf]
  %v594 = vld [vmem:[%s1 + $0x200] sm:$0xf]
  %v595 = vld [vmem:[%s1 + $0x204] sm:$0xf]
  %v596 = vld [vmem:[%s1 + $0x208] sm:$0xf]
  %v597 = vld [vmem:[%s1 + $0x20c] sm:$0xf]
  %v598 = vld [vmem:[%s1 + $0x210] sm:$0xf]
  %v599 = vld [vmem:[%s1 + $0x214] sm:$0xf]
  %v600 = vld [vmem:[%s1 + $0x218] sm:$0xf]
  %v601 = vld [vmem:[%s1 + $0x21c] sm:$0xf]
  %v602 = vld [vmem:[%s1 + $0x220] sm:$0xf]
  %v603 = vld [vmem:[%s1 + $0x224] sm:$0xf]
  %v604 = vld [vmem:[%s1 + $0x228] sm:$0xf]
  %v605 = vld [vmem:[%s1 + $0x22c] sm:$0xf]
  %v606 = vld [vmem:[%s1 + $0x230] sm:$0xf]
  %v607 = vld [vmem:[%s1 + $0x234] sm:$0xf]
  %v608 = vld [vmem:[%s1 + $0x238] sm:$0xf]
  %v609 = vld [vmem:[%s1 + $0x23c] sm:$0xf]
  %v930 = vunpack.c.l.b16 %v146
  %v931 = vunpack.c.h.b16 %v146
  %v932 = vunpack.c.l.b16 %v147
  %v933 = vunpack.c.h.b16 %v147
  %v934 = vunpack.c.l.b16 %v148
  %v935 = vunpack.c.h.b16 %v148
  %v936 = vunpack.c.l.b16 %v149
  %v937 = vunpack.c.h.b16 %v149
  %v938 = vunpack.c.l.b16 %v150
  %v939 = vunpack.c.l.b16 %v151
  %v940 = vunpack.c.h.b16 %v151
  %v941 = vunpack.c.l.b16 %v152
  %v942 = vunpack.c.h.b16 %v152
  %v943 = vunpack.c.l.b16 %v153
  %v944 = vunpack.c.h.b16 %v153
  %v945 = vunpack.c.l.b16 %v154
  %v946 = vunpack.c.h.b16 %v154
  %v947 = vunpack.c.l.b16 %v155
  %v948 = vunpack.c.l.b16 %v156
  %v949 = vunpack.c.h.b16 %v156
  %v950 = vunpack.c.l.b16 %v157
  %v951 = vunpack.c.h.b16 %v157
  %v952 = vunpack.c.l.b16 %v158
  %v953 = vunpack.c.h.b16 %v158
  %v954 = vunpack.c.l.b16 %v159
  %v955 = vunpack.c.h.b16 %v159
  %v956 = vunpack.c.l.b16 %v160
  %v957 = vunpack.c.l.b16 %v161
  %v958 = vunpack.c.h.b16 %v161
  %v959 = vunpack.c.l.b16 %v162
  %v960 = vunpack.c.h.b16 %v162
  %v961 = vunpack.c.l.b16 %v163
  %v962 = vunpack.c.h.b16 %v163
  %v963 = vunpack.c.l.b16 %v164
  %v964 = vunpack.c.h.b16 %v164
  %v965 = vunpack.c.l.b16 %v165
  %v966 = vunpack.c.l.b16 %v166
  %v967 = vunpack.c.h.b16 %v166
  %v968 = vunpack.c.l.b16 %v167
  %v969 = vunpack.c.h.b16 %v167
  %v970 = vunpack.c.l.b16 %v168
  %v971 = vunpack.c.h.b16 %v168
  %v972 = vunpack.c.l.b16 %v169
  %v973 = vunpack.c.h.b16 %v169
  %v974 = vunpack.c.l.b16 %v170
  %v975 = vunpack.c.l.b16 %v171
  %v976 = vunpack.c.h.b16 %v171
  %v977 = vunpack.c.l.b16 %v172
  %v978 = vunpack.c.h.b16 %v172
  %v979 = vunpack.c.l.b16 %v173
  %v980 = vunpack.c.h.b16 %v173
  %v981 = vunpack.c.l.b16 %v174
  %v982 = vunpack.c.h.b16 %v174
  %v983 = vunpack.c.l.b16 %v175
  %v984 = vunpack.c.l.b16 %v176
  %v985 = vunpack.c.h.b16 %v176
  %v986 = vunpack.c.l.b16 %v177
  %v987 = vunpack.c.h.b16 %v177
  %v988 = vunpack.c.l.b16 %v178
  %v989 = vunpack.c.h.b16 %v178
  %v990 = vunpack.c.l.b16 %v179
  %v991 = vunpack.c.h.b16 %v179
  %v992 = vunpack.c.l.b16 %v180
  %v993 = vunpack.c.l.b16 %v181
  %v994 = vunpack.c.h.b16 %v181
  %v995 = vunpack.c.l.b16 %v182
  %v996 = vunpack.c.h.b16 %v182
  %v997 = vunpack.c.l.b16 %v183
  %v998 = vunpack.c.h.b16 %v183
  %v999 = vunpack.c.l.b16 %v184
  %v1000 = vunpack.c.h.b16 %v184
  %v1001 = vunpack.c.l.b16 %v185
  %v1002 = vunpack.c.l.b16 %v186
  %v1003 = vunpack.c.h.b16 %v186
  %v1004 = vunpack.c.l.b16 %v187
  %v1005 = vunpack.c.h.b16 %v187
  %v1006 = vunpack.c.l.b16 %v188
  %v1007 = vunpack.c.h.b16 %v188
  %v1008 = vunpack.c.l.b16 %v189
  %v1009 = vunpack.c.h.b16 %v189
  %v1010 = vunpack.c.l.b16 %v190
  %v1011 = vunpack.c.l.b16 %v191
  %v1012 = vunpack.c.h.b16 %v191
  %v1013 = vunpack.c.l.b16 %v192
  %v1014 = vunpack.c.h.b16 %v192
  %v1015 = vunpack.c.l.b16 %v193
  %v1016 = vunpack.c.h.b16 %v193
  %v1017 = vunpack.c.l.b16 %v194
  %v1018 = vunpack.c.h.b16 %v194
  %v1019 = vunpack.c.l.b16 %v195
  %v1020 = vunpack.c.l.b16 %v196
  %v1021 = vunpack.c.h.b16 %v196
  %v1022 = vunpack.c.l.b16 %v197
  %v1023 = vunpack.c.h.b16 %v197
  %v1024 = vunpack.c.l.b16 %v198
  %v1025 = vunpack.c.h.b16 %v198
  %v1026 = vunpack.c.l.b16 %v199
  %v1027 = vunpack.c.h.b16 %v199
  %v1028 = vunpack.c.l.b16 %v200
  %v1029 = vunpack.c.l.b16 %v201
  %v1030 = vunpack.c.h.b16 %v201
  %v1031 = vunpack.c.l.b16 %v202
  %v1032 = vunpack.c.h.b16 %v202
  %v1033 = vunpack.c.l.b16 %v203
  %v1034 = vunpack.c.h.b16 %v203
  %v1035 = vunpack.c.l.b16 %v204
  %v1036 = vunpack.c.h.b16 %v204
  %v1037 = vunpack.c.l.b16 %v205
  %v1038 = vunpack.c.l.b16 %v206
  %v1039 = vunpack.c.h.b16 %v206
  %v1040 = vunpack.c.l.b16 %v207
  %v1041 = vunpack.c.h.b16 %v207
  %v1042 = vunpack.c.l.b16 %v208
  %v1043 = vunpack.c.h.b16 %v208
  %v1044 = vunpack.c.l.b16 %v209
  %v1045 = vunpack.c.h.b16 %v209
  %v1046 = vunpack.c.l.b16 %v210
  %v1047 = vunpack.c.l.b16 %v211
  %v1048 = vunpack.c.h.b16 %v211
  %v1049 = vunpack.c.l.b16 %v212
  %v1050 = vunpack.c.h.b16 %v212
  %v1051 = vunpack.c.l.b16 %v213
  %v1052 = vunpack.c.h.b16 %v213
  %v1053 = vunpack.c.l.b16 %v214
  %v1054 = vunpack.c.h.b16 %v214
  %v1055 = vunpack.c.l.b16 %v215
  %v1056 = vunpack.c.l.b16 %v216
  %v1057 = vunpack.c.h.b16 %v216
  %v1058 = vunpack.c.l.b16 %v217
  %v1059 = vunpack.c.h.b16 %v217
  %v1060 = vunpack.c.l.b16 %v218
  %v1061 = vunpack.c.h.b16 %v218
  %v1062 = vunpack.c.l.b16 %v219
  %v1063 = vunpack.c.h.b16 %v219
  %v1064 = vunpack.c.l.b16 %v220
  %v1065 = vunpack.c.l.b16 %v221
  %v1066 = vunpack.c.h.b16 %v221
  %v1067 = vunpack.c.l.b16 %v222
  %v1068 = vunpack.c.h.b16 %v222
  %v1069 = vunpack.c.l.b16 %v223
  %v1070 = vunpack.c.h.b16 %v223
  %v1071 = vunpack.c.l.b16 %v224
  %v1072 = vunpack.c.h.b16 %v224
  %v1073 = vunpack.c.l.b16 %v225
  %v1074 = vunpack.c.l.b16 %v226
  %v1075 = vunpack.c.h.b16 %v226
  %v1076 = vunpack.c.l.b16 %v227
  %v1077 = vunpack.c.h.b16 %v227
  %v1078 = vunpack.c.l.b16 %v228
  %v1079 = vunpack.c.h.b16 %v228
  %v1080 = vunpack.c.l.b16 %v229
  %v1081 = vunpack.c.h.b16 %v229
  %v1082 = vunpack.c.l.b16 %v230
  %v1083 = vunpack.c.l.b16 %v231
  %v1084 = vunpack.c.h.b16 %v231
  %v1085 = vunpack.c.l.b16 %v232
  %v1086 = vunpack.c.h.b16 %v232
  %v1087 = vunpack.c.l.b16 %v233
  %v1088 = vunpack.c.h.b16 %v233
  %v1089 = vunpack.c.l.b16 %v234
  %v1090 = vunpack.c.h.b16 %v234
  %v1091 = vunpack.c.l.b16 %v235
  %v1092 = vunpack.c.l.b16 %v236
  %v1093 = vunpack.c.h.b16 %v236
  %v1094 = vunpack.c.l.b16 %v237
  %v1095 = vunpack.c.h.b16 %v237
  %v1096 = vunpack.c.l.b16 %v238
  %v1097 = vunpack.c.h.b16 %v238
  %v1098 = vunpack.c.l.b16 %v239
  %v1099 = vunpack.c.h.b16 %v239
  %v1100 = vunpack.c.l.b16 %v240
  %v1101 = vunpack.c.l.b16 %v241
  %v1102 = vunpack.c.h.b16 %v241
  %v1103 = vunpack.c.l.b16 %v242
  %v1104 = vunpack.c.h.b16 %v242
  %v1105 = vunpack.c.l.b16 %v243
  %v1106 = vunpack.c.h.b16 %v243
  %v1107 = vunpack.c.l.b16 %v244
  %v1108 = vunpack.c.h.b16 %v244
  %v1109 = vunpack.c.l.b16 %v245
  %v1110 = vunpack.c.l.b16 %v246
  %v1111 = vunpack.c.h.b16 %v246
  %v1112 = vunpack.c.l.b16 %v247
  %v1113 = vunpack.c.h.b16 %v247
  %v1114 = vunpack.c.l.b16 %v248
  %v1115 = vunpack.c.h.b16 %v248
  %v1116 = vunpack.c.l.b16 %v249
  %v1117 = vunpack.c.h.b16 %v249
  %v1118 = vunpack.c.l.b16 %v250
  %v1119 = vunpack.c.l.b16 %v251
  %v1120 = vunpack.c.h.b16 %v251
  %v1121 = vunpack.c.l.b16 %v252
  %v1122 = vunpack.c.h.b16 %v252
  %v1123 = vunpack.c.l.b16 %v253
  %v1124 = vunpack.c.h.b16 %v253
  %v1125 = vunpack.c.l.b16 %v254
  %v1126 = vunpack.c.h.b16 %v254
  %v1127 = vunpack.c.l.b16 %v255
  %v1128 = vunpack.c.l.b16 %v256
  %v1129 = vunpack.c.h.b16 %v256
  %v1130 = vunpack.c.l.b16 %v257
  %v1131 = vunpack.c.h.b16 %v257
  %v1132 = vunpack.c.l.b16 %v258
  %v1133 = vunpack.c.h.b16 %v258
  %v1134 = vunpack.c.l.b16 %v259
  %v1135 = vunpack.c.h.b16 %v259
  %v1136 = vunpack.c.l.b16 %v260
  %v1137 = vunpack.c.l.b16 %v261
  %v1138 = vunpack.c.h.b16 %v261
  %v1139 = vunpack.c.l.b16 %v262
  %v1140 = vunpack.c.h.b16 %v262
  %v1141 = vunpack.c.l.b16 %v263
  %v1142 = vunpack.c.h.b16 %v263
  %v1143 = vunpack.c.l.b16 %v264
  %v1144 = vunpack.c.h.b16 %v264
  %v1145 = vunpack.c.l.b16 %v265
  %v1146 = vunpack.c.l.b16 %v266
  %v1147 = vunpack.c.h.b16 %v266
  %v1148 = vunpack.c.l.b16 %v267
  %v1149 = vunpack.c.h.b16 %v267
  %v1150 = vunpack.c.l.b16 %v268
  %v1151 = vunpack.c.h.b16 %v268
  %v1152 = vunpack.c.l.b16 %v269
  %v1153 = vunpack.c.h.b16 %v269
  %v1154 = vunpack.c.l.b16 %v270
  %v1155 = vunpack.c.l.b16 %v271
  %v1156 = vunpack.c.h.b16 %v271
  %v1157 = vunpack.c.l.b16 %v272
  %v1158 = vunpack.c.h.b16 %v272
  %v1159 = vunpack.c.l.b16 %v273
  %v1160 = vunpack.c.h.b16 %v273
  %v1161 = vunpack.c.l.b16 %v274
  %v1162 = vunpack.c.h.b16 %v274
  %v1163 = vunpack.c.l.b16 %v275
  %v1164 = vunpack.c.l.b16 %v276
  %v1165 = vunpack.c.h.b16 %v276
  %v1166 = vunpack.c.l.b16 %v277
  %v1167 = vunpack.c.h.b16 %v277
  %v1168 = vunpack.c.l.b16 %v278
  %v1169 = vunpack.c.h.b16 %v278
  %v1170 = vunpack.c.l.b16 %v279
  %v1171 = vunpack.c.h.b16 %v279
  %v1172 = vunpack.c.l.b16 %v280
  %v1173 = vunpack.c.l.b16 %v281
  %v1174 = vunpack.c.h.b16 %v281
  %v1175 = vunpack.c.l.b16 %v282
  %v1176 = vunpack.c.h.b16 %v282
  %v1177 = vunpack.c.l.b16 %v283
  %v1178 = vunpack.c.h.b16 %v283
  %v1179 = vunpack.c.l.b16 %v284
  %v1180 = vunpack.c.h.b16 %v284
  %v1181 = vunpack.c.l.b16 %v285
  %v1182 = vunpack.c.l.b16 %v286
  %v1183 = vunpack.c.h.b16 %v286
  %v1184 = vunpack.c.l.b16 %v287
  %v1185 = vunpack.c.h.b16 %v287
  %v1186 = vunpack.c.l.b16 %v288
  %v1187 = vunpack.c.h.b16 %v288
  %v1188 = vunpack.c.l.b16 %v289
  %v1189 = vunpack.c.h.b16 %v289
  %v1190 = vunpack.c.l.b16 %v290
  %v1191 = vunpack.c.l.b16 %v291
  %v1192 = vunpack.c.h.b16 %v291
  %v1193 = vunpack.c.l.b16 %v292
  %v1194 = vunpack.c.h.b16 %v292
  %v1195 = vunpack.c.l.b16 %v293
  %v1196 = vunpack.c.h.b16 %v293
  %v1197 = vunpack.c.l.b16 %v294
  %v1198 = vunpack.c.h.b16 %v294
  %v1199 = vunpack.c.l.b16 %v295
  %v1200 = vunpack.c.l.b16 %v296
  %v1201 = vunpack.c.h.b16 %v296
  %v1202 = vunpack.c.l.b16 %v297
  %v1203 = vunpack.c.h.b16 %v297
  %v1204 = vunpack.c.l.b16 %v298
  %v1205 = vunpack.c.h.b16 %v298
  %v1206 = vunpack.c.l.b16 %v299
  %v1207 = vunpack.c.h.b16 %v299
  %v1208 = vunpack.c.l.b16 %v300
  %v1209 = vunpack.c.l.b16 %v301
  %v1210 = vunpack.c.h.b16 %v301
  %v1211 = vunpack.c.l.b16 %v302
  %v1212 = vunpack.c.h.b16 %v302
  %v1213 = vunpack.c.l.b16 %v303
  %v1214 = vunpack.c.h.b16 %v303
  %v1215 = vunpack.c.l.b16 %v304
  %v1216 = vunpack.c.h.b16 %v304
  %v1217 = vunpack.c.l.b16 %v305
  %v1218 = vunpack.c.l.b16 %v306
  %v1219 = vunpack.c.h.b16 %v306
  %v1220 = vunpack.c.l.b16 %v307
  %v1221 = vunpack.c.h.b16 %v307
  %v1222 = vunpack.c.l.b16 %v308
  %v1223 = vunpack.c.h.b16 %v308
  %v1224 = vunpack.c.l.b16 %v309
  %v1225 = vunpack.c.h.b16 %v309
  %v1226 = vunpack.c.l.b16 %v310
  %v1227 = vunpack.c.l.b16 %v311
  %v1228 = vunpack.c.h.b16 %v311
  %v1229 = vunpack.c.l.b16 %v312
  %v1230 = vunpack.c.h.b16 %v312
  %v1231 = vunpack.c.l.b16 %v313
  %v1232 = vunpack.c.h.b16 %v313
  %v1233 = vunpack.c.l.b16 %v314
  %v1234 = vunpack.c.h.b16 %v314
  %v1235 = vunpack.c.l.b16 %v315
  %v1236 = vunpack.c.l.b16 %v316
  %v1237 = vunpack.c.h.b16 %v316
  %v1238 = vunpack.c.l.b16 %v317
  %v1239 = vunpack.c.h.b16 %v317
  %v1240 = vunpack.c.l.b16 %v318
  %v1241 = vunpack.c.h.b16 %v318
  %v1242 = vunpack.c.l.b16 %v319
  %v1243 = vunpack.c.h.b16 %v319
  %v1244 = vunpack.c.l.b16 %v320
  %v1245 = vunpack.c.l.b16 %v321
  %v1246 = vunpack.c.h.b16 %v321
  %v1247 = vunpack.c.l.b16 %v322
  %v1248 = vunpack.c.h.b16 %v322
  %v1249 = vunpack.c.l.b16 %v323
  %v1250 = vunpack.c.h.b16 %v323
  %v1251 = vunpack.c.l.b16 %v324
  %v1252 = vunpack.c.h.b16 %v324
  %v1253 = vunpack.c.l.b16 %v325
  %v1254 = vunpack.c.l.b16 %v326
  %v1255 = vunpack.c.h.b16 %v326
  %v1256 = vunpack.c.l.b16 %v327
  %v1257 = vunpack.c.h.b16 %v327
  %v1258 = vunpack.c.l.b16 %v328
  %v1259 = vunpack.c.h.b16 %v328
  %v1260 = vunpack.c.l.b16 %v329
  %v1261 = vunpack.c.h.b16 %v329
  %v1262 = vunpack.c.l.b16 %v330
  %v1263 = vunpack.c.l.b16 %v331
  %v1264 = vunpack.c.h.b16 %v331
  %v1265 = vunpack.c.l.b16 %v332
  %v1266 = vunpack.c.h.b16 %v332
  %v1267 = vunpack.c.l.b16 %v333
  %v1268 = vunpack.c.h.b16 %v333
  %v1269 = vunpack.c.l.b16 %v334
  %v1270 = vunpack.c.h.b16 %v334
  %v1271 = vunpack.c.l.b16 %v335
  %v1272 = vunpack.c.l.b16 %v336
  %v1273 = vunpack.c.h.b16 %v336
  %v1274 = vunpack.c.l.b16 %v337
  %v1275 = vunpack.c.h.b16 %v337
  %v1276 = vunpack.c.l.b16 %v338
  %v1277 = vunpack.c.h.b16 %v338
  %v1278 = vunpack.c.l.b16 %v339
  %v1279 = vunpack.c.h.b16 %v339
  %v1280 = vunpack.c.l.b16 %v340
  %v1281 = vunpack.c.l.b16 %v341
  %v1282 = vunpack.c.h.b16 %v341
  %v1283 = vunpack.c.l.b16 %v342
  %v1284 = vunpack.c.h.b16 %v342
  %v1285 = vunpack.c.l.b16 %v343
  %v1286 = vunpack.c.h.b16 %v343
  %v1287 = vunpack.c.l.b16 %v344
  %v1288 = vunpack.c.h.b16 %v344
  %v1289 = vunpack.c.l.b16 %v345
  %v1290 = vunpack.c.l.b16 %v346
  %v1291 = vunpack.c.h.b16 %v346
  %v1292 = vunpack.c.l.b16 %v347
  %v1293 = vunpack.c.h.b16 %v347
  %v1294 = vunpack.c.l.b16 %v348
  %v1295 = vunpack.c.h.b16 %v348
  %v1296 = vunpack.c.l.b16 %v349
  %v1297 = vunpack.c.h.b16 %v349
  %v1298 = vunpack.c.l.b16 %v350
  %v1299 = vunpack.c.l.b16 %v351
  %v1300 = vunpack.c.h.b16 %v351
  %v1301 = vunpack.c.l.b16 %v352
  %v1302 = vunpack.c.h.b16 %v352
  %v1303 = vunpack.c.l.b16 %v353
  %v1304 = vunpack.c.h.b16 %v353
  %v1305 = vunpack.c.l.b16 %v354
  %v1306 = vunpack.c.h.b16 %v354
  %v1307 = vunpack.c.l.b16 %v355
  %v1308 = vunpack.c.l.b16 %v356
  %v1309 = vunpack.c.h.b16 %v356
  %v1310 = vunpack.c.l.b16 %v357
  %v1311 = vunpack.c.h.b16 %v357
  %v1312 = vunpack.c.l.b16 %v358
  %v1313 = vunpack.c.h.b16 %v358
  %v1314 = vunpack.c.l.b16 %v359
  %v1315 = vunpack.c.h.b16 %v359
  %v1316 = vunpack.c.l.b16 %v360
  %v1317 = vunpack.c.l.b16 %v361
  %v1318 = vunpack.c.h.b16 %v361
  %v1319 = vunpack.c.l.b16 %v362
  %v1320 = vunpack.c.h.b16 %v362
  %v1321 = vunpack.c.l.b16 %v363
  %v1322 = vunpack.c.h.b16 %v363
  %v1323 = vunpack.c.l.b16 %v364
  %v1324 = vunpack.c.h.b16 %v364
  %v1325 = vunpack.c.l.b16 %v365
  %v1326 = vunpack.c.l.b16 %v366
  %v1327 = vunpack.c.h.b16 %v366
  %v1328 = vunpack.c.l.b16 %v367
  %v1329 = vunpack.c.h.b16 %v367
  %v1330 = vunpack.c.l.b16 %v368
  %v1331 = vunpack.c.h.b16 %v368
  %v1332 = vunpack.c.l.b16 %v369
  %v1333 = vunpack.c.h.b16 %v369
  %v1334 = vunpack.c.l.b16 %v370
  %v1335 = vunpack.c.l.b16 %v371
  %v1336 = vunpack.c.h.b16 %v371
  %v1337 = vunpack.c.l.b16 %v372
  %v1338 = vunpack.c.h.b16 %v372
  %v1339 = vunpack.c.l.b16 %v373
  %v1340 = vunpack.c.h.b16 %v373
  %v1341 = vunpack.c.l.b16 %v374
  %v1342 = vunpack.c.h.b16 %v374
  %v1343 = vunpack.c.l.b16 %v375
  %v1344 = vunpack.c.l.b16 %v376
  %v1345 = vunpack.c.h.b16 %v376
  %v1346 = vunpack.c.l.b16 %v377
  %v1347 = vunpack.c.h.b16 %v377
  %v1348 = vunpack.c.l.b16 %v378
  %v1349 = vunpack.c.h.b16 %v378
  %v1350 = vunpack.c.l.b16 %v379
  %v1351 = vunpack.c.h.b16 %v379
  %v1352 = vunpack.c.l.b16 %v380
  %v1353 = vunpack.c.l.b16 %v381
  %v1354 = vunpack.c.h.b16 %v381
  %v1355 = vunpack.c.l.b16 %v382
  %v1356 = vunpack.c.h.b16 %v382
  %v1357 = vunpack.c.l.b16 %v383
  %v1358 = vunpack.c.h.b16 %v383
  %v1359 = vunpack.c.l.b16 %v384
  %v1360 = vunpack.c.h.b16 %v384
  %v1361 = vunpack.c.l.b16 %v385
  %v1362 = vunpack.c.l.b16 %v386
  %v1363 = vunpack.c.h.b16 %v386
  %v1364 = vunpack.c.l.b16 %v387
  %v1365 = vunpack.c.h.b16 %v387
  %v1366 = vunpack.c.l.b16 %v388
  %v1367 = vunpack.c.h.b16 %v388
  %v1368 = vunpack.c.l.b16 %v389
  %v1369 = vunpack.c.h.b16 %v389
  %v1370 = vunpack.c.l.b16 %v390
  %v1371 = vunpack.c.l.b16 %v391
  %v1372 = vunpack.c.h.b16 %v391
  %v1373 = vunpack.c.l.b16 %v392
  %v1374 = vunpack.c.h.b16 %v392
  %v1375 = vunpack.c.l.b16 %v393
  %v1376 = vunpack.c.h.b16 %v393
  %v1377 = vunpack.c.l.b16 %v394
  %v1378 = vunpack.c.h.b16 %v394
  %v1379 = vunpack.c.l.b16 %v395
  %v1380 = vunpack.c.l.b16 %v396
  %v1381 = vunpack.c.h.b16 %v396
  %v1382 = vunpack.c.l.b16 %v397
  %v1383 = vunpack.c.h.b16 %v397
  %v1384 = vunpack.c.l.b16 %v398
  %v1385 = vunpack.c.h.b16 %v398
  %v1386 = vunpack.c.l.b16 %v399
  %v1387 = vunpack.c.h.b16 %v399
  %v1388 = vunpack.c.l.b16 %v400
  %v1389 = vunpack.c.l.b16 %v401
  %v1390 = vunpack.c.h.b16 %v401
  %v1391 = vunpack.c.l.b16 %v402
  %v1392 = vunpack.c.h.b16 %v402
  %v1393 = vunpack.c.l.b16 %v403
  %v1394 = vunpack.c.h.b16 %v403
  %v1395 = vunpack.c.l.b16 %v404
  %v1396 = vunpack.c.h.b16 %v404
  %v1397 = vunpack.c.l.b16 %v405
  %v1398 = vunpack.c.l.b16 %v406
  %v1399 = vunpack.c.h.b16 %v406
  %v1400 = vunpack.c.l.b16 %v407
  %v1401 = vunpack.c.h.b16 %v407
  %v1402 = vunpack.c.l.b16 %v408
  %v1403 = vunpack.c.h.b16 %v408
  %v1404 = vunpack.c.l.b16 %v409
  %v1405 = vunpack.c.h.b16 %v409
  %v1406 = vunpack.c.l.b16 %v410
  %v1407 = vunpack.c.l.b16 %v411
  %v1408 = vunpack.c.h.b16 %v411
  %v1409 = vunpack.c.l.b16 %v412
  %v1410 = vunpack.c.h.b16 %v412
  %v1411 = vunpack.c.l.b16 %v413
  %v1412 = vunpack.c.h.b16 %v413
  %v1413 = vunpack.c.l.b16 %v414
  %v1414 = vunpack.c.h.b16 %v414
  %v1415 = vunpack.c.l.b16 %v415
  %v1416 = vunpack.c.l.b16 %v416
  %v1417 = vunpack.c.h.b16 %v416
  %v1418 = vunpack.c.l.b16 %v417
  %v1419 = vunpack.c.h.b16 %v417
  %v1420 = vunpack.c.l.b16 %v418
  %v1421 = vunpack.c.h.b16 %v418
  %v1422 = vunpack.c.l.b16 %v419
  %v1423 = vunpack.c.h.b16 %v419
  %v1424 = vunpack.c.l.b16 %v420
  %v1425 = vunpack.c.l.b16 %v421
  %v1426 = vunpack.c.h.b16 %v421
  %v1427 = vunpack.c.l.b16 %v422
  %v1428 = vunpack.c.h.b16 %v422
  %v1429 = vunpack.c.l.b16 %v423
  %v1430 = vunpack.c.h.b16 %v423
  %v1431 = vunpack.c.l.b16 %v424
  %v1432 = vunpack.c.h.b16 %v424
  %v1433 = vunpack.c.l.b16 %v425
  %v1434 = vunpack.c.l.b16 %v426
  %v1435 = vunpack.c.h.b16 %v426
  %v1436 = vunpack.c.l.b16 %v427
  %v1437 = vunpack.c.h.b16 %v427
  %v1438 = vunpack.c.l.b16 %v428
  %v1439 = vunpack.c.h.b16 %v428
  %v1440 = vunpack.c.l.b16 %v429
  %v1441 = vunpack.c.h.b16 %v429
  %v1442 = vunpack.c.l.b16 %v430
  %v1443 = vunpack.c.l.b16 %v431
  %v1444 = vunpack.c.h.b16 %v431
  %v1445 = vunpack.c.l.b16 %v432
  %v1446 = vunpack.c.h.b16 %v432
  %v1447 = vunpack.c.l.b16 %v433
  %v1448 = vunpack.c.h.b16 %v433
  %v1449 = vunpack.c.l.b16 %v434
  %v1450 = vunpack.c.h.b16 %v434
  %v1451 = vunpack.c.l.b16 %v435
  %v1452 = vunpack.c.l.b16 %v436
  %v1453 = vunpack.c.h.b16 %v436
  %v1454 = vunpack.c.l.b16 %v437
  %v1455 = vunpack.c.h.b16 %v437
  %v1456 = vunpack.c.l.b16 %v438
  %v1457 = vunpack.c.h.b16 %v438
  %v1458 = vunpack.c.l.b16 %v439
  %v1459 = vunpack.c.h.b16 %v439
  %v1460 = vunpack.c.l.b16 %v440
  %v1461 = vunpack.c.l.b16 %v441
  %v1462 = vunpack.c.h.b16 %v441
  %v1463 = vunpack.c.l.b16 %v442
  %v1464 = vunpack.c.h.b16 %v442
  %v1465 = vunpack.c.l.b16 %v443
  %v1466 = vunpack.c.h.b16 %v443
  %v1467 = vunpack.c.l.b16 %v444
  %v1468 = vunpack.c.h.b16 %v444
  %v1469 = vunpack.c.l.b16 %v445
  %v1470 = vunpack.c.l.b16 %v446
  %v1471 = vunpack.c.h.b16 %v446
  %v1472 = vunpack.c.l.b16 %v447
  %v1473 = vunpack.c.h.b16 %v447
  %v1474 = vunpack.c.l.b16 %v448
  %v1475 = vunpack.c.h.b16 %v448
  %v1476 = vunpack.c.l.b16 %v449
  %v1477 = vunpack.c.h.b16 %v449
  %v1478 = vunpack.c.l.b16 %v450
  %v1479 = vunpack.c.l.b16 %v451
  %v1480 = vunpack.c.h.b16 %v451
  %v1481 = vunpack.c.l.b16 %v452
  %v1482 = vunpack.c.h.b16 %v452
  %v1483 = vunpack.c.l.b16 %v453
  %v1484 = vunpack.c.h.b16 %v453
  %v1485 = vunpack.c.l.b16 %v454
  %v1486 = vunpack.c.h.b16 %v454
  %v1487 = vunpack.c.l.b16 %v455
  %v1488 = vunpack.c.l.b16 %v456
  %v1489 = vunpack.c.h.b16 %v456
  %v1490 = vunpack.c.l.b16 %v457
  %v1491 = vunpack.c.h.b16 %v457
  %v1492 = vunpack.c.l.b16 %v458
  %v1493 = vunpack.c.h.b16 %v458
  %v1494 = vunpack.c.l.b16 %v459
  %v1495 = vunpack.c.h.b16 %v459
  %v1496 = vunpack.c.l.b16 %v460
  %v1497 = vunpack.c.l.b16 %v461
  %v1498 = vunpack.c.h.b16 %v461
  %v1499 = vunpack.c.l.b16 %v462
  %v1500 = vunpack.c.h.b16 %v462
  %v1501 = vunpack.c.l.b16 %v463
  %v1502 = vunpack.c.h.b16 %v463
  %v1503 = vunpack.c.l.b16 %v464
  %v1504 = vunpack.c.h.b16 %v464
  %v1505 = vunpack.c.l.b16 %v465
  %v1506 = vpack.c.b16 %v939, %v930
  %v1507 = vpack.c.b16 %v940, %v931
  %v1508 = vpack.c.b16 %v941, %v932
  %v1509 = vpack.c.b16 %v942, %v933
  %v1510 = vpack.c.b16 %v943, %v934
  %v1511 = vpack.c.b16 %v944, %v935
  %v1512 = vpack.c.b16 %v945, %v936
  %v1513 = vpack.c.b16 %v946, %v937
  %v1514 = vpack.c.b16 %v947, %v938
  %v1515 = vpack.c.b16 %v957, %v948
  %v1516 = vpack.c.b16 %v958, %v949
  %v1517 = vpack.c.b16 %v959, %v950
  %v1518 = vpack.c.b16 %v960, %v951
  %v1519 = vpack.c.b16 %v961, %v952
  %v1520 = vpack.c.b16 %v962, %v953
  %v1521 = vpack.c.b16 %v963, %v954
  %v1522 = vpack.c.b16 %v964, %v955
  %v1523 = vpack.c.b16 %v965, %v956
  %v1524 = vpack.c.b16 %v975, %v966
  %v1525 = vpack.c.b16 %v976, %v967
  %v1526 = vpack.c.b16 %v977, %v968
  %v1527 = vpack.c.b16 %v978, %v969
  %v1528 = vpack.c.b16 %v979, %v970
  %v1529 = vpack.c.b16 %v980, %v971
  %v1530 = vpack.c.b16 %v981, %v972
  %v1531 = vpack.c.b16 %v982, %v973
  %v1532 = vpack.c.b16 %v983, %v974
  %v1533 = vpack.c.b16 %v993, %v984
  %v1534 = vpack.c.b16 %v994, %v985
  %v1535 = vpack.c.b16 %v995, %v986
  %v1536 = vpack.c.b16 %v996, %v987
  %v1537 = vpack.c.b16 %v997, %v988
  %v1538 = vpack.c.b16 %v998, %v989
  %v1539 = vpack.c.b16 %v999, %v990
  %v1540 = vpack.c.b16 %v1000, %v991
  %v1541 = vpack.c.b16 %v1001, %v992
  %v1542 = vpack.c.b16 %v1011, %v1002
  %v1543 = vpack.c.b16 %v1012, %v1003
  %v1544 = vpack.c.b16 %v1013, %v1004
  %v1545 = vpack.c.b16 %v1014, %v1005
  %v1546 = vpack.c.b16 %v1015, %v1006
  %v1547 = vpack.c.b16 %v1016, %v1007
  %v1548 = vpack.c.b16 %v1017, %v1008
  %v1549 = vpack.c.b16 %v1018, %v1009
  %v1550 = vpack.c.b16 %v1019, %v1010
  %v1551 = vpack.c.b16 %v1029, %v1020
  %v1552 = vpack.c.b16 %v1030, %v1021
  %v1553 = vpack.c.b16 %v1031, %v1022
  %v1554 = vpack.c.b16 %v1032, %v1023
  %v1555 = vpack.c.b16 %v1033, %v1024
  %v1556 = vpack.c.b16 %v1034, %v1025
  %v1557 = vpack.c.b16 %v1035, %v1026
  %v1558 = vpack.c.b16 %v1036, %v1027
  %v1559 = vpack.c.b16 %v1037, %v1028
  %v1560 = vpack.c.b16 %v1047, %v1038
  %v1561 = vpack.c.b16 %v1048, %v1039
  %v1562 = vpack.c.b16 %v1049, %v1040
  %v1563 = vpack.c.b16 %v1050, %v1041
  %v1564 = vpack.c.b16 %v1051, %v1042
  %v1565 = vpack.c.b16 %v1052, %v1043
  %v1566 = vpack.c.b16 %v1053, %v1044
  %v1567 = vpack.c.b16 %v1054, %v1045
  %v1568 = vpack.c.b16 %v1055, %v1046
  %v1569 = vpack.c.b16 %v1065, %v1056
  %v1570 = vpack.c.b16 %v1066, %v1057
  %v1571 = vpack.c.b16 %v1067, %v1058
  %v1572 = vpack.c.b16 %v1068, %v1059
  %v1573 = vpack.c.b16 %v1069, %v1060
  %v1574 = vpack.c.b16 %v1070, %v1061
  %v1575 = vpack.c.b16 %v1071, %v1062
  %v1576 = vpack.c.b16 %v1072, %v1063
  %v1577 = vpack.c.b16 %v1073, %v1064
  %v1578 = vpack.c.b16 %v1083, %v1074
  %v1579 = vpack.c.b16 %v1084, %v1075
  %v1580 = vpack.c.b16 %v1085, %v1076
  %v1581 = vpack.c.b16 %v1086, %v1077
  %v1582 = vpack.c.b16 %v1087, %v1078
  %v1583 = vpack.c.b16 %v1088, %v1079
  %v1584 = vpack.c.b16 %v1089, %v1080
  %v1585 = vpack.c.b16 %v1090, %v1081
  %v1586 = vpack.c.b16 %v1091, %v1082
  %v1587 = vpack.c.b16 %v1101, %v1092
  %v1588 = vpack.c.b16 %v1102, %v1093
  %v1589 = vpack.c.b16 %v1103, %v1094
  %v1590 = vpack.c.b16 %v1104, %v1095
  %v1591 = vpack.c.b16 %v1105, %v1096
  %v1592 = vpack.c.b16 %v1106, %v1097
  %v1593 = vpack.c.b16 %v1107, %v1098
  %v1594 = vpack.c.b16 %v1108, %v1099
  %v1595 = vpack.c.b16 %v1109, %v1100
  %v1596 = vpack.c.b16 %v1119, %v1110
  %v1597 = vpack.c.b16 %v1120, %v1111
  %v1598 = vpack.c.b16 %v1121, %v1112
  %v1599 = vpack.c.b16 %v1122, %v1113
  %v1600 = vpack.c.b16 %v1123, %v1114
  %v1601 = vpack.c.b16 %v1124, %v1115
  %v1602 = vpack.c.b16 %v1125, %v1116
  %v1603 = vpack.c.b16 %v1126, %v1117
  %v1604 = vpack.c.b16 %v1127, %v1118
  %v1605 = vpack.c.b16 %v1137, %v1128
  %v1606 = vpack.c.b16 %v1138, %v1129
  %v1607 = vpack.c.b16 %v1139, %v1130
  %v1608 = vpack.c.b16 %v1140, %v1131
  %v1609 = vpack.c.b16 %v1141, %v1132
  %v1610 = vpack.c.b16 %v1142, %v1133
  %v1611 = vpack.c.b16 %v1143, %v1134
  %v1612 = vpack.c.b16 %v1144, %v1135
  %v1613 = vpack.c.b16 %v1145, %v1136
  %v1614 = vpack.c.b16 %v1155, %v1146
  %v1615 = vpack.c.b16 %v1156, %v1147
  %v1616 = vpack.c.b16 %v1157, %v1148
  %v1617 = vpack.c.b16 %v1158, %v1149
  %v1618 = vpack.c.b16 %v1159, %v1150
  %v1619 = vpack.c.b16 %v1160, %v1151
  %v1620 = vpack.c.b16 %v1161, %v1152
  %v1621 = vpack.c.b16 %v1162, %v1153
  %v1622 = vpack.c.b16 %v1163, %v1154
  %v1623 = vpack.c.b16 %v1173, %v1164
  %v1624 = vpack.c.b16 %v1174, %v1165
  %v1625 = vpack.c.b16 %v1175, %v1166
  %v1626 = vpack.c.b16 %v1176, %v1167
  %v1627 = vpack.c.b16 %v1177, %v1168
  %v1628 = vpack.c.b16 %v1178, %v1169
  %v1629 = vpack.c.b16 %v1179, %v1170
  %v1630 = vpack.c.b16 %v1180, %v1171
  %v1631 = vpack.c.b16 %v1181, %v1172
  %v1632 = vpack.c.b16 %v1191, %v1182
  %v1633 = vpack.c.b16 %v1192, %v1183
  %v1634 = vpack.c.b16 %v1193, %v1184
  %v1635 = vpack.c.b16 %v1194, %v1185
  %v1636 = vpack.c.b16 %v1195, %v1186
  %v1637 = vpack.c.b16 %v1196, %v1187
  %v1638 = vpack.c.b16 %v1197, %v1188
  %v1639 = vpack.c.b16 %v1198, %v1189
  %v1640 = vpack.c.b16 %v1199, %v1190
  %v1641 = vpack.c.b16 %v1209, %v1200
  %v1642 = vpack.c.b16 %v1210, %v1201
  %v1643 = vpack.c.b16 %v1211, %v1202
  %v1644 = vpack.c.b16 %v1212, %v1203
  %v1645 = vpack.c.b16 %v1213, %v1204
  %v1646 = vpack.c.b16 %v1214, %v1205
  %v1647 = vpack.c.b16 %v1215, %v1206
  %v1648 = vpack.c.b16 %v1216, %v1207
  %v1649 = vpack.c.b16 %v1217, %v1208
  %v1650 = vpack.c.b16 %v1227, %v1218
  %v1651 = vpack.c.b16 %v1228, %v1219
  %v1652 = vpack.c.b16 %v1229, %v1220
  %v1653 = vpack.c.b16 %v1230, %v1221
  %v1654 = vpack.c.b16 %v1231, %v1222
  %v1655 = vpack.c.b16 %v1232, %v1223
  %v1656 = vpack.c.b16 %v1233, %v1224
  %v1657 = vpack.c.b16 %v1234, %v1225
  %v1658 = vpack.c.b16 %v1235, %v1226
  %v1659 = vpack.c.b16 %v1245, %v1236
  %v1660 = vpack.c.b16 %v1246, %v1237
  %v1661 = vpack.c.b16 %v1247, %v1238
  %v1662 = vpack.c.b16 %v1248, %v1239
  %v1663 = vpack.c.b16 %v1249, %v1240
  %v1664 = vpack.c.b16 %v1250, %v1241
  %v1665 = vpack.c.b16 %v1251, %v1242
  %v1666 = vpack.c.b16 %v1252, %v1243
  %v1667 = vpack.c.b16 %v1253, %v1244
  %v1668 = vpack.c.b16 %v1263, %v1254
  %v1669 = vpack.c.b16 %v1264, %v1255
  %v1670 = vpack.c.b16 %v1265, %v1256
  %v1671 = vpack.c.b16 %v1266, %v1257
  %v1672 = vpack.c.b16 %v1267, %v1258
  %v1673 = vpack.c.b16 %v1268, %v1259
  %v1674 = vpack.c.b16 %v1269, %v1260
  %v1675 = vpack.c.b16 %v1270, %v1261
  %v1676 = vpack.c.b16 %v1271, %v1262
  %v1677 = vpack.c.b16 %v1281, %v1272
  %v1678 = vpack.c.b16 %v1282, %v1273
  %v1679 = vpack.c.b16 %v1283, %v1274
  %v1680 = vpack.c.b16 %v1284, %v1275
  %v1681 = vpack.c.b16 %v1285, %v1276
  %v1682 = vpack.c.b16 %v1286, %v1277
  %v1683 = vpack.c.b16 %v1287, %v1278
  %v1684 = vpack.c.b16 %v1288, %v1279
  %v1685 = vpack.c.b16 %v1289, %v1280
  %v1686 = vpack.c.b16 %v1299, %v1290
  %v1687 = vpack.c.b16 %v1300, %v1291
  %v1688 = vpack.c.b16 %v1301, %v1292
  %v1689 = vpack.c.b16 %v1302, %v1293
  %v1690 = vpack.c.b16 %v1303, %v1294
  %v1691 = vpack.c.b16 %v1304, %v1295
  %v1692 = vpack.c.b16 %v1305, %v1296
  %v1693 = vpack.c.b16 %v1306, %v1297
  %v1694 = vpack.c.b16 %v1307, %v1298
  %v1695 = vpack.c.b16 %v1317, %v1308
  %v1696 = vpack.c.b16 %v1318, %v1309
  %v1697 = vpack.c.b16 %v1319, %v1310
  %v1698 = vpack.c.b16 %v1320, %v1311
  %v1699 = vpack.c.b16 %v1321, %v1312
  %v1700 = vpack.c.b16 %v1322, %v1313
  %v1701 = vpack.c.b16 %v1323, %v1314
  %v1702 = vpack.c.b16 %v1324, %v1315
  %v1703 = vpack.c.b16 %v1325, %v1316
  %v1704 = vpack.c.b16 %v1335, %v1326
  %v1705 = vpack.c.b16 %v1336, %v1327
  %v1706 = vpack.c.b16 %v1337, %v1328
  %v1707 = vpack.c.b16 %v1338, %v1329
  %v1708 = vpack.c.b16 %v1339, %v1330
  %v1709 = vpack.c.b16 %v1340, %v1331
  %v1710 = vpack.c.b16 %v1341, %v1332
  %v1711 = vpack.c.b16 %v1342, %v1333
  %v1712 = vpack.c.b16 %v1343, %v1334
  %v1713 = vpack.c.b16 %v1353, %v1344
  %v1714 = vpack.c.b16 %v1354, %v1345
  %v1715 = vpack.c.b16 %v1355, %v1346
  %v1716 = vpack.c.b16 %v1356, %v1347
  %v1717 = vpack.c.b16 %v1357, %v1348
  %v1718 = vpack.c.b16 %v1358, %v1349
  %v1719 = vpack.c.b16 %v1359, %v1350
  %v1720 = vpack.c.b16 %v1360, %v1351
  %v1721 = vpack.c.b16 %v1361, %v1352
  %v1722 = vpack.c.b16 %v1371, %v1362
  %v1723 = vpack.c.b16 %v1372, %v1363
  %v1724 = vpack.c.b16 %v1373, %v1364
  %v1725 = vpack.c.b16 %v1374, %v1365
  %v1726 = vpack.c.b16 %v1375, %v1366
  %v1727 = vpack.c.b16 %v1376, %v1367
  %v1728 = vpack.c.b16 %v1377, %v1368
  %v1729 = vpack.c.b16 %v1378, %v1369
  %v1730 = vpack.c.b16 %v1379, %v1370
  %v1731 = vpack.c.b16 %v1389, %v1380
  %v1732 = vpack.c.b16 %v1390, %v1381
  %v1733 = vpack.c.b16 %v1391, %v1382
  %v1734 = vpack.c.b16 %v1392, %v1383
  %v1735 = vpack.c.b16 %v1393, %v1384
  %v1736 = vpack.c.b16 %v1394, %v1385
  %v1737 = vpack.c.b16 %v1395, %v1386
  %v1738 = vpack.c.b16 %v1396, %v1387
  %v1739 = vpack.c.b16 %v1397, %v1388
  %v1740 = vpack.c.b16 %v1407, %v1398
  %v1741 = vpack.c.b16 %v1408, %v1399
  %v1742 = vpack.c.b16 %v1409, %v1400
  %v1743 = vpack.c.b16 %v1410, %v1401
  %v1744 = vpack.c.b16 %v1411, %v1402
  %v1745 = vpack.c.b16 %v1412, %v1403
  %v1746 = vpack.c.b16 %v1413, %v1404
  %v1747 = vpack.c.b16 %v1414, %v1405
  %v1748 = vpack.c.b16 %v1415, %v1406
  %v1749 = vpack.c.b16 %v1425, %v1416
  %v1750 = vpack.c.b16 %v1426, %v1417
  %v1751 = vpack.c.b16 %v1427, %v1418
  %v1752 = vpack.c.b16 %v1428, %v1419
  %v1753 = vpack.c.b16 %v1429, %v1420
  %v1754 = vpack.c.b16 %v1430, %v1421
  %v1755 = vpack.c.b16 %v1431, %v1422
  %v1756 = vpack.c.b16 %v1432, %v1423
  %v1757 = vpack.c.b16 %v1433, %v1424
  %v1758 = vpack.c.b16 %v1443, %v1434
  %v1759 = vpack.c.b16 %v1444, %v1435
  %v1760 = vpack.c.b16 %v1445, %v1436
  %v1761 = vpack.c.b16 %v1446, %v1437
  %v1762 = vpack.c.b16 %v1447, %v1438
  %v1763 = vpack.c.b16 %v1448, %v1439
  %v1764 = vpack.c.b16 %v1449, %v1440
  %v1765 = vpack.c.b16 %v1450, %v1441
  %v1766 = vpack.c.b16 %v1451, %v1442
  %v1767 = vpack.c.b16 %v1461, %v1452
  %v1768 = vpack.c.b16 %v1462, %v1453
  %v1769 = vpack.c.b16 %v1463, %v1454
  %v1770 = vpack.c.b16 %v1464, %v1455
  %v1771 = vpack.c.b16 %v1465, %v1456
  %v1772 = vpack.c.b16 %v1466, %v1457
  %v1773 = vpack.c.b16 %v1467, %v1458
  %v1774 = vpack.c.b16 %v1468, %v1459
  %v1775 = vpack.c.b16 %v1469, %v1460
  %v1776 = vpack.c.b16 %v1479, %v1470
  %v1777 = vpack.c.b16 %v1480, %v1471
  %v1778 = vpack.c.b16 %v1481, %v1472
  %v1779 = vpack.c.b16 %v1482, %v1473
  %v1780 = vpack.c.b16 %v1483, %v1474
  %v1781 = vpack.c.b16 %v1484, %v1475
  %v1782 = vpack.c.b16 %v1485, %v1476
  %v1783 = vpack.c.b16 %v1486, %v1477
  %v1784 = vpack.c.b16 %v1487, %v1478
  %v1785 = vpack.c.b16 %v1497, %v1488
  %v1786 = vpack.c.b16 %v1498, %v1489
  %v1787 = vpack.c.b16 %v1499, %v1490
  %v1788 = vpack.c.b16 %v1500, %v1491
  %v1789 = vpack.c.b16 %v1501, %v1492
  %v1790 = vpack.c.b16 %v1502, %v1493
  %v1791 = vpack.c.b16 %v1503, %v1494
  %v1792 = vpack.c.b16 %v1504, %v1495
  %v1793 = vpack.c.b16 %v1505, %v1496
  %v2226 = vunpack.c.l.b16 %v466
  %v2227 = vunpack.c.l.b16 %v467
  %v2228 = vunpack.c.l.b16 %v468
  %v2229 = vunpack.c.l.b16 %v469
  %v2230 = vunpack.c.l.b16 %v470
  %v2231 = vunpack.c.l.b16 %v471
  %v2232 = vunpack.c.l.b16 %v472
  %v2233 = vunpack.c.l.b16 %v473
  %v2234 = vunpack.c.l.b16 %v474
  %v2235 = vunpack.c.l.b16 %v475
  %v2236 = vunpack.c.l.b16 %v476
  %v2237 = vunpack.c.l.b16 %v477
  %v2238 = vunpack.c.l.b16 %v478
  %v2239 = vunpack.c.l.b16 %v479
  %v2240 = vunpack.c.l.b16 %v480
  %v2241 = vunpack.c.l.b16 %v481
  %v2242 = vunpack.c.l.b16 %v482
  %v2243 = vunpack.c.l.b16 %v483
  %v2244 = vunpack.c.l.b16 %v484
  %v2245 = vunpack.c.l.b16 %v485
  %v2246 = vunpack.c.l.b16 %v486
  %v2247 = vunpack.c.l.b16 %v487
  %v2248 = vunpack.c.l.b16 %v488
  %v2249 = vunpack.c.l.b16 %v489
  %v2250 = vunpack.c.l.b16 %v490
  %v2251 = vunpack.c.l.b16 %v491
  %v2252 = vunpack.c.l.b16 %v492
  %v2253 = vunpack.c.l.b16 %v493
  %v2254 = vunpack.c.l.b16 %v494
  %v2255 = vunpack.c.l.b16 %v495
  %v2256 = vunpack.c.l.b16 %v496
  %v2257 = vunpack.c.l.b16 %v497
  %v2258 = vunpack.c.l.b16 %v498
  %v2259 = vunpack.c.l.b16 %v499
  %v2260 = vunpack.c.l.b16 %v500
  %v2261 = vunpack.c.l.b16 %v501
  %v2262 = vunpack.c.l.b16 %v502
  %v2263 = vunpack.c.l.b16 %v503
  %v2264 = vunpack.c.l.b16 %v504
  %v2265 = vunpack.c.l.b16 %v505
  %v2266 = vunpack.c.l.b16 %v506
  %v2267 = vunpack.c.l.b16 %v507
  %v2268 = vunpack.c.l.b16 %v508
  %v2269 = vunpack.c.l.b16 %v509
  %v2270 = vunpack.c.l.b16 %v510
  %v2271 = vunpack.c.l.b16 %v511
  %v2272 = vunpack.c.l.b16 %v512
  %v2273 = vunpack.c.l.b16 %v513
  %v2274 = vunpack.c.l.b16 %v514
  %v2275 = vunpack.c.l.b16 %v515
  %v2276 = vunpack.c.l.b16 %v516
  %v2277 = vunpack.c.l.b16 %v517
  %v2278 = vunpack.c.l.b16 %v518
  %v2279 = vunpack.c.l.b16 %v519
  %v2280 = vunpack.c.l.b16 %v520
  %v2281 = vunpack.c.l.b16 %v521
  %v2282 = vunpack.c.l.b16 %v522
  %v2283 = vunpack.c.l.b16 %v523
  %v2284 = vunpack.c.l.b16 %v524
  %v2285 = vunpack.c.l.b16 %v525
  %v2286 = vunpack.c.l.b16 %v526
  %v2287 = vunpack.c.l.b16 %v527
  %v2288 = vunpack.c.l.b16 %v528
  %v2289 = vunpack.c.l.b16 %v529
  %v2290 = vunpack.c.l.b16 %v530
  %v2291 = vunpack.c.l.b16 %v531
  %v2292 = vunpack.c.l.b16 %v532
  %v2293 = vunpack.c.l.b16 %v533
  %v2294 = vunpack.c.l.b16 %v534
  %v2295 = vunpack.c.l.b16 %v535
  %v2296 = vunpack.c.l.b16 %v536
  %v2297 = vunpack.c.l.b16 %v537
  %v2298 = vunpack.c.l.b16 %v538
  %v2299 = vunpack.c.l.b16 %v539
  %v2300 = vunpack.c.l.b16 %v540
  %v2301 = vunpack.c.l.b16 %v541
  %v2302 = vunpack.c.l.b16 %v542
  %v2303 = vunpack.c.l.b16 %v543
  %v2304 = vunpack.c.l.b16 %v544
  %v2305 = vunpack.c.l.b16 %v545
  %v2306 = vunpack.c.l.b16 %v546
  %v2307 = vunpack.c.l.b16 %v547
  %v2308 = vunpack.c.l.b16 %v548
  %v2309 = vunpack.c.l.b16 %v549
  %v2310 = vunpack.c.l.b16 %v550
  %v2311 = vunpack.c.l.b16 %v551
  %v2312 = vunpack.c.l.b16 %v552
  %v2313 = vunpack.c.l.b16 %v553
  %v2314 = vunpack.c.l.b16 %v554
  %v2315 = vunpack.c.l.b16 %v555
  %v2316 = vunpack.c.l.b16 %v556
  %v2317 = vunpack.c.l.b16 %v557
  %v2318 = vunpack.c.l.b16 %v558
  %v2319 = vunpack.c.l.b16 %v559
  %v2320 = vunpack.c.l.b16 %v560
  %v2321 = vunpack.c.l.b16 %v561
  %v2322 = vunpack.c.l.b16 %v562
  %v2323 = vunpack.c.l.b16 %v563
  %v2324 = vunpack.c.l.b16 %v564
  %v2325 = vunpack.c.l.b16 %v565
  %v2326 = vunpack.c.l.b16 %v566
  %v2327 = vunpack.c.l.b16 %v567
  %v2328 = vunpack.c.l.b16 %v568
  %v2329 = vunpack.c.l.b16 %v569
  %v2330 = vunpack.c.l.b16 %v570
  %v2331 = vunpack.c.l.b16 %v571
  %v2332 = vunpack.c.l.b16 %v572
  %v2333 = vunpack.c.l.b16 %v573
  %v2334 = vunpack.c.l.b16 %v574
  %v2335 = vunpack.c.l.b16 %v575
  %v2336 = vunpack.c.l.b16 %v576
  %v2337 = vunpack.c.l.b16 %v577
  %v2338 = vunpack.c.l.b16 %v578
  %v2339 = vunpack.c.l.b16 %v579
  %v2340 = vunpack.c.l.b16 %v580
  %v2341 = vunpack.c.l.b16 %v581
  %v2342 = vunpack.c.l.b16 %v582
  %v2343 = vunpack.c.l.b16 %v583
  %v2344 = vunpack.c.l.b16 %v584
  %v2345 = vunpack.c.l.b16 %v585
  %v2346 = vunpack.c.l.b16 %v586
  %v2347 = vunpack.c.l.b16 %v587
  %v2348 = vunpack.c.l.b16 %v588
  %v2349 = vunpack.c.l.b16 %v589
  %v2350 = vunpack.c.l.b16 %v590
  %v2351 = vunpack.c.l.b16 %v591
  %v2352 = vunpack.c.l.b16 %v592
  %v2353 = vunpack.c.l.b16 %v593
  %v2354 = vunpack.c.l.b16 %v594
  %v2355 = vunpack.c.l.b16 %v595
  %v2356 = vunpack.c.l.b16 %v596
  %v2357 = vunpack.c.l.b16 %v597
  %v2358 = vunpack.c.l.b16 %v598
  %v2359 = vunpack.c.l.b16 %v599
  %v2360 = vunpack.c.l.b16 %v600
  %v2361 = vunpack.c.l.b16 %v601
  %v2362 = vunpack.c.l.b16 %v602
  %v2363 = vunpack.c.l.b16 %v603
  %v2364 = vunpack.c.l.b16 %v604
  %v2365 = vunpack.c.l.b16 %v605
  %v2366 = vunpack.c.l.b16 %v606
  %v2367 = vunpack.c.l.b16 %v607
  %v2368 = vunpack.c.l.b16 %v608
  %v2369 = vunpack.c.l.b16 %v609
  %v2370 = vpack.c.b16 %v2227, %v2226
  %v2371 = vpack.c.b16 %v2229, %v2228
  %v2372 = vpack.c.b16 %v2231, %v2230
  %v2373 = vpack.c.b16 %v2233, %v2232
  %v2374 = vpack.c.b16 %v2235, %v2234
  %v2375 = vpack.c.b16 %v2237, %v2236
  %v2376 = vpack.c.b16 %v2239, %v2238
  %v2377 = vpack.c.b16 %v2241, %v2240
  %v2378 = vpack.c.b16 %v2243, %v2242
  %v2379 = vpack.c.b16 %v2245, %v2244
  %v2380 = vpack.c.b16 %v2247, %v2246
  %v2381 = vpack.c.b16 %v2249, %v2248
  %v2382 = vpack.c.b16 %v2251, %v2250
  %v2383 = vpack.c.b16 %v2253, %v2252
  %v2384 = vpack.c.b16 %v2255, %v2254
  %v2385 = vpack.c.b16 %v2257, %v2256
  %v2386 = vpack.c.b16 %v2259, %v2258
  %v2387 = vpack.c.b16 %v2261, %v2260
  %v2388 = vpack.c.b16 %v2263, %v2262
  %v2389 = vpack.c.b16 %v2265, %v2264
  %v2390 = vpack.c.b16 %v2267, %v2266
  %v2391 = vpack.c.b16 %v2269, %v2268
  %v2392 = vpack.c.b16 %v2271, %v2270
  %v2393 = vpack.c.b16 %v2273, %v2272
  %v2394 = vpack.c.b16 %v2275, %v2274
  %v2395 = vpack.c.b16 %v2277, %v2276
  %v2396 = vpack.c.b16 %v2279, %v2278
  %v2397 = vpack.c.b16 %v2281, %v2280
  %v2398 = vpack.c.b16 %v2283, %v2282
  %v2399 = vpack.c.b16 %v2285, %v2284
  %v2400 = vpack.c.b16 %v2287, %v2286
  %v2401 = vpack.c.b16 %v2289, %v2288
  %v2402 = vpack.c.b16 %v2291, %v2290
  %v2403 = vpack.c.b16 %v2293, %v2292
  %v2404 = vpack.c.b16 %v2295, %v2294
  %v2405 = vpack.c.b16 %v2297, %v2296
  %v2406 = vpack.c.b16 %v2299, %v2298
  %v2407 = vpack.c.b16 %v2301, %v2300
  %v2408 = vpack.c.b16 %v2303, %v2302
  %v2409 = vpack.c.b16 %v2305, %v2304
  %v2410 = vpack.c.b16 %v2307, %v2306
  %v2411 = vpack.c.b16 %v2309, %v2308
  %v2412 = vpack.c.b16 %v2311, %v2310
  %v2413 = vpack.c.b16 %v2313, %v2312
  %v2414 = vpack.c.b16 %v2315, %v2314
  %v2415 = vpack.c.b16 %v2317, %v2316
  %v2416 = vpack.c.b16 %v2319, %v2318
  %v2417 = vpack.c.b16 %v2321, %v2320
  %v2418 = vpack.c.b16 %v2323, %v2322
  %v2419 = vpack.c.b16 %v2325, %v2324
  %v2420 = vpack.c.b16 %v2327, %v2326
  %v2421 = vpack.c.b16 %v2329, %v2328
  %v2422 = vpack.c.b16 %v2331, %v2330
  %v2423 = vpack.c.b16 %v2333, %v2332
  %v2424 = vpack.c.b16 %v2335, %v2334
  %v2425 = vpack.c.b16 %v2337, %v2336
  %v2426 = vpack.c.b16 %v2339, %v2338
  %v2427 = vpack.c.b16 %v2341, %v2340
  %v2428 = vpack.c.b16 %v2343, %v2342
  %v2429 = vpack.c.b16 %v2345, %v2344
  %v2430 = vpack.c.b16 %v2347, %v2346
  %v2431 = vpack.c.b16 %v2349, %v2348
  %v2432 = vpack.c.b16 %v2351, %v2350
  %v2433 = vpack.c.b16 %v2353, %v2352
  %v2434 = vpack.c.b16 %v2355, %v2354
  %v2435 = vpack.c.b16 %v2357, %v2356
  %v2436 = vpack.c.b16 %v2359, %v2358
  %v2437 = vpack.c.b16 %v2361, %v2360
  %v2438 = vpack.c.b16 %v2363, %v2362
  %v2439 = vpack.c.b16 %v2365, %v2364
  %v2440 = vpack.c.b16 %v2367, %v2366
  %v2441 = vpack.c.b16 %v2369, %v2368
  %2514 = vmatprep.subr.bf16.mxu0 0
  %2515 = vmatpush1.bf16.msra.mxu0 %v2370
  %2516 = vmatprep.subr.bf16.mxu0 0
  %2517 = vmatpush1.bf16.msra.mxu0 %v2371
  %2518 = vmatprep.subr.bf16.mxu0 0
  %2519 = vmatpush1.bf16.msra.mxu0 %v2372
  %2520 = vmatprep.subr.bf16.mxu0 0
  %2521 = vmatpush1.bf16.msra.mxu0 %v2373
  %2522 = vmatprep.subr.bf16.mxu0 0
  %2523 = vmatpush1.bf16.msra.mxu0 %v2374
  %2524 = vmatprep.subr.bf16.mxu0 0
  %2525 = vmatpush1.bf16.msra.mxu0 %v2375
  %2526 = vmatprep.subr.bf16.mxu0 0
  %2527 = vmatpush1.bf16.msra.mxu0 %v2376
  %2528 = vmatprep.subr.bf16.mxu0 0
  %2529 = vmatpush1.bf16.msra.mxu0 %v2377
  %2530 = vmatprep.subr.bf16.mxu0 0
  %2531 = vmatpush1.bf16.msra.mxu0 %v2378
  %2532 = vmatprep.subr.bf16.mxu0 0
  %2533 = vmatpush1.bf16.msra.mxu0 %v2379
  %2534 = vmatprep.subr.bf16.mxu0 0
  %2535 = vmatpush1.bf16.msra.mxu0 %v2380
  %2536 = vmatprep.subr.bf16.mxu0 0
  %2537 = vmatpush1.bf16.msra.mxu0 %v2381
  %2538 = vmatprep.subr.bf16.mxu0 0
  %2539 = vmatpush1.bf16.msra.mxu0 %v2382
  %2540 = vmatprep.subr.bf16.mxu0 0
  %2541 = vmatpush1.bf16.msra.mxu0 %v2383
  %2542 = vmatprep.subr.bf16.mxu0 0
  %2543 = vmatpush1.bf16.msra.mxu0 %v2384
  %2544 = vmatprep.subr.bf16.mxu0 0
  %2545 = vmatpush1.bf16.msra.mxu0 %v2385
  %2546 = vmatprep.mubr.bf16.mxu0 %v1507
  %2547 = vmatmul.mubr.bf16.gmra.mrb[0].mxu0 %v1506
  %v2548 = vpop.f32.mrb[0].mxu0
  %v2549 = vadd.f32 0.0, %v2548
  %v2550 = vpop.f32.mrb[0].mxu0
  %v2551 = vpop.f32.mrb[0].mxu0
  %v2552 = vadd.f32 0.0, %v2551
  %v2553 = vpop.f32.mrb[0].mxu0
  %2554 = vmatprep.mubr.bf16.mxu0 %v1516
  %2555 = vmatmul.mubr.bf16.gmra.mrb[0].mxu0 %v1515
  %v2556 = vpop.f32.mrb[0].mxu0
  %v2557 = vadd.f32 0.0, %v2556
  %v2558 = vpop.f32.mrb[0].mxu0
  %v2559 = vpop.f32.mrb[0].mxu0
  %v2560 = vadd.f32 0.0, %v2559
  %v2561 = vpop.f32.mrb[0].mxu0
  %2562 = vmatprep.mubr.bf16.mxu0 %v1525
  %2563 = vmatmul.mubr.bf16.gmra.mrb[0].mxu0 %v1524
  %v2564 = vpop.f32.mrb[0].mxu0
  %v2565 = vadd.f32 0.0, %v2564
  %v2566 = vpop.f32.mrb[0].mxu0
  %v2567 = vpop.f32.mrb[0].mxu0
  %v2568 = vadd.f32 0.0, %v2567
  %v2569 = vpop.f32.mrb[0].mxu0
  %2570 = vmatprep.mubr.bf16.mxu0 %v1534
  %2571 = vmatmul.mubr.bf16.gmra.mrb[0].mxu0 %v1533
  %v2572 = vpop.f32.mrb[0].mxu0
  %v2573 = vadd.f32 0.0, %v2572
  %v2574 = vpop.f32.mrb[0].mxu0
  %v2575 = vpop.f32.mrb[0].mxu0
  %v2576 = vadd.f32 0.0, %v2575
  %v2577 = vpop.f32.mrb[0].mxu0
  %2578 = vmatprep.mubr.bf16.mxu0 %v1543
  %2579 = vmatmul.mubr.bf16.gmra.mrb[0].mxu0 %v1542
  %v2580 = vpop.f32.mrb[0].mxu0
  %v2581 = vadd.f32 0.0, %v2580
  %v2582 = vpop.f32.mrb[0].mxu0
  %v2583 = vpop.f32.mrb[0].mxu0
  %v2584 = vadd.f32 0.0, %v2583
  %v2585 = vpop.f32.mrb[0].mxu0
  %2586 = vmatprep.mubr.bf16.mxu0 %v1552
  %2587 = vmatmul.mubr.bf16.gmra.mrb[0].mxu0 %v1551
  %v2588 = vpop.f32.mrb[0].mxu0
  %v2589 = vadd.f32 0.0, %v2588
  %v2590 = vpop.f32.mrb[0].mxu0
  %v2591 = vpop.f32.mrb[0].mxu0
  %v2592 = vadd.f32 0.0, %v2591
  %v2593 = vpop.f32.mrb[0].mxu0
  %2594 = vmatprep.mubr.bf16.mxu0 %v1561
  %2595 = vmatmul.mubr.bf16.gmra.mrb[0].mxu0 %v1560
  %v2596 = vpop.f32.mrb[0].mxu0
  %v2597 = vadd.f32 0.0, %v2596
  %v2598 = vpop.f32.mrb[0].mxu0
  %v2599 = vpop.f32.mrb[0].mxu0
  %v2600 = vadd.f32 0.0, %v2599
  %v2601 = vpop.f32.mrb[0].mxu0
  %2602 = vmatprep.mubr.bf16.mxu0 %v1570
  %2603 = vmatmul.mubr.bf16.gmra.mrb[0].mxu0 %v1569
  %v2604 = vpop.f32.mrb[0].mxu0
  %v2605 = vadd.f32 0.0, %v2604
  %v2606 = vpop.f32.mrb[0].mxu0
  %v2607 = vpop.f32.mrb[0].mxu0
  %v2608 = vadd.f32 0.0, %v2607
  %v2609 = vpop.f32.mrb[0].mxu0
  %2610 = vmatprep.mubr.bf16.mxu0 %v1579
  %2611 = vmatmul.mubr.bf16.gmra.mrb[0].mxu0 %v1578
  %v2612 = vpop.f32.mrb[0].mxu0
  %v2613 = vadd.f32 0.0, %v2612
  %v2614 = vpop.f32.mrb[0].mxu0
  %v2615 = vpop.f32.mrb[0].mxu0
  %v2616 = vadd.f32 0.0, %v2615
  %v2617 = vpop.f32.mrb[0].mxu0
  %2618 = vmatprep.mubr.bf16.mxu0 %v1588
  %2619 = vmatmul.mubr.bf16.gmra.mrb[0].mxu0 %v1587
  %v2620 = vpop.f32.mrb[0].mxu0
  %v2621 = vadd.f32 0.0, %v2620
  %v2622 = vpop.f32.mrb[0].mxu0
  %v2623 = vpop.f32.mrb[0].mxu0
  %v2624 = vadd.f32 0.0, %v2623
  %v2625 = vpop.f32.mrb[0].mxu0
  %2626 = vmatprep.mubr.bf16.mxu0 %v1597
  %2627 = vmatmul.mubr.bf16.gmra.mrb[0].mxu0 %v1596
  %v2628 = vpop.f32.mrb[0].mxu0
  %v2629 = vadd.f32 0.0, %v2628
  %v2630 = vpop.f32.mrb[0].mxu0
  %v2631 = vpop.f32.mrb[0].mxu0
  %v2632 = vadd.f32 0.0, %v2631
  %v2633 = vpop.f32.mrb[0].mxu0
  %2634 = vmatprep.mubr.bf16.mxu0 %v1606
  %2635 = vmatmul.mubr.bf16.gmra.mrb[0].mxu0 %v1605
  %v2636 = vpop.f32.mrb[0].mxu0
  %v2637 = vadd.f32 0.0, %v2636
  %v2638 = vpop.f32.mrb[0].mxu0
  %v2639 = vpop.f32.mrb[0].mxu0
  %v2640 = vadd.f32 0.0, %v2639
  %v2641 = vpop.f32.mrb[0].mxu0
  %2642 = vmatprep.mubr.bf16.mxu0 %v1615
  %2643 = vmatmul.mubr.bf16.gmra.mrb[0].mxu0 %v1614
  %v2644 = vpop.f32.mrb[0].mxu0
  %v2645 = vadd.f32 0.0, %v2644
  %v2646 = vpop.f32.mrb[0].mxu0
  %v2647 = vpop.f32.mrb[0].mxu0
  %v2648 = vadd.f32 0.0, %v2647
  %v2649 = vpop.f32.mrb[0].mxu0
  %2650 = vmatprep.mubr.bf16.mxu0 %v1624
  %2651 = vmatmul.mubr.bf16.gmra.mrb[0].mxu0 %v1623
  %v2652 = vpop.f32.mrb[0].mxu0
  %v2653 = vadd.f32 0.0, %v2652
  %v2654 = vpop.f32.mrb[0].mxu0
  %v2655 = vpop.f32.mrb[0].mxu0
  %v2656 = vadd.f32 0.0, %v2655
  %v2657 = vpop.f32.mrb[0].mxu0
  %2658 = vmatprep.mubr.bf16.mxu0 %v1633
  %2659 = vmatmul.mubr.bf16.gmra.mrb[0].mxu0 %v1632
  %v2660 = vpop.f32.mrb[0].mxu0
  %v2661 = vadd.f32 0.0, %v2660
  %v2662 = vpop.f32.mrb[0].mxu0
  %v2663 = vpop.f32.mrb[0].mxu0
  %v2664 = vadd.f32 0.0, %v2663
  %v2665 = vpop.f32.mrb[0].mxu0
  %2666 = vmatprep.mubr.bf16.mxu0 %v1642
  %2667 = vmatmul.mubr.bf16.gmra.mrb[0].mxu0 %v1641
  %v2668 = vpop.f32.mrb[0].mxu0
  %v2669 = vadd.f32 0.0, %v2668
  %v2670 = vpop.f32.mrb[0].mxu0
  %v2671 = vpop.f32.mrb[0].mxu0
  %v2672 = vadd.f32 0.0, %v2671
  %v2673 = vpop.f32.mrb[0].mxu0
  %2674 = vmatprep.mubr.bf16.mxu0 %v1651
  %2675 = vmatmul.mubr.bf16.gmra.mrb[0].mxu0 %v1650
  %v2676 = vpop.f32.mrb[0].mxu0
  %v2677 = vadd.f32 0.0, %v2676
  %v2678 = vpop.f32.mrb[0].mxu0
  %v2679 = vpop.f32.mrb[0].mxu0
  %v2680 = vadd.f32 0.0, %v2679
  %v2681 = vpop.f32.mrb[0].mxu0
  %2682 = vmatprep.mubr.bf16.mxu0 %v1660
  %2683 = vmatmul.mubr.bf16.gmra.mrb[0].mxu0 %v1659
  %v2684 = vpop.f32.mrb[0].mxu0
  %v2685 = vadd.f32 0.0, %v2684
  %v2686 = vpop.f32.mrb[0].mxu0
  %v2687 = vpop.f32.mrb[0].mxu0
  %v2688 = vadd.f32 0.0, %v2687
  %v2689 = vpop.f32.mrb[0].mxu0
  %2690 = vmatprep.mubr.bf16.mxu0 %v1669
  %2691 = vmatmul.mubr.bf16.gmra.mrb[0].mxu0 %v1668
  %v2692 = vpop.f32.mrb[0].mxu0
  %v2693 = vadd.f32 0.0, %v2692
  %v2694 = vpop.f32.mrb[0].mxu0
  %v2695 = vpop.f32.mrb[0].mxu0
  %v2696 = vadd.f32 0.0, %v2695
  %v2697 = vpop.f32.mrb[0].mxu0
  %2698 = vmatprep.mubr.bf16.mxu0 %v1678
  %2699 = vmatmul.mubr.bf16.gmra.mrb[0].mxu0 %v1677
  %v2700 = vpop.f32.mrb[0].mxu0
  %v2701 = vadd.f32 0.0, %v2700
  %v2702 = vpop.f32.mrb[0].mxu0
  %v2703 = vpop.f32.mrb[0].mxu0
  %v2704 = vadd.f32 0.0, %v2703
  %v2705 = vpop.f32.mrb[0].mxu0
  %2706 = vmatprep.mubr.bf16.mxu0 %v1687
  %2707 = vmatmul.mubr.bf16.gmra.mrb[0].mxu0 %v1686
  %v2708 = vpop.f32.mrb[0].mxu0
  %v2709 = vadd.f32 0.0, %v2708
  %v2710 = vpop.f32.mrb[0].mxu0
  %v2711 = vpop.f32.mrb[0].mxu0
  %v2712 = vadd.f32 0.0, %v2711
  %v2713 = vpop.f32.mrb[0].mxu0
  %2714 = vmatprep.mubr.bf16.mxu0 %v1696
  %2715 = vmatmul.mubr.bf16.gmra.mrb[0].mxu0 %v1695
  %v2716 = vpop.f32.mrb[0].mxu0
  %v2717 = vadd.f32 0.0, %v2716
  %v2718 = vpop.f32.mrb[0].mxu0
  %v2719 = vpop.f32.mrb[0].mxu0
  %v2720 = vadd.f32 0.0, %v2719
  %v2721 = vpop.f32.mrb[0].mxu0
  %2722 = vmatprep.mubr.bf16.mxu0 %v1705
  %2723 = vmatmul.mubr.bf16.gmra.mrb[0].mxu0 %v1704
  %v2724 = vpop.f32.mrb[0].mxu0
  %v2725 = vadd.f32 0.0, %v2724
  %v2726 = vpop.f32.mrb[0].mxu0
  %v2727 = vpop.f32.mrb[0].mxu0
  %v2728 = vadd.f32 0.0, %v2727
  %v2729 = vpop.f32.mrb[0].mxu0
  %2730 = vmatprep.mubr.bf16.mxu0 %v1714
  %2731 = vmatmul.mubr.bf16.gmra.mrb[0].mxu0 %v1713
  %v2732 = vpop.f32.mrb[0].mxu0
  %v2733 = vadd.f32 0.0, %v2732
  %v2734 = vpop.f32.mrb[0].mxu0
  %v2735 = vpop.f32.mrb[0].mxu0
  %v2736 = vadd.f32 0.0, %v2735
  %v2737 = vpop.f32.mrb[0].mxu0
  %2738 = vmatprep.mubr.bf16.mxu0 %v1723
  %2739 = vmatmul.mubr.bf16.gmra.mrb[0].mxu0 %v1722
  %v2740 = vpop.f32.mrb[0].mxu0
  %v2741 = vadd.f32 0.0, %v2740
  %v2742 = vpop.f32.mrb[0].mxu0
  %v2743 = vpop.f32.mrb[0].mxu0
  %v2744 = vadd.f32 0.0, %v2743
  %v2745 = vpop.f32.mrb[0].mxu0
  %2746 = vmatprep.mubr.bf16.mxu0 %v1732
  %2747 = vmatmul.mubr.bf16.gmra.mrb[0].mxu0 %v1731
  %v2748 = vpop.f32.mrb[0].mxu0
  %v2749 = vadd.f32 0.0, %v2748
  %v2750 = vpop.f32.mrb[0].mxu0
  %v2751 = vpop.f32.mrb[0].mxu0
  %v2752 = vadd.f32 0.0, %v2751
  %v2753 = vpop.f32.mrb[0].mxu0
  %2754 = vmatprep.mubr.bf16.mxu0 %v1741
  %2755 = vmatmul.mubr.bf16.gmra.mrb[0].mxu0 %v1740
  %v2756 = vpop.f32.mrb[0].mxu0
  %v2757 = vadd.f32 0.0, %v2756
  %v2758 = vpop.f32.mrb[0].mxu0
  %v2759 = vpop.f32.mrb[0].mxu0
  %v2760 = vadd.f32 0.0, %v2759
  %v2761 = vpop.f32.mrb[0].mxu0
  %2762 = vmatprep.mubr.bf16.mxu0 %v1750
  %2763 = vmatmul.mubr.bf16.gmra.mrb[0].mxu0 %v1749
  %v2764 = vpop.f32.mrb[0].mxu0
  %v2765 = vadd.f32 0.0, %v2764
  %v2766 = vpop.f32.mrb[0].mxu0
  %v2767 = vpop.f32.mrb[0].mxu0
  %v2768 = vadd.f32 0.0, %v2767
  %v2769 = vpop.f32.mrb[0].mxu0
  %2770 = vmatprep.mubr.bf16.mxu0 %v1759
  %2771 = vmatmul.mubr.bf16.gmra.mrb[0].mxu0 %v1758
  %v2772 = vpop.f32.mrb[0].mxu0
  %v2773 = vadd.f32 0.0, %v2772
  %v2774 = vpop.f32.mrb[0].mxu0
  %v2775 = vpop.f32.mrb[0].mxu0
  %v2776 = vadd.f32 0.0, %v2775
  %v2777 = vpop.f32.mrb[0].mxu0
  %2778 = vmatprep.mubr.bf16.mxu0 %v1768
  %2779 = vmatmul.mubr.bf16.gmra.mrb[0].mxu0 %v1767
  %v2780 = vpop.f32.mrb[0].mxu0
  %v2781 = vadd.f32 0.0, %v2780
  %v2782 = vpop.f32.mrb[0].mxu0
  %v2783 = vpop.f32.mrb[0].mxu0
  %v2784 = vadd.f32 0.0, %v2783
  %v2785 = vpop.f32.mrb[0].mxu0
  %2786 = vmatprep.mubr.bf16.mxu0 %v1777
  %2787 = vmatmul.mubr.bf16.gmra.mrb[0].mxu0 %v1776
  %v2788 = vpop.f32.mrb[0].mxu0
  %v2789 = vadd.f32 0.0, %v2788
  %v2790 = vpop.f32.mrb[0].mxu0
  %v2791 = vpop.f32.mrb[0].mxu0
  %v2792 = vadd.f32 0.0, %v2791
  %v2793 = vpop.f32.mrb[0].mxu0
  %2794 = vmatprep.mubr.bf16.mxu0 %v1786
  %2795 = vmatmul.mubr.bf16.gmra.mrb[0].mxu0 %v1785
  %v2796 = vpop.f32.mrb[0].mxu0
  %v2797 = vadd.f32 0.0, %v2796
  %v2798 = vpop.f32.mrb[0].mxu0
  %v2799 = vpop.f32.mrb[0].mxu0
  %v2800 = vadd.f32 0.0, %v2799
  %v2801 = vpop.f32.mrb[0].mxu0
  %2802 = vdwg.mxu0
  %2803 = vmatprep.subr.bf16.mxu0 0
  %2804 = vmatpush1.bf16.msra.mxu0 %v2386
  %2805 = vmatprep.subr.bf16.mxu0 0
  %2806 = vmatpush1.bf16.msra.mxu0 %v2387
  %2807 = vmatprep.subr.bf16.mxu0 0
  %2808 = vmatpush1.bf16.msra.mxu0 %v2388
  %2809 = vmatprep.subr.bf16.mxu0 0
  %2810 = vmatpush1.bf16.msra.mxu0 %v2389
  %2811 = vmatprep.subr.bf16.mxu0 0
  %2812 = vmatpush1.bf16.msra.mxu0 %v2390
  %2813 = vmatprep.subr.bf16.mxu0 0
  %2814 = vmatpush1.bf16.msra.mxu0 %v2391
  %2815 = vmatprep.subr.bf16.mxu0 0
  %2816 = vmatpush1.bf16.msra.mxu0 %v2392
  %2817 = vmatprep.subr.bf16.mxu0 0
  %2818 = vmatpush1.bf16.msra.mxu0 %v2393
  %2819 = vmatprep.subr.bf16.mxu0 0
  %2820 = vmatpush1.bf16.msra.mxu0 %v2394
  %2821 = vmatprep.subr.bf16.mxu0 0
  %2822 = vmatpush1.bf16.msra.mxu0 %v2395
  %2823 = vmatprep.subr.bf16.mxu0 0
  %2824 = vmatpush1.bf16.msra.mxu0 %v2396
  %2825 = vmatprep.subr.bf16.mxu0 0
  %2826 = vmatpush1.bf16.msra.mxu0 %v2397
  %2827 = vmatprep.subr.bf16.mxu0 0
  %2828 = vmatpush1.bf16.msra.mxu0 %v2398
  %2829 = vmatprep.subr.bf16.mxu0 0
  %2830 = vmatpush1.bf16.msra.mxu0 %v2399
  %2831 = vmatprep.subr.bf16.mxu0 0
  %2832 = vmatpush1.bf16.msra.mxu0 %v2400
  %2833 = vmatprep.subr.bf16.mxu0 0
  %2834 = vmatpush1.bf16.msra.mxu0 %v2401
  %2835 = vmatprep.mubr.bf16.mxu0 %v1509
  %2836 = vmatmul.mubr.bf16.gmra.mrb[0].mxu0 %v1508
  %v2837 = vpop.f32.mrb[0].mxu0
  %v2838 = vadd.f32 %v2549, %v2837
  %v2839 = vpop.f32.mrb[0].mxu0
  %v2840 = vpop.f32.mrb[0].mxu0
  %v2841 = vadd.f32 %v2552, %v2840
  %v2842 = vpop.f32.mrb[0].mxu0
  %2843 = vmatprep.mubr.bf16.mxu0 %v1518
  %2844 = vmatmul.mubr.bf16.gmra.mrb[0].mxu0 %v1517
  %v2845 = vpop.f32.mrb[0].mxu0
  %v2846 = vadd.f32 %v2557, %v2845
  %v2847 = vpop.f32.mrb[0].mxu0
  %v2848 = vpop.f32.mrb[0].mxu0
  %v2849 = vadd.f32 %v2560, %v2848
  %v2850 = vpop.f32.mrb[0].mxu0
  %2851 = vmatprep.mubr.bf16.mxu0 %v1527
  %2852 = vmatmul.mubr.bf16.gmra.mrb[0].mxu0 %v1526
  %v2853 = vpop.f32.mrb[0].mxu0
  %v2854 = vadd.f32 %v2565, %v2853
  %v2855 = vpop.f32.mrb[0].mxu0
  %v2856 = vpop.f32.mrb[0].mxu0
  %v2857 = vadd.f32 %v2568, %v2856
  %v2858 = vpop.f32.mrb[0].mxu0
  %2859 = vmatprep.mubr.bf16.mxu0 %v1536
  %2860 = vmatmul.mubr.bf16.gmra.mrb[0].mxu0 %v1535
  %v2861 = vpop.f32.mrb[0].mxu0
  %v2862 = vadd.f32 %v2573, %v2861
  %v2863 = vpop.f32.mrb[0].mxu0
  %v2864 = vpop.f32.mrb[0].mxu0
  %v2865 = vadd.f32 %v2576, %v2864
  %v2866 = vpop.f32.mrb[0].mxu0
  %2867 = vmatprep.mubr.bf16.mxu0 %v1545
  %2868 = vmatmul.mubr.bf16.gmra.mrb[0].mxu0 %v1544
  %v2869 = vpop.f32.mrb[0].mxu0
  %v2870 = vadd.f32 %v2581, %v2869
  %v2871 = vpop.f32.mrb[0].mxu0
  %v2872 = vpop.f32.mrb[0].mxu0
  %v2873 = vadd.f32 %v2584, %v2872
  %v2874 = vpop.f32.mrb[0].mxu0
  %2875 = vmatprep.mubr.bf16.mxu0 %v1554
  %2876 = vmatmul.mubr.bf16.gmra.mrb[0].mxu0 %v1553
  %v2877 = vpop.f32.mrb[0].mxu0
  %v2878 = vadd.f32 %v2589, %v2877
  %v2879 = vpop.f32.mrb[0].mxu0
  %v2880 = vpop.f32.mrb[0].mxu0
  %v2881 = vadd.f32 %v2592, %v2880
  %v2882 = vpop.f32.mrb[0].mxu0
  %2883 = vmatprep.mubr.bf16.mxu0 %v1563
  %2884 = vmatmul.mubr.bf16.gmra.mrb[0].mxu0 %v1562
  %v2885 = vpop.f32.mrb[0].mxu0
  %v2886 = vadd.f32 %v2597, %v2885
  %v2887 = vpop.f32.mrb[0].mxu0
  %v2888 = vpop.f32.mrb[0].mxu0
  %v2889 = vadd.f32 %v2600, %v2888
  %v2890 = vpop.f32.mrb[0].mxu0
  %2891 = vmatprep.mubr.bf16.mxu0 %v1572
  %2892 = vmatmul.mubr.bf16.gmra.mrb[0].mxu0 %v1571
  %v2893 = vpop.f32.mrb[0].mxu0
  %v2894 = vadd.f32 %v2605, %v2893
  %v2895 = vpop.f32.mrb[0].mxu0
  %v2896 = vpop.f32.mrb[0].mxu0
  %v2897 = vadd.f32 %v2608, %v2896
  %v2898 = vpop.f32.mrb[0].mxu0
  %2899 = vmatprep.mubr.bf16.mxu0 %v1581
  %2900 = vmatmul.mubr.bf16.gmra.mrb[0].mxu0 %v1580
  %v2901 = vpop.f32.mrb[0].mxu0
  %v2902 = vadd.f32 %v2613, %v2901
  %v2903 = vpop.f32.mrb[0].mxu0
  %v2904 = vpop.f32.mrb[0].mxu0
  %v2905 = vadd.f32 %v2616, %v2904
  %v2906 = vpop.f32.mrb[0].mxu0
  %2907 = vmatprep.mubr.bf16.mxu0 %v1590
  %2908 = vmatmul.mubr.bf16.gmra.mrb[0].mxu0 %v1589
  %v2909 = vpop.f32.mrb[0].mxu0
  %v2910 = vadd.f32 %v2621, %v2909
  %v2911 = vpop.f32.mrb[0].mxu0
  %v2912 = vpop.f32.mrb[0].mxu0
  %v2913 = vadd.f32 %v2624, %v2912
  %v2914 = vpop.f32.mrb[0].mxu0
  %2915 = vmatprep.mubr.bf16.mxu0 %v1599
  %2916 = vmatmul.mubr.bf16.gmra.mrb[0].mxu0 %v1598
  %v2917 = vpop.f32.mrb[0].mxu0
  %v2918 = vadd.f32 %v2629, %v2917
  %v2919 = vpop.f32.mrb[0].mxu0
  %v2920 = vpop.f32.mrb[0].mxu0
  %v2921 = vadd.f32 %v2632, %v2920
  %v2922 = vpop.f32.mrb[0].mxu0
  %2923 = vmatprep.mubr.bf16.mxu0 %v1608
  %2924 = vmatmul.mubr.bf16.gmra.mrb[0].mxu0 %v1607
  %v2925 = vpop.f32.mrb[0].mxu0
  %v2926 = vadd.f32 %v2637, %v2925
  %v2927 = vpop.f32.mrb[0].mxu0
  %v2928 = vpop.f32.mrb[0].mxu0
  %v2929 = vadd.f32 %v2640, %v2928
  %v2930 = vpop.f32.mrb[0].mxu0
  %2931 = vmatprep.mubr.bf16.mxu0 %v1617
  %2932 = vmatmul.mubr.bf16.gmra.mrb[0].mxu0 %v1616
  %v2933 = vpop.f32.mrb[0].mxu0
  %v2934 = vadd.f32 %v2645, %v2933
  %v2935 = vpop.f32.mrb[0].mxu0
  %v2936 = vpop.f32.mrb[0].mxu0
  %v2937 = vadd.f32 %v2648, %v2936
  %v2938 = vpop.f32.mrb[0].mxu0
  %2939 = vmatprep.mubr.bf16.mxu0 %v1626
  %2940 = vmatmul.mubr.bf16.gmra.mrb[0].mxu0 %v1625
  %v2941 = vpop.f32.mrb[0].mxu0
  %v2942 = vadd.f32 %v2653, %v2941
  %v2943 = vpop.f32.mrb[0].mxu0
  %v2944 = vpop.f32.mrb[0].mxu0
  %v2945 = vadd.f32 %v2656, %v2944
  %v2946 = vpop.f32.mrb[0].mxu0
  %2947 = vmatprep.mubr.bf16.mxu0 %v1635
  %2948 = vmatmul.mubr.bf16.gmra.mrb[0].mxu0 %v1634
  %v2949 = vpop.f32.mrb[0].mxu0
  %v2950 = vadd.f32 %v2661, %v2949
  %v2951 = vpop.f32.mrb[0].mxu0
  %v2952 = vpop.f32.mrb[0].mxu0
  %v2953 = vadd.f32 %v2664, %v2952
  %v2954 = vpop.f32.mrb[0].mxu0
  %2955 = vmatprep.mubr.bf16.mxu0 %v1644
  %2956 = vmatmul.mubr.bf16.gmra.mrb[0].mxu0 %v1643
  %v2957 = vpop.f32.mrb[0].mxu0
  %v2958 = vadd.f32 %v2669, %v2957
  %v2959 = vpop.f32.mrb[0].mxu0
  %v2960 = vpop.f32.mrb[0].mxu0
  %v2961 = vadd.f32 %v2672, %v2960
  %v2962 = vpop.f32.mrb[0].mxu0
  %2963 = vmatprep.mubr.bf16.mxu0 %v1653
  %2964 = vmatmul.mubr.bf16.gmra.mrb[0].mxu0 %v1652
  %v2965 = vpop.f32.mrb[0].mxu0
  %v2966 = vadd.f32 %v2677, %v2965
  %v2967 = vpop.f32.mrb[0].mxu0
  %v2968 = vpop.f32.mrb[0].mxu0
  %v2969 = vadd.f32 %v2680, %v2968
  %v2970 = vpop.f32.mrb[0].mxu0
  %2971 = vmatprep.mubr.bf16.mxu0 %v1662
  %2972 = vmatmul.mubr.bf16.gmra.mrb[0].mxu0 %v1661
  %v2973 = vpop.f32.mrb[0].mxu0
  %v2974 = vadd.f32 %v2685, %v2973
  %v2975 = vpop.f32.mrb[0].mxu0
  %v2976 = vpop.f32.mrb[0].mxu0
  %v2977 = vadd.f32 %v2688, %v2976
  %v2978 = vpop.f32.mrb[0].mxu0
  %2979 = vmatprep.mubr.bf16.mxu0 %v1671
  %2980 = vmatmul.mubr.bf16.gmra.mrb[0].mxu0 %v1670
  %v2981 = vpop.f32.mrb[0].mxu0
  %v2982 = vadd.f32 %v2693, %v2981
  %v2983 = vpop.f32.mrb[0].mxu0
  %v2984 = vpop.f32.mrb[0].mxu0
  %v2985 = vadd.f32 %v2696, %v2984
  %v2986 = vpop.f32.mrb[0].mxu0
  %2987 = vmatprep.mubr.bf16.mxu0 %v1680
  %2988 = vmatmul.mubr.bf16.gmra.mrb[0].mxu0 %v1679
  %v2989 = vpop.f32.mrb[0].mxu0
  %v2990 = vadd.f32 %v2701, %v2989
  %v2991 = vpop.f32.mrb[0].mxu0
  %v2992 = vpop.f32.mrb[0].mxu0
  %v2993 = vadd.f32 %v2704, %v2992
  %v2994 = vpop.f32.mrb[0].mxu0
  %2995 = vmatprep.mubr.bf16.mxu0 %v1689
  %2996 = vmatmul.mubr.bf16.gmra.mrb[0].mxu0 %v1688
  %v2997 = vpop.f32.mrb[0].mxu0
  %v2998 = vadd.f32 %v2709, %v2997
  %v2999 = vpop.f32.mrb[0].mxu0
  %v3000 = vpop.f32.mrb[0].mxu0
  %v3001 = vadd.f32 %v2712, %v3000
  %v3002 = vpop.f32.mrb[0].mxu0
  %3003 = vmatprep.mubr.bf16.mxu0 %v1698
  %3004 = vmatmul.mubr.bf16.gmra.mrb[0].mxu0 %v1697
  %v3005 = vpop.f32.mrb[0].mxu0
  %v3006 = vadd.f32 %v2717, %v3005
  %v3007 = vpop.f32.mrb[0].mxu0
  %v3008 = vpop.f32.mrb[0].mxu0
  %v3009 = vadd.f32 %v2720, %v3008
  %v3010 = vpop.f32.mrb[0].mxu0
  %3011 = vmatprep.mubr.bf16.mxu0 %v1707
  %3012 = vmatmul.mubr.bf16.gmra.mrb[0].mxu0 %v1706
  %v3013 = vpop.f32.mrb[0].mxu0
  %v3014 = vadd.f32 %v2725, %v3013
  %v3015 = vpop.f32.mrb[0].mxu0
  %v3016 = vpop.f32.mrb[0].mxu0
  %v3017 = vadd.f32 %v2728, %v3016
  %v3018 = vpop.f32.mrb[0].mxu0
  %3019 = vmatprep.mubr.bf16.mxu0 %v1716
  %3020 = vmatmul.mubr.bf16.gmra.mrb[0].mxu0 %v1715
  %v3021 = vpop.f32.mrb[0].mxu0
  %v3022 = vadd.f32 %v2733, %v3021
  %v3023 = vpop.f32.mrb[0].mxu0
  %v3024 = vpop.f32.mrb[0].mxu0
  %v3025 = vadd.f32 %v2736, %v3024
  %v3026 = vpop.f32.mrb[0].mxu0
  %3027 = vmatprep.mubr.bf16.mxu0 %v1725
  %3028 = vmatmul.mubr.bf16.gmra.mrb[0].mxu0 %v1724
  %v3029 = vpop.f32.mrb[0].mxu0
  %v3030 = vadd.f32 %v2741, %v3029
  %v3031 = vpop.f32.mrb[0].mxu0
  %v3032 = vpop.f32.mrb[0].mxu0
  %v3033 = vadd.f32 %v2744, %v3032
  %v3034 = vpop.f32.mrb[0].mxu0
  %3035 = vmatprep.mubr.bf16.mxu0 %v1734
  %3036 = vmatmul.mubr.bf16.gmra.mrb[0].mxu0 %v1733
  %v3037 = vpop.f32.mrb[0].mxu0
  %v3038 = vadd.f32 %v2749, %v3037
  %v3039 = vpop.f32.mrb[0].mxu0
  %v3040 = vpop.f32.mrb[0].mxu0
  %v3041 = vadd.f32 %v2752, %v3040
  %v3042 = vpop.f32.mrb[0].mxu0
  %3043 = vmatprep.mubr.bf16.mxu0 %v1743
  %3044 = vmatmul.mubr.bf16.gmra.mrb[0].mxu0 %v1742
  %v3045 = vpop.f32.mrb[0].mxu0
  %v3046 = vadd.f32 %v2757, %v3045
  %v3047 = vpop.f32.mrb[0].mxu0
  %v3048 = vpop.f32.mrb[0].mxu0
  %v3049 = vadd.f32 %v2760, %v3048
  %v3050 = vpop.f32.mrb[0].mxu0
  %3051 = vmatprep.mubr.bf16.mxu0 %v1752
  %3052 = vmatmul.mubr.bf16.gmra.mrb[0].mxu0 %v1751
  %v3053 = vpop.f32.mrb[0].mxu0
  %v3054 = vadd.f32 %v2765, %v3053
  %v3055 = vpop.f32.mrb[0].mxu0
  %v3056 = vpop.f32.mrb[0].mxu0
  %v3057 = vadd.f32 %v2768, %v3056
  %v3058 = vpop.f32.mrb[0].mxu0
  %3059 = vmatprep.mubr.bf16.mxu0 %v1761
  %3060 = vmatmul.mubr.bf16.gmra.mrb[0].mxu0 %v1760
  %v3061 = vpop.f32.mrb[0].mxu0
  %v3062 = vadd.f32 %v2773, %v3061
  %v3063 = vpop.f32.mrb[0].mxu0
  %v3064 = vpop.f32.mrb[0].mxu0
  %v3065 = vadd.f32 %v2776, %v3064
  %v3066 = vpop.f32.mrb[0].mxu0
  %3067 = vmatprep.mubr.bf16.mxu0 %v1770
  %3068 = vmatmul.mubr.bf16.gmra.mrb[0].mxu0 %v1769
  %v3069 = vpop.f32.mrb[0].mxu0
  %v3070 = vadd.f32 %v2781, %v3069
  %v3071 = vpop.f32.mrb[0].mxu0
  %v3072 = vpop.f32.mrb[0].mxu0
  %v3073 = vadd.f32 %v2784, %v3072
  %v3074 = vpop.f32.mrb[0].mxu0
  %3075 = vmatprep.mubr.bf16.mxu0 %v1779
  %3076 = vmatmul.mubr.bf16.gmra.mrb[0].mxu0 %v1778
  %v3077 = vpop.f32.mrb[0].mxu0
  %v3078 = vadd.f32 %v2789, %v3077
  %v3079 = vpop.f32.mrb[0].mxu0
  %v3080 = vpop.f32.mrb[0].mxu0
  %v3081 = vadd.f32 %v2792, %v3080
  %v3082 = vpop.f32.mrb[0].mxu0
  %3083 = vmatprep.mubr.bf16.mxu0 %v1788
  %3084 = vmatmul.mubr.bf16.gmra.mrb[0].mxu0 %v1787
  %v3085 = vpop.f32.mrb[0].mxu0
  %v3086 = vadd.f32 %v2797, %v3085
  %v3087 = vpop.f32.mrb[0].mxu0
  %v3088 = vpop.f32.mrb[0].mxu0
  %v3089 = vadd.f32 %v2800, %v3088
  %v3090 = vpop.f32.mrb[0].mxu0
  %3091 = vdwg.mxu0
  %3092 = vmatprep.subr.bf16.mxu0 0
  %3093 = vmatpush1.bf16.msra.mxu0 %v2402
  %3094 = vmatprep.subr.bf16.mxu0 0
  %3095 = vmatpush1.bf16.msra.mxu0 %v2403
  %3096 = vmatprep.subr.bf16.mxu0 0
  %3097 = vmatpush1.bf16.msra.mxu0 %v2404
  %3098 = vmatprep.subr.bf16.mxu0 0
  %3099 = vmatpush1.bf16.msra.mxu0 %v2405
  %3100 = vmatprep.subr.bf16.mxu0 0
  %3101 = vmatpush1.bf16.msra.mxu0 %v2406
  %3102 = vmatprep.subr.bf16.mxu0 0
  %3103 = vmatpush1.bf16.msra.mxu0 %v2407
  %3104 = vmatprep.subr.bf16.mxu0 0
  %3105 = vmatpush1.bf16.msra.mxu0 %v2408
  %3106 = vmatprep.subr.bf16.mxu0 0
  %3107 = vmatpush1.bf16.msra.mxu0 %v2409
  %3108 = vmatprep.subr.bf16.mxu0 0
  %3109 = vmatpush1.bf16.msra.mxu0 %v2410
  %3110 = vmatprep.subr.bf16.mxu0 0
  %3111 = vmatpush1.bf16.msra.mxu0 %v2411
  %3112 = vmatprep.subr.bf16.mxu0 0
  %3113 = vmatpush1.bf16.msra.mxu0 %v2412
  %3114 = vmatprep.subr.bf16.mxu0 0
  %3115 = vmatpush1.bf16.msra.mxu0 %v2413
  %3116 = vmatprep.subr.bf16.mxu0 0
  %3117 = vmatpush1.bf16.msra.mxu0 %v2414
  %3118 = vmatprep.subr.bf16.mxu0 0
  %3119 = vmatpush1.bf16.msra.mxu0 %v2415
  %3120 = vmatprep.subr.bf16.mxu0 0
  %3121 = vmatpush1.bf16.msra.mxu0 %v2416
  %3122 = vmatprep.subr.bf16.mxu0 0
  %3123 = vmatpush1.bf16.msra.mxu0 %v2417
  %3124 = vmatprep.mubr.bf16.mxu0 %v1511
  %3125 = vmatmul.mubr.bf16.gmra.mrb[0].mxu0 %v1510
  %v3126 = vpop.f32.mrb[0].mxu0
  %v3127 = vadd.f32 %v2838, %v3126
  %v3128 = vpop.f32.mrb[0].mxu0
  %v3129 = vpop.f32.mrb[0].mxu0
  %v3130 = vadd.f32 %v2841, %v3129
  %v3131 = vpop.f32.mrb[0].mxu0
  %3132 = vmatprep.mubr.bf16.mxu0 %v1520
  %3133 = vmatmul.mubr.bf16.gmra.mrb[0].mxu0 %v1519
  %v3134 = vpop.f32.mrb[0].mxu0
  %v3135 = vadd.f32 %v2846, %v3134
  %v3136 = vpop.f32.mrb[0].mxu0
  %v3137 = vpop.f32.mrb[0].mxu0
  %v3138 = vadd.f32 %v2849, %v3137
  %v3139 = vpop.f32.mrb[0].mxu0
  %3140 = vmatprep.mubr.bf16.mxu0 %v1529
  %3141 = vmatmul.mubr.bf16.gmra.mrb[0].mxu0 %v1528
  %v3142 = vpop.f32.mrb[0].mxu0
  %v3143 = vadd.f32 %v2854, %v3142
  %v3144 = vpop.f32.mrb[0].mxu0
  %v3145 = vpop.f32.mrb[0].mxu0
  %v3146 = vadd.f32 %v2857, %v3145
  %v3147 = vpop.f32.mrb[0].mxu0
  %3148 = vmatprep.mubr.bf16.mxu0 %v1538
  %3149 = vmatmul.mubr.bf16.gmra.mrb[0].mxu0 %v1537
  %v3150 = vpop.f32.mrb[0].mxu0
  %v3151 = vadd.f32 %v2862, %v3150
  %v3152 = vpop.f32.mrb[0].mxu0
  %v3153 = vpop.f32.mrb[0].mxu0
  %v3154 = vadd.f32 %v2865, %v3153
  %v3155 = vpop.f32.mrb[0].mxu0
  %3156 = vmatprep.mubr.bf16.mxu0 %v1547
  %3157 = vmatmul.mubr.bf16.gmra.mrb[0].mxu0 %v1546
  %v3158 = vpop.f32.mrb[0].mxu0
  %v3159 = vadd.f32 %v2870, %v3158
  %v3160 = vpop.f32.mrb[0].mxu0
  %v3161 = vpop.f32.mrb[0].mxu0
  %v3162 = vadd.f32 %v2873, %v3161
  %v3163 = vpop.f32.mrb[0].mxu0
  %3164 = vmatprep.mubr.bf16.mxu0 %v1556
  %3165 = vmatmul.mubr.bf16.gmra.mrb[0].mxu0 %v1555
  %v3166 = vpop.f32.mrb[0].mxu0
  %v3167 = vadd.f32 %v2878, %v3166
  %v3168 = vpop.f32.mrb[0].mxu0
  %v3169 = vpop.f32.mrb[0].mxu0
  %v3170 = vadd.f32 %v2881, %v3169
  %v3171 = vpop.f32.mrb[0].mxu0
  %3172 = vmatprep.mubr.bf16.mxu0 %v1565
  %3173 = vmatmul.mubr.bf16.gmra.mrb[0].mxu0 %v1564
  %v3174 = vpop.f32.mrb[0].mxu0
  %v3175 = vadd.f32 %v2886, %v3174
  %v3176 = vpop.f32.mrb[0].mxu0
  %v3177 = vpop.f32.mrb[0].mxu0
  %v3178 = vadd.f32 %v2889, %v3177
  %v3179 = vpop.f32.mrb[0].mxu0
  %3180 = vmatprep.mubr.bf16.mxu0 %v1574
  %3181 = vmatmul.mubr.bf16.gmra.mrb[0].mxu0 %v1573
  %v3182 = vpop.f32.mrb[0].mxu0
  %v3183 = vadd.f32 %v2894, %v3182
  %v3184 = vpop.f32.mrb[0].mxu0
  %v3185 = vpop.f32.mrb[0].mxu0
  %v3186 = vadd.f32 %v2897, %v3185
  %v3187 = vpop.f32.mrb[0].mxu0
  %3188 = vmatprep.mubr.bf16.mxu0 %v1583
  %3189 = vmatmul.mubr.bf16.gmra.mrb[0].mxu0 %v1582
  %v3190 = vpop.f32.mrb[0].mxu0
  %v3191 = vadd.f32 %v2902, %v3190
  %v3192 = vpop.f32.mrb[0].mxu0
  %v3193 = vpop.f32.mrb[0].mxu0
  %v3194 = vadd.f32 %v2905, %v3193
  %v3195 = vpop.f32.mrb[0].mxu0
  %3196 = vmatprep.mubr.bf16.mxu0 %v1592
  %3197 = vmatmul.mubr.bf16.gmra.mrb[0].mxu0 %v1591
  %v3198 = vpop.f32.mrb[0].mxu0
  %v3199 = vadd.f32 %v2910, %v3198
  %v3200 = vpop.f32.mrb[0].mxu0
  %v3201 = vpop.f32.mrb[0].mxu0
  %v3202 = vadd.f32 %v2913, %v3201
  %v3203 = vpop.f32.mrb[0].mxu0
  %3204 = vmatprep.mubr.bf16.mxu0 %v1601
  %3205 = vmatmul.mubr.bf16.gmra.mrb[0].mxu0 %v1600
  %v3206 = vpop.f32.mrb[0].mxu0
  %v3207 = vadd.f32 %v2918, %v3206
  %v3208 = vpop.f32.mrb[0].mxu0
  %v3209 = vpop.f32.mrb[0].mxu0
  %v3210 = vadd.f32 %v2921, %v3209
  %v3211 = vpop.f32.mrb[0].mxu0
  %3212 = vmatprep.mubr.bf16.mxu0 %v1610
  %3213 = vmatmul.mubr.bf16.gmra.mrb[0].mxu0 %v1609
  %v3214 = vpop.f32.mrb[0].mxu0
  %v3215 = vadd.f32 %v2926, %v3214
  %v3216 = vpop.f32.mrb[0].mxu0
  %v3217 = vpop.f32.mrb[0].mxu0
  %v3218 = vadd.f32 %v2929, %v3217
  %v3219 = vpop.f32.mrb[0].mxu0
  %3220 = vmatprep.mubr.bf16.mxu0 %v1619
  %3221 = vmatmul.mubr.bf16.gmra.mrb[0].mxu0 %v1618
  %v3222 = vpop.f32.mrb[0].mxu0
  %v3223 = vadd.f32 %v2934, %v3222
  %v3224 = vpop.f32.mrb[0].mxu0
  %v3225 = vpop.f32.mrb[0].mxu0
  %v3226 = vadd.f32 %v2937, %v3225
  %v3227 = vpop.f32.mrb[0].mxu0
  %3228 = vmatprep.mubr.bf16.mxu0 %v1628
  %3229 = vmatmul.mubr.bf16.gmra.mrb[0].mxu0 %v1627
  %v3230 = vpop.f32.mrb[0].mxu0
  %v3231 = vadd.f32 %v2942, %v3230
  %v3232 = vpop.f32.mrb[0].mxu0
  %v3233 = vpop.f32.mrb[0].mxu0
  %v3234 = vadd.f32 %v2945, %v3233
  %v3235 = vpop.f32.mrb[0].mxu0
  %3236 = vmatprep.mubr.bf16.mxu0 %v1637
  %3237 = vmatmul.mubr.bf16.gmra.mrb[0].mxu0 %v1636
  %v3238 = vpop.f32.mrb[0].mxu0
  %v3239 = vadd.f32 %v2950, %v3238
  %v3240 = vpop.f32.mrb[0].mxu0
  %v3241 = vpop.f32.mrb[0].mxu0
  %v3242 = vadd.f32 %v2953, %v3241
  %v3243 = vpop.f32.mrb[0].mxu0
  %3244 = vmatprep.mubr.bf16.mxu0 %v1646
  %3245 = vmatmul.mubr.bf16.gmra.mrb[0].mxu0 %v1645
  %v3246 = vpop.f32.mrb[0].mxu0
  %v3247 = vadd.f32 %v2958, %v3246
  %v3248 = vpop.f32.mrb[0].mxu0
  %v3249 = vpop.f32.mrb[0].mxu0
  %v3250 = vadd.f32 %v2961, %v3249
  %v3251 = vpop.f32.mrb[0].mxu0
  %3252 = vmatprep.mubr.bf16.mxu0 %v1655
  %3253 = vmatmul.mubr.bf16.gmra.mrb[0].mxu0 %v1654
  %v3254 = vpop.f32.mrb[0].mxu0
  %v3255 = vadd.f32 %v2966, %v3254
  %v3256 = vpop.f32.mrb[0].mxu0
  %v3257 = vpop.f32.mrb[0].mxu0
  %v3258 = vadd.f32 %v2969, %v3257
  %v3259 = vpop.f32.mrb[0].mxu0
  %3260 = vmatprep.mubr.bf16.mxu0 %v1664
  %3261 = vmatmul.mubr.bf16.gmra.mrb[0].mxu0 %v1663
  %v3262 = vpop.f32.mrb[0].mxu0
  %v3263 = vadd.f32 %v2974, %v3262
  %v3264 = vpop.f32.mrb[0].mxu0
  %v3265 = vpop.f32.mrb[0].mxu0
  %v3266 = vadd.f32 %v2977, %v3265
  %v3267 = vpop.f32.mrb[0].mxu0
  %3268 = vmatprep.mubr.bf16.mxu0 %v1673
  %3269 = vmatmul.mubr.bf16.gmra.mrb[0].mxu0 %v1672
  %v3270 = vpop.f32.mrb[0].mxu0
  %v3271 = vadd.f32 %v2982, %v3270
  %v3272 = vpop.f32.mrb[0].mxu0
  %v3273 = vpop.f32.mrb[0].mxu0
  %v3274 = vadd.f32 %v2985, %v3273
  %v3275 = vpop.f32.mrb[0].mxu0
  %3276 = vmatprep.mubr.bf16.mxu0 %v1682
  %3277 = vmatmul.mubr.bf16.gmra.mrb[0].mxu0 %v1681
  %v3278 = vpop.f32.mrb[0].mxu0
  %v3279 = vadd.f32 %v2990, %v3278
  %v3280 = vpop.f32.mrb[0].mxu0
  %v3281 = vpop.f32.mrb[0].mxu0
  %v3282 = vadd.f32 %v2993, %v3281
  %v3283 = vpop.f32.mrb[0].mxu0
  %3284 = vmatprep.mubr.bf16.mxu0 %v1691
  %3285 = vmatmul.mubr.bf16.gmra.mrb[0].mxu0 %v1690
  %v3286 = vpop.f32.mrb[0].mxu0
  %v3287 = vadd.f32 %v2998, %v3286
  %v3288 = vpop.f32.mrb[0].mxu0
  %v3289 = vpop.f32.mrb[0].mxu0
  %v3290 = vadd.f32 %v3001, %v3289
  %v3291 = vpop.f32.mrb[0].mxu0
  %3292 = vmatprep.mubr.bf16.mxu0 %v1700
  %3293 = vmatmul.mubr.bf16.gmra.mrb[0].mxu0 %v1699
  %v3294 = vpop.f32.mrb[0].mxu0
  %v3295 = vadd.f32 %v3006, %v3294
  %v3296 = vpop.f32.mrb[0].mxu0
  %v3297 = vpop.f32.mrb[0].mxu0
  %v3298 = vadd.f32 %v3009, %v3297
  %v3299 = vpop.f32.mrb[0].mxu0
  %3300 = vmatprep.mubr.bf16.mxu0 %v1709
  %3301 = vmatmul.mubr.bf16.gmra.mrb[0].mxu0 %v1708
  %v3302 = vpop.f32.mrb[0].mxu0
  %v3303 = vadd.f32 %v3014, %v3302
  %v3304 = vpop.f32.mrb[0].mxu0
  %v3305 = vpop.f32.mrb[0].mxu0
  %v3306 = vadd.f32 %v3017, %v3305
  %v3307 = vpop.f32.mrb[0].mxu0
  %3308 = vmatprep.mubr.bf16.mxu0 %v1718
  %3309 = vmatmul.mubr.bf16.gmra.mrb[0].mxu0 %v1717
  %v3310 = vpop.f32.mrb[0].mxu0
  %v3311 = vadd.f32 %v3022, %v3310
  %v3312 = vpop.f32.mrb[0].mxu0
  %v3313 = vpop.f32.mrb[0].mxu0
  %v3314 = vadd.f32 %v3025, %v3313
  %v3315 = vpop.f32.mrb[0].mxu0
  %3316 = vmatprep.mubr.bf16.mxu0 %v1727
  %3317 = vmatmul.mubr.bf16.gmra.mrb[0].mxu0 %v1726
  %v3318 = vpop.f32.mrb[0].mxu0
  %v3319 = vadd.f32 %v3030, %v3318
  %v3320 = vpop.f32.mrb[0].mxu0
  %v3321 = vpop.f32.mrb[0].mxu0
  %v3322 = vadd.f32 %v3033, %v3321
  %v3323 = vpop.f32.mrb[0].mxu0
  %3324 = vmatprep.mubr.bf16.mxu0 %v1736
  %3325 = vmatmul.mubr.bf16.gmra.mrb[0].mxu0 %v1735
  %v3326 = vpop.f32.mrb[0].mxu0
  %v3327 = vadd.f32 %v3038, %v3326
  %v3328 = vpop.f32.mrb[0].mxu0
  %v3329 = vpop.f32.mrb[0].mxu0
  %v3330 = vadd.f32 %v3041, %v3329
  %v3331 = vpop.f32.mrb[0].mxu0
  %3332 = vmatprep.mubr.bf16.mxu0 %v1745
  %3333 = vmatmul.mubr.bf16.gmra.mrb[0].mxu0 %v1744
  %v3334 = vpop.f32.mrb[0].mxu0
  %v3335 = vadd.f32 %v3046, %v3334
  %v3336 = vpop.f32.mrb[0].mxu0
  %v3337 = vpop.f32.mrb[0].mxu0
  %v3338 = vadd.f32 %v3049, %v3337
  %v3339 = vpop.f32.mrb[0].mxu0
  %3340 = vmatprep.mubr.bf16.mxu0 %v1754
  %3341 = vmatmul.mubr.bf16.gmra.mrb[0].mxu0 %v1753
  %v3342 = vpop.f32.mrb[0].mxu0
  %v3343 = vadd.f32 %v3054, %v3342
  %v3344 = vpop.f32.mrb[0].mxu0
  %v3345 = vpop.f32.mrb[0].mxu0
  %v3346 = vadd.f32 %v3057, %v3345
  %v3347 = vpop.f32.mrb[0].mxu0
  %3348 = vmatprep.mubr.bf16.mxu0 %v1763
  %3349 = vmatmul.mubr.bf16.gmra.mrb[0].mxu0 %v1762
  %v3350 = vpop.f32.mrb[0].mxu0
  %v3351 = vadd.f32 %v3062, %v3350
  %v3352 = vpop.f32.mrb[0].mxu0
  %v3353 = vpop.f32.mrb[0].mxu0
  %v3354 = vadd.f32 %v3065, %v3353
  %v3355 = vpop.f32.mrb[0].mxu0
  %3356 = vmatprep.mubr.bf16.mxu0 %v1772
  %3357 = vmatmul.mubr.bf16.gmra.mrb[0].mxu0 %v1771
  %v3358 = vpop.f32.mrb[0].mxu0
  %v3359 = vadd.f32 %v3070, %v3358
  %v3360 = vpop.f32.mrb[0].mxu0
  %v3361 = vpop.f32.mrb[0].mxu0
  %v3362 = vadd.f32 %v3073, %v3361
  %v3363 = vpop.f32.mrb[0].mxu0
  %3364 = vmatprep.mubr.bf16.mxu0 %v1781
  %3365 = vmatmul.mubr.bf16.gmra.mrb[0].mxu0 %v1780
  %v3366 = vpop.f32.mrb[0].mxu0
  %v3367 = vadd.f32 %v3078, %v3366
  %v3368 = vpop.f32.mrb[0].mxu0
  %v3369 = vpop.f32.mrb[0].mxu0
  %v3370 = vadd.f32 %v3081, %v3369
  %v3371 = vpop.f32.mrb[0].mxu0
  %3372 = vmatprep.mubr.bf16.mxu0 %v1790
  %3373 = vmatmul.mubr.bf16.gmra.mrb[0].mxu0 %v1789
  %v3374 = vpop.f32.mrb[0].mxu0
  %v3375 = vadd.f32 %v3086, %v3374
  %v3376 = vpop.f32.mrb[0].mxu0
  %v3377 = vpop.f32.mrb[0].mxu0
  %v3378 = vadd.f32 %v3089, %v3377
  %v3379 = vpop.f32.mrb[0].mxu0
  %3380 = vdwg.mxu0
  %3381 = vmatprep.subr.bf16.mxu0 0
  %3382 = vmatpush1.bf16.msra.mxu0 %v2418
  %3383 = vmatprep.subr.bf16.mxu0 0
  %3384 = vmatpush1.bf16.msra.mxu0 %v2419
  %3385 = vmatprep.subr.bf16.mxu0 0
  %3386 = vmatpush1.bf16.msra.mxu0 %v2420
  %3387 = vmatprep.subr.bf16.mxu0 0
  %3388 = vmatpush1.bf16.msra.mxu0 %v2421
  %3389 = vmatprep.subr.bf16.mxu0 0
  %3390 = vmatpush1.bf16.msra.mxu0 %v2422
  %3391 = vmatprep.subr.bf16.mxu0 0
  %3392 = vmatpush1.bf16.msra.mxu0 %v2423
  %3393 = vmatprep.subr.bf16.mxu0 0
  %3394 = vmatpush1.bf16.msra.mxu0 %v2424
  %3395 = vmatprep.subr.bf16.mxu0 0
  %3396 = vmatpush1.bf16.msra.mxu0 %v2425
  %3397 = vmatprep.subr.bf16.mxu0 0
  %3398 = vmatpush1.bf16.msra.mxu0 %v2426
  %3399 = vmatprep.subr.bf16.mxu0 0
  %3400 = vmatpush1.bf16.msra.mxu0 %v2427
  %3401 = vmatprep.subr.bf16.mxu0 0
  %3402 = vmatpush1.bf16.msra.mxu0 %v2428
  %3403 = vmatprep.subr.bf16.mxu0 0
  %3404 = vmatpush1.bf16.msra.mxu0 %v2429
  %3405 = vmatprep.subr.bf16.mxu0 0
  %3406 = vmatpush1.bf16.msra.mxu0 %v2430
  %3407 = vmatprep.subr.bf16.mxu0 0
  %3408 = vmatpush1.bf16.msra.mxu0 %v2431
  %3409 = vmatprep.subr.bf16.mxu0 0
  %3410 = vmatpush1.bf16.msra.mxu0 %v2432
  %3411 = vmatprep.subr.bf16.mxu0 0
  %3412 = vmatpush1.bf16.msra.mxu0 %v2433
  %3413 = vmatprep.mubr.bf16.mxu0 %v1513
  %3414 = vmatmul.mubr.bf16.gmra.mrb[0].mxu0 %v1512
  %v3415 = vpop.f32.mrb[0].mxu0
  %v3416 = vadd.f32 %v3127, %v3415
  %v3417 = vpop.f32.mrb[0].mxu0
  %v3418 = vpop.f32.mrb[0].mxu0
  %v3419 = vadd.f32 %v3130, %v3418
  %v3420 = vpop.f32.mrb[0].mxu0
  %3421 = vmatprep.mubr.bf16.mxu0 %v1522
  %3422 = vmatmul.mubr.bf16.gmra.mrb[0].mxu0 %v1521
  %v3423 = vpop.f32.mrb[0].mxu0
  %v3424 = vadd.f32 %v3135, %v3423
  %v3425 = vpop.f32.mrb[0].mxu0
  %v3426 = vpop.f32.mrb[0].mxu0
  %v3427 = vadd.f32 %v3138, %v3426
  %v3428 = vpop.f32.mrb[0].mxu0
  %3429 = vmatprep.mubr.bf16.mxu0 %v1531
  %3430 = vmatmul.mubr.bf16.gmra.mrb[0].mxu0 %v1530
  %v3431 = vpop.f32.mrb[0].mxu0
  %v3432 = vadd.f32 %v3143, %v3431
  %v3433 = vpop.f32.mrb[0].mxu0
  %v3434 = vpop.f32.mrb[0].mxu0
  %v3435 = vadd.f32 %v3146, %v3434
  %v3436 = vpop.f32.mrb[0].mxu0
  %3437 = vmatprep.mubr.bf16.mxu0 %v1540
  %3438 = vmatmul.mubr.bf16.gmra.mrb[0].mxu0 %v1539
  %v3439 = vpop.f32.mrb[0].mxu0
  %v3440 = vadd.f32 %v3151, %v3439
  %v3441 = vpop.f32.mrb[0].mxu0
  %v3442 = vpop.f32.mrb[0].mxu0
  %v3443 = vadd.f32 %v3154, %v3442
  %v3444 = vpop.f32.mrb[0].mxu0
  %3445 = vmatprep.mubr.bf16.mxu0 %v1549
  %3446 = vmatmul.mubr.bf16.gmra.mrb[0].mxu0 %v1548
  %v3447 = vpop.f32.mrb[0].mxu0
  %v3448 = vadd.f32 %v3159, %v3447
  %v3449 = vpop.f32.mrb[0].mxu0
  %v3450 = vpop.f32.mrb[0].mxu0
  %v3451 = vadd.f32 %v3162, %v3450
  %v3452 = vpop.f32.mrb[0].mxu0
  %3453 = vmatprep.mubr.bf16.mxu0 %v1558
  %3454 = vmatmul.mubr.bf16.gmra.mrb[0].mxu0 %v1557
  %v3455 = vpop.f32.mrb[0].mxu0
  %v3456 = vadd.f32 %v3167, %v3455
  %v3457 = vpop.f32.mrb[0].mxu0
  %v3458 = vpop.f32.mrb[0].mxu0
  %v3459 = vadd.f32 %v3170, %v3458
  %v3460 = vpop.f32.mrb[0].mxu0
  %3461 = vmatprep.mubr.bf16.mxu0 %v1567
  %3462 = vmatmul.mubr.bf16.gmra.mrb[0].mxu0 %v1566
  %v3463 = vpop.f32.mrb[0].mxu0
  %v3464 = vadd.f32 %v3175, %v3463
  %v3465 = vpop.f32.mrb[0].mxu0
  %v3466 = vpop.f32.mrb[0].mxu0
  %v3467 = vadd.f32 %v3178, %v3466
  %v3468 = vpop.f32.mrb[0].mxu0
  %3469 = vmatprep.mubr.bf16.mxu0 %v1576
  %3470 = vmatmul.mubr.bf16.gmra.mrb[0].mxu0 %v1575
  %v3471 = vpop.f32.mrb[0].mxu0
  %v3472 = vadd.f32 %v3183, %v3471
  %v3473 = vpop.f32.mrb[0].mxu0
  %v3474 = vpop.f32.mrb[0].mxu0
  %v3475 = vadd.f32 %v3186, %v3474
  %v3476 = vpop.f32.mrb[0].mxu0
  %3477 = vmatprep.mubr.bf16.mxu0 %v1585
  %3478 = vmatmul.mubr.bf16.gmra.mrb[0].mxu0 %v1584
  %v3479 = vpop.f32.mrb[0].mxu0
  %v3480 = vadd.f32 %v3191, %v3479
  %v3481 = vpop.f32.mrb[0].mxu0
  %v3482 = vpop.f32.mrb[0].mxu0
  %v3483 = vadd.f32 %v3194, %v3482
  %v3484 = vpop.f32.mrb[0].mxu0
  %3485 = vmatprep.mubr.bf16.mxu0 %v1594
  %3486 = vmatmul.mubr.bf16.gmra.mrb[0].mxu0 %v1593
  %v3487 = vpop.f32.mrb[0].mxu0
  %v3488 = vadd.f32 %v3199, %v3487
  %v3489 = vpop.f32.mrb[0].mxu0
  %v3490 = vpop.f32.mrb[0].mxu0
  %v3491 = vadd.f32 %v3202, %v3490
  %v3492 = vpop.f32.mrb[0].mxu0
  %3493 = vmatprep.mubr.bf16.mxu0 %v1603
  %3494 = vmatmul.mubr.bf16.gmra.mrb[0].mxu0 %v1602
  %v3495 = vpop.f32.mrb[0].mxu0
  %v3496 = vadd.f32 %v3207, %v3495
  %v3497 = vpop.f32.mrb[0].mxu0
  %v3498 = vpop.f32.mrb[0].mxu0
  %v3499 = vadd.f32 %v3210, %v3498
  %v3500 = vpop.f32.mrb[0].mxu0
  %3501 = vmatprep.mubr.bf16.mxu0 %v1612
  %3502 = vmatmul.mubr.bf16.gmra.mrb[0].mxu0 %v1611
  %v3503 = vpop.f32.mrb[0].mxu0
  %v3504 = vadd.f32 %v3215, %v3503
  %v3505 = vpop.f32.mrb[0].mxu0
  %v3506 = vpop.f32.mrb[0].mxu0
  %v3507 = vadd.f32 %v3218, %v3506
  %v3508 = vpop.f32.mrb[0].mxu0
  %3509 = vmatprep.mubr.bf16.mxu0 %v1621
  %3510 = vmatmul.mubr.bf16.gmra.mrb[0].mxu0 %v1620
  %v3511 = vpop.f32.mrb[0].mxu0
  %v3512 = vadd.f32 %v3223, %v3511
  %v3513 = vpop.f32.mrb[0].mxu0
  %v3514 = vpop.f32.mrb[0].mxu0
  %v3515 = vadd.f32 %v3226, %v3514
  %v3516 = vpop.f32.mrb[0].mxu0
  %3517 = vmatprep.mubr.bf16.mxu0 %v1630
  %3518 = vmatmul.mubr.bf16.gmra.mrb[0].mxu0 %v1629
  %v3519 = vpop.f32.mrb[0].mxu0
  %v3520 = vadd.f32 %v3231, %v3519
  %v3521 = vpop.f32.mrb[0].mxu0
  %v3522 = vpop.f32.mrb[0].mxu0
  %v3523 = vadd.f32 %v3234, %v3522
  %v3524 = vpop.f32.mrb[0].mxu0
  %3525 = vmatprep.mubr.bf16.mxu0 %v1639
  %3526 = vmatmul.mubr.bf16.gmra.mrb[0].mxu0 %v1638
  %v3527 = vpop.f32.mrb[0].mxu0
  %v3528 = vadd.f32 %v3239, %v3527
  %v3529 = vpop.f32.mrb[0].mxu0
  %v3530 = vpop.f32.mrb[0].mxu0
  %v3531 = vadd.f32 %v3242, %v3530
  %v3532 = vpop.f32.mrb[0].mxu0
  %3533 = vmatprep.mubr.bf16.mxu0 %v1648
  %3534 = vmatmul.mubr.bf16.gmra.mrb[0].mxu0 %v1647
  %v3535 = vpop.f32.mrb[0].mxu0
  %v3536 = vadd.f32 %v3247, %v3535
  %v3537 = vpop.f32.mrb[0].mxu0
  %v3538 = vpop.f32.mrb[0].mxu0
  %v3539 = vadd.f32 %v3250, %v3538
  %v3540 = vpop.f32.mrb[0].mxu0
  %3541 = vmatprep.mubr.bf16.mxu0 %v1657
  %3542 = vmatmul.mubr.bf16.gmra.mrb[0].mxu0 %v1656
  %v3543 = vpop.f32.mrb[0].mxu0
  %v3544 = vadd.f32 %v3255, %v3543
  %v3545 = vpop.f32.mrb[0].mxu0
  %v3546 = vpop.f32.mrb[0].mxu0
  %v3547 = vadd.f32 %v3258, %v3546
  %v3548 = vpop.f32.mrb[0].mxu0
  %3549 = vmatprep.mubr.bf16.mxu0 %v1666
  %3550 = vmatmul.mubr.bf16.gmra.mrb[0].mxu0 %v1665
  %v3551 = vpop.f32.mrb[0].mxu0
  %v3552 = vadd.f32 %v3263, %v3551
  %v3553 = vpop.f32.mrb[0].mxu0
  %v3554 = vpop.f32.mrb[0].mxu0
  %v3555 = vadd.f32 %v3266, %v3554
  %v3556 = vpop.f32.mrb[0].mxu0
  %3557 = vmatprep.mubr.bf16.mxu0 %v1675
  %3558 = vmatmul.mubr.bf16.gmra.mrb[0].mxu0 %v1674
  %v3559 = vpop.f32.mrb[0].mxu0
  %v3560 = vadd.f32 %v3271, %v3559
  %v3561 = vpop.f32.mrb[0].mxu0
  %v3562 = vpop.f32.mrb[0].mxu0
  %v3563 = vadd.f32 %v3274, %v3562
  %v3564 = vpop.f32.mrb[0].mxu0
  %3565 = vmatprep.mubr.bf16.mxu0 %v1684
  %3566 = vmatmul.mubr.bf16.gmra.mrb[0].mxu0 %v1683
  %v3567 = vpop.f32.mrb[0].mxu0
  %v3568 = vadd.f32 %v3279, %v3567
  %v3569 = vpop.f32.mrb[0].mxu0
  %v3570 = vpop.f32.mrb[0].mxu0
  %v3571 = vadd.f32 %v3282, %v3570
  %v3572 = vpop.f32.mrb[0].mxu0
  %3573 = vmatprep.mubr.bf16.mxu0 %v1693
  %3574 = vmatmul.mubr.bf16.gmra.mrb[0].mxu0 %v1692
  %v3575 = vpop.f32.mrb[0].mxu0
  %v3576 = vadd.f32 %v3287, %v3575
  %v3577 = vpop.f32.mrb[0].mxu0
  %v3578 = vpop.f32.mrb[0].mxu0
  %v3579 = vadd.f32 %v3290, %v3578
  %v3580 = vpop.f32.mrb[0].mxu0
  %3581 = vmatprep.mubr.bf16.mxu0 %v1702
  %3582 = vmatmul.mubr.bf16.gmra.mrb[0].mxu0 %v1701
  %v3583 = vpop.f32.mrb[0].mxu0
  %v3584 = vadd.f32 %v3295, %v3583
  %v3585 = vpop.f32.mrb[0].mxu0
  %v3586 = vpop.f32.mrb[0].mxu0
  %v3587 = vadd.f32 %v3298, %v3586
  %v3588 = vpop.f32.mrb[0].mxu0
  %3589 = vmatprep.mubr.bf16.mxu0 %v1711
  %3590 = vmatmul.mubr.bf16.gmra.mrb[0].mxu0 %v1710
  %v3591 = vpop.f32.mrb[0].mxu0
  %v3592 = vadd.f32 %v3303, %v3591
  %v3593 = vpop.f32.mrb[0].mxu0
  %v3594 = vpop.f32.mrb[0].mxu0
  %v3595 = vadd.f32 %v3306, %v3594
  %v3596 = vpop.f32.mrb[0].mxu0
  %3597 = vmatprep.mubr.bf16.mxu0 %v1720
  %3598 = vmatmul.mubr.bf16.gmra.mrb[0].mxu0 %v1719
  %v3599 = vpop.f32.mrb[0].mxu0
  %v3600 = vadd.f32 %v3311, %v3599
  %v3601 = vpop.f32.mrb[0].mxu0
  %v3602 = vpop.f32.mrb[0].mxu0
  %v3603 = vadd.f32 %v3314, %v3602
  %v3604 = vpop.f32.mrb[0].mxu0
  %3605 = vmatprep.mubr.bf16.mxu0 %v1729
  %3606 = vmatmul.mubr.bf16.gmra.mrb[0].mxu0 %v1728
  %v3607 = vpop.f32.mrb[0].mxu0
  %v3608 = vadd.f32 %v3319, %v3607
  %v3609 = vpop.f32.mrb[0].mxu0
  %v3610 = vpop.f32.mrb[0].mxu0
  %v3611 = vadd.f32 %v3322, %v3610
  %v3612 = vpop.f32.mrb[0].mxu0
  %3613 = vmatprep.mubr.bf16.mxu0 %v1738
  %3614 = vmatmul.mubr.bf16.gmra.mrb[0].mxu0 %v1737
  %v3615 = vpop.f32.mrb[0].mxu0
  %v3616 = vadd.f32 %v3327, %v3615
  %v3617 = vpop.f32.mrb[0].mxu0
  %v3618 = vpop.f32.mrb[0].mxu0
  %v3619 = vadd.f32 %v3330, %v3618
  %v3620 = vpop.f32.mrb[0].mxu0
  %3621 = vmatprep.mubr.bf16.mxu0 %v1747
  %3622 = vmatmul.mubr.bf16.gmra.mrb[0].mxu0 %v1746
  %v3623 = vpop.f32.mrb[0].mxu0
  %v3624 = vadd.f32 %v3335, %v3623
  %v3625 = vpop.f32.mrb[0].mxu0
  %v3626 = vpop.f32.mrb[0].mxu0
  %v3627 = vadd.f32 %v3338, %v3626
  %v3628 = vpop.f32.mrb[0].mxu0
  %3629 = vmatprep.mubr.bf16.mxu0 %v1756
  %3630 = vmatmul.mubr.bf16.gmra.mrb[0].mxu0 %v1755
  %v3631 = vpop.f32.mrb[0].mxu0
  %v3632 = vadd.f32 %v3343, %v3631
  %v3633 = vpop.f32.mrb[0].mxu0
  %v3634 = vpop.f32.mrb[0].mxu0
  %v3635 = vadd.f32 %v3346, %v3634
  %v3636 = vpop.f32.mrb[0].mxu0
  %3637 = vmatprep.mubr.bf16.mxu0 %v1765
  %3638 = vmatmul.mubr.bf16.gmra.mrb[0].mxu0 %v1764
  %v3639 = vpop.f32.mrb[0].mxu0
  %v3640 = vadd.f32 %v3351, %v3639
  %v3641 = vpop.f32.mrb[0].mxu0
  %v3642 = vpop.f32.mrb[0].mxu0
  %v3643 = vadd.f32 %v3354, %v3642
  %v3644 = vpop.f32.mrb[0].mxu0
  %3645 = vmatprep.mubr.bf16.mxu0 %v1774
  %3646 = vmatmul.mubr.bf16.gmra.mrb[0].mxu0 %v1773
  %v3647 = vpop.f32.mrb[0].mxu0
  %v3648 = vadd.f32 %v3359, %v3647
  %v3649 = vpop.f32.mrb[0].mxu0
  %v3650 = vpop.f32.mrb[0].mxu0
  %v3651 = vadd.f32 %v3362, %v3650
  %v3652 = vpop.f32.mrb[0].mxu0
  %3653 = vmatprep.mubr.bf16.mxu0 %v1783
  %3654 = vmatmul.mubr.bf16.gmra.mrb[0].mxu0 %v1782
  %v3655 = vpop.f32.mrb[0].mxu0
  %v3656 = vadd.f32 %v3367, %v3655
  %v3657 = vpop.f32.mrb[0].mxu0
  %v3658 = vpop.f32.mrb[0].mxu0
  %v3659 = vadd.f32 %v3370, %v3658
  %v3660 = vpop.f32.mrb[0].mxu0
  %3661 = vmatprep.mubr.bf16.mxu0 %v1792
  %3662 = vmatmul.mubr.bf16.gmra.mrb[0].mxu0 %v1791
  %v3663 = vpop.f32.mrb[0].mxu0
  %v3664 = vadd.f32 %v3375, %v3663
  %v3665 = vpop.f32.mrb[0].mxu0
  %v3666 = vpop.f32.mrb[0].mxu0
  %v3667 = vadd.f32 %v3378, %v3666
  %v3668 = vpop.f32.mrb[0].mxu0
  %3669 = vdwg.mxu0
  %3670 = vmatprep.subr.bf16.mxu0 0
  %3671 = vmatpush1.bf16.msra.mxu0 %v2434
  %3672 = vmatprep.subr.bf16.mxu0 0
  %3673 = vmatpush1.bf16.msra.mxu0 %v2435
  %3674 = vmatprep.subr.bf16.mxu0 0
  %3675 = vmatpush1.bf16.msra.mxu0 %v2436
  %3676 = vmatprep.subr.bf16.mxu0 0
  %3677 = vmatpush1.bf16.msra.mxu0 %v2437
  %3678 = vmatprep.subr.bf16.mxu0 0
  %3679 = vmatpush1.bf16.msra.mxu0 %v2438
  %3680 = vmatprep.subr.bf16.mxu0 0
  %3681 = vmatpush1.bf16.msra.mxu0 %v2439
  %3682 = vmatprep.subr.bf16.mxu0 0
  %3683 = vmatpush1.bf16.msra.mxu0 %v2440
  %3684 = vmatprep.subr.bf16.mxu0 0
  %3685 = vmatpush1.bf16.msra.mxu0 %v2441
  %3686 = vmatprep.subr.bf16.mxu0 0
  %3687 = vmatpush1.bf16.msra.mxu0 0
  %3688 = vmatprep.subr.bf16.mxu0 0
  %3689 = vmatpush1.bf16.msra.mxu0 0
  %3690 = vmatprep.subr.bf16.mxu0 0
  %3691 = vmatpush1.bf16.msra.mxu0 0
  %3692 = vmatprep.subr.bf16.mxu0 0
  %3693 = vmatpush1.bf16.msra.mxu0 0
  %3694 = vmatprep.subr.bf16.mxu0 0
  %3695 = vmatpush1.bf16.msra.mxu0 0
  %3696 = vmatprep.subr.bf16.mxu0 0
  %3697 = vmatpush1.bf16.msra.mxu0 0
  %3698 = vmatprep.subr.bf16.mxu0 0
  %3699 = vmatpush1.bf16.msra.mxu0 0
  %3700 = vmatprep.subr.bf16.mxu0 0
  %3701 = vmatpush1.bf16.msra.mxu0 0
  %3702 = vmatprep.mubr.bf16.mxu0 0
  %3703 = vmatmul.mubr.bf16.gmra.mrb[0].mxu0 %v1514
  %v3704 = vpop.f32.mrb[0].mxu0
  %v3705 = vadd.f32 %v3416, %v3704
  %v3706 = vpop.f32.mrb[0].mxu0
  %v3707 = vpop.f32.mrb[0].mxu0
  %v3708 = vadd.f32 %v3419, %v3707
  %v3709 = vpop.f32.mrb[0].mxu0
  %3710 = vmatprep.mubr.bf16.mxu0 0
  %3711 = vmatmul.mubr.bf16.gmra.mrb[0].mxu0 %v1523
  %v3712 = vpop.f32.mrb[0].mxu0
  %v3713 = vadd.f32 %v3424, %v3712
  %v3714 = vpop.f32.mrb[0].mxu0
  %v3715 = vpop.f32.mrb[0].mxu0
  %v3716 = vadd.f32 %v3427, %v3715
  %v3717 = vpop.f32.mrb[0].mxu0
  %3718 = vmatprep.mubr.bf16.mxu0 0
  %3719 = vmatmul.mubr.bf16.gmra.mrb[0].mxu0 %v1532
  %v3720 = vpop.f32.mrb[0].mxu0
  %v3721 = vadd.f32 %v3432, %v3720
  %v3722 = vpop.f32.mrb[0].mxu0
  %v3723 = vpop.f32.mrb[0].mxu0
  %v3724 = vadd.f32 %v3435, %v3723
  %v3725 = vpop.f32.mrb[0].mxu0
  %3726 = vmatprep.mubr.bf16.mxu0 0
  %3727 = vmatmul.mubr.bf16.gmra.mrb[0].mxu0 %v1541
  %v3728 = vpop.f32.mrb[0].mxu0
  %v3729 = vadd.f32 %v3440, %v3728
  %v3730 = vpop.f32.mrb[0].mxu0
  %v3731 = vpop.f32.mrb[0].mxu0
  %v3732 = vadd.f32 %v3443, %v3731
  %v3733 = vpop.f32.mrb[0].mxu0
  %3734 = vmatprep.mubr.bf16.mxu0 0
  %3735 = vmatmul.mubr.bf16.gmra.mrb[0].mxu0 %v1550
  %v3736 = vpop.f32.mrb[0].mxu0
  %v3737 = vadd.f32 %v3448, %v3736
  %v3738 = vpop.f32.mrb[0].mxu0
  %v3739 = vpop.f32.mrb[0].mxu0
  %v3740 = vadd.f32 %v3451, %v3739
  %v3741 = vpop.f32.mrb[0].mxu0
  %3742 = vmatprep.mubr.bf16.mxu0 0
  %3743 = vmatmul.mubr.bf16.gmra.mrb[0].mxu0 %v1559
  %v3744 = vpop.f32.mrb[0].mxu0
  %v3745 = vadd.f32 %v3456, %v3744
  %v3746 = vpop.f32.mrb[0].mxu0
  %v3747 = vpop.f32.mrb[0].mxu0
  %v3748 = vadd.f32 %v3459, %v3747
  %v3749 = vpop.f32.mrb[0].mxu0
  %3750 = vmatprep.mubr.bf16.mxu0 0
  %3751 = vmatmul.mubr.bf16.gmra.mrb[0].mxu0 %v1568
  %v3752 = vpop.f32.mrb[0].mxu0
  %v3753 = vadd.f32 %v3464, %v3752
  %v3754 = vpop.f32.mrb[0].mxu0
  %v3755 = vpop.f32.mrb[0].mxu0
  %v3756 = vadd.f32 %v3467, %v3755
  %v3757 = vpop.f32.mrb[0].mxu0
  %3758 = vmatprep.mubr.bf16.mxu0 0
  %3759 = vmatmul.mubr.bf16.gmra.mrb[0].mxu0 %v1577
  %v3760 = vpop.f32.mrb[0].mxu0
  %v3761 = vadd.f32 %v3472, %v3760
  %v3762 = vpop.f32.mrb[0].mxu0
  %v3763 = vpop.f32.mrb[0].mxu0
  %v3764 = vadd.f32 %v3475, %v3763
  %v3765 = vpop.f32.mrb[0].mxu0
  %3766 = vmatprep.mubr.bf16.mxu0 0
  %3767 = vmatmul.mubr.bf16.gmra.mrb[0].mxu0 %v1586
  %v3768 = vpop.f32.mrb[0].mxu0
  %v3769 = vadd.f32 %v3480, %v3768
  %v3770 = vpop.f32.mrb[0].mxu0
  %v3771 = vpop.f32.mrb[0].mxu0
  %v3772 = vadd.f32 %v3483, %v3771
  %v3773 = vpop.f32.mrb[0].mxu0
  %3774 = vmatprep.mubr.bf16.mxu0 0
  %3775 = vmatmul.mubr.bf16.gmra.mrb[0].mxu0 %v1595
  %v3776 = vpop.f32.mrb[0].mxu0
  %v3777 = vadd.f32 %v3488, %v3776
  %v3778 = vpop.f32.mrb[0].mxu0
  %v3779 = vpop.f32.mrb[0].mxu0
  %v3780 = vadd.f32 %v3491, %v3779
  %v3781 = vpop.f32.mrb[0].mxu0
  %3782 = vmatprep.mubr.bf16.mxu0 0
  %3783 = vmatmul.mubr.bf16.gmra.mrb[0].mxu0 %v1604
  %v3784 = vpop.f32.mrb[0].mxu0
  %v3785 = vadd.f32 %v3496, %v3784
  %v3786 = vpop.f32.mrb[0].mxu0
  %v3787 = vpop.f32.mrb[0].mxu0
  %v3788 = vadd.f32 %v3499, %v3787
  %v3789 = vpop.f32.mrb[0].mxu0
  %3790 = vmatprep.mubr.bf16.mxu0 0
  %3791 = vmatmul.mubr.bf16.gmra.mrb[0].mxu0 %v1613
  %v3792 = vpop.f32.mrb[0].mxu0
  %v3793 = vadd.f32 %v3504, %v3792
  %v3794 = vpop.f32.mrb[0].mxu0
  %v3795 = vpop.f32.mrb[0].mxu0
  %v3796 = vadd.f32 %v3507, %v3795
  %v3797 = vpop.f32.mrb[0].mxu0
  %3798 = vmatprep.mubr.bf16.mxu0 0
  %3799 = vmatmul.mubr.bf16.gmra.mrb[0].mxu0 %v1622
  %v3800 = vpop.f32.mrb[0].mxu0
  %v3801 = vadd.f32 %v3512, %v3800
  %v3802 = vpop.f32.mrb[0].mxu0
  %v3803 = vpop.f32.mrb[0].mxu0
  %v3804 = vadd.f32 %v3515, %v3803
  %v3805 = vpop.f32.mrb[0].mxu0
  %3806 = vmatprep.mubr.bf16.mxu0 0
  %3807 = vmatmul.mubr.bf16.gmra.mrb[0].mxu0 %v1631
  %v3808 = vpop.f32.mrb[0].mxu0
  %v3809 = vadd.f32 %v3520, %v3808
  %v3810 = vpop.f32.mrb[0].mxu0
  %v3811 = vpop.f32.mrb[0].mxu0
  %v3812 = vadd.f32 %v3523, %v3811
  %v3813 = vpop.f32.mrb[0].mxu0
  %3814 = vmatprep.mubr.bf16.mxu0 0
  %3815 = vmatmul.mubr.bf16.gmra.mrb[0].mxu0 %v1640
  %v3816 = vpop.f32.mrb[0].mxu0
  %v3817 = vadd.f32 %v3528, %v3816
  %v3818 = vpop.f32.mrb[0].mxu0
  %v3819 = vpop.f32.mrb[0].mxu0
  %v3820 = vadd.f32 %v3531, %v3819
  %v3821 = vpop.f32.mrb[0].mxu0
  %3822 = vmatprep.mubr.bf16.mxu0 0
  %3823 = vmatmul.mubr.bf16.gmra.mrb[0].mxu0 %v1649
  %v3824 = vpop.f32.mrb[0].mxu0
  %v3825 = vadd.f32 %v3536, %v3824
  %v3826 = vpop.f32.mrb[0].mxu0
  %v3827 = vpop.f32.mrb[0].mxu0
  %v3828 = vadd.f32 %v3539, %v3827
  %v3829 = vpop.f32.mrb[0].mxu0
  %3830 = vmatprep.mubr.bf16.mxu0 0
  %3831 = vmatmul.mubr.bf16.gmra.mrb[0].mxu0 %v1658
  %v3832 = vpop.f32.mrb[0].mxu0
  %v3833 = vadd.f32 %v3544, %v3832
  %v3834 = vpop.f32.mrb[0].mxu0
  %v3835 = vpop.f32.mrb[0].mxu0
  %v3836 = vadd.f32 %v3547, %v3835
  %v3837 = vpop.f32.mrb[0].mxu0
  %3838 = vmatprep.mubr.bf16.mxu0 0
  %3839 = vmatmul.mubr.bf16.gmra.mrb[0].mxu0 %v1667
  %v3840 = vpop.f32.mrb[0].mxu0
  %v3841 = vadd.f32 %v3552, %v3840
  %v3842 = vpop.f32.mrb[0].mxu0
  %v3843 = vpop.f32.mrb[0].mxu0
  %v3844 = vadd.f32 %v3555, %v3843
  %v3845 = vpop.f32.mrb[0].mxu0
  %3846 = vmatprep.mubr.bf16.mxu0 0
  %3847 = vmatmul.mubr.bf16.gmra.mrb[0].mxu0 %v1676
  %v3848 = vpop.f32.mrb[0].mxu0
  %v3849 = vadd.f32 %v3560, %v3848
  %v3850 = vpop.f32.mrb[0].mxu0
  %v3851 = vpop.f32.mrb[0].mxu0
  %v3852 = vadd.f32 %v3563, %v3851
  %v3853 = vpop.f32.mrb[0].mxu0
  %3854 = vmatprep.mubr.bf16.mxu0 0
  %3855 = vmatmul.mubr.bf16.gmra.mrb[0].mxu0 %v1685
  %v3856 = vpop.f32.mrb[0].mxu0
  %v3857 = vadd.f32 %v3568, %v3856
  %v3858 = vpop.f32.mrb[0].mxu0
  %v3859 = vpop.f32.mrb[0].mxu0
  %v3860 = vadd.f32 %v3571, %v3859
  %v3861 = vpop.f32.mrb[0].mxu0
  %3862 = vmatprep.mubr.bf16.mxu0 0
  %3863 = vmatmul.mubr.bf16.gmra.mrb[0].mxu0 %v1694
  %v3864 = vpop.f32.mrb[0].mxu0
  %v3865 = vadd.f32 %v3576, %v3864
  %v3866 = vpop.f32.mrb[0].mxu0
  %v3867 = vpop.f32.mrb[0].mxu0
  %v3868 = vadd.f32 %v3579, %v3867
  %v3869 = vpop.f32.mrb[0].mxu0
  %3870 = vmatprep.mubr.bf16.mxu0 0
  %3871 = vmatmul.mubr.bf16.gmra.mrb[0].mxu0 %v1703
  %v3872 = vpop.f32.mrb[0].mxu0
  %v3873 = vadd.f32 %v3584, %v3872
  %v3874 = vpop.f32.mrb[0].mxu0
  %v3875 = vpop.f32.mrb[0].mxu0
  %v3876 = vadd.f32 %v3587, %v3875
  %v3877 = vpop.f32.mrb[0].mxu0
  %3878 = vmatprep.mubr.bf16.mxu0 0
  %3879 = vmatmul.mubr.bf16.gmra.mrb[0].mxu0 %v1712
  %v3880 = vpop.f32.mrb[0].mxu0
  %v3881 = vadd.f32 %v3592, %v3880
  %v3882 = vpop.f32.mrb[0].mxu0
  %v3883 = vpop.f32.mrb[0].mxu0
  %v3884 = vadd.f32 %v3595, %v3883
  %v3885 = vpop.f32.mrb[0].mxu0
  %3886 = vmatprep.mubr.bf16.mxu0 0
  %3887 = vmatmul.mubr.bf16.gmra.mrb[0].mxu0 %v1721
  %v3888 = vpop.f32.mrb[0].mxu0
  %v3889 = vadd.f32 %v3600, %v3888
  %v3890 = vpop.f32.mrb[0].mxu0
  %v3891 = vpop.f32.mrb[0].mxu0
  %v3892 = vadd.f32 %v3603, %v3891
  %v3893 = vpop.f32.mrb[0].mxu0
  %3894 = vmatprep.mubr.bf16.mxu0 0
  %3895 = vmatmul.mubr.bf16.gmra.mrb[0].mxu0 %v1730
  %v3896 = vpop.f32.mrb[0].mxu0
  %v3897 = vadd.f32 %v3608, %v3896
  %v3898 = vpop.f32.mrb[0].mxu0
  %v3899 = vpop.f32.mrb[0].mxu0
  %v3900 = vadd.f32 %v3611, %v3899
  %v3901 = vpop.f32.mrb[0].mxu0
  %3902 = vmatprep.mubr.bf16.mxu0 0
  %3903 = vmatmul.mubr.bf16.gmra.mrb[0].mxu0 %v1739
  %v3904 = vpop.f32.mrb[0].mxu0
  %v3905 = vadd.f32 %v3616, %v3904
  %v3906 = vpop.f32.mrb[0].mxu0
  %v3907 = vpop.f32.mrb[0].mxu0
  %v3908 = vadd.f32 %v3619, %v3907
  %v3909 = vpop.f32.mrb[0].mxu0
  %3910 = vmatprep.mubr.bf16.mxu0 0
  %3911 = vmatmul.mubr.bf16.gmra.mrb[0].mxu0 %v1748
  %v3912 = vpop.f32.mrb[0].mxu0
  %v3913 = vadd.f32 %v3624, %v3912
  %v3914 = vpop.f32.mrb[0].mxu0
  %v3915 = vpop.f32.mrb[0].mxu0
  %v3916 = vadd.f32 %v3627, %v3915
  %v3917 = vpop.f32.mrb[0].mxu0
  %3918 = vmatprep.mubr.bf16.mxu0 0
  %3919 = vmatmul.mubr.bf16.gmra.mrb[0].mxu0 %v1757
  %v3920 = vpop.f32.mrb[0].mxu0
  %v3921 = vadd.f32 %v3632, %v3920
  %v3922 = vpop.f32.mrb[0].mxu0
  %v3923 = vpop.f32.mrb[0].mxu0
  %v3924 = vadd.f32 %v3635, %v3923
  %v3925 = vpop.f32.mrb[0].mxu0
  %3926 = vmatprep.mubr.bf16.mxu0 0
  %3927 = vmatmul.mubr.bf16.gmra.mrb[0].mxu0 %v1766
  %v3928 = vpop.f32.mrb[0].mxu0
  %v3929 = vadd.f32 %v3640, %v3928
  %v3930 = vpop.f32.mrb[0].mxu0
  %v3931 = vpop.f32.mrb[0].mxu0
  %v3932 = vadd.f32 %v3643, %v3931
  %v3933 = vpop.f32.mrb[0].mxu0
  %3934 = vmatprep.mubr.bf16.mxu0 0
  %3935 = vmatmul.mubr.bf16.gmra.mrb[0].mxu0 %v1775
  %v3936 = vpop.f32.mrb[0].mxu0
  %v3937 = vadd.f32 %v3648, %v3936
  %v3938 = vpop.f32.mrb[0].mxu0
  %v3939 = vpop.f32.mrb[0].mxu0
  %v3940 = vadd.f32 %v3651, %v3939
  %v3941 = vpop.f32.mrb[0].mxu0
  %3942 = vmatprep.mubr.bf16.mxu0 0
  %3943 = vmatmul.mubr.bf16.gmra.mrb[0].mxu0 %v1784
  %v3944 = vpop.f32.mrb[0].mxu0
  %v3945 = vadd.f32 %v3656, %v3944
  %v3946 = vpop.f32.mrb[0].mxu0
  %v3947 = vpop.f32.mrb[0].mxu0
  %v3948 = vadd.f32 %v3659, %v3947
  %v3949 = vpop.f32.mrb[0].mxu0
  %3950 = vmatprep.mubr.bf16.mxu0 0
  %3951 = vmatmul.mubr.bf16.gmra.mrb[0].mxu0 %v1793
  %v3952 = vpop.f32.mrb[0].mxu0
  %v3953 = vadd.f32 %v3664, %v3952
  %v3954 = vpop.f32.mrb[0].mxu0
  %v3955 = vpop.f32.mrb[0].mxu0
  %v3956 = vadd.f32 %v3667, %v3955
  %v3957 = vpop.f32.mrb[0].mxu0
  %3958 = vdwg.mxu0
  %v3959 = vadd.f32 %v82, %v3705
  %v3960 = vadd.f32 %v83, %v3708
  %v3961 = vadd.f32 %v84, %v3713
  %v3962 = vadd.f32 %v85, %v3716
  %v3963 = vadd.f32 %v86, %v3721
  %v3964 = vadd.f32 %v87, %v3724
  %v3965 = vadd.f32 %v88, %v3729
  %v3966 = vadd.f32 %v89, %v3732
  %v3967 = vadd.f32 %v90, %v3737
  %v3968 = vadd.f32 %v91, %v3740
  %v3969 = vadd.f32 %v92, %v3745
  %v3970 = vadd.f32 %v93, %v3748
  %v3971 = vadd.f32 %v94, %v3753
  %v3972 = vadd.f32 %v95, %v3756
  %v3973 = vadd.f32 %v96, %v3761
  %v3974 = vadd.f32 %v97, %v3764
  %v3975 = vadd.f32 %v98, %v3769
  %v3976 = vadd.f32 %v99, %v3772
  %v3977 = vadd.f32 %v100, %v3777
  %v3978 = vadd.f32 %v101, %v3780
  %v3979 = vadd.f32 %v102, %v3785
  %v3980 = vadd.f32 %v103, %v3788
  %v3981 = vadd.f32 %v104, %v3793
  %v3982 = vadd.f32 %v105, %v3796
  %v3983 = vadd.f32 %v106, %v3801
  %v3984 = vadd.f32 %v107, %v3804
  %v3985 = vadd.f32 %v108, %v3809
  %v3986 = vadd.f32 %v109, %v3812
  %v3987 = vadd.f32 %v110, %v3817
  %v3988 = vadd.f32 %v111, %v3820
  %v3989 = vadd.f32 %v112, %v3825
  %v3990 = vadd.f32 %v113, %v3828
  %v3991 = vadd.f32 %v114, %v3833
  %v3992 = vadd.f32 %v115, %v3836
  %v3993 = vadd.f32 %v116, %v3841
  %v3994 = vadd.f32 %v117, %v3844
  %v3995 = vadd.f32 %v118, %v3849
  %v3996 = vadd.f32 %v119, %v3852
  %v3997 = vadd.f32 %v120, %v3857
  %v3998 = vadd.f32 %v121, %v3860
  %v3999 = vadd.f32 %v122, %v3865
  %v4000 = vadd.f32 %v123, %v3868
  %v4001 = vadd.f32 %v124, %v3873
  %v4002 = vadd.f32 %v125, %v3876
  %v4003 = vadd.f32 %v126, %v3881
  %v4004 = vadd.f32 %v127, %v3884
  %v4005 = vadd.f32 %v128, %v3889
  %v4006 = vadd.f32 %v129, %v3892
  %v4007 = vadd.f32 %v130, %v3897
  %v4008 = vadd.f32 %v131, %v3900
  %v4009 = vadd.f32 %v132, %v3905
  %v4010 = vadd.f32 %v133, %v3908
  %v4011 = vadd.f32 %v134, %v3913
  %v4012 = vadd.f32 %v135, %v3916
  %v4013 = vadd.f32 %v136, %v3921
  %v4014 = vadd.f32 %v137, %v3924
  %v4015 = vadd.f32 %v138, %v3929
  %v4016 = vadd.f32 %v139, %v3932
  %v4017 = vadd.f32 %v140, %v3937
  %v4018 = vadd.f32 %v141, %v3940
  %v4019 = vadd.f32 %v142, %v3945
  %v4020 = vadd.f32 %v143, %v3948
  %v4021 = vadd.f32 %v144, %v3953
  %v4022 = vadd.f32 %v145, %v3956
  %4023 = vst [vmem:[#allocation2] sm:$0xff] %v3959
  %4024 = vst [vmem:[#allocation2 + $0x8] sm:$0xff] %v3960
  %4025 = vst [vmem:[#allocation2 + $0x10] sm:$0xff] %v3961
  %4026 = vst [vmem:[#allocation2 + $0x18] sm:$0xff] %v3962
  %4027 = vst [vmem:[#allocation2 + $0x20] sm:$0xff] %v3963
  %4028 = vst [vmem:[#allocation2 + $0x28] sm:$0xff] %v3964
  %4029 = vst [vmem:[#allocation2 + $0x30] sm:$0xff] %v3965
  %4030 = vst [vmem:[#allocation2 + $0x38] sm:$0xff] %v3966
  %4031 = vst [vmem:[#allocation2 + $0x40] sm:$0xff] %v3967
  %4032 = vst [vmem:[#allocation2 + $0x48] sm:$0xff] %v3968
  %4033 = vst [vmem:[#allocation2 + $0x50] sm:$0xff] %v3969
  %4034 = vst [vmem:[#allocation2 + $0x58] sm:$0xff] %v3970
  %4035 = vst [vmem:[#allocation2 + $0x60] sm:$0xff] %v3971
  %4036 = vst [vmem:[#allocation2 + $0x68] sm:$0xff] %v3972
  %4037 = vst [vmem:[#allocation2 + $0x70] sm:$0xff] %v3973
  %4038 = vst [vmem:[#allocation2 + $0x78] sm:$0xff] %v3974
  %4039 = vst [vmem:[#allocation2 + $0x80] sm:$0xff] %v3975
  %4040 = vst [vmem:[#allocation2 + $0x88] sm:$0xff] %v3976
  %4041 = vst [vmem:[#allocation2 + $0x90] sm:$0xff] %v3977
  %4042 = vst [vmem:[#allocation2 + $0x98] sm:$0xff] %v3978
  %4043 = vst [vmem:[#allocation2 + $0xa0] sm:$0xff] %v3979
  %4044 = vst [vmem:[#allocation2 + $0xa8] sm:$0xff] %v3980
  %4045 = vst [vmem:[#allocation2 + $0xb0] sm:$0xff] %v3981
  %4046 = vst [vmem:[#allocation2 + $0xb8] sm:$0xff] %v3982
  %4047 = vst [vmem:[#allocation2 + $0xc0] sm:$0xff] %v3983
  %4048 = vst [vmem:[#allocation2 + $0xc8] sm:$0xff] %v3984
  %4049 = vst [vmem:[#allocation2 + $0xd0] sm:$0xff] %v3985
  %4050 = vst [vmem:[#allocation2 + $0xd8] sm:$0xff] %v3986
  %4051 = vst [vmem:[#allocation2 + $0xe0] sm:$0xff] %v3987
  %4052 = vst [vmem:[#allocation2 + $0xe8] sm:$0xff] %v3988
  %4053 = vst [vmem:[#allocation2 + $0xf0] sm:$0xff] %v3989
  %4054 = vst [vmem:[#allocation2 + $0xf8] sm:$0xff] %v3990
  %4055 = vst [vmem:[#allocation2 + $0x100] sm:$0xff] %v3991
  %4056 = vst [vmem:[#allocation2 + $0x108] sm:$0xff] %v3992
  %4057 = vst [vmem:[#allocation2 + $0x110] sm:$0xff] %v3993
  %4058 = vst [vmem:[#allocation2 + $0x118] sm:$0xff] %v3994
  %4059 = vst [vmem:[#allocation2 + $0x120] sm:$0xff] %v3995
  %4060 = vst [vmem:[#allocation2 + $0x128] sm:$0xff] %v3996
  %4061 = vst [vmem:[#allocation2 + $0x130] sm:$0xff] %v3997
  %4062 = vst [vmem:[#allocation2 + $0x138] sm:$0xff] %v3998
  %4063 = vst [vmem:[#allocation2 + $0x140] sm:$0xff] %v3999
  %4064 = vst [vmem:[#allocation2 + $0x148] sm:$0xff] %v4000
  %4065 = vst [vmem:[#allocation2 + $0x150] sm:$0xff] %v4001
  %4066 = vst [vmem:[#allocation2 + $0x158] sm:$0xff] %v4002
  %4067 = vst [vmem:[#allocation2 + $0x160] sm:$0xff] %v4003
  %4068 = vst [vmem:[#allocation2 + $0x168] sm:$0xff] %v4004
  %4069 = vst [vmem:[#allocation2 + $0x170] sm:$0xff] %v4005
  %4070 = vst [vmem:[#allocation2 + $0x178] sm:$0xff] %v4006
  %4071 = vst [vmem:[#allocation2 + $0x180] sm:$0xff] %v4007
  %4072 = vst [vmem:[#allocation2 + $0x188] sm:$0xff] %v4008
  %4073 = vst [vmem:[#allocation2 + $0x190] sm:$0xff] %v4009
  %4074 = vst [vmem:[#allocation2 + $0x198] sm:$0xff] %v4010
  %4075 = vst [vmem:[#allocation2 + $0x1a0] sm:$0xff] %v4011
  %4076 = vst [vmem:[#allocation2 + $0x1a8] sm:$0xff] %v4012
  %4077 = vst [vmem:[#allocation2 + $0x1b0] sm:$0xff] %v4013
  %4078 = vst [vmem:[#allocation2 + $0x1b8] sm:$0xff] %v4014
  %4079 = vst [vmem:[#allocation2 + $0x1c0] sm:$0xff] %v4015
  %4080 = vst [vmem:[#allocation2 + $0x1c8] sm:$0xff] %v4016
  %4081 = vst [vmem:[#allocation2 + $0x1d0] sm:$0xff] %v4017
  %4082 = vst [vmem:[#allocation2 + $0x1d8] sm:$0xff] %v4018
  %4083 = vst [vmem:[#allocation2 + $0x1e0] sm:$0xff] %v4019
  %4084 = vst [vmem:[#allocation2 + $0x1e8] sm:$0xff] %v4020
  %4085 = vst [vmem:[#allocation2 + $0x1f0] sm:$0xff] %v4021
  %4086 = vst [vmem:[#allocation2 + $0x1f8] sm:$0xff] %v4022
  // Predicated region
  $region14: #{residual_block_forward.6} parent=0 // pred_check
    %p4087 = pneg %p14
  $region15: #{residual_block_forward.6} parent=0 // pred_check_branch
    %4089 = sbr.rel (%p4087) target = $region17
  $region16: #{residual_block_forward.6} parent=0 // pred_region
    %v4090 = vld [vmem:[#allocation2] sm:$0xff]
    %v4091 = vld [vmem:[#allocation2 + $0x8] sm:$0xff]
    %v4092 = vld [vmem:[#allocation2 + $0x10] sm:$0xff]
    %v4093 = vld [vmem:[#allocation2 + $0x18] sm:$0xff]
    %v4094 = vld [vmem:[#allocation2 + $0x20] sm:$0xff]
    %v4095 = vld [vmem:[#allocation2 + $0x28] sm:$0xff]
    %v4096 = vld [vmem:[#allocation2 + $0x30] sm:$0xff]
    %v4097 = vld [vmem:[#allocation2 + $0x38] sm:$0xff]
    %v4098 = vld [vmem:[#allocation2 + $0x40] sm:$0xff]
    %v4099 = vld [vmem:[#allocation2 + $0x48] sm:$0xff]
    %v4100 = vld [vmem:[#allocation2 + $0x50] sm:$0xff]
    %v4101 = vld [vmem:[#allocation2 + $0x58] sm:$0xff]
    %v4102 = vld [vmem:[#allocation2 + $0x60] sm:$0xff]
    %v4103 = vld [vmem:[#allocation2 + $0x68] sm:$0xff]
    %v4104 = vld [vmem:[#allocation2 + $0x70] sm:$0xff]
    %v4105 = vld [vmem:[#allocation2 + $0x78] sm:$0xff]
    %v4106 = vld [vmem:[#allocation2 + $0x80] sm:$0xff]
    %v4107 = vld [vmem:[#allocation2 + $0x88] sm:$0xff]
    %v4108 = vld [vmem:[#allocation2 + $0x90] sm:$0xff]
    %v4109 = vld [vmem:[#allocation2 + $0x98] sm:$0xff]
    %v4110 = vld [vmem:[#allocation2 + $0xa0] sm:$0xff]
    %v4111 = vld [vmem:[#allocation2 + $0xa8] sm:$0xff]
    %v4112 = vld [vmem:[#allocation2 + $0xb0] sm:$0xff]
    %v4113 = vld [vmem:[#allocation2 + $0xb8] sm:$0xff]
    %v4114 = vld [vmem:[#allocation2 + $0xc0] sm:$0xff]
    %v4115 = vld [vmem:[#allocation2 + $0xc8] sm:$0xff]
    %v4116 = vld [vmem:[#allocation2 + $0xd0] sm:$0xff]
    %v4117 = vld [vmem:[#allocation2 + $0xd8] sm:$0xff]
    %v4118 = vld [vmem:[#allocation2 + $0xe0] sm:$0xff]
    %v4119 = vld [vmem:[#allocation2 + $0xe8] sm:$0xff]
    %v4120 = vld [vmem:[#allocation2 + $0xf0] sm:$0xff]
    %v4121 = vld [vmem:[#allocation2 + $0xf8] sm:$0xff]
    %v4122 = vld [vmem:[#allocation2 + $0x100] sm:$0xff]
    %v4123 = vld [vmem:[#allocation2 + $0x108] sm:$0xff]
    %v4124 = vld [vmem:[#allocation2 + $0x110] sm:$0xff]
    %v4125 = vld [vmem:[#allocation2 + $0x118] sm:$0xff]
    %v4126 = vld [vmem:[#allocation2 + $0x120] sm:$0xff]
    %v4127 = vld [vmem:[#allocation2 + $0x128] sm:$0xff]
    %v4128 = vld [vmem:[#allocation2 + $0x130] sm:$0xff]
    %v4129 = vld [vmem:[#allocation2 + $0x138] sm:$0xff]
    %v4130 = vld [vmem:[#allocation2 + $0x140] sm:$0xff]
    %v4131 = vld [vmem:[#allocation2 + $0x148] sm:$0xff]
    %v4132 = vld [vmem:[#allocation2 + $0x150] sm:$0xff]
    %v4133 = vld [vmem:[#allocation2 + $0x158] sm:$0xff]
    %v4134 = vld [vmem:[#allocation2 + $0x160] sm:$0xff]
    %v4135 = vld [vmem:[#allocation2 + $0x168] sm:$0xff]
    %v4136 = vld [vmem:[#allocation2 + $0x170] sm:$0xff]
    %v4137 = vld [vmem:[#allocation2 + $0x178] sm:$0xff]
    %v4138 = vld [vmem:[#allocation2 + $0x180] sm:$0xff]
    %v4139 = vld [vmem:[#allocation2 + $0x188] sm:$0xff]
    %v4140 = vld [vmem:[#allocation2 + $0x190] sm:$0xff]
    %v4141 = vld [vmem:[#allocation2 + $0x198] sm:$0xff]
    %v4142 = vld [vmem:[#allocation2 + $0x1a0] sm:$0xff]
    %v4143 = vld [vmem:[#allocation2 + $0x1a8] sm:$0xff]
    %v4144 = vld [vmem:[#allocation2 + $0x1b0] sm:$0xff]
    %v4145 = vld [vmem:[#allocation2 + $0x1b8] sm:$0xff]
    %v4146 = vld [vmem:[#allocation2 + $0x1c0] sm:$0xff]
    %v4147 = vld [vmem:[#allocation2 + $0x1c8] sm:$0xff]
    %v4148 = vld [vmem:[#allocation2 + $0x1d0] sm:$0xff]
    %v4149 = vld [vmem:[#allocation2 + $0x1d8] sm:$0xff]
    %v4150 = vld [vmem:[#allocation2 + $0x1e0] sm:$0xff]
    %v4151 = vld [vmem:[#allocation2 + $0x1e8] sm:$0xff]
    %v4152 = vld [vmem:[#allocation2 + $0x1f0] sm:$0xff]
    %v4153 = vld [vmem:[#allocation2 + $0x1f8] sm:$0xff]
    %v4154 = vpack.c.bf16 %v4091, %v4090
    %v4155 = vpack.c.bf16 %v4093, %v4092
    %v4156 = vpack.c.bf16 %v4095, %v4094
    %v4157 = vpack.c.bf16 %v4097, %v4096
    %v4158 = vpack.c.bf16 %v4099, %v4098
    %v4159 = vpack.c.bf16 %v4101, %v4100
    %v4160 = vpack.c.bf16 %v4103, %v4102
    %v4161 = vpack.c.bf16 %v4105, %v4104
    %v4162 = vpack.c.bf16 %v4107, %v4106
    %v4163 = vpack.c.bf16 %v4109, %v4108
    %v4164 = vpack.c.bf16 %v4111, %v4110
    %v4165 = vpack.c.bf16 %v4113, %v4112
    %v4166 = vpack.c.bf16 %v4115, %v4114
    %v4167 = vpack.c.bf16 %v4117, %v4116
    %v4168 = vpack.c.bf16 %v4119, %v4118
    %v4169 = vpack.c.bf16 %v4121, %v4120
    %v4170 = vpack.c.bf16 %v4123, %v4122
    %v4171 = vpack.c.bf16 %v4125, %v4124
    %v4172 = vpack.c.bf16 %v4127, %v4126
    %v4173 = vpack.c.bf16 %v4129, %v4128
    %v4174 = vpack.c.bf16 %v4131, %v4130
    %v4175 = vpack.c.bf16 %v4133, %v4132
    %v4176 = vpack.c.bf16 %v4135, %v4134
    %v4177 = vpack.c.bf16 %v4137, %v4136
    %v4178 = vpack.c.bf16 %v4139, %v4138
    %v4179 = vpack.c.bf16 %v4141, %v4140
    %v4180 = vpack.c.bf16 %v4143, %v4142
    %v4181 = vpack.c.bf16 %v4145, %v4144
    %v4182 = vpack.c.bf16 %v4147, %v4146
    %v4183 = vpack.c.bf16 %v4149, %v4148
    %v4184 = vpack.c.bf16 %v4151, %v4150
    %v4185 = vpack.c.bf16 %v4153, %v4152
    %v4218 = vunpack.c.l.b16 %v4154
    %v4219 = vunpack.c.h.b16 %v4154
    %v4220 = vunpack.c.l.b16 %v4155
    %v4221 = vunpack.c.h.b16 %v4155
    %v4222 = vunpack.c.l.b16 %v4156
    %v4223 = vunpack.c.h.b16 %v4156
    %v4224 = vunpack.c.l.b16 %v4157
    %v4225 = vunpack.c.h.b16 %v4157
    %v4226 = vunpack.c.l.b16 %v4158
    %v4227 = vunpack.c.h.b16 %v4158
    %v4228 = vunpack.c.l.b16 %v4159
    %v4229 = vunpack.c.h.b16 %v4159
    %v4230 = vunpack.c.l.b16 %v4160
    %v4231 = vunpack.c.h.b16 %v4160
    %v4232 = vunpack.c.l.b16 %v4161
    %v4233 = vunpack.c.h.b16 %v4161
    %v4234 = vunpack.c.l.b16 %v4162
    %v4235 = vunpack.c.h.b16 %v4162
    %v4236 = vunpack.c.l.b16 %v4163
    %v4237 = vunpack.c.h.b16 %v4163
    %v4238 = vunpack.c.l.b16 %v4164
    %v4239 = vunpack.c.h.b16 %v4164
    %v4240 = vunpack.c.l.b16 %v4165
    %v4241 = vunpack.c.h.b16 %v4165
    %v4242 = vunpack.c.l.b16 %v4166
    %v4243 = vunpack.c.h.b16 %v4166
    %v4244 = vunpack.c.l.b16 %v4167
    %v4245 = vunpack.c.h.b16 %v4167
    %v4246 = vunpack.c.l.b16 %v4168
    %v4247 = vunpack.c.h.b16 %v4168
    %v4248 = vunpack.c.l.b16 %v4169
    %v4249 = vunpack.c.h.b16 %v4169
    %v4250 = vunpack.c.l.b16 %v4170
    %v4251 = vunpack.c.h.b16 %v4170
    %v4252 = vunpack.c.l.b16 %v4171
    %v4253 = vunpack.c.h.b16 %v4171
    %v4254 = vunpack.c.l.b16 %v4172
    %v4255 = vunpack.c.h.b16 %v4172
    %v4256 = vunpack.c.l.b16 %v4173
    %v4257 = vunpack.c.h.b16 %v4173
    %v4258 = vunpack.c.l.b16 %v4174
    %v4259 = vunpack.c.h.b16 %v4174
    %v4260 = vunpack.c.l.b16 %v4175
    %v4261 = vunpack.c.h.b16 %v4175
    %v4262 = vunpack.c.l.b16 %v4176
    %v4263 = vunpack.c.h.b16 %v4176
    %v4264 = vunpack.c.l.b16 %v4177
    %v4265 = vunpack.c.h.b16 %v4177
    %v4266 = vunpack.c.l.b16 %v4178
    %v4267 = vunpack.c.h.b16 %v4178
    %v4268 = vunpack.c.l.b16 %v4179
    %v4269 = vunpack.c.h.b16 %v4179
    %v4270 = vunpack.c.l.b16 %v4180
    %v4271 = vunpack.c.h.b16 %v4180
    %v4272 = vunpack.c.l.b16 %v4181
    %v4273 = vunpack.c.h.b16 %v4181
    %v4274 = vunpack.c.l.b16 %v4182
    %v4275 = vunpack.c.h.b16 %v4182
    %v4276 = vunpack.c.l.b16 %v4183
    %v4277 = vunpack.c.h.b16 %v4183
    %v4278 = vunpack.c.l.b16 %v4184
    %v4279 = vunpack.c.h.b16 %v4184
    %v4280 = vunpack.c.l.b16 %v4185
    %v4281 = vunpack.c.h.b16 %v4185
    %v4282 = vpack.c.b16 %v4218, %v4218
    %v4283 = vpack.c.b16 %v4219, %v4219
    %v4284 = vpack.c.b16 %v4220, %v4220
    %v4285 = vpack.c.b16 %v4221, %v4221
    %v4286 = vpack.c.b16 %v4222, %v4222
    %v4287 = vpack.c.b16 %v4223, %v4223
    %v4288 = vpack.c.b16 %v4224, %v4224
    %v4289 = vpack.c.b16 %v4225, %v4225
    %v4290 = vpack.c.b16 %v4226, %v4226
    %v4291 = vpack.c.b16 %v4227, %v4227
    %v4292 = vpack.c.b16 %v4228, %v4228
    %v4293 = vpack.c.b16 %v4229, %v4229
    %v4294 = vpack.c.b16 %v4230, %v4230
    %v4295 = vpack.c.b16 %v4231, %v4231
    %v4296 = vpack.c.b16 %v4232, %v4232
    %v4297 = vpack.c.b16 %v4233, %v4233
    %v4298 = vpack.c.b16 %v4234, %v4234
    %v4299 = vpack.c.b16 %v4235, %v4235
    %v4300 = vpack.c.b16 %v4236, %v4236
    %v4301 = vpack.c.b16 %v4237, %v4237
    %v4302 = vpack.c.b16 %v4238, %v4238
    %v4303 = vpack.c.b16 %v4239, %v4239
    %v4304 = vpack.c.b16 %v4240, %v4240
    %v4305 = vpack.c.b16 %v4241, %v4241
    %v4306 = vpack.c.b16 %v4242, %v4242
    %v4307 = vpack.c.b16 %v4243, %v4243
    %v4308 = vpack.c.b16 %v4244, %v4244
    %v4309 = vpack.c.b16 %v4245, %v4245
    %v4310 = vpack.c.b16 %v4246, %v4246
    %v4311 = vpack.c.b16 %v4247, %v4247
    %v4312 = vpack.c.b16 %v4248, %v4248
    %v4313 = vpack.c.b16 %v4249, %v4249
    %v4314 = vpack.c.b16 %v4250, %v4250
    %v4315 = vpack.c.b16 %v4251, %v4251
    %v4316 = vpack.c.b16 %v4252, %v4252
    %v4317 = vpack.c.b16 %v4253, %v4253
    %v4318 = vpack.c.b16 %v4254, %v4254
    %v4319 = vpack.c.b16 %v4255, %v4255
    %v4320 = vpack.c.b16 %v4256, %v4256
    %v4321 = vpack.c.b16 %v4257, %v4257
    %v4322 = vpack.c.b16 %v4258, %v4258
    %v4323 = vpack.c.b16 %v4259, %v4259
    %v4324 = vpack.c.b16 %v4260, %v4260
    %v4325 = vpack.c.b16 %v4261, %v4261
    %v4326 = vpack.c.b16 %v4262, %v4262
    %v4327 = vpack.c.b16 %v4263, %v4263
    %v4328 = vpack.c.b16 %v4264, %v4264
    %v4329 = vpack.c.b16 %v4265, %v4265
    %v4330 = vpack.c.b16 %v4266, %v4266
    %v4331 = vpack.c.b16 %v4267, %v4267
    %v4332 = vpack.c.b16 %v4268, %v4268
    %v4333 = vpack.c.b16 %v4269, %v4269
    %v4334 = vpack.c.b16 %v4270, %v4270
    %v4335 = vpack.c.b16 %v4271, %v4271
    %v4336 = vpack.c.b16 %v4272, %v4272
    %v4337 = vpack.c.b16 %v4273, %v4273
    %v4338 = vpack.c.b16 %v4274, %v4274
    %v4339 = vpack.c.b16 %v4275, %v4275
    %v4340 = vpack.c.b16 %v4276, %v4276
    %v4341 = vpack.c.b16 %v4277, %v4277
    %v4342 = vpack.c.b16 %v4278, %v4278
    %v4343 = vpack.c.b16 %v4279, %v4279
    %v4344 = vpack.c.b16 %v4280, %v4280
    %v4345 = vpack.c.b16 %v4281, %v4281
    %4410 = vst [vmem:[%s2] sm:$0xf] %v4282
    %4411 = vst [vmem:[%s2 + $0x4] sm:$0xf] %v4283
    %4412 = vst [vmem:[%s2 + $0x8] sm:$0xf] %v4284
    %4413 = vst [vmem:[%s2 + $0xc] sm:$0xf] %v4285
    %4414 = vst [vmem:[%s2 + $0x10] sm:$0xf] %v4286
    %4415 = vst [vmem:[%s2 + $0x14] sm:$0xf] %v4287
    %4416 = vst [vmem:[%s2 + $0x18] sm:$0xf] %v4288
    %4417 = vst [vmem:[%s2 + $0x1c] sm:$0xf] %v4289
    %4418 = vst [vmem:[%s2 + $0x20] sm:$0xf] %v4290
    %4419 = vst [vmem:[%s2 + $0x24] sm:$0xf] %v4291
    %4420 = vst [vmem:[%s2 + $0x28] sm:$0xf] %v4292
    %4421 = vst [vmem:[%s2 + $0x2c] sm:$0xf] %v4293
    %4422 = vst [vmem:[%s2 + $0x30] sm:$0xf] %v4294
    %4423 = vst [vmem:[%s2 + $0x34] sm:$0xf] %v4295
    %4424 = vst [vmem:[%s2 + $0x38] sm:$0xf] %v4296
    %4425 = vst [vmem:[%s2 + $0x3c] sm:$0xf] %v4297
    %4426 = vst [vmem:[%s2 + $0x40] sm:$0xf] %v4298
    %4427 = vst [vmem:[%s2 + $0x44] sm:$0xf] %v4299
    %4428 = vst [vmem:[%s2 + $0x48] sm:$0xf] %v4300
    %4429 = vst [vmem:[%s2 + $0x4c] sm:$0xf] %v4301
    %4430 = vst [vmem:[%s2 + $0x50] sm:$0xf] %v4302
    %4431 = vst [vmem:[%s2 + $0x54] sm:$0xf] %v4303
    %4432 = vst [vmem:[%s2 + $0x58] sm:$0xf] %v4304
    %4433 = vst [vmem:[%s2 + $0x5c] sm:$0xf] %v4305
    %4434 = vst [vmem:[%s2 + $0x60] sm:$0xf] %v4306
    %4435 = vst [vmem:[%s2 + $0x64] sm:$0xf] %v4307
    %4436 = vst [vmem:[%s2 + $0x68] sm:$0xf] %v4308
    %4437 = vst [vmem:[%s2 + $0x6c] sm:$0xf] %v4309
    %4438 = vst [vmem:[%s2 + $0x70] sm:$0xf] %v4310
    %4439 = vst [vmem:[%s2 + $0x74] sm:$0xf] %v4311
    %4440 = vst [vmem:[%s2 + $0x78] sm:$0xf] %v4312
    %4441 = vst [vmem:[%s2 + $0x7c] sm:$0xf] %v4313
    %4442 = vst [vmem:[%s2 + $0x80] sm:$0xf] %v4314
    %4443 = vst [vmem:[%s2 + $0x84] sm:$0xf] %v4315
    %4444 = vst [vmem:[%s2 + $0x88] sm:$0xf] %v4316
    %4445 = vst [vmem:[%s2 + $0x8c] sm:$0xf] %v4317
    %4446 = vst [vmem:[%s2 + $0x90] sm:$0xf] %v4318
    %4447 = vst [vmem:[%s2 + $0x94] sm:$0xf] %v4319
    %4448 = vst [vmem:[%s2 + $0x98] sm:$0xf] %v4320
    %4449 = vst [vmem:[%s2 + $0x9c] sm:$0xf] %v4321
    %4450 = vst [vmem:[%s2 + $0xa0] sm:$0xf] %v4322
    %4451 = vst [vmem:[%s2 + $0xa4] sm:$0xf] %v4323
    %4452 = vst [vmem:[%s2 + $0xa8] sm:$0xf] %v4324
    %4453 = vst [vmem:[%s2 + $0xac] sm:$0xf] %v4325
    %4454 = vst [vmem:[%s2 + $0xb0] sm:$0xf] %v4326
    %4455 = vst [vmem:[%s2 + $0xb4] sm:$0xf] %v4327
    %4456 = vst [vmem:[%s2 + $0xb8] sm:$0xf] %v4328
    %4457 = vst [vmem:[%s2 + $0xbc] sm:$0xf] %v4329
    %4458 = vst [vmem:[%s2 + $0xc0] sm:$0xf] %v4330
    %4459 = vst [vmem:[%s2 + $0xc4] sm:$0xf] %v4331
    %4460 = vst [vmem:[%s2 + $0xc8] sm:$0xf] %v4332
    %4461 = vst [vmem:[%s2 + $0xcc] sm:$0xf] %v4333
    %4462 = vst [vmem:[%s2 + $0xd0] sm:$0xf] %v4334
    %4463 = vst [vmem:[%s2 + $0xd4] sm:$0xf] %v4335
    %4464 = vst [vmem:[%s2 + $0xd8] sm:$0xf] %v4336
    %4465 = vst [vmem:[%s2 + $0xdc] sm:$0xf] %v4337
    %4466 = vst [vmem:[%s2 + $0xe0] sm:$0xf] %v4338
    %4467 = vst [vmem:[%s2 + $0xe4] sm:$0xf] %v4339
    %4468 = vst [vmem:[%s2 + $0xe8] sm:$0xf] %v4340
    %4469 = vst [vmem:[%s2 + $0xec] sm:$0xf] %v4341
    %4470 = vst [vmem:[%s2 + $0xf0] sm:$0xf] %v4342
    %4471 = vst [vmem:[%s2 + $0xf4] sm:$0xf] %v4343
    %4472 = vst [vmem:[%s2 + $0xf8] sm:$0xf] %v4344
    %4473 = vst [vmem:[%s2 + $0xfc] sm:$0xf] %v4345
    %v4474 = vadd.f32 %v4090, %v4091
    %v4475 = vadd.f32 %v4474, %v4092
    %v4476 = vadd.f32 %v4475, %v4093
    %v4477 = vadd.f32 %v4476, %v4094
    %v4478 = vadd.f32 %v4477, %v4095
    %v4479 = vadd.f32 %v4478, %v4096
    %v4480 = vadd.f32 %v4479, %v4097
    %v4481 = vadd.f32 %v4480, %v4098
    %v4482 = vadd.f32 %v4481, %v4099
    %v4483 = vadd.f32 %v4482, %v4100
    %v4484 = vadd.f32 %v4483, %v4101
    %v4485 = vadd.f32 %v4484, %v4102
    %v4486 = vadd.f32 %v4485, %v4103
    %v4487 = vadd.f32 %v4486, %v4104
    %v4488 = vadd.f32 %v4487, %v4105
    %v4489 = vadd.f32 %v4488, %v4106
    %v4490 = vadd.f32 %v4489, %v4107
    %v4491 = vadd.f32 %v4490, %v4108
    %v4492 = vadd.f32 %v4491, %v4109
    %v4493 = vadd.f32 %v4492, %v4110
    %v4494 = vadd.f32 %v4493, %v4111
    %v4495 = vadd.f32 %v4494, %v4112
    %v4496 = vadd.f32 %v4495, %v4113
    %v4497 = vadd.f32 %v4496, %v4114
    %v4498 = vadd.f32 %v4497, %v4115
    %v4499 = vadd.f32 %v4498, %v4116
    %v4500 = vadd.f32 %v4499, %v4117
    %v4501 = vadd.f32 %v4500, %v4118
    %v4502 = vadd.f32 %v4501, %v4119
    %v4503 = vadd.f32 %v4502, %v4120
    %v4504 = vadd.f32 %v4503, %v4121
    %v4505 = vadd.f32 %v4504, %v4122
    %v4506 = vadd.f32 %v4505, %v4123
    %v4507 = vadd.f32 %v4506, %v4124
    %v4508 = vadd.f32 %v4507, %v4125
    %v4509 = vadd.f32 %v4508, %v4126
    %v4510 = vadd.f32 %v4509, %v4127
    %v4511 = vadd.f32 %v4510, %v4128
    %v4512 = vadd.f32 %v4511, %v4129
    %v4513 = vadd.f32 %v4512, %v4130
    %v4514 = vadd.f32 %v4513, %v4131
    %v4515 = vadd.f32 %v4514, %v4132
    %v4516 = vadd.f32 %v4515, %v4133
    %v4517 = vadd.f32 %v4516, %v4134
    %v4518 = vadd.f32 %v4517, %v4135
    %v4519 = vadd.f32 %v4518, %v4136
    %v4520 = vadd.f32 %v4519, %v4137
    %v4521 = vadd.f32 %v4520, %v4138
    %v4522 = vadd.f32 %v4521, %v4139
    %v4523 = vadd.f32 %v4522, %v4140
    %v4524 = vadd.f32 %v4523, %v4141
    %v4525 = vadd.f32 %v4524, %v4142
    %v4526 = vadd.f32 %v4525, %v4143
    %v4527 = vadd.f32 %v4526, %v4144
    %v4528 = vadd.f32 %v4527, %v4145
    %v4529 = vadd.f32 %v4528, %v4146
    %v4530 = vadd.f32 %v4529, %v4147
    %v4531 = vadd.f32 %v4530, %v4148
    %v4532 = vadd.f32 %v4531, %v4149
    %v4533 = vadd.f32 %v4532, %v4150
    %v4534 = vadd.f32 %v4533, %v4151
    %v4535 = vadd.f32 %v4534, %v4152
    %v4536 = vadd.f32 %v4535, %v4153
    %v4537 = vrot.slane %v4536, 4
    %v4538 = vadd.f32 %v4536, %v4537
    %v4539 = vrot.slane %v4538, 2
    %v4540 = vadd.f32 %v4538, %v4539
    %v4541 = vrot.slane %v4540, 1
    %v4542 = vadd.f32 %v4540, %v4541
    %4543 = vst [vmem:[%s3] sm:$0x1] %v4542
    %v4544 = vmul.f32 %v4090, %v4090
    %v4545 = vmul.f32 %v4091, %v4091
    %v4546 = vmul.f32 %v4092, %v4092
    %v4547 = vmul.f32 %v4093, %v4093
    %v4548 = vmul.f32 %v4094, %v4094
    %v4549 = vmul.f32 %v4095, %v4095
    %v4550 = vmul.f32 %v4096, %v4096
    %v4551 = vmul.f32 %v4097, %v4097
    %v4552 = vmul.f32 %v4098, %v4098
    %v4553 = vmul.f32 %v4099, %v4099
    %v4554 = vmul.f32 %v4100, %v4100
    %v4555 = vmul.f32 %v4101, %v4101
    %v4556 = vmul.f32 %v4102, %v4102
    %v4557 = vmul.f32 %v4103, %v4103
    %v4558 = vmul.f32 %v4104, %v4104
    %v4559 = vmul.f32 %v4105, %v4105
    %v4560 = vmul.f32 %v4106, %v4106
    %v4561 = vmul.f32 %v4107, %v4107
    %v4562 = vmul.f32 %v4108, %v4108
    %v4563 = vmul.f32 %v4109, %v4109
    %v4564 = vmul.f32 %v4110, %v4110
    %v4565 = vmul.f32 %v4111, %v4111
    %v4566 = vmul.f32 %v4112, %v4112
    %v4567 = vmul.f32 %v4113, %v4113
    %v4568 = vmul.f32 %v4114, %v4114
    %v4569 = vmul.f32 %v4115, %v4115
    %v4570 = vmul.f32 %v4116, %v4116
    %v4571 = vmul.f32 %v4117, %v4117
    %v4572 = vmul.f32 %v4118, %v4118
    %v4573 = vmul.f32 %v4119, %v4119
    %v4574 = vmul.f32 %v4120, %v4120
    %v4575 = vmul.f32 %v4121, %v4121
    %v4576 = vmul.f32 %v4122, %v4122
    %v4577 = vmul.f32 %v4123, %v4123
    %v4578 = vmul.f32 %v4124, %v4124
    %v4579 = vmul.f32 %v4125, %v4125
    %v4580 = vmul.f32 %v4126, %v4126
    %v4581 = vmul.f32 %v4127, %v4127
    %v4582 = vmul.f32 %v4128, %v4128
    %v4583 = vmul.f32 %v4129, %v4129
    %v4584 = vmul.f32 %v4130, %v4130
    %v4585 = vmul.f32 %v4131, %v4131
    %v4586 = vmul.f32 %v4132, %v4132
    %v4587 = vmul.f32 %v4133, %v4133
    %v4588 = vmul.f32 %v4134, %v4134
    %v4589 = vmul.f32 %v4135, %v4135
    %v4590 = vmul.f32 %v4136, %v4136
    %v4591 = vmul.f32 %v4137, %v4137
    %v4592 = vmul.f32 %v4138, %v4138
    %v4593 = vmul.f32 %v4139, %v4139
    %v4594 = vmul.f32 %v4140, %v4140
    %v4595 = vmul.f32 %v4141, %v4141
    %v4596 = vmul.f32 %v4142, %v4142
    %v4597 = vmul.f32 %v4143, %v4143
    %v4598 = vmul.f32 %v4144, %v4144
    %v4599 = vmul.f32 %v4145, %v4145
    %v4600 = vmul.f32 %v4146, %v4146
    %v4601 = vmul.f32 %v4147, %v4147
    %v4602 = vmul.f32 %v4148, %v4148
    %v4603 = vmul.f32 %v4149, %v4149
    %v4604 = vmul.f32 %v4150, %v4150
    %v4605 = vmul.f32 %v4151, %v4151
    %v4606 = vmul.f32 %v4152, %v4152
    %v4607 = vmul.f32 %v4153, %v4153
    %v4608 = vadd.f32 %v4544, %v4545
    %v4609 = vadd.f32 %v4608, %v4546
    %v4610 = vadd.f32 %v4609, %v4547
    %v4611 = vadd.f32 %v4610, %v4548
    %v4612 = vadd.f32 %v4611, %v4549
    %v4613 = vadd.f32 %v4612, %v4550
    %v4614 = vadd.f32 %v4613, %v4551
    %v4615 = vadd.f32 %v4614, %v4552
    %v4616 = vadd.f32 %v4615, %v4553
    %v4617 = vadd.f32 %v4616, %v4554
    %v4618 = vadd.f32 %v4617, %v4555
    %v4619 = vadd.f32 %v4618, %v4556
    %v4620 = vadd.f32 %v4619, %v4557
    %v4621 = vadd.f32 %v4620, %v4558
    %v4622 = vadd.f32 %v4621, %v4559
    %v4623 = vadd.f32 %v4622, %v4560
    %v4624 = vadd.f32 %v4623, %v4561
    %v4625 = vadd.f32 %v4624, %v4562
    %v4626 = vadd.f32 %v4625, %v4563
    %v4627 = vadd.f32 %v4626, %v4564
    %v4628 = vadd.f32 %v4627, %v4565
    %v4629 = vadd.f32 %v4628, %v4566
    %v4630 = vadd.f32 %v4629, %v4567
    %v4631 = vadd.f32 %v4630, %v4568
    %v4632 = vadd.f32 %v4631, %v4569
    %v4633 = vadd.f32 %v4632, %v4570
    %v4634 = vadd.f32 %v4633, %v4571
    %v4635 = vadd.f32 %v4634, %v4572
    %v4636 = vadd.f32 %v4635, %v4573
    %v4637 = vadd.f32 %v4636, %v4574
    %v4638 = vadd.f32 %v4637, %v4575
    %v4639 = vadd.f32 %v4638, %v4576
    %v4640 = vadd.f32 %v4639, %v4577
    %v4641 = vadd.f32 %v4640, %v4578
    %v4642 = vadd.f32 %v4641, %v4579
    %v4643 = vadd.f32 %v4642, %v4580
    %v4644 = vadd.f32 %v4643, %v4581
    %v4645 = vadd.f32 %v4644, %v4582
    %v4646 = vadd.f32 %v4645, %v4583
    %v4647 = vadd.f32 %v4646, %v4584
    %v4648 = vadd.f32 %v4647, %v4585
    %v4649 = vadd.f32 %v4648, %v4586
    %v4650 = vadd.f32 %v4649, %v4587
    %v4651 = vadd.f32 %v4650, %v4588
    %v4652 = vadd.f32 %v4651, %v4589
    %v4653 = vadd.f32 %v4652, %v4590
    %v4654 = vadd.f32 %v4653, %v4591
    %v4655 = vadd.f32 %v4654, %v4592
    %v4656 = vadd.f32 %v4655, %v4593
    %v4657 = vadd.f32 %v4656, %v4594
    %v4658 = vadd.f32 %v4657, %v4595
    %v4659 = vadd.f32 %v4658, %v4596
    %v4660 = vadd.f32 %v4659, %v4597
    %v4661 = vadd.f32 %v4660, %v4598
    %v4662 = vadd.f32 %v4661, %v4599
    %v4663 = vadd.f32 %v4662, %v4600
    %v4664 = vadd.f32 %v4663, %v4601
    %v4665 = vadd.f32 %v4664, %v4602
    %v4666 = vadd.f32 %v4665, %v4603
    %v4667 = vadd.f32 %v4666, %v4604
    %v4668 = vadd.f32 %v4667, %v4605
    %v4669 = vadd.f32 %v4668, %v4606
    %v4670 = vadd.f32 %v4669, %v4607
    %v4671 = vrot.slane %v4670, 4
    %v4672 = vadd.f32 %v4670, %v4671
    %v4673 = vrot.slane %v4672, 2
    %v4674 = vadd.f32 %v4672, %v4673
    %v4675 = vrot.slane %v4674, 1
    %v4676 = vadd.f32 %v4674, %v4675
    %4677 = vst [vmem:[%s3 + $0x1] sm:$0x1] %v4676
  $region17: #{residual_block_forward.6} parent=0 // pred_fallthru
    _
  // Predicated region
  $region18: #{residual_block_forward.6} parent=0 // pred_check
    _
  $region19: #{residual_block_forward.6} parent=0 // pred_check_branch
    %4679 = sbr.rel (0) target = $region21
  $region20: #{residual_block_forward.6} parent=0 // pred_region
    _
  $region21: #{residual_block_forward.6} parent=0 // pred_fallthru
    _
  // Predicated region
  $region22: #{residual_block_forward.6} parent=0 // pred_check
    _
  $region23: #{residual_block_forward.6} parent=0 // pred_check_branch
    %4681 = sbr.rel (0) target = $region25
  $region24: #{residual_block_forward.6} parent=0 // pred_region
    _
  $region25: #{residual_block_forward.6} parent=0 // pred_fallthru
    _
  // Predicated region
  $region26: #{residual_block_forward.6} parent=0 // pred_check
    _
  $region27: #{residual_block_forward.6} parent=0 // pred_check_branch
    %4683 = sbr.rel (0) target = $region29
  $region28: #{residual_block_forward.6} parent=0 // pred_region
    _
  $region29: #{residual_block_forward.6} parent=0 // pred_fallthru
    _
  // Predicated region
  $region30: #{residual_block_forward.6} parent=0 // pred_check
    _
  $region31: #{residual_block_forward.6} parent=0 // pred_check_branch
    %4685 = sbr.rel (0) target = $region33
  $region32: #{residual_block_forward.6} parent=0 // pred_region
    _
  $region33: #{residual_block_forward.6} parent=0 // pred_fallthru
    _

</llo_original>
